<compile_context>
chip_gen: v7x
topology: tpu7x:2x2x1
jax: 0.10.0
libtpu: 0.0.40
codegen_flags: <defaults>
</compile_context>

<pallas_src>
import jax
import jax.numpy as jnp
from jax.experimental import pallas as pl
from jax.experimental.pallas import tpu as pltpu

# ---------------- model config (small, synthetic stand-in for ViT-H/14) ----------------
C_IN = 3
IMG = 32
PATCH = 8
GRID = IMG // PATCH              # 4
NPATCH = GRID * GRID             # 16
SEQ = NPATCH + 1                 # 17 real tokens (cls + patches)
SEQ_PAD = 32                     # full (16,128)/(8,128) grain; pad keys masked in softmax
CPP = C_IN * PATCH * PATCH       # 192 flattened patch features
WIDTH = 64                       # ViT width (ViT-H uses 1280; scaled down)
HEADS = 4
HEAD_DIM = WIDTH // HEADS
LAYERS = 2                       # ViT-H uses 32; scaled down
EMBED = 1024                     # visual projection dim -> fc = nn.Linear(1024, 1)
HEAD_PAD = 128                   # lane-dense width for the folded score head output


# ---------------- fused ViT + score-head kernel ----------------
def _ln(x, g, b):
    # two reductions issued back-to-back (var = E[x^2] - mu^2), no mu->xc->var chain
    mu = jnp.mean(x, axis=-1, keepdims=True)
    ex2 = jnp.mean(x * x, axis=-1, keepdims=True)
    var = ex2 - mu * mu
    return (x - mu) * jax.lax.rsqrt(var + 1e-5) * g + b


def _make_vit_kernel(nb):
    """Build the fused kernel for `nb` batch elements per grid step."""
    bf = jnp.bfloat16

    def kernel(patches_ref, conv_w_ref, pos_ref, ln_pre_g_ref, ln_pre_b_ref,
               ln1_g_ref, ln1_b_ref, qkv_w_ref, qkv_b_ref, proj_w_ref, proj_b_ref,
               ln2_g_ref, ln2_b_ref, fc1_w_ref, fc1_b_ref, fc2_w_ref, fc2_b_ref,
               ln_post_g_ref, ln_post_b_ref, head_w_ref, head_b_ref,
               out_ref, av_ref):
        # ---- patch embedding over all nb*SEQ_PAD token rows at once (bf16 in, f32 acc) ----
        x = jnp.dot(patches_ref[...], conv_w_ref[...],
                    preferred_element_type=jnp.float32)
        x = x + pos_ref[...]                           # cls folded into row 0, tiled x nb
        x = _ln(x, ln_pre_g_ref[...], ln_pre_b_ref[...])

        # key-padding mask: padded key positions (>= SEQ) get a large negative bias
        key_ids = jax.lax.broadcasted_iota(jnp.int32, (SEQ_PAD, SEQ_PAD), 1)
        key_bias = jnp.where(key_ids < SEQ, 0.0, -1e30).astype(jnp.float32)

        for l in range(LAYERS):
            # --- attention: one QKV matmul over ALL rows; tiny score/AV matmuls per (n, head) ---
            h = _ln(x, ln1_g_ref[l], ln1_b_ref[l])
            qkv = jnp.dot(h.astype(bf), qkv_w_ref[l],
                          preferred_element_type=jnp.float32) + qkv_b_ref[l]   # (rows, 3W)
            # split q/k/v once and cast to bf16 once (1/sqrt(Dh) already folded into Q weights)
            q_all = qkv[:, :WIDTH].astype(bf)
            k_all = qkv[:, WIDTH:2 * WIDTH].astype(bf)
            v_all = qkv[:, 2 * WIDTH:3 * WIDTH].astype(bf)
            for n in range(nb):
                r0 = n * SEQ_PAD
                for hh in range(HEADS):
                    c0 = hh * HEAD_DIM
                    q = q_all[r0:r0 + SEQ_PAD, c0:c0 + HEAD_DIM]
                    k = k_all[r0:r0 + SEQ_PAD, c0:c0 + HEAD_DIM]
                    v = v_all[r0:r0 + SEQ_PAD, c0:c0 + HEAD_DIM]
                    s = jax.lax.dot_general(q, k, (((1,), (1,)), ((), ())),
                                            preferred_element_type=jnp.float32)
                    s = s + key_bias
                    m = jnp.max(s, axis=-1, keepdims=True)
                    p = jnp.exp(s - m)
                    p = p * pl.reciprocal(jnp.sum(p, axis=-1, keepdims=True), approx=True)
                    av = jnp.dot(p.astype(bf), v,
                                 preferred_element_type=jnp.float32)           # (32, Dh)
                    av_ref[r0:r0 + SEQ_PAD, c0:c0 + HEAD_DIM] = av
            # single merged proj matmul over all rows / all heads (K=WIDTH, not 4x K=16)
            attn = jnp.dot(av_ref[...].astype(bf), proj_w_ref[l],
                           preferred_element_type=jnp.float32)
            x = x + attn + proj_b_ref[l]

            # --- MLP over all rows ---
            h = _ln(x, ln2_g_ref[l], ln2_b_ref[l])
            h = jnp.dot(h.astype(bf), fc1_w_ref[l],
                        preferred_element_type=jnp.float32) + fc1_b_ref[l]
            # TODO(synk): open_clip's nn.GELU is exact (erf); tanh approximation used here.
            h = jax.nn.gelu(h, approximate=True)
            h = jnp.dot(h.astype(bf), fc2_w_ref[l],
                        preferred_element_type=jnp.float32) + fc2_b_ref[l]
            x = x + h

        # ---- ln_post on the cls rows only, folded (vis_proj @ fc) head (lane-dense store) ----
        cls_rows = jnp.concatenate(
            [x[n * SEQ_PAD:n * SEQ_PAD + 1, :] for n in range(nb)], axis=0)    # (nb, W)
        pooled = _ln(cls_rows, ln_post_g_ref[...], ln_post_b_ref[...])
        scores = jnp.dot(pooled.astype(bf), head_w_ref[...],
                         preferred_element_type=jnp.float32) + head_b_ref[...]  # (nb, 128)
        for n in range(nb):
            out_ref[n] = scores[n:n + 1, :]                                     # col 0 = score

    return kernel


def _choose_nb(B):
    # fold up to 8 batch elements per grid step, but keep >= 2 grid steps when the
    # batch allows it so v7x can shard the batch axis across its 2 TensorCores.
    return min(8, max(1, B // 2))


def _full_spec(arr):
    nd = arr.ndim
    return pl.BlockSpec(arr.shape, lambda b, _nd=nd: (0,) * _nd)


def _fused_vit(patches2d, weights, b_pad, nb):
    grid = b_pad // nb
    rows = nb * SEQ_PAD
    in_specs = [pl.BlockSpec((rows, CPP), lambda b: (b, 0))]
    in_specs += [_full_spec(w) for w in weights]      # weights fully VMEM-resident (tiny model)
    out = pl.pallas_call(
        _make_vit_kernel(nb),
        out_shape=jax.ShapeDtypeStruct((b_pad, 1, HEAD_PAD), jnp.float32),
        grid=(grid,),
        in_specs=in_specs,
        out_specs=pl.BlockSpec((nb, 1, HEAD_PAD), lambda b: (b, 0, 0)),
        scratch_shapes=[pltpu.VMEM((rows, WIDTH), jnp.float32)],   # per-head AV assembly
        compiler_params=pltpu.CompilerParams(
            dimension_semantics=("parallel",)),        # batch-block axis -> both TCs on v7x
    )(patches2d, *weights)
    return out


# ---------------- parameter initialization (deterministic, synthetic) ----------------
def init_params(key):
    def nrm(k, shape, scale=0.02):
        return scale * jax.random.normal(k, shape, jnp.float32)

    keys = iter(jax.random.split(key, 16 + 16 * LAYERS))
    params = {
        # Conv2d(3, WIDTH, kernel=PATCH, stride=PATCH, bias=False), flattened (C*p*p, WIDTH)
        "conv_w": nrm(next(keys), (CPP, WIDTH)),
        "cls": nrm(next(keys), (WIDTH,)),
        "pos": nrm(next(keys), (SEQ, WIDTH)),
        "ln_pre_g": jnp.ones((WIDTH,), jnp.float32),
        "ln_pre_b": jnp.zeros((WIDTH,), jnp.float32),
        "ln_post_g": jnp.ones((WIDTH,), jnp.float32),
        "ln_post_b": jnp.zeros((WIDTH,), jnp.float32),
        "vis_proj": nrm(next(keys), (WIDTH, EMBED)),      # CLIP visual projection (no bias)
        "fc_w": nrm(next(keys), (EMBED, 1)),              # nn.Linear(1024, 1) weight^T
        "fc_b": jnp.zeros((1,), jnp.float32),
        "layers": [],
    }
    for _ in range(LAYERS):
        params["layers"].append({
            "ln1_g": jnp.ones((WIDTH,), jnp.float32),
            "ln1_b": jnp.zeros((WIDTH,), jnp.float32),
            "qkv_w": nrm(next(keys), (WIDTH, 3 * WIDTH)),
            "qkv_b": jnp.zeros((3 * WIDTH,), jnp.float32),
            "proj_w": nrm(next(keys), (WIDTH, WIDTH)),
            "proj_b": jnp.zeros((WIDTH,), jnp.float32),
            "ln2_g": jnp.ones((WIDTH,), jnp.float32),
            "ln2_b": jnp.zeros((WIDTH,), jnp.float32),
            "fc1_w": nrm(next(keys), (WIDTH, 4 * WIDTH)),
            "fc1_b": jnp.zeros((4 * WIDTH,), jnp.float32),
            "fc2_w": nrm(next(keys), (4 * WIDTH, WIDTH)),
            "fc2_b": jnp.zeros((WIDTH,), jnp.float32),
        })
    return params


# ---------------- forward (mirrors hps_v2_1.forward) ----------------
def forward(params, image):
    B = image.shape[0]
    bf = jnp.bfloat16
    L = LAYERS

    nb = _choose_nb(B)
    grid = -(-B // nb)                                   # cdiv
    b_pad = grid * nb

    # --- patch extraction: NCHW -> (B, NPATCH, C*p*p), (c, ph, pw) fastest (torch conv order) ---
    p = image.reshape(B, C_IN, GRID, PATCH, GRID, PATCH)
    p = p.transpose(0, 2, 4, 1, 3, 5).reshape(B, NPATCH, CPP)
    patches = jnp.zeros((b_pad, SEQ_PAD, CPP), jnp.float32).at[:B, 1:1 + NPATCH].set(p)
    # flatten to 2D + cast to bf16 in the wrapper: halves the only per-step streamed DMA
    patches2d = patches.reshape(b_pad * SEQ_PAD, CPP).astype(bf)

    # cls token folded into row 0 of the positional table; padded rows stay zero; tiled x nb
    pos_plus = jnp.zeros((SEQ_PAD, WIDTH), jnp.float32)
    pos_plus = pos_plus.at[:SEQ].set(params["pos"])
    pos_plus = pos_plus.at[0].add(params["cls"])
    pos_tiled = jnp.tile(pos_plus, (nb, 1))

    stack = lambda name: jnp.stack([lyr[name] for lyr in params["layers"]])

    # fold 1/sqrt(head_dim) into the Q columns of qkv weight / bias (removes per-head VPU mul)
    scale = 1.0 / (HEAD_DIM ** 0.5)
    qkv_w = stack("qkv_w").at[:, :, :WIDTH].multiply(scale)
    qkv_b = stack("qkv_b").at[:, :WIDTH].multiply(scale)

    # fold vis_proj (bias-free) and fc=Linear(1024,1) into a single (WIDTH, 1) head,
    # padded to a lane-dense 128-wide output (only column 0 is used).
    w_head = params["vis_proj"] @ params["fc_w"]                          # (WIDTH, 1)
    w_head = jnp.pad(w_head, ((0, 0), (0, HEAD_PAD - 1))).astype(bf)      # (WIDTH, 128)
    b_head = jnp.pad(params["fc_b"].reshape(1, 1), ((0, 0), (0, HEAD_PAD - 1)))

    weights = (
        params["conv_w"].astype(bf),                                      # (CPP, WIDTH)
        pos_tiled,                                                        # (nb*SEQ_PAD, WIDTH)
        params["ln_pre_g"].reshape(1, WIDTH), params["ln_pre_b"].reshape(1, WIDTH),
        stack("ln1_g").reshape(L, 1, WIDTH), stack("ln1_b").reshape(L, 1, WIDTH),
        qkv_w.astype(bf),                                                 # (L, W, 3W) Q pre-scaled
        qkv_b.reshape(L, 1, 3 * WIDTH),
        stack("proj_w").astype(bf),                                       # (L, W, W)
        stack("proj_b").reshape(L, 1, WIDTH),
        stack("ln2_g").reshape(L, 1, WIDTH), stack("ln2_b").reshape(L, 1, WIDTH),
        stack("fc1_w").astype(bf),                                        # (L, W, 4W)
        stack("fc1_b").reshape(L, 1, 4 * WIDTH),
        stack("fc2_w").astype(bf),                                        # (L, 4W, W)
        stack("fc2_b").reshape(L, 1, WIDTH),
        params["ln_post_g"].reshape(1, WIDTH), params["ln_post_b"].reshape(1, WIDTH),
        w_head, b_head,
    )
    out = _fused_vit(patches2d, weights, b_pad, nb)                       # (b_pad, 1, 128)
    return out[:B, 0, :1]                                                 # (B, 1) scores


if __name__ == "__main__":
    key = jax.random.PRNGKey(0)
    params = init_params(key)
    # B=4 -> nb=2 batch elements fused per grid step, grid=2 (exercises both the batched
    # per-step path and the >=2-step requirement for v7x megacore sharding).
    image = jax.random.normal(jax.random.fold_in(key, 123), (4, C_IN, IMG, IMG), jnp.float32)

    scores = jax.jit(forward)(params, image)
    jax.block_until_ready(scores)
    assert scores.shape == (4, 1) and scores.dtype == jnp.float32
    assert bool(jnp.all(jnp.isfinite(scores)))
    print("KERNEL_OK")
</pallas_src>

<mosaic_0001>
module attributes {stable_mosaic.version = 11 : i64} {
  func.func @kernel(%arg0: i32, %arg1: memref<64x192xbf16, #tpu.memory_space<vmem>>, %arg2: memref<192x64xbf16, #tpu.memory_space<vmem>>, %arg3: memref<64x64xf32, #tpu.memory_space<vmem>>, %arg4: memref<1x64xf32, #tpu.memory_space<vmem>>, %arg5: memref<1x64xf32, #tpu.memory_space<vmem>>, %arg6: memref<2x1x64xf32, #tpu.memory_space<vmem>>, %arg7: memref<2x1x64xf32, #tpu.memory_space<vmem>>, %arg8: memref<2x64x192xbf16, #tpu.memory_space<vmem>>, %arg9: memref<2x1x192xf32, #tpu.memory_space<vmem>>, %arg10: memref<2x64x64xbf16, #tpu.memory_space<vmem>>, %arg11: memref<2x1x64xf32, #tpu.memory_space<vmem>>, %arg12: memref<2x1x64xf32, #tpu.memory_space<vmem>>, %arg13: memref<2x1x64xf32, #tpu.memory_space<vmem>>, %arg14: memref<2x64x256xbf16, #tpu.memory_space<vmem>>, %arg15: memref<2x1x256xf32, #tpu.memory_space<vmem>>, %arg16: memref<2x256x64xbf16, #tpu.memory_space<vmem>>, %arg17: memref<2x1x64xf32, #tpu.memory_space<vmem>>, %arg18: memref<1x64xf32, #tpu.memory_space<vmem>>, %arg19: memref<1x64xf32, #tpu.memory_space<vmem>>, %arg20: memref<64x128xbf16, #tpu.memory_space<vmem>>, %arg21: memref<1x128xf32, #tpu.memory_space<vmem>>, %arg22: memref<2x1x128xf32, #tpu.memory_space<vmem>>, %arg23: memref<64x64xf32, #tpu.memory_space<vmem>>) attributes {dimension_semantics = [#tpu.dimension_semantics<parallel>], iteration_bounds = array<i64: 2>, scalar_prefetch = 0 : i64, scratch_operands = 1 : i64, tpu.core_type = #tpu.core_type<tc>, window_params = [{transform_indices = @transform_0, window_bounds = array<i64: 64, 192>}, {pipeline_mode = #tpu.pipeline_mode<synchronous>, transform_indices = @transform_1, window_bounds = array<i64: 192, 64>}, {pipeline_mode = #tpu.pipeline_mode<synchronous>, transform_indices = @transform_2, window_bounds = array<i64: 64, 64>}, {pipeline_mode = #tpu.pipeline_mode<synchronous>, transform_indices = @transform_3, window_bounds = array<i64: 1, 64>}, {pipeline_mode = #tpu.pipeline_mode<synchronous>, transform_indices = @transform_4, window_bounds = array<i64: 1, 64>}, {pipeline_mode = #tpu.pipeline_mode<synchronous>, transform_indices = @transform_5, window_bounds = array<i64: 2, 1, 64>}, {pipeline_mode = #tpu.pipeline_mode<synchronous>, transform_indices = @transform_6, window_bounds = array<i64: 2, 1, 64>}, {pipeline_mode = #tpu.pipeline_mode<synchronous>, transform_indices = @transform_7, window_bounds = array<i64: 2, 64, 192>}, {pipeline_mode = #tpu.pipeline_mode<synchronous>, transform_indices = @transform_8, window_bounds = array<i64: 2, 1, 192>}, {pipeline_mode = #tpu.pipeline_mode<synchronous>, transform_indices = @transform_9, window_bounds = array<i64: 2, 64, 64>}, {pipeline_mode = #tpu.pipeline_mode<synchronous>, transform_indices = @transform_10, window_bounds = array<i64: 2, 1, 64>}, {pipeline_mode = #tpu.pipeline_mode<synchronous>, transform_indices = @transform_11, window_bounds = array<i64: 2, 1, 64>}, {pipeline_mode = #tpu.pipeline_mode<synchronous>, transform_indices = @transform_12, window_bounds = array<i64: 2, 1, 64>}, {pipeline_mode = #tpu.pipeline_mode<synchronous>, transform_indices = @transform_13, window_bounds = array<i64: 2, 64, 256>}, {pipeline_mode = #tpu.pipeline_mode<synchronous>, transform_indices = @transform_14, window_bounds = array<i64: 2, 1, 256>}, {pipeline_mode = #tpu.pipeline_mode<synchronous>, transform_indices = @transform_15, window_bounds = array<i64: 2, 256, 64>}, {pipeline_mode = #tpu.pipeline_mode<synchronous>, transform_indices = @transform_16, window_bounds = array<i64: 2, 1, 64>}, {pipeline_mode = #tpu.pipeline_mode<synchronous>, transform_indices = @transform_17, window_bounds = array<i64: 1, 64>}, {pipeline_mode = #tpu.pipeline_mode<synchronous>, transform_indices = @transform_18, window_bounds = array<i64: 1, 64>}, {pipeline_mode = #tpu.pipeline_mode<synchronous>, transform_indices = @transform_19, window_bounds = array<i64: 64, 128>}, {pipeline_mode = #tpu.pipeline_mode<synchronous>, transform_indices = @transform_20, window_bounds = array<i64: 1, 128>}, {transform_indices = @transform_21, window_bounds = array<i64: 2, 1, 128>}]} {
    %c0 = arith.constant 0 : index
    %c0_0 = arith.constant 0 : index
    %0 = vector.load %arg1[%c0, %c0_0] : memref<64x192xbf16, #tpu.memory_space<vmem>>, vector<64x192xbf16>
    %c0_1 = arith.constant 0 : index
    %c0_2 = arith.constant 0 : index
    %1 = vector.load %arg2[%c0_1, %c0_2] : memref<192x64xbf16, #tpu.memory_space<vmem>>, vector<192x64xbf16>
    %cst = arith.constant dense<0.000000e+00> : vector<64x64xf32>
    %2 = tpu.matmul %0, %1, %cst {dimension_numbers = #tpu.dot_dimension_numbers<[1], [0], [0], [1], [0, 0, 1, 1], [], []>} : vector<64x192xbf16>, vector<192x64xbf16>, vector<64x64xf32> -> vector<64x64xf32>
    %c0_3 = arith.constant 0 : index
    %c0_4 = arith.constant 0 : index
    %3 = vector.load %arg3[%c0_3, %c0_4] : memref<64x64xf32, #tpu.memory_space<vmem>>, vector<64x64xf32>
    %4 = arith.addf %2, %3 : vector<64x64xf32>
    %c0_5 = arith.constant 0 : index
    %c0_6 = arith.constant 0 : index
    %5 = vector.load %arg4[%c0_5, %c0_6] : memref<1x64xf32, #tpu.memory_space<vmem>>, vector<1x64xf32>
    %c0_7 = arith.constant 0 : index
    %c0_8 = arith.constant 0 : index
    %6 = vector.load %arg5[%c0_7, %c0_8] : memref<1x64xf32, #tpu.memory_space<vmem>>, vector<1x64xf32>
    %cst_9 = arith.constant dense<0.000000e+00> : vector<64xf32>
    %7 = vector.multi_reduction <add>, %4, %cst_9 [1] : vector<64x64xf32> to vector<64xf32>
    %8 = vector.shape_cast %7 : vector<64xf32> to vector<64x1xf32>
    %cst_10 = arith.constant 6.400000e+01 : f32
    %9 = vector.broadcast %cst_10 : f32 to vector<64x1xf32>
    %10 = arith.divf %8, %9 : vector<64x1xf32>
    %11 = arith.mulf %4, %4 : vector<64x64xf32>
    %cst_11 = arith.constant dense<0.000000e+00> : vector<64xf32>
    %12 = vector.multi_reduction <add>, %11, %cst_11 [1] : vector<64x64xf32> to vector<64xf32>
    %13 = vector.shape_cast %12 : vector<64xf32> to vector<64x1xf32>
    %cst_12 = arith.constant 6.400000e+01 : f32
    %14 = vector.broadcast %cst_12 : f32 to vector<64x1xf32>
    %15 = arith.divf %13, %14 : vector<64x1xf32>
    %16 = arith.mulf %10, %10 : vector<64x1xf32>
    %17 = arith.subf %15, %16 : vector<64x1xf32>
    %18 = vector.broadcast %10 : vector<64x1xf32> to vector<64x64xf32>
    %19 = arith.subf %4, %18 : vector<64x64xf32>
    %cst_13 = arith.constant 9.99999974E-6 : f32
    %20 = vector.broadcast %cst_13 : f32 to vector<64x1xf32>
    %21 = arith.addf %17, %20 : vector<64x1xf32>
    %22 = math.rsqrt %21 : vector<64x1xf32>
    %23 = vector.broadcast %22 : vector<64x1xf32> to vector<64x64xf32>
    %24 = arith.mulf %19, %23 : vector<64x64xf32>
    %25 = vector.broadcast %5 : vector<1x64xf32> to vector<64x64xf32>
    %26 = arith.mulf %24, %25 : vector<64x64xf32>
    %27 = vector.broadcast %6 : vector<1x64xf32> to vector<64x64xf32>
    %28 = arith.addf %26, %27 : vector<64x64xf32>
    %29 = tpu.iota {dimensions = array<i32: 1>} : vector<32x32xi32>
    %c17_i32 = arith.constant 17 : i32
    %30 = vector.broadcast %c17_i32 : i32 to vector<32x32xi32>
    %31 = arith.cmpi slt, %29, %30 : vector<32x32xi32>
    %cst_14 = arith.constant 0.000000e+00 : f32
    %cst_15 = arith.constant -1.000000e+30 : f32
    %32 = vector.broadcast %cst_14 : f32 to vector<32x32xf32>
    %33 = vector.broadcast %cst_15 : f32 to vector<32x32xf32>
    %34 = arith.select %31, %32, %33 : vector<32x32xi1>, vector<32x32xf32>
    %c0_16 = arith.constant 0 : index
    %c0_17 = arith.constant 0 : index
    %c0_18 = arith.constant 0 : index
    %35 = vector.load %arg6[%c0_16, %c0_17, %c0_18] : memref<2x1x64xf32, #tpu.memory_space<vmem>>, vector<1x1x64xf32>
    %36 = vector.shape_cast %35 : vector<1x1x64xf32> to vector<1x64xf32>
    %c0_19 = arith.constant 0 : index
    %c0_20 = arith.constant 0 : index
    %c0_21 = arith.constant 0 : index
    %37 = vector.load %arg7[%c0_19, %c0_20, %c0_21] : memref<2x1x64xf32, #tpu.memory_space<vmem>>, vector<1x1x64xf32>
    %38 = vector.shape_cast %37 : vector<1x1x64xf32> to vector<1x64xf32>
    %cst_22 = arith.constant dense<0.000000e+00> : vector<64xf32>
    %39 = vector.multi_reduction <add>, %28, %cst_22 [1] : vector<64x64xf32> to vector<64xf32>
    %40 = vector.shape_cast %39 : vector<64xf32> to vector<64x1xf32>
    %cst_23 = arith.constant 6.400000e+01 : f32
    %41 = vector.broadcast %cst_23 : f32 to vector<64x1xf32>
    %42 = arith.divf %40, %41 : vector<64x1xf32>
    %43 = arith.mulf %28, %28 : vector<64x64xf32>
    %cst_24 = arith.constant dense<0.000000e+00> : vector<64xf32>
    %44 = vector.multi_reduction <add>, %43, %cst_24 [1] : vector<64x64xf32> to vector<64xf32>
    %45 = vector.shape_cast %44 : vector<64xf32> to vector<64x1xf32>
    %cst_25 = arith.constant 6.400000e+01 : f32
    %46 = vector.broadcast %cst_25 : f32 to vector<64x1xf32>
    %47 = arith.divf %45, %46 : vector<64x1xf32>
    %48 = arith.mulf %42, %42 : vector<64x1xf32>
    %49 = arith.subf %47, %48 : vector<64x1xf32>
    %50 = vector.broadcast %42 : vector<64x1xf32> to vector<64x64xf32>
    %51 = arith.subf %28, %50 : vector<64x64xf32>
    %cst_26 = arith.constant 9.99999974E-6 : f32
    %52 = vector.broadcast %cst_26 : f32 to vector<64x1xf32>
    %53 = arith.addf %49, %52 : vector<64x1xf32>
    %54 = math.rsqrt %53 : vector<64x1xf32>
    %55 = vector.broadcast %54 : vector<64x1xf32> to vector<64x64xf32>
    %56 = arith.mulf %51, %55 : vector<64x64xf32>
    %57 = vector.broadcast %36 : vector<1x64xf32> to vector<64x64xf32>
    %58 = arith.mulf %56, %57 : vector<64x64xf32>
    %59 = vector.broadcast %38 : vector<1x64xf32> to vector<64x64xf32>
    %60 = arith.addf %58, %59 : vector<64x64xf32>
    %61 = arith.truncf %60 : vector<64x64xf32> to vector<64x64xbf16>
    %c0_27 = arith.constant 0 : index
    %c0_28 = arith.constant 0 : index
    %c0_29 = arith.constant 0 : index
    %62 = vector.load %arg8[%c0_27, %c0_28, %c0_29] : memref<2x64x192xbf16, #tpu.memory_space<vmem>>, vector<1x64x192xbf16>
    %63 = vector.shape_cast %62 : vector<1x64x192xbf16> to vector<64x192xbf16>
    %cst_30 = arith.constant dense<0.000000e+00> : vector<64x192xf32>
    %64 = tpu.matmul %61, %63, %cst_30 {dimension_numbers = #tpu.dot_dimension_numbers<[1], [0], [0], [1], [0, 0, 1, 1], [], []>} : vector<64x64xbf16>, vector<64x192xbf16>, vector<64x192xf32> -> vector<64x192xf32>
    %c0_31 = arith.constant 0 : index
    %c0_32 = arith.constant 0 : index
    %c0_33 = arith.constant 0 : index
    %65 = vector.load %arg9[%c0_31, %c0_32, %c0_33] : memref<2x1x192xf32, #tpu.memory_space<vmem>>, vector<1x1x192xf32>
    %66 = vector.shape_cast %65 : vector<1x1x192xf32> to vector<1x192xf32>
    %67 = vector.broadcast %66 : vector<1x192xf32> to vector<64x192xf32>
    %68 = arith.addf %64, %67 : vector<64x192xf32>
    %69 = vector.extract_strided_slice %68 {offsets = [0, 0], sizes = [64, 64], strides = [1, 1]} : vector<64x192xf32> to vector<64x64xf32>
    %70 = arith.truncf %69 : vector<64x64xf32> to vector<64x64xbf16>
    %71 = vector.extract_strided_slice %68 {offsets = [0, 64], sizes = [64, 64], strides = [1, 1]} : vector<64x192xf32> to vector<64x64xf32>
    %72 = arith.truncf %71 : vector<64x64xf32> to vector<64x64xbf16>
    %73 = vector.extract_strided_slice %68 {offsets = [0, 128], sizes = [64, 64], strides = [1, 1]} : vector<64x192xf32> to vector<64x64xf32>
    %74 = arith.truncf %73 : vector<64x64xf32> to vector<64x64xbf16>
    %75 = vector.extract_strided_slice %70 {offsets = [0, 0], sizes = [32, 16], strides = [1, 1]} : vector<64x64xbf16> to vector<32x16xbf16>
    %76 = vector.extract_strided_slice %72 {offsets = [0, 0], sizes = [32, 16], strides = [1, 1]} : vector<64x64xbf16> to vector<32x16xbf16>
    %77 = vector.extract_strided_slice %74 {offsets = [0, 0], sizes = [32, 16], strides = [1, 1]} : vector<64x64xbf16> to vector<32x16xbf16>
    %cst_34 = arith.constant dense<0.000000e+00> : vector<32x32xf32>
    %78 = tpu.matmul %75, %76, %cst_34 {dimension_numbers = #tpu.dot_dimension_numbers<[1], [1], [0], [0], [0, 0, 1, 0], [], []>} : vector<32x16xbf16>, vector<32x16xbf16>, vector<32x32xf32> -> vector<32x32xf32>
    %79 = arith.addf %78, %34 : vector<32x32xf32>
    %cst_35 = arith.constant dense<0xFF800000> : vector<32xf32>
    %80 = vector.multi_reduction <maximumf>, %79, %cst_35 [1] : vector<32x32xf32> to vector<32xf32>
    %81 = vector.shape_cast %80 : vector<32xf32> to vector<32x1xf32>
    %82 = vector.broadcast %81 : vector<32x1xf32> to vector<32x32xf32>
    %83 = arith.subf %79, %82 : vector<32x32xf32>
    %84 = math.exp %83 : vector<32x32xf32>
    %cst_36 = arith.constant dense<0.000000e+00> : vector<32xf32>
    %85 = vector.multi_reduction <add>, %84, %cst_36 [1] : vector<32x32xf32> to vector<32xf32>
    %86 = vector.shape_cast %85 : vector<32xf32> to vector<32x1xf32>
    %87 = tpu.reciprocal %86 {approx = true} : vector<32x1xf32> -> vector<32x1xf32>
    %88 = vector.broadcast %87 : vector<32x1xf32> to vector<32x32xf32>
    %89 = arith.mulf %84, %88 : vector<32x32xf32>
    %90 = arith.truncf %89 : vector<32x32xf32> to vector<32x32xbf16>
    %cst_37 = arith.constant dense<0.000000e+00> : vector<32x16xf32>
    %91 = tpu.matmul %90, %77, %cst_37 {dimension_numbers = #tpu.dot_dimension_numbers<[1], [0], [0], [1], [0, 0, 1, 1], [], []>} : vector<32x32xbf16>, vector<32x16xbf16>, vector<32x16xf32> -> vector<32x16xf32>
    %c0_38 = arith.constant 0 : index
    %c0_39 = arith.constant 0 : index
    %92 = vector.load %arg23[%c0_38, %c0_39] : memref<64x64xf32, #tpu.memory_space<vmem>>, vector<32x16xf32>
    tpu.vector_store %arg23[%c0_38, %c0_39], %91 {strides = array<i32>} : memref<64x64xf32, #tpu.memory_space<vmem>>, vector<32x16xf32>,
    %93 = vector.extract_strided_slice %70 {offsets = [0, 16], sizes = [32, 16], strides = [1, 1]} : vector<64x64xbf16> to vector<32x16xbf16>
    %94 = vector.extract_strided_slice %72 {offsets = [0, 16], sizes = [32, 16], strides = [1, 1]} : vector<64x64xbf16> to vector<32x16xbf16>
    %95 = vector.extract_strided_slice %74 {offsets = [0, 16], sizes = [32, 16], strides = [1, 1]} : vector<64x64xbf16> to vector<32x16xbf16>
    %cst_40 = arith.constant dense<0.000000e+00> : vector<32x32xf32>
    %96 = tpu.matmul %93, %94, %cst_40 {dimension_numbers = #tpu.dot_dimension_numbers<[1], [1], [0], [0], [0, 0, 1, 0], [], []>} : vector<32x16xbf16>, vector<32x16xbf16>, vector<32x32xf32> -> vector<32x32xf32>
    %97 = arith.addf %96, %34 : vector<32x32xf32>
    %cst_41 = arith.constant dense<0xFF800000> : vector<32xf32>
    %98 = vector.multi_reduction <maximumf>, %97, %cst_41 [1] : vector<32x32xf32> to vector<32xf32>
    %99 = vector.shape_cast %98 : vector<32xf32> to vector<32x1xf32>
    %100 = vector.broadcast %99 : vector<32x1xf32> to vector<32x32xf32>
    %101 = arith.subf %97, %100 : vector<32x32xf32>
    %102 = math.exp %101 : vector<32x32xf32>
    %cst_42 = arith.constant dense<0.000000e+00> : vector<32xf32>
    %103 = vector.multi_reduction <add>, %102, %cst_42 [1] : vector<32x32xf32> to vector<32xf32>
    %104 = vector.shape_cast %103 : vector<32xf32> to vector<32x1xf32>
    %105 = tpu.reciprocal %104 {approx = true} : vector<32x1xf32> -> vector<32x1xf32>
    %106 = vector.broadcast %105 : vector<32x1xf32> to vector<32x32xf32>
    %107 = arith.mulf %102, %106 : vector<32x32xf32>
    %108 = arith.truncf %107 : vector<32x32xf32> to vector<32x32xbf16>
    %cst_43 = arith.constant dense<0.000000e+00> : vector<32x16xf32>
    %109 = tpu.matmul %108, %95, %cst_43 {dimension_numbers = #tpu.dot_dimension_numbers<[1], [0], [0], [1], [0, 0, 1, 1], [], []>} : vector<32x32xbf16>, vector<32x16xbf16>, vector<32x16xf32> -> vector<32x16xf32>
    %c0_44 = arith.constant 0 : index
    %c16 = arith.constant 16 : index
    %110 = vector.load %arg23[%c0_44, %c16] : memref<64x64xf32, #tpu.memory_space<vmem>>, vector<32x16xf32>
    tpu.vector_store %arg23[%c0_44, %c16], %109 {strides = array<i32>} : memref<64x64xf32, #tpu.memory_space<vmem>>, vector<32x16xf32>,
    %111 = vector.extract_strided_slice %70 {offsets = [0, 32], sizes = [32, 16], strides = [1, 1]} : vector<64x64xbf16> to vector<32x16xbf16>
    %112 = vector.extract_strided_slice %72 {offsets = [0, 32], sizes = [32, 16], strides = [1, 1]} : vector<64x64xbf16> to vector<32x16xbf16>
    %113 = vector.extract_strided_slice %74 {offsets = [0, 32], sizes = [32, 16], strides = [1, 1]} : vector<64x64xbf16> to vector<32x16xbf16>
    %cst_45 = arith.constant dense<0.000000e+00> : vector<32x32xf32>
    %114 = tpu.matmul %111, %112, %cst_45 {dimension_numbers = #tpu.dot_dimension_numbers<[1], [1], [0], [0], [0, 0, 1, 0], [], []>} : vector<32x16xbf16>, vector<32x16xbf16>, vector<32x32xf32> -> vector<32x32xf32>
    %115 = arith.addf %114, %34 : vector<32x32xf32>
    %cst_46 = arith.constant dense<0xFF800000> : vector<32xf32>
    %116 = vector.multi_reduction <maximumf>, %115, %cst_46 [1] : vector<32x32xf32> to vector<32xf32>
    %117 = vector.shape_cast %116 : vector<32xf32> to vector<32x1xf32>
    %118 = vector.broadcast %117 : vector<32x1xf32> to vector<32x32xf32>
    %119 = arith.subf %115, %118 : vector<32x32xf32>
    %120 = math.exp %119 : vector<32x32xf32>
    %cst_47 = arith.constant dense<0.000000e+00> : vector<32xf32>
    %121 = vector.multi_reduction <add>, %120, %cst_47 [1] : vector<32x32xf32> to vector<32xf32>
    %122 = vector.shape_cast %121 : vector<32xf32> to vector<32x1xf32>
    %123 = tpu.reciprocal %122 {approx = true} : vector<32x1xf32> -> vector<32x1xf32>
    %124 = vector.broadcast %123 : vector<32x1xf32> to vector<32x32xf32>
    %125 = arith.mulf %120, %124 : vector<32x32xf32>
    %126 = arith.truncf %125 : vector<32x32xf32> to vector<32x32xbf16>
    %cst_48 = arith.constant dense<0.000000e+00> : vector<32x16xf32>
    %127 = tpu.matmul %126, %113, %cst_48 {dimension_numbers = #tpu.dot_dimension_numbers<[1], [0], [0], [1], [0, 0, 1, 1], [], []>} : vector<32x32xbf16>, vector<32x16xbf16>, vector<32x16xf32> -> vector<32x16xf32>
    %c0_49 = arith.constant 0 : index
    %c32 = arith.constant 32 : index
    %128 = vector.load %arg23[%c0_49, %c32] : memref<64x64xf32, #tpu.memory_space<vmem>>, vector<32x16xf32>
    tpu.vector_store %arg23[%c0_49, %c32], %127 {strides = array<i32>} : memref<64x64xf32, #tpu.memory_space<vmem>>, vector<32x16xf32>,
    %129 = vector.extract_strided_slice %70 {offsets = [0, 48], sizes = [32, 16], strides = [1, 1]} : vector<64x64xbf16> to vector<32x16xbf16>
    %130 = vector.extract_strided_slice %72 {offsets = [0, 48], sizes = [32, 16], strides = [1, 1]} : vector<64x64xbf16> to vector<32x16xbf16>
    %131 = vector.extract_strided_slice %74 {offsets = [0, 48], sizes = [32, 16], strides = [1, 1]} : vector<64x64xbf16> to vector<32x16xbf16>
    %cst_50 = arith.constant dense<0.000000e+00> : vector<32x32xf32>
    %132 = tpu.matmul %129, %130, %cst_50 {dimension_numbers = #tpu.dot_dimension_numbers<[1], [1], [0], [0], [0, 0, 1, 0], [], []>} : vector<32x16xbf16>, vector<32x16xbf16>, vector<32x32xf32> -> vector<32x32xf32>
    %133 = arith.addf %132, %34 : vector<32x32xf32>
    %cst_51 = arith.constant dense<0xFF800000> : vector<32xf32>
    %134 = vector.multi_reduction <maximumf>, %133, %cst_51 [1] : vector<32x32xf32> to vector<32xf32>
    %135 = vector.shape_cast %134 : vector<32xf32> to vector<32x1xf32>
    %136 = vector.broadcast %135 : vector<32x1xf32> to vector<32x32xf32>
    %137 = arith.subf %133, %136 : vector<32x32xf32>
    %138 = math.exp %137 : vector<32x32xf32>
    %cst_52 = arith.constant dense<0.000000e+00> : vector<32xf32>
    %139 = vector.multi_reduction <add>, %138, %cst_52 [1] : vector<32x32xf32> to vector<32xf32>
    %140 = vector.shape_cast %139 : vector<32xf32> to vector<32x1xf32>
    %141 = tpu.reciprocal %140 {approx = true} : vector<32x1xf32> -> vector<32x1xf32>
    %142 = vector.broadcast %141 : vector<32x1xf32> to vector<32x32xf32>
    %143 = arith.mulf %138, %142 : vector<32x32xf32>
    %144 = arith.truncf %143 : vector<32x32xf32> to vector<32x32xbf16>
    %cst_53 = arith.constant dense<0.000000e+00> : vector<32x16xf32>
    %145 = tpu.matmul %144, %131, %cst_53 {dimension_numbers = #tpu.dot_dimension_numbers<[1], [0], [0], [1], [0, 0, 1, 1], [], []>} : vector<32x32xbf16>, vector<32x16xbf16>, vector<32x16xf32> -> vector<32x16xf32>
    %c0_54 = arith.constant 0 : index
    %c48 = arith.constant 48 : index
    %146 = vector.load %arg23[%c0_54, %c48] : memref<64x64xf32, #tpu.memory_space<vmem>>, vector<32x16xf32>
    tpu.vector_store %arg23[%c0_54, %c48], %145 {strides = array<i32>} : memref<64x64xf32, #tpu.memory_space<vmem>>, vector<32x16xf32>,
    %147 = vector.extract_strided_slice %70 {offsets = [32, 0], sizes = [32, 16], strides = [1, 1]} : vector<64x64xbf16> to vector<32x16xbf16>
    %148 = vector.extract_strided_slice %72 {offsets = [32, 0], sizes = [32, 16], strides = [1, 1]} : vector<64x64xbf16> to vector<32x16xbf16>
    %149 = vector.extract_strided_slice %74 {offsets = [32, 0], sizes = [32, 16], strides = [1, 1]} : vector<64x64xbf16> to vector<32x16xbf16>
    %cst_55 = arith.constant dense<0.000000e+00> : vector<32x32xf32>
    %150 = tpu.matmul %147, %148, %cst_55 {dimension_numbers = #tpu.dot_dimension_numbers<[1], [1], [0], [0], [0, 0, 1, 0], [], []>} : vector<32x16xbf16>, vector<32x16xbf16>, vector<32x32xf32> -> vector<32x32xf32>
    %151 = arith.addf %150, %34 : vector<32x32xf32>
    %cst_56 = arith.constant dense<0xFF800000> : vector<32xf32>
    %152 = vector.multi_reduction <maximumf>, %151, %cst_56 [1] : vector<32x32xf32> to vector<32xf32>
    %153 = vector.shape_cast %152 : vector<32xf32> to vector<32x1xf32>
    %154 = vector.broadcast %153 : vector<32x1xf32> to vector<32x32xf32>
    %155 = arith.subf %151, %154 : vector<32x32xf32>
    %156 = math.exp %155 : vector<32x32xf32>
    %cst_57 = arith.constant dense<0.000000e+00> : vector<32xf32>
    %157 = vector.multi_reduction <add>, %156, %cst_57 [1] : vector<32x32xf32> to vector<32xf32>
    %158 = vector.shape_cast %157 : vector<32xf32> to vector<32x1xf32>
    %159 = tpu.reciprocal %158 {approx = true} : vector<32x1xf32> -> vector<32x1xf32>
    %160 = vector.broadcast %159 : vector<32x1xf32> to vector<32x32xf32>
    %161 = arith.mulf %156, %160 : vector<32x32xf32>
    %162 = arith.truncf %161 : vector<32x32xf32> to vector<32x32xbf16>
    %cst_58 = arith.constant dense<0.000000e+00> : vector<32x16xf32>
    %163 = tpu.matmul %162, %149, %cst_58 {dimension_numbers = #tpu.dot_dimension_numbers<[1], [0], [0], [1], [0, 0, 1, 1], [], []>} : vector<32x32xbf16>, vector<32x16xbf16>, vector<32x16xf32> -> vector<32x16xf32>
    %c32_59 = arith.constant 32 : index
    %c0_60 = arith.constant 0 : index
    %164 = vector.load %arg23[%c32_59, %c0_60] : memref<64x64xf32, #tpu.memory_space<vmem>>, vector<32x16xf32>
    tpu.vector_store %arg23[%c32_59, %c0_60], %163 {strides = array<i32>} : memref<64x64xf32, #tpu.memory_space<vmem>>, vector<32x16xf32>,
    %165 = vector.extract_strided_slice %70 {offsets = [32, 16], sizes = [32, 16], strides = [1, 1]} : vector<64x64xbf16> to vector<32x16xbf16>
    %166 = vector.extract_strided_slice %72 {offsets = [32, 16], sizes = [32, 16], strides = [1, 1]} : vector<64x64xbf16> to vector<32x16xbf16>
    %167 = vector.extract_strided_slice %74 {offsets = [32, 16], sizes = [32, 16], strides = [1, 1]} : vector<64x64xbf16> to vector<32x16xbf16>
    %cst_61 = arith.constant dense<0.000000e+00> : vector<32x32xf32>
    %168 = tpu.matmul %165, %166, %cst_61 {dimension_numbers = #tpu.dot_dimension_numbers<[1], [1], [0], [0], [0, 0, 1, 0], [], []>} : vector<32x16xbf16>, vector<32x16xbf16>, vector<32x32xf32> -> vector<32x32xf32>
    %169 = arith.addf %168, %34 : vector<32x32xf32>
    %cst_62 = arith.constant dense<0xFF800000> : vector<32xf32>
    %170 = vector.multi_reduction <maximumf>, %169, %cst_62 [1] : vector<32x32xf32> to vector<32xf32>
    %171 = vector.shape_cast %170 : vector<32xf32> to vector<32x1xf32>
    %172 = vector.broadcast %171 : vector<32x1xf32> to vector<32x32xf32>
    %173 = arith.subf %169, %172 : vector<32x32xf32>
    %174 = math.exp %173 : vector<32x32xf32>
    %cst_63 = arith.constant dense<0.000000e+00> : vector<32xf32>
    %175 = vector.multi_reduction <add>, %174, %cst_63 [1] : vector<32x32xf32> to vector<32xf32>
    %176 = vector.shape_cast %175 : vector<32xf32> to vector<32x1xf32>
    %177 = tpu.reciprocal %176 {approx = true} : vector<32x1xf32> -> vector<32x1xf32>
    %178 = vector.broadcast %177 : vector<32x1xf32> to vector<32x32xf32>
    %179 = arith.mulf %174, %178 : vector<32x32xf32>
    %180 = arith.truncf %179 : vector<32x32xf32> to vector<32x32xbf16>
    %cst_64 = arith.constant dense<0.000000e+00> : vector<32x16xf32>
    %181 = tpu.matmul %180, %167, %cst_64 {dimension_numbers = #tpu.dot_dimension_numbers<[1], [0], [0], [1], [0, 0, 1, 1], [], []>} : vector<32x32xbf16>, vector<32x16xbf16>, vector<32x16xf32> -> vector<32x16xf32>
    %c32_65 = arith.constant 32 : index
    %c16_66 = arith.constant 16 : index
    %182 = vector.load %arg23[%c32_65, %c16_66] : memref<64x64xf32, #tpu.memory_space<vmem>>, vector<32x16xf32>
    tpu.vector_store %arg23[%c32_65, %c16_66], %181 {strides = array<i32>} : memref<64x64xf32, #tpu.memory_space<vmem>>, vector<32x16xf32>,
    %183 = vector.extract_strided_slice %70 {offsets = [32, 32], sizes = [32, 16], strides = [1, 1]} : vector<64x64xbf16> to vector<32x16xbf16>
    %184 = vector.extract_strided_slice %72 {offsets = [32, 32], sizes = [32, 16], strides = [1, 1]} : vector<64x64xbf16> to vector<32x16xbf16>
    %185 = vector.extract_strided_slice %74 {offsets = [32, 32], sizes = [32, 16], strides = [1, 1]} : vector<64x64xbf16> to vector<32x16xbf16>
    %cst_67 = arith.constant dense<0.000000e+00> : vector<32x32xf32>
    %186 = tpu.matmul %183, %184, %cst_67 {dimension_numbers = #tpu.dot_dimension_numbers<[1], [1], [0], [0], [0, 0, 1, 0], [], []>} : vector<32x16xbf16>, vector<32x16xbf16>, vector<32x32xf32> -> vector<32x32xf32>
    %187 = arith.addf %186, %34 : vector<32x32xf32>
    %cst_68 = arith.constant dense<0xFF800000> : vector<32xf32>
    %188 = vector.multi_reduction <maximumf>, %187, %cst_68 [1] : vector<32x32xf32> to vector<32xf32>
    %189 = vector.shape_cast %188 : vector<32xf32> to vector<32x1xf32>
    %190 = vector.broadcast %189 : vector<32x1xf32> to vector<32x32xf32>
    %191 = arith.subf %187, %190 : vector<32x32xf32>
    %192 = math.exp %191 : vector<32x32xf32>
    %cst_69 = arith.constant dense<0.000000e+00> : vector<32xf32>
    %193 = vector.multi_reduction <add>, %192, %cst_69 [1] : vector<32x32xf32> to vector<32xf32>
    %194 = vector.shape_cast %193 : vector<32xf32> to vector<32x1xf32>
    %195 = tpu.reciprocal %194 {approx = true} : vector<32x1xf32> -> vector<32x1xf32>
    %196 = vector.broadcast %195 : vector<32x1xf32> to vector<32x32xf32>
    %197 = arith.mulf %192, %196 : vector<32x32xf32>
    %198 = arith.truncf %197 : vector<32x32xf32> to vector<32x32xbf16>
    %cst_70 = arith.constant dense<0.000000e+00> : vector<32x16xf32>
    %199 = tpu.matmul %198, %185, %cst_70 {dimension_numbers = #tpu.dot_dimension_numbers<[1], [0], [0], [1], [0, 0, 1, 1], [], []>} : vector<32x32xbf16>, vector<32x16xbf16>, vector<32x16xf32> -> vector<32x16xf32>
    %c32_71 = arith.constant 32 : index
    %c32_72 = arith.constant 32 : index
    %200 = vector.load %arg23[%c32_71, %c32_72] : memref<64x64xf32, #tpu.memory_space<vmem>>, vector<32x16xf32>
    tpu.vector_store %arg23[%c32_71, %c32_72], %199 {strides = array<i32>} : memref<64x64xf32, #tpu.memory_space<vmem>>, vector<32x16xf32>,
    %201 = vector.extract_strided_slice %70 {offsets = [32, 48], sizes = [32, 16], strides = [1, 1]} : vector<64x64xbf16> to vector<32x16xbf16>
    %202 = vector.extract_strided_slice %72 {offsets = [32, 48], sizes = [32, 16], strides = [1, 1]} : vector<64x64xbf16> to vector<32x16xbf16>
    %203 = vector.extract_strided_slice %74 {offsets = [32, 48], sizes = [32, 16], strides = [1, 1]} : vector<64x64xbf16> to vector<32x16xbf16>
    %cst_73 = arith.constant dense<0.000000e+00> : vector<32x32xf32>
    %204 = tpu.matmul %201, %202, %cst_73 {dimension_numbers = #tpu.dot_dimension_numbers<[1], [1], [0], [0], [0, 0, 1, 0], [], []>} : vector<32x16xbf16>, vector<32x16xbf16>, vector<32x32xf32> -> vector<32x32xf32>
    %205 = arith.addf %204, %34 : vector<32x32xf32>
    %cst_74 = arith.constant dense<0xFF800000> : vector<32xf32>
    %206 = vector.multi_reduction <maximumf>, %205, %cst_74 [1] : vector<32x32xf32> to vector<32xf32>
    %207 = vector.shape_cast %206 : vector<32xf32> to vector<32x1xf32>
    %208 = vector.broadcast %207 : vector<32x1xf32> to vector<32x32xf32>
    %209 = arith.subf %205, %208 : vector<32x32xf32>
    %210 = math.exp %209 : vector<32x32xf32>
    %cst_75 = arith.constant dense<0.000000e+00> : vector<32xf32>
    %211 = vector.multi_reduction <add>, %210, %cst_75 [1] : vector<32x32xf32> to vector<32xf32>
    %212 = vector.shape_cast %211 : vector<32xf32> to vector<32x1xf32>
    %213 = tpu.reciprocal %212 {approx = true} : vector<32x1xf32> -> vector<32x1xf32>
    %214 = vector.broadcast %213 : vector<32x1xf32> to vector<32x32xf32>
    %215 = arith.mulf %210, %214 : vector<32x32xf32>
    %216 = arith.truncf %215 : vector<32x32xf32> to vector<32x32xbf16>
    %cst_76 = arith.constant dense<0.000000e+00> : vector<32x16xf32>
    %217 = tpu.matmul %216, %203, %cst_76 {dimension_numbers = #tpu.dot_dimension_numbers<[1], [0], [0], [1], [0, 0, 1, 1], [], []>} : vector<32x32xbf16>, vector<32x16xbf16>, vector<32x16xf32> -> vector<32x16xf32>
    %c32_77 = arith.constant 32 : index
    %c48_78 = arith.constant 48 : index
    %218 = vector.load %arg23[%c32_77, %c48_78] : memref<64x64xf32, #tpu.memory_space<vmem>>, vector<32x16xf32>
    tpu.vector_store %arg23[%c32_77, %c48_78], %217 {strides = array<i32>} : memref<64x64xf32, #tpu.memory_space<vmem>>, vector<32x16xf32>,
    %c0_79 = arith.constant 0 : index
    %c0_80 = arith.constant 0 : index
    %219 = vector.load %arg23[%c0_79, %c0_80] : memref<64x64xf32, #tpu.memory_space<vmem>>, vector<64x64xf32>
    %220 = arith.truncf %219 : vector<64x64xf32> to vector<64x64xbf16>
    %c0_81 = arith.constant 0 : index
    %c0_82 = arith.constant 0 : index
    %c0_83 = arith.constant 0 : index
    %221 = vector.load %arg10[%c0_81, %c0_82, %c0_83] : memref<2x64x64xbf16, #tpu.memory_space<vmem>>, vector<1x64x64xbf16>
    %222 = vector.shape_cast %221 : vector<1x64x64xbf16> to vector<64x64xbf16>
    %cst_84 = arith.constant dense<0.000000e+00> : vector<64x64xf32>
    %223 = tpu.matmul %220, %222, %cst_84 {dimension_numbers = #tpu.dot_dimension_numbers<[1], [0], [0], [1], [0, 0, 1, 1], [], []>} : vector<64x64xbf16>, vector<64x64xbf16>, vector<64x64xf32> -> vector<64x64xf32>
    %224 = arith.addf %28, %223 : vector<64x64xf32>
    %c0_85 = arith.constant 0 : index
    %c0_86 = arith.constant 0 : index
    %c0_87 = arith.constant 0 : index
    %225 = vector.load %arg11[%c0_85, %c0_86, %c0_87] : memref<2x1x64xf32, #tpu.memory_space<vmem>>, vector<1x1x64xf32>
    %226 = vector.shape_cast %225 : vector<1x1x64xf32> to vector<1x64xf32>
    %227 = vector.broadcast %226 : vector<1x64xf32> to vector<64x64xf32>
    %228 = arith.addf %224, %227 : vector<64x64xf32>
    %c0_88 = arith.constant 0 : index
    %c0_89 = arith.constant 0 : index
    %c0_90 = arith.constant 0 : index
    %229 = vector.load %arg12[%c0_88, %c0_89, %c0_90] : memref<2x1x64xf32, #tpu.memory_space<vmem>>, vector<1x1x64xf32>
    %230 = vector.shape_cast %229 : vector<1x1x64xf32> to vector<1x64xf32>
    %c0_91 = arith.constant 0 : index
    %c0_92 = arith.constant 0 : index
    %c0_93 = arith.constant 0 : index
    %231 = vector.load %arg13[%c0_91, %c0_92, %c0_93] : memref<2x1x64xf32, #tpu.memory_space<vmem>>, vector<1x1x64xf32>
    %232 = vector.shape_cast %231 : vector<1x1x64xf32> to vector<1x64xf32>
    %cst_94 = arith.constant dense<0.000000e+00> : vector<64xf32>
    %233 = vector.multi_reduction <add>, %228, %cst_94 [1] : vector<64x64xf32> to vector<64xf32>
    %234 = vector.shape_cast %233 : vector<64xf32> to vector<64x1xf32>
    %cst_95 = arith.constant 6.400000e+01 : f32
    %235 = vector.broadcast %cst_95 : f32 to vector<64x1xf32>
    %236 = arith.divf %234, %235 : vector<64x1xf32>
    %237 = arith.mulf %228, %228 : vector<64x64xf32>
    %cst_96 = arith.constant dense<0.000000e+00> : vector<64xf32>
    %238 = vector.multi_reduction <add>, %237, %cst_96 [1] : vector<64x64xf32> to vector<64xf32>
    %239 = vector.shape_cast %238 : vector<64xf32> to vector<64x1xf32>
    %cst_97 = arith.constant 6.400000e+01 : f32
    %240 = vector.broadcast %cst_97 : f32 to vector<64x1xf32>
    %241 = arith.divf %239, %240 : vector<64x1xf32>
    %242 = arith.mulf %236, %236 : vector<64x1xf32>
    %243 = arith.subf %241, %242 : vector<64x1xf32>
    %244 = vector.broadcast %236 : vector<64x1xf32> to vector<64x64xf32>
    %245 = arith.subf %228, %244 : vector<64x64xf32>
    %cst_98 = arith.constant 9.99999974E-6 : f32
    %246 = vector.broadcast %cst_98 : f32 to vector<64x1xf32>
    %247 = arith.addf %243, %246 : vector<64x1xf32>
    %248 = math.rsqrt %247 : vector<64x1xf32>
    %249 = vector.broadcast %248 : vector<64x1xf32> to vector<64x64xf32>
    %250 = arith.mulf %245, %249 : vector<64x64xf32>
    %251 = vector.broadcast %230 : vector<1x64xf32> to vector<64x64xf32>
    %252 = arith.mulf %250, %251 : vector<64x64xf32>
    %253 = vector.broadcast %232 : vector<1x64xf32> to vector<64x64xf32>
    %254 = arith.addf %252, %253 : vector<64x64xf32>
    %255 = arith.truncf %254 : vector<64x64xf32> to vector<64x64xbf16>
    %c0_99 = arith.constant 0 : index
    %c0_100 = arith.constant 0 : index
    %c0_101 = arith.constant 0 : index
    %256 = vector.load %arg14[%c0_99, %c0_100, %c0_101] : memref<2x64x256xbf16, #tpu.memory_space<vmem>>, vector<1x64x256xbf16>
    %257 = vector.shape_cast %256 : vector<1x64x256xbf16> to vector<64x256xbf16>
    %cst_102 = arith.constant dense<0.000000e+00> : vector<64x256xf32>
    %258 = tpu.matmul %255, %257, %cst_102 {dimension_numbers = #tpu.dot_dimension_numbers<[1], [0], [0], [1], [0, 0, 1, 1], [], []>} : vector<64x64xbf16>, vector<64x256xbf16>, vector<64x256xf32> -> vector<64x256xf32>
    %c0_103 = arith.constant 0 : index
    %c0_104 = arith.constant 0 : index
    %c0_105 = arith.constant 0 : index
    %259 = vector.load %arg15[%c0_103, %c0_104, %c0_105] : memref<2x1x256xf32, #tpu.memory_space<vmem>>, vector<1x1x256xf32>
    %260 = vector.shape_cast %259 : vector<1x1x256xf32> to vector<1x256xf32>
    %261 = vector.broadcast %260 : vector<1x256xf32> to vector<64x256xf32>
    %262 = arith.addf %258, %261 : vector<64x256xf32>
    %263 = arith.mulf %262, %262 : vector<64x256xf32>
    %264 = arith.mulf %262, %263 : vector<64x256xf32>
    %cst_106 = arith.constant 4.471500e-02 : f32
    %265 = vector.broadcast %cst_106 : f32 to vector<64x256xf32>
    %266 = arith.mulf %265, %264 : vector<64x256xf32>
    %267 = arith.addf %262, %266 : vector<64x256xf32>
    %cst_107 = arith.constant 0.797884583 : f32
    %268 = vector.broadcast %cst_107 : f32 to vector<64x256xf32>
    %269 = arith.mulf %268, %267 : vector<64x256xf32>
    %270 = math.tanh %269 : vector<64x256xf32>
    %cst_108 = arith.constant 1.000000e+00 : f32
    %271 = vector.broadcast %cst_108 : f32 to vector<64x256xf32>
    %272 = arith.addf %271, %270 : vector<64x256xf32>
    %cst_109 = arith.constant 5.000000e-01 : f32
    %273 = vector.broadcast %cst_109 : f32 to vector<64x256xf32>
    %274 = arith.mulf %273, %272 : vector<64x256xf32>
    %275 = arith.mulf %262, %274 : vector<64x256xf32>
    %276 = arith.truncf %275 : vector<64x256xf32> to vector<64x256xbf16>
    %c0_110 = arith.constant 0 : index
    %c0_111 = arith.constant 0 : index
    %c0_112 = arith.constant 0 : index
    %277 = vector.load %arg16[%c0_110, %c0_111, %c0_112] : memref<2x256x64xbf16, #tpu.memory_space<vmem>>, vector<1x256x64xbf16>
    %278 = vector.shape_cast %277 : vector<1x256x64xbf16> to vector<256x64xbf16>
    %cst_113 = arith.constant dense<0.000000e+00> : vector<64x64xf32>
    %279 = tpu.matmul %276, %278, %cst_113 {dimension_numbers = #tpu.dot_dimension_numbers<[1], [0], [0], [1], [0, 0, 1, 1], [], []>} : vector<64x256xbf16>, vector<256x64xbf16>, vector<64x64xf32> -> vector<64x64xf32>
    %c0_114 = arith.constant 0 : index
    %c0_115 = arith.constant 0 : index
    %c0_116 = arith.constant 0 : index
    %280 = vector.load %arg17[%c0_114, %c0_115, %c0_116] : memref<2x1x64xf32, #tpu.memory_space<vmem>>, vector<1x1x64xf32>
    %281 = vector.shape_cast %280 : vector<1x1x64xf32> to vector<1x64xf32>
    %282 = vector.broadcast %281 : vector<1x64xf32> to vector<64x64xf32>
    %283 = arith.addf %279, %282 : vector<64x64xf32>
    %284 = arith.addf %228, %283 : vector<64x64xf32>
    %c1 = arith.constant 1 : index
    %c0_117 = arith.constant 0 : index
    %c0_118 = arith.constant 0 : index
    %285 = vector.load %arg6[%c1, %c0_117, %c0_118] : memref<2x1x64xf32, #tpu.memory_space<vmem>>, vector<1x1x64xf32>
    %286 = vector.shape_cast %285 : vector<1x1x64xf32> to vector<1x64xf32>
    %c1_119 = arith.constant 1 : index
    %c0_120 = arith.constant 0 : index
    %c0_121 = arith.constant 0 : index
    %287 = vector.load %arg7[%c1_119, %c0_120, %c0_121] : memref<2x1x64xf32, #tpu.memory_space<vmem>>, vector<1x1x64xf32>
    %288 = vector.shape_cast %287 : vector<1x1x64xf32> to vector<1x64xf32>
    %cst_122 = arith.constant dense<0.000000e+00> : vector<64xf32>
    %289 = vector.multi_reduction <add>, %284, %cst_122 [1] : vector<64x64xf32> to vector<64xf32>
    %290 = vector.shape_cast %289 : vector<64xf32> to vector<64x1xf32>
    %cst_123 = arith.constant 6.400000e+01 : f32
    %291 = vector.broadcast %cst_123 : f32 to vector<64x1xf32>
    %292 = arith.divf %290, %291 : vector<64x1xf32>
    %293 = arith.mulf %284, %284 : vector<64x64xf32>
    %cst_124 = arith.constant dense<0.000000e+00> : vector<64xf32>
    %294 = vector.multi_reduction <add>, %293, %cst_124 [1] : vector<64x64xf32> to vector<64xf32>
    %295 = vector.shape_cast %294 : vector<64xf32> to vector<64x1xf32>
    %cst_125 = arith.constant 6.400000e+01 : f32
    %296 = vector.broadcast %cst_125 : f32 to vector<64x1xf32>
    %297 = arith.divf %295, %296 : vector<64x1xf32>
    %298 = arith.mulf %292, %292 : vector<64x1xf32>
    %299 = arith.subf %297, %298 : vector<64x1xf32>
    %300 = vector.broadcast %292 : vector<64x1xf32> to vector<64x64xf32>
    %301 = arith.subf %284, %300 : vector<64x64xf32>
    %cst_126 = arith.constant 9.99999974E-6 : f32
    %302 = vector.broadcast %cst_126 : f32 to vector<64x1xf32>
    %303 = arith.addf %299, %302 : vector<64x1xf32>
    %304 = math.rsqrt %303 : vector<64x1xf32>
    %305 = vector.broadcast %304 : vector<64x1xf32> to vector<64x64xf32>
    %306 = arith.mulf %301, %305 : vector<64x64xf32>
    %307 = vector.broadcast %286 : vector<1x64xf32> to vector<64x64xf32>
    %308 = arith.mulf %306, %307 : vector<64x64xf32>
    %309 = vector.broadcast %288 : vector<1x64xf32> to vector<64x64xf32>
    %310 = arith.addf %308, %309 : vector<64x64xf32>
    %311 = arith.truncf %310 : vector<64x64xf32> to vector<64x64xbf16>
    %c1_127 = arith.constant 1 : index
    %c0_128 = arith.constant 0 : index
    %c0_129 = arith.constant 0 : index
    %312 = vector.load %arg8[%c1_127, %c0_128, %c0_129] : memref<2x64x192xbf16, #tpu.memory_space<vmem>>, vector<1x64x192xbf16>
    %313 = vector.shape_cast %312 : vector<1x64x192xbf16> to vector<64x192xbf16>
    %cst_130 = arith.constant dense<0.000000e+00> : vector<64x192xf32>
    %314 = tpu.matmul %311, %313, %cst_130 {dimension_numbers = #tpu.dot_dimension_numbers<[1], [0], [0], [1], [0, 0, 1, 1], [], []>} : vector<64x64xbf16>, vector<64x192xbf16>, vector<64x192xf32> -> vector<64x192xf32>
    %c1_131 = arith.constant 1 : index
    %c0_132 = arith.constant 0 : index
    %c0_133 = arith.constant 0 : index
    %315 = vector.load %arg9[%c1_131, %c0_132, %c0_133] : memref<2x1x192xf32, #tpu.memory_space<vmem>>, vector<1x1x192xf32>
    %316 = vector.shape_cast %315 : vector<1x1x192xf32> to vector<1x192xf32>
    %317 = vector.broadcast %316 : vector<1x192xf32> to vector<64x192xf32>
    %318 = arith.addf %314, %317 : vector<64x192xf32>
    %319 = vector.extract_strided_slice %318 {offsets = [0, 0], sizes = [64, 64], strides = [1, 1]} : vector<64x192xf32> to vector<64x64xf32>
    %320 = arith.truncf %319 : vector<64x64xf32> to vector<64x64xbf16>
    %321 = vector.extract_strided_slice %318 {offsets = [0, 64], sizes = [64, 64], strides = [1, 1]} : vector<64x192xf32> to vector<64x64xf32>
    %322 = arith.truncf %321 : vector<64x64xf32> to vector<64x64xbf16>
    %323 = vector.extract_strided_slice %318 {offsets = [0, 128], sizes = [64, 64], strides = [1, 1]} : vector<64x192xf32> to vector<64x64xf32>
    %324 = arith.truncf %323 : vector<64x64xf32> to vector<64x64xbf16>
    %325 = vector.extract_strided_slice %320 {offsets = [0, 0], sizes = [32, 16], strides = [1, 1]} : vector<64x64xbf16> to vector<32x16xbf16>
    %326 = vector.extract_strided_slice %322 {offsets = [0, 0], sizes = [32, 16], strides = [1, 1]} : vector<64x64xbf16> to vector<32x16xbf16>
    %327 = vector.extract_strided_slice %324 {offsets = [0, 0], sizes = [32, 16], strides = [1, 1]} : vector<64x64xbf16> to vector<32x16xbf16>
    %cst_134 = arith.constant dense<0.000000e+00> : vector<32x32xf32>
    %328 = tpu.matmul %325, %326, %cst_134 {dimension_numbers = #tpu.dot_dimension_numbers<[1], [1], [0], [0], [0, 0, 1, 0], [], []>} : vector<32x16xbf16>, vector<32x16xbf16>, vector<32x32xf32> -> vector<32x32xf32>
    %329 = arith.addf %328, %34 : vector<32x32xf32>
    %cst_135 = arith.constant dense<0xFF800000> : vector<32xf32>
    %330 = vector.multi_reduction <maximumf>, %329, %cst_135 [1] : vector<32x32xf32> to vector<32xf32>
    %331 = vector.shape_cast %330 : vector<32xf32> to vector<32x1xf32>
    %332 = vector.broadcast %331 : vector<32x1xf32> to vector<32x32xf32>
    %333 = arith.subf %329, %332 : vector<32x32xf32>
    %334 = math.exp %333 : vector<32x32xf32>
    %cst_136 = arith.constant dense<0.000000e+00> : vector<32xf32>
    %335 = vector.multi_reduction <add>, %334, %cst_136 [1] : vector<32x32xf32> to vector<32xf32>
    %336 = vector.shape_cast %335 : vector<32xf32> to vector<32x1xf32>
    %337 = tpu.reciprocal %336 {approx = true} : vector<32x1xf32> -> vector<32x1xf32>
    %338 = vector.broadcast %337 : vector<32x1xf32> to vector<32x32xf32>
    %339 = arith.mulf %334, %338 : vector<32x32xf32>
    %340 = arith.truncf %339 : vector<32x32xf32> to vector<32x32xbf16>
    %cst_137 = arith.constant dense<0.000000e+00> : vector<32x16xf32>
    %341 = tpu.matmul %340, %327, %cst_137 {dimension_numbers = #tpu.dot_dimension_numbers<[1], [0], [0], [1], [0, 0, 1, 1], [], []>} : vector<32x32xbf16>, vector<32x16xbf16>, vector<32x16xf32> -> vector<32x16xf32>
    %c0_138 = arith.constant 0 : index
    %c0_139 = arith.constant 0 : index
    %342 = vector.load %arg23[%c0_138, %c0_139] : memref<64x64xf32, #tpu.memory_space<vmem>>, vector<32x16xf32>
    tpu.vector_store %arg23[%c0_138, %c0_139], %341 {strides = array<i32>} : memref<64x64xf32, #tpu.memory_space<vmem>>, vector<32x16xf32>,
    %343 = vector.extract_strided_slice %320 {offsets = [0, 16], sizes = [32, 16], strides = [1, 1]} : vector<64x64xbf16> to vector<32x16xbf16>
    %344 = vector.extract_strided_slice %322 {offsets = [0, 16], sizes = [32, 16], strides = [1, 1]} : vector<64x64xbf16> to vector<32x16xbf16>
    %345 = vector.extract_strided_slice %324 {offsets = [0, 16], sizes = [32, 16], strides = [1, 1]} : vector<64x64xbf16> to vector<32x16xbf16>
    %cst_140 = arith.constant dense<0.000000e+00> : vector<32x32xf32>
    %346 = tpu.matmul %343, %344, %cst_140 {dimension_numbers = #tpu.dot_dimension_numbers<[1], [1], [0], [0], [0, 0, 1, 0], [], []>} : vector<32x16xbf16>, vector<32x16xbf16>, vector<32x32xf32> -> vector<32x32xf32>
    %347 = arith.addf %346, %34 : vector<32x32xf32>
    %cst_141 = arith.constant dense<0xFF800000> : vector<32xf32>
    %348 = vector.multi_reduction <maximumf>, %347, %cst_141 [1] : vector<32x32xf32> to vector<32xf32>
    %349 = vector.shape_cast %348 : vector<32xf32> to vector<32x1xf32>
    %350 = vector.broadcast %349 : vector<32x1xf32> to vector<32x32xf32>
    %351 = arith.subf %347, %350 : vector<32x32xf32>
    %352 = math.exp %351 : vector<32x32xf32>
    %cst_142 = arith.constant dense<0.000000e+00> : vector<32xf32>
    %353 = vector.multi_reduction <add>, %352, %cst_142 [1] : vector<32x32xf32> to vector<32xf32>
    %354 = vector.shape_cast %353 : vector<32xf32> to vector<32x1xf32>
    %355 = tpu.reciprocal %354 {approx = true} : vector<32x1xf32> -> vector<32x1xf32>
    %356 = vector.broadcast %355 : vector<32x1xf32> to vector<32x32xf32>
    %357 = arith.mulf %352, %356 : vector<32x32xf32>
    %358 = arith.truncf %357 : vector<32x32xf32> to vector<32x32xbf16>
    %cst_143 = arith.constant dense<0.000000e+00> : vector<32x16xf32>
    %359 = tpu.matmul %358, %345, %cst_143 {dimension_numbers = #tpu.dot_dimension_numbers<[1], [0], [0], [1], [0, 0, 1, 1], [], []>} : vector<32x32xbf16>, vector<32x16xbf16>, vector<32x16xf32> -> vector<32x16xf32>
    %c0_144 = arith.constant 0 : index
    %c16_145 = arith.constant 16 : index
    %360 = vector.load %arg23[%c0_144, %c16_145] : memref<64x64xf32, #tpu.memory_space<vmem>>, vector<32x16xf32>
    tpu.vector_store %arg23[%c0_144, %c16_145], %359 {strides = array<i32>} : memref<64x64xf32, #tpu.memory_space<vmem>>, vector<32x16xf32>,
    %361 = vector.extract_strided_slice %320 {offsets = [0, 32], sizes = [32, 16], strides = [1, 1]} : vector<64x64xbf16> to vector<32x16xbf16>
    %362 = vector.extract_strided_slice %322 {offsets = [0, 32], sizes = [32, 16], strides = [1, 1]} : vector<64x64xbf16> to vector<32x16xbf16>
    %363 = vector.extract_strided_slice %324 {offsets = [0, 32], sizes = [32, 16], strides = [1, 1]} : vector<64x64xbf16> to vector<32x16xbf16>
    %cst_146 = arith.constant dense<0.000000e+00> : vector<32x32xf32>
    %364 = tpu.matmul %361, %362, %cst_146 {dimension_numbers = #tpu.dot_dimension_numbers<[1], [1], [0], [0], [0, 0, 1, 0], [], []>} : vector<32x16xbf16>, vector<32x16xbf16>, vector<32x32xf32> -> vector<32x32xf32>
    %365 = arith.addf %364, %34 : vector<32x32xf32>
    %cst_147 = arith.constant dense<0xFF800000> : vector<32xf32>
    %366 = vector.multi_reduction <maximumf>, %365, %cst_147 [1] : vector<32x32xf32> to vector<32xf32>
    %367 = vector.shape_cast %366 : vector<32xf32> to vector<32x1xf32>
    %368 = vector.broadcast %367 : vector<32x1xf32> to vector<32x32xf32>
    %369 = arith.subf %365, %368 : vector<32x32xf32>
    %370 = math.exp %369 : vector<32x32xf32>
    %cst_148 = arith.constant dense<0.000000e+00> : vector<32xf32>
    %371 = vector.multi_reduction <add>, %370, %cst_148 [1] : vector<32x32xf32> to vector<32xf32>
    %372 = vector.shape_cast %371 : vector<32xf32> to vector<32x1xf32>
    %373 = tpu.reciprocal %372 {approx = true} : vector<32x1xf32> -> vector<32x1xf32>
    %374 = vector.broadcast %373 : vector<32x1xf32> to vector<32x32xf32>
    %375 = arith.mulf %370, %374 : vector<32x32xf32>
    %376 = arith.truncf %375 : vector<32x32xf32> to vector<32x32xbf16>
    %cst_149 = arith.constant dense<0.000000e+00> : vector<32x16xf32>
    %377 = tpu.matmul %376, %363, %cst_149 {dimension_numbers = #tpu.dot_dimension_numbers<[1], [0], [0], [1], [0, 0, 1, 1], [], []>} : vector<32x32xbf16>, vector<32x16xbf16>, vector<32x16xf32> -> vector<32x16xf32>
    %c0_150 = arith.constant 0 : index
    %c32_151 = arith.constant 32 : index
    %378 = vector.load %arg23[%c0_150, %c32_151] : memref<64x64xf32, #tpu.memory_space<vmem>>, vector<32x16xf32>
    tpu.vector_store %arg23[%c0_150, %c32_151], %377 {strides = array<i32>} : memref<64x64xf32, #tpu.memory_space<vmem>>, vector<32x16xf32>,
    %379 = vector.extract_strided_slice %320 {offsets = [0, 48], sizes = [32, 16], strides = [1, 1]} : vector<64x64xbf16> to vector<32x16xbf16>
    %380 = vector.extract_strided_slice %322 {offsets = [0, 48], sizes = [32, 16], strides = [1, 1]} : vector<64x64xbf16> to vector<32x16xbf16>
    %381 = vector.extract_strided_slice %324 {offsets = [0, 48], sizes = [32, 16], strides = [1, 1]} : vector<64x64xbf16> to vector<32x16xbf16>
    %cst_152 = arith.constant dense<0.000000e+00> : vector<32x32xf32>
    %382 = tpu.matmul %379, %380, %cst_152 {dimension_numbers = #tpu.dot_dimension_numbers<[1], [1], [0], [0], [0, 0, 1, 0], [], []>} : vector<32x16xbf16>, vector<32x16xbf16>, vector<32x32xf32> -> vector<32x32xf32>
    %383 = arith.addf %382, %34 : vector<32x32xf32>
    %cst_153 = arith.constant dense<0xFF800000> : vector<32xf32>
    %384 = vector.multi_reduction <maximumf>, %383, %cst_153 [1] : vector<32x32xf32> to vector<32xf32>
    %385 = vector.shape_cast %384 : vector<32xf32> to vector<32x1xf32>
    %386 = vector.broadcast %385 : vector<32x1xf32> to vector<32x32xf32>
    %387 = arith.subf %383, %386 : vector<32x32xf32>
    %388 = math.exp %387 : vector<32x32xf32>
    %cst_154 = arith.constant dense<0.000000e+00> : vector<32xf32>
    %389 = vector.multi_reduction <add>, %388, %cst_154 [1] : vector<32x32xf32> to vector<32xf32>
    %390 = vector.shape_cast %389 : vector<32xf32> to vector<32x1xf32>
    %391 = tpu.reciprocal %390 {approx = true} : vector<32x1xf32> -> vector<32x1xf32>
    %392 = vector.broadcast %391 : vector<32x1xf32> to vector<32x32xf32>
    %393 = arith.mulf %388, %392 : vector<32x32xf32>
    %394 = arith.truncf %393 : vector<32x32xf32> to vector<32x32xbf16>
    %cst_155 = arith.constant dense<0.000000e+00> : vector<32x16xf32>
    %395 = tpu.matmul %394, %381, %cst_155 {dimension_numbers = #tpu.dot_dimension_numbers<[1], [0], [0], [1], [0, 0, 1, 1], [], []>} : vector<32x32xbf16>, vector<32x16xbf16>, vector<32x16xf32> -> vector<32x16xf32>
    %c0_156 = arith.constant 0 : index
    %c48_157 = arith.constant 48 : index
    %396 = vector.load %arg23[%c0_156, %c48_157] : memref<64x64xf32, #tpu.memory_space<vmem>>, vector<32x16xf32>
    tpu.vector_store %arg23[%c0_156, %c48_157], %395 {strides = array<i32>} : memref<64x64xf32, #tpu.memory_space<vmem>>, vector<32x16xf32>,
    %397 = vector.extract_strided_slice %320 {offsets = [32, 0], sizes = [32, 16], strides = [1, 1]} : vector<64x64xbf16> to vector<32x16xbf16>
    %398 = vector.extract_strided_slice %322 {offsets = [32, 0], sizes = [32, 16], strides = [1, 1]} : vector<64x64xbf16> to vector<32x16xbf16>
    %399 = vector.extract_strided_slice %324 {offsets = [32, 0], sizes = [32, 16], strides = [1, 1]} : vector<64x64xbf16> to vector<32x16xbf16>
    %cst_158 = arith.constant dense<0.000000e+00> : vector<32x32xf32>
    %400 = tpu.matmul %397, %398, %cst_158 {dimension_numbers = #tpu.dot_dimension_numbers<[1], [1], [0], [0], [0, 0, 1, 0], [], []>} : vector<32x16xbf16>, vector<32x16xbf16>, vector<32x32xf32> -> vector<32x32xf32>
    %401 = arith.addf %400, %34 : vector<32x32xf32>
    %cst_159 = arith.constant dense<0xFF800000> : vector<32xf32>
    %402 = vector.multi_reduction <maximumf>, %401, %cst_159 [1] : vector<32x32xf32> to vector<32xf32>
    %403 = vector.shape_cast %402 : vector<32xf32> to vector<32x1xf32>
    %404 = vector.broadcast %403 : vector<32x1xf32> to vector<32x32xf32>
    %405 = arith.subf %401, %404 : vector<32x32xf32>
    %406 = math.exp %405 : vector<32x32xf32>
    %cst_160 = arith.constant dense<0.000000e+00> : vector<32xf32>
    %407 = vector.multi_reduction <add>, %406, %cst_160 [1] : vector<32x32xf32> to vector<32xf32>
    %408 = vector.shape_cast %407 : vector<32xf32> to vector<32x1xf32>
    %409 = tpu.reciprocal %408 {approx = true} : vector<32x1xf32> -> vector<32x1xf32>
    %410 = vector.broadcast %409 : vector<32x1xf32> to vector<32x32xf32>
    %411 = arith.mulf %406, %410 : vector<32x32xf32>
    %412 = arith.truncf %411 : vector<32x32xf32> to vector<32x32xbf16>
    %cst_161 = arith.constant dense<0.000000e+00> : vector<32x16xf32>
    %413 = tpu.matmul %412, %399, %cst_161 {dimension_numbers = #tpu.dot_dimension_numbers<[1], [0], [0], [1], [0, 0, 1, 1], [], []>} : vector<32x32xbf16>, vector<32x16xbf16>, vector<32x16xf32> -> vector<32x16xf32>
    %c32_162 = arith.constant 32 : index
    %c0_163 = arith.constant 0 : index
    %414 = vector.load %arg23[%c32_162, %c0_163] : memref<64x64xf32, #tpu.memory_space<vmem>>, vector<32x16xf32>
    tpu.vector_store %arg23[%c32_162, %c0_163], %413 {strides = array<i32>} : memref<64x64xf32, #tpu.memory_space<vmem>>, vector<32x16xf32>,
    %415 = vector.extract_strided_slice %320 {offsets = [32, 16], sizes = [32, 16], strides = [1, 1]} : vector<64x64xbf16> to vector<32x16xbf16>
    %416 = vector.extract_strided_slice %322 {offsets = [32, 16], sizes = [32, 16], strides = [1, 1]} : vector<64x64xbf16> to vector<32x16xbf16>
    %417 = vector.extract_strided_slice %324 {offsets = [32, 16], sizes = [32, 16], strides = [1, 1]} : vector<64x64xbf16> to vector<32x16xbf16>
    %cst_164 = arith.constant dense<0.000000e+00> : vector<32x32xf32>
    %418 = tpu.matmul %415, %416, %cst_164 {dimension_numbers = #tpu.dot_dimension_numbers<[1], [1], [0], [0], [0, 0, 1, 0], [], []>} : vector<32x16xbf16>, vector<32x16xbf16>, vector<32x32xf32> -> vector<32x32xf32>
    %419 = arith.addf %418, %34 : vector<32x32xf32>
    %cst_165 = arith.constant dense<0xFF800000> : vector<32xf32>
    %420 = vector.multi_reduction <maximumf>, %419, %cst_165 [1] : vector<32x32xf32> to vector<32xf32>
    %421 = vector.shape_cast %420 : vector<32xf32> to vector<32x1xf32>
    %422 = vector.broadcast %421 : vector<32x1xf32> to vector<32x32xf32>
    %423 = arith.subf %419, %422 : vector<32x32xf32>
    %424 = math.exp %423 : vector<32x32xf32>
    %cst_166 = arith.constant dense<0.000000e+00> : vector<32xf32>
    %425 = vector.multi_reduction <add>, %424, %cst_166 [1] : vector<32x32xf32> to vector<32xf32>
    %426 = vector.shape_cast %425 : vector<32xf32> to vector<32x1xf32>
    %427 = tpu.reciprocal %426 {approx = true} : vector<32x1xf32> -> vector<32x1xf32>
    %428 = vector.broadcast %427 : vector<32x1xf32> to vector<32x32xf32>
    %429 = arith.mulf %424, %428 : vector<32x32xf32>
    %430 = arith.truncf %429 : vector<32x32xf32> to vector<32x32xbf16>
    %cst_167 = arith.constant dense<0.000000e+00> : vector<32x16xf32>
    %431 = tpu.matmul %430, %417, %cst_167 {dimension_numbers = #tpu.dot_dimension_numbers<[1], [0], [0], [1], [0, 0, 1, 1], [], []>} : vector<32x32xbf16>, vector<32x16xbf16>, vector<32x16xf32> -> vector<32x16xf32>
    %c32_168 = arith.constant 32 : index
    %c16_169 = arith.constant 16 : index
    %432 = vector.load %arg23[%c32_168, %c16_169] : memref<64x64xf32, #tpu.memory_space<vmem>>, vector<32x16xf32>
    tpu.vector_store %arg23[%c32_168, %c16_169], %431 {strides = array<i32>} : memref<64x64xf32, #tpu.memory_space<vmem>>, vector<32x16xf32>,
    %433 = vector.extract_strided_slice %320 {offsets = [32, 32], sizes = [32, 16], strides = [1, 1]} : vector<64x64xbf16> to vector<32x16xbf16>
    %434 = vector.extract_strided_slice %322 {offsets = [32, 32], sizes = [32, 16], strides = [1, 1]} : vector<64x64xbf16> to vector<32x16xbf16>
    %435 = vector.extract_strided_slice %324 {offsets = [32, 32], sizes = [32, 16], strides = [1, 1]} : vector<64x64xbf16> to vector<32x16xbf16>
    %cst_170 = arith.constant dense<0.000000e+00> : vector<32x32xf32>
    %436 = tpu.matmul %433, %434, %cst_170 {dimension_numbers = #tpu.dot_dimension_numbers<[1], [1], [0], [0], [0, 0, 1, 0], [], []>} : vector<32x16xbf16>, vector<32x16xbf16>, vector<32x32xf32> -> vector<32x32xf32>
    %437 = arith.addf %436, %34 : vector<32x32xf32>
    %cst_171 = arith.constant dense<0xFF800000> : vector<32xf32>
    %438 = vector.multi_reduction <maximumf>, %437, %cst_171 [1] : vector<32x32xf32> to vector<32xf32>
    %439 = vector.shape_cast %438 : vector<32xf32> to vector<32x1xf32>
    %440 = vector.broadcast %439 : vector<32x1xf32> to vector<32x32xf32>
    %441 = arith.subf %437, %440 : vector<32x32xf32>
    %442 = math.exp %441 : vector<32x32xf32>
    %cst_172 = arith.constant dense<0.000000e+00> : vector<32xf32>
    %443 = vector.multi_reduction <add>, %442, %cst_172 [1] : vector<32x32xf32> to vector<32xf32>
    %444 = vector.shape_cast %443 : vector<32xf32> to vector<32x1xf32>
    %445 = tpu.reciprocal %444 {approx = true} : vector<32x1xf32> -> vector<32x1xf32>
    %446 = vector.broadcast %445 : vector<32x1xf32> to vector<32x32xf32>
    %447 = arith.mulf %442, %446 : vector<32x32xf32>
    %448 = arith.truncf %447 : vector<32x32xf32> to vector<32x32xbf16>
    %cst_173 = arith.constant dense<0.000000e+00> : vector<32x16xf32>
    %449 = tpu.matmul %448, %435, %cst_173 {dimension_numbers = #tpu.dot_dimension_numbers<[1], [0], [0], [1], [0, 0, 1, 1], [], []>} : vector<32x32xbf16>, vector<32x16xbf16>, vector<32x16xf32> -> vector<32x16xf32>
    %c32_174 = arith.constant 32 : index
    %c32_175 = arith.constant 32 : index
    %450 = vector.load %arg23[%c32_174, %c32_175] : memref<64x64xf32, #tpu.memory_space<vmem>>, vector<32x16xf32>
    tpu.vector_store %arg23[%c32_174, %c32_175], %449 {strides = array<i32>} : memref<64x64xf32, #tpu.memory_space<vmem>>, vector<32x16xf32>,
    %451 = vector.extract_strided_slice %320 {offsets = [32, 48], sizes = [32, 16], strides = [1, 1]} : vector<64x64xbf16> to vector<32x16xbf16>
    %452 = vector.extract_strided_slice %322 {offsets = [32, 48], sizes = [32, 16], strides = [1, 1]} : vector<64x64xbf16> to vector<32x16xbf16>
    %453 = vector.extract_strided_slice %324 {offsets = [32, 48], sizes = [32, 16], strides = [1, 1]} : vector<64x64xbf16> to vector<32x16xbf16>
    %cst_176 = arith.constant dense<0.000000e+00> : vector<32x32xf32>
    %454 = tpu.matmul %451, %452, %cst_176 {dimension_numbers = #tpu.dot_dimension_numbers<[1], [1], [0], [0], [0, 0, 1, 0], [], []>} : vector<32x16xbf16>, vector<32x16xbf16>, vector<32x32xf32> -> vector<32x32xf32>
    %455 = arith.addf %454, %34 : vector<32x32xf32>
    %cst_177 = arith.constant dense<0xFF800000> : vector<32xf32>
    %456 = vector.multi_reduction <maximumf>, %455, %cst_177 [1] : vector<32x32xf32> to vector<32xf32>
    %457 = vector.shape_cast %456 : vector<32xf32> to vector<32x1xf32>
    %458 = vector.broadcast %457 : vector<32x1xf32> to vector<32x32xf32>
    %459 = arith.subf %455, %458 : vector<32x32xf32>
    %460 = math.exp %459 : vector<32x32xf32>
    %cst_178 = arith.constant dense<0.000000e+00> : vector<32xf32>
    %461 = vector.multi_reduction <add>, %460, %cst_178 [1] : vector<32x32xf32> to vector<32xf32>
    %462 = vector.shape_cast %461 : vector<32xf32> to vector<32x1xf32>
    %463 = tpu.reciprocal %462 {approx = true} : vector<32x1xf32> -> vector<32x1xf32>
    %464 = vector.broadcast %463 : vector<32x1xf32> to vector<32x32xf32>
    %465 = arith.mulf %460, %464 : vector<32x32xf32>
    %466 = arith.truncf %465 : vector<32x32xf32> to vector<32x32xbf16>
    %cst_179 = arith.constant dense<0.000000e+00> : vector<32x16xf32>
    %467 = tpu.matmul %466, %453, %cst_179 {dimension_numbers = #tpu.dot_dimension_numbers<[1], [0], [0], [1], [0, 0, 1, 1], [], []>} : vector<32x32xbf16>, vector<32x16xbf16>, vector<32x16xf32> -> vector<32x16xf32>
    %c32_180 = arith.constant 32 : index
    %c48_181 = arith.constant 48 : index
    %468 = vector.load %arg23[%c32_180, %c48_181] : memref<64x64xf32, #tpu.memory_space<vmem>>, vector<32x16xf32>
    tpu.vector_store %arg23[%c32_180, %c48_181], %467 {strides = array<i32>} : memref<64x64xf32, #tpu.memory_space<vmem>>, vector<32x16xf32>,
    %c0_182 = arith.constant 0 : index
    %c0_183 = arith.constant 0 : index
    %469 = vector.load %arg23[%c0_182, %c0_183] : memref<64x64xf32, #tpu.memory_space<vmem>>, vector<64x64xf32>
    %470 = arith.truncf %469 : vector<64x64xf32> to vector<64x64xbf16>
    %c1_184 = arith.constant 1 : index
    %c0_185 = arith.constant 0 : index
    %c0_186 = arith.constant 0 : index
    %471 = vector.load %arg10[%c1_184, %c0_185, %c0_186] : memref<2x64x64xbf16, #tpu.memory_space<vmem>>, vector<1x64x64xbf16>
    %472 = vector.shape_cast %471 : vector<1x64x64xbf16> to vector<64x64xbf16>
    %cst_187 = arith.constant dense<0.000000e+00> : vector<64x64xf32>
    %473 = tpu.matmul %470, %472, %cst_187 {dimension_numbers = #tpu.dot_dimension_numbers<[1], [0], [0], [1], [0, 0, 1, 1], [], []>} : vector<64x64xbf16>, vector<64x64xbf16>, vector<64x64xf32> -> vector<64x64xf32>
    %474 = arith.addf %284, %473 : vector<64x64xf32>
    %c1_188 = arith.constant 1 : index
    %c0_189 = arith.constant 0 : index
    %c0_190 = arith.constant 0 : index
    %475 = vector.load %arg11[%c1_188, %c0_189, %c0_190] : memref<2x1x64xf32, #tpu.memory_space<vmem>>, vector<1x1x64xf32>
    %476 = vector.shape_cast %475 : vector<1x1x64xf32> to vector<1x64xf32>
    %477 = vector.broadcast %476 : vector<1x64xf32> to vector<64x64xf32>
    %478 = arith.addf %474, %477 : vector<64x64xf32>
    %c1_191 = arith.constant 1 : index
    %c0_192 = arith.constant 0 : index
    %c0_193 = arith.constant 0 : index
    %479 = vector.load %arg12[%c1_191, %c0_192, %c0_193] : memref<2x1x64xf32, #tpu.memory_space<vmem>>, vector<1x1x64xf32>
    %480 = vector.shape_cast %479 : vector<1x1x64xf32> to vector<1x64xf32>
    %c1_194 = arith.constant 1 : index
    %c0_195 = arith.constant 0 : index
    %c0_196 = arith.constant 0 : index
    %481 = vector.load %arg13[%c1_194, %c0_195, %c0_196] : memref<2x1x64xf32, #tpu.memory_space<vmem>>, vector<1x1x64xf32>
    %482 = vector.shape_cast %481 : vector<1x1x64xf32> to vector<1x64xf32>
    %cst_197 = arith.constant dense<0.000000e+00> : vector<64xf32>
    %483 = vector.multi_reduction <add>, %478, %cst_197 [1] : vector<64x64xf32> to vector<64xf32>
    %484 = vector.shape_cast %483 : vector<64xf32> to vector<64x1xf32>
    %cst_198 = arith.constant 6.400000e+01 : f32
    %485 = vector.broadcast %cst_198 : f32 to vector<64x1xf32>
    %486 = arith.divf %484, %485 : vector<64x1xf32>
    %487 = arith.mulf %478, %478 : vector<64x64xf32>
    %cst_199 = arith.constant dense<0.000000e+00> : vector<64xf32>
    %488 = vector.multi_reduction <add>, %487, %cst_199 [1] : vector<64x64xf32> to vector<64xf32>
    %489 = vector.shape_cast %488 : vector<64xf32> to vector<64x1xf32>
    %cst_200 = arith.constant 6.400000e+01 : f32
    %490 = vector.broadcast %cst_200 : f32 to vector<64x1xf32>
    %491 = arith.divf %489, %490 : vector<64x1xf32>
    %492 = arith.mulf %486, %486 : vector<64x1xf32>
    %493 = arith.subf %491, %492 : vector<64x1xf32>
    %494 = vector.broadcast %486 : vector<64x1xf32> to vector<64x64xf32>
    %495 = arith.subf %478, %494 : vector<64x64xf32>
    %cst_201 = arith.constant 9.99999974E-6 : f32
    %496 = vector.broadcast %cst_201 : f32 to vector<64x1xf32>
    %497 = arith.addf %493, %496 : vector<64x1xf32>
    %498 = math.rsqrt %497 : vector<64x1xf32>
    %499 = vector.broadcast %498 : vector<64x1xf32> to vector<64x64xf32>
    %500 = arith.mulf %495, %499 : vector<64x64xf32>
    %501 = vector.broadcast %480 : vector<1x64xf32> to vector<64x64xf32>
    %502 = arith.mulf %500, %501 : vector<64x64xf32>
    %503 = vector.broadcast %482 : vector<1x64xf32> to vector<64x64xf32>
    %504 = arith.addf %502, %503 : vector<64x64xf32>
    %505 = arith.truncf %504 : vector<64x64xf32> to vector<64x64xbf16>
    %c1_202 = arith.constant 1 : index
    %c0_203 = arith.constant 0 : index
    %c0_204 = arith.constant 0 : index
    %506 = vector.load %arg14[%c1_202, %c0_203, %c0_204] : memref<2x64x256xbf16, #tpu.memory_space<vmem>>, vector<1x64x256xbf16>
    %507 = vector.shape_cast %506 : vector<1x64x256xbf16> to vector<64x256xbf16>
    %cst_205 = arith.constant dense<0.000000e+00> : vector<64x256xf32>
    %508 = tpu.matmul %505, %507, %cst_205 {dimension_numbers = #tpu.dot_dimension_numbers<[1], [0], [0], [1], [0, 0, 1, 1], [], []>} : vector<64x64xbf16>, vector<64x256xbf16>, vector<64x256xf32> -> vector<64x256xf32>
    %c1_206 = arith.constant 1 : index
    %c0_207 = arith.constant 0 : index
    %c0_208 = arith.constant 0 : index
    %509 = vector.load %arg15[%c1_206, %c0_207, %c0_208] : memref<2x1x256xf32, #tpu.memory_space<vmem>>, vector<1x1x256xf32>
    %510 = vector.shape_cast %509 : vector<1x1x256xf32> to vector<1x256xf32>
    %511 = vector.broadcast %510 : vector<1x256xf32> to vector<64x256xf32>
    %512 = arith.addf %508, %511 : vector<64x256xf32>
    %513 = arith.mulf %512, %512 : vector<64x256xf32>
    %514 = arith.mulf %512, %513 : vector<64x256xf32>
    %cst_209 = arith.constant 4.471500e-02 : f32
    %515 = vector.broadcast %cst_209 : f32 to vector<64x256xf32>
    %516 = arith.mulf %515, %514 : vector<64x256xf32>
    %517 = arith.addf %512, %516 : vector<64x256xf32>
    %cst_210 = arith.constant 0.797884583 : f32
    %518 = vector.broadcast %cst_210 : f32 to vector<64x256xf32>
    %519 = arith.mulf %518, %517 : vector<64x256xf32>
    %520 = math.tanh %519 : vector<64x256xf32>
    %cst_211 = arith.constant 1.000000e+00 : f32
    %521 = vector.broadcast %cst_211 : f32 to vector<64x256xf32>
    %522 = arith.addf %521, %520 : vector<64x256xf32>
    %cst_212 = arith.constant 5.000000e-01 : f32
    %523 = vector.broadcast %cst_212 : f32 to vector<64x256xf32>
    %524 = arith.mulf %523, %522 : vector<64x256xf32>
    %525 = arith.mulf %512, %524 : vector<64x256xf32>
    %526 = arith.truncf %525 : vector<64x256xf32> to vector<64x256xbf16>
    %c1_213 = arith.constant 1 : index
    %c0_214 = arith.constant 0 : index
    %c0_215 = arith.constant 0 : index
    %527 = vector.load %arg16[%c1_213, %c0_214, %c0_215] : memref<2x256x64xbf16, #tpu.memory_space<vmem>>, vector<1x256x64xbf16>
    %528 = vector.shape_cast %527 : vector<1x256x64xbf16> to vector<256x64xbf16>
    %cst_216 = arith.constant dense<0.000000e+00> : vector<64x64xf32>
    %529 = tpu.matmul %526, %528, %cst_216 {dimension_numbers = #tpu.dot_dimension_numbers<[1], [0], [0], [1], [0, 0, 1, 1], [], []>} : vector<64x256xbf16>, vector<256x64xbf16>, vector<64x64xf32> -> vector<64x64xf32>
    %c1_217 = arith.constant 1 : index
    %c0_218 = arith.constant 0 : index
    %c0_219 = arith.constant 0 : index
    %530 = vector.load %arg17[%c1_217, %c0_218, %c0_219] : memref<2x1x64xf32, #tpu.memory_space<vmem>>, vector<1x1x64xf32>
    %531 = vector.shape_cast %530 : vector<1x1x64xf32> to vector<1x64xf32>
    %532 = vector.broadcast %531 : vector<1x64xf32> to vector<64x64xf32>
    %533 = arith.addf %529, %532 : vector<64x64xf32>
    %534 = arith.addf %478, %533 : vector<64x64xf32>
    %535 = vector.extract_strided_slice %534 {offsets = [0, 0], sizes = [1, 64], strides = [1, 1]} : vector<64x64xf32> to vector<1x64xf32>
    %536 = vector.extract_strided_slice %534 {offsets = [32, 0], sizes = [1, 64], strides = [1, 1]} : vector<64x64xf32> to vector<1x64xf32>
    %537 = tpu.concatenate %535, %536 in 0 : vector<1x64xf32>, vector<1x64xf32> -> vector<2x64xf32>
    %c0_220 = arith.constant 0 : index
    %c0_221 = arith.constant 0 : index
    %538 = vector.load %arg18[%c0_220, %c0_221] : memref<1x64xf32, #tpu.memory_space<vmem>>, vector<1x64xf32>
    %c0_222 = arith.constant 0 : index
    %c0_223 = arith.constant 0 : index
    %539 = vector.load %arg19[%c0_222, %c0_223] : memref<1x64xf32, #tpu.memory_space<vmem>>, vector<1x64xf32>
    %cst_224 = arith.constant dense<0.000000e+00> : vector<2xf32>
    %540 = vector.multi_reduction <add>, %537, %cst_224 [1] : vector<2x64xf32> to vector<2xf32>
    %541 = vector.shape_cast %540 : vector<2xf32> to vector<2x1xf32>
    %cst_225 = arith.constant 6.400000e+01 : f32
    %542 = vector.broadcast %cst_225 : f32 to vector<2x1xf32>
    %543 = arith.divf %541, %542 : vector<2x1xf32>
    %544 = arith.mulf %537, %537 : vector<2x64xf32>
    %cst_226 = arith.constant dense<0.000000e+00> : vector<2xf32>
    %545 = vector.multi_reduction <add>, %544, %cst_226 [1] : vector<2x64xf32> to vector<2xf32>
    %546 = vector.shape_cast %545 : vector<2xf32> to vector<2x1xf32>
    %cst_227 = arith.constant 6.400000e+01 : f32
    %547 = vector.broadcast %cst_227 : f32 to vector<2x1xf32>
    %548 = arith.divf %546, %547 : vector<2x1xf32>
    %549 = arith.mulf %543, %543 : vector<2x1xf32>
    %550 = arith.subf %548, %549 : vector<2x1xf32>
    %551 = vector.broadcast %543 : vector<2x1xf32> to vector<2x64xf32>
    %552 = arith.subf %537, %551 : vector<2x64xf32>
    %cst_228 = arith.constant 9.99999974E-6 : f32
    %553 = vector.broadcast %cst_228 : f32 to vector<2x1xf32>
    %554 = arith.addf %550, %553 : vector<2x1xf32>
    %555 = math.rsqrt %554 : vector<2x1xf32>
    %556 = vector.broadcast %555 : vector<2x1xf32> to vector<2x64xf32>
    %557 = arith.mulf %552, %556 : vector<2x64xf32>
    %558 = vector.broadcast %538 : vector<1x64xf32> to vector<2x64xf32>
    %559 = arith.mulf %557, %558 : vector<2x64xf32>
    %560 = vector.broadcast %539 : vector<1x64xf32> to vector<2x64xf32>
    %561 = arith.addf %559, %560 : vector<2x64xf32>
    %562 = arith.truncf %561 : vector<2x64xf32> to vector<2x64xbf16>
    %c0_229 = arith.constant 0 : index
    %c0_230 = arith.constant 0 : index
    %563 = vector.load %arg20[%c0_229, %c0_230] : memref<64x128xbf16, #tpu.memory_space<vmem>>, vector<64x128xbf16>
    %cst_231 = arith.constant dense<0.000000e+00> : vector<2x128xf32>
    %564 = tpu.matmul %562, %563, %cst_231 {dimension_numbers = #tpu.dot_dimension_numbers<[1], [0], [0], [1], [0, 0, 1, 1], [], []>} : vector<2x64xbf16>, vector<64x128xbf16>, vector<2x128xf32> -> vector<2x128xf32>
    %c0_232 = arith.constant 0 : index
    %c0_233 = arith.constant 0 : index
    %565 = vector.load %arg21[%c0_232, %c0_233] : memref<1x128xf32, #tpu.memory_space<vmem>>, vector<1x128xf32>
    %566 = vector.broadcast %565 : vector<1x128xf32> to vector<2x128xf32>
    %567 = arith.addf %564, %566 : vector<2x128xf32>
    %568 = vector.extract_strided_slice %567 {offsets = [0, 0], sizes = [1, 128], strides = [1, 1]} : vector<2x128xf32> to vector<1x128xf32>
    %c0_234 = arith.constant 0 : index
    %c0_235 = arith.constant 0 : index
    %c0_236 = arith.constant 0 : index
    %569 = vector.load %arg22[%c0_234, %c0_235, %c0_236] : memref<2x1x128xf32, #tpu.memory_space<vmem>>, vector<1x1x128xf32>
    %570 = vector.shape_cast %569 : vector<1x1x128xf32> to vector<1x128xf32>
    %571 = vector.shape_cast %568 : vector<1x128xf32> to vector<1x1x128xf32>
    tpu.vector_store %arg22[%c0_234, %c0_235, %c0_236], %571 {strides = array<i32>} : memref<2x1x128xf32, #tpu.memory_space<vmem>>, vector<1x1x128xf32>,
    %572 = vector.extract_strided_slice %567 {offsets = [1, 0], sizes = [1, 128], strides = [1, 1]} : vector<2x128xf32> to vector<1x128xf32>
    %c1_237 = arith.constant 1 : index
    %c0_238 = arith.constant 0 : index
    %c0_239 = arith.constant 0 : index
    %573 = vector.load %arg22[%c1_237, %c0_238, %c0_239] : memref<2x1x128xf32, #tpu.memory_space<vmem>>, vector<1x1x128xf32>
    %574 = vector.shape_cast %573 : vector<1x1x128xf32> to vector<1x128xf32>
    %575 = vector.shape_cast %572 : vector<1x128xf32> to vector<1x1x128xf32>
    tpu.vector_store %arg22[%c1_237, %c0_238, %c0_239], %575 {strides = array<i32>} : memref<2x1x128xf32, #tpu.memory_space<vmem>>, vector<1x1x128xf32>,
    return
  }
  func.func @transform_0(%arg0: i32) -> (i32, i32) {
    %c0_i32 = arith.constant 0 : i32
    %c0_i32_0 = arith.constant 0 : i32
    return %arg0, %c0_i32 : i32, i32
  }
  func.func @transform_1(%arg0: i32) -> (i32, i32) {
    %c0_i32 = arith.constant 0 : i32
    %c0_i32_0 = arith.constant 0 : i32
    %c0_i32_1 = arith.constant 0 : i32
    return %c0_i32, %c0_i32_0 : i32, i32
  }
  func.func @transform_2(%arg0: i32) -> (i32, i32) {
    %c0_i32 = arith.constant 0 : i32
    %c0_i32_0 = arith.constant 0 : i32
    %c0_i32_1 = arith.constant 0 : i32
    return %c0_i32, %c0_i32_0 : i32, i32
  }
  func.func @transform_3(%arg0: i32) -> (i32, i32) {
    %c0_i32 = arith.constant 0 : i32
    %c0_i32_0 = arith.constant 0 : i32
    %c0_i32_1 = arith.constant 0 : i32
    return %c0_i32, %c0_i32_0 : i32, i32
  }
  func.func @transform_4(%arg0: i32) -> (i32, i32) {
    %c0_i32 = arith.constant 0 : i32
    %c0_i32_0 = arith.constant 0 : i32
    %c0_i32_1 = arith.constant 0 : i32
    return %c0_i32, %c0_i32_0 : i32, i32
  }
  func.func @transform_5(%arg0: i32) -> (i32, i32, i32) {
    %c0_i32 = arith.constant 0 : i32
    %c0_i32_0 = arith.constant 0 : i32
    %c0_i32_1 = arith.constant 0 : i32
    %c0_i32_2 = arith.constant 0 : i32
    return %c0_i32, %c0_i32_0, %c0_i32_1 : i32, i32, i32
  }
  func.func @transform_6(%arg0: i32) -> (i32, i32, i32) {
    %c0_i32 = arith.constant 0 : i32
    %c0_i32_0 = arith.constant 0 : i32
    %c0_i32_1 = arith.constant 0 : i32
    %c0_i32_2 = arith.constant 0 : i32
    return %c0_i32, %c0_i32_0, %c0_i32_1 : i32, i32, i32
  }
  func.func @transform_7(%arg0: i32) -> (i32, i32, i32) {
    %c0_i32 = arith.constant 0 : i32
    %c0_i32_0 = arith.constant 0 : i32
    %c0_i32_1 = arith.constant 0 : i32
    %c0_i32_2 = arith.constant 0 : i32
    return %c0_i32, %c0_i32_0, %c0_i32_1 : i32, i32, i32
  }
  func.func @transform_8(%arg0: i32) -> (i32, i32, i32) {
    %c0_i32 = arith.constant 0 : i32
    %c0_i32_0 = arith.constant 0 : i32
    %c0_i32_1 = arith.constant 0 : i32
    %c0_i32_2 = arith.constant 0 : i32
    return %c0_i32, %c0_i32_0, %c0_i32_1 : i32, i32, i32
  }
  func.func @transform_9(%arg0: i32) -> (i32, i32, i32) {
    %c0_i32 = arith.constant 0 : i32
    %c0_i32_0 = arith.constant 0 : i32
    %c0_i32_1 = arith.constant 0 : i32
    %c0_i32_2 = arith.constant 0 : i32
    return %c0_i32, %c0_i32_0, %c0_i32_1 : i32, i32, i32
  }
  func.func @transform_10(%arg0: i32) -> (i32, i32, i32) {
    %c0_i32 = arith.constant 0 : i32
    %c0_i32_0 = arith.constant 0 : i32
    %c0_i32_1 = arith.constant 0 : i32
    %c0_i32_2 = arith.constant 0 : i32
    return %c0_i32, %c0_i32_0, %c0_i32_1 : i32, i32, i32
  }
  func.func @transform_11(%arg0: i32) -> (i32, i32, i32) {
    %c0_i32 = arith.constant 0 : i32
    %c0_i32_0 = arith.constant 0 : i32
    %c0_i32_1 = arith.constant 0 : i32
    %c0_i32_2 = arith.constant 0 : i32
    return %c0_i32, %c0_i32_0, %c0_i32_1 : i32, i32, i32
  }
  func.func @transform_12(%arg0: i32) -> (i32, i32, i32) {
    %c0_i32 = arith.constant 0 : i32
    %c0_i32_0 = arith.constant 0 : i32
    %c0_i32_1 = arith.constant 0 : i32
    %c0_i32_2 = arith.constant 0 : i32
    return %c0_i32, %c0_i32_0, %c0_i32_1 : i32, i32, i32
  }
  func.func @transform_13(%arg0: i32) -> (i32, i32, i32) {
    %c0_i32 = arith.constant 0 : i32
    %c0_i32_0 = arith.constant 0 : i32
    %c0_i32_1 = arith.constant 0 : i32
    %c0_i32_2 = arith.constant 0 : i32
    return %c0_i32, %c0_i32_0, %c0_i32_1 : i32, i32, i32
  }
  func.func @transform_14(%arg0: i32) -> (i32, i32, i32) {
    %c0_i32 = arith.constant 0 : i32
    %c0_i32_0 = arith.constant 0 : i32
    %c0_i32_1 = arith.constant 0 : i32
    %c0_i32_2 = arith.constant 0 : i32
    return %c0_i32, %c0_i32_0, %c0_i32_1 : i32, i32, i32
  }
  func.func @transform_15(%arg0: i32) -> (i32, i32, i32) {
    %c0_i32 = arith.constant 0 : i32
    %c0_i32_0 = arith.constant 0 : i32
    %c0_i32_1 = arith.constant 0 : i32
    %c0_i32_2 = arith.constant 0 : i32
    return %c0_i32, %c0_i32_0, %c0_i32_1 : i32, i32, i32
  }
  func.func @transform_16(%arg0: i32) -> (i32, i32, i32) {
    %c0_i32 = arith.constant 0 : i32
    %c0_i32_0 = arith.constant 0 : i32
    %c0_i32_1 = arith.constant 0 : i32
    %c0_i32_2 = arith.constant 0 : i32
    return %c0_i32, %c0_i32_0, %c0_i32_1 : i32, i32, i32
  }
  func.func @transform_17(%arg0: i32) -> (i32, i32) {
    %c0_i32 = arith.constant 0 : i32
    %c0_i32_0 = arith.constant 0 : i32
    %c0_i32_1 = arith.constant 0 : i32
    return %c0_i32, %c0_i32_0 : i32, i32
  }
  func.func @transform_18(%arg0: i32) -> (i32, i32) {
    %c0_i32 = arith.constant 0 : i32
    %c0_i32_0 = arith.constant 0 : i32
    %c0_i32_1 = arith.constant 0 : i32
    return %c0_i32, %c0_i32_0 : i32, i32
  }
  func.func @transform_19(%arg0: i32) -> (i32, i32) {
    %c0_i32 = arith.constant 0 : i32
    %c0_i32_0 = arith.constant 0 : i32
    %c0_i32_1 = arith.constant 0 : i32
    return %c0_i32, %c0_i32_0 : i32, i32
  }
  func.func @transform_20(%arg0: i32) -> (i32, i32) {
    %c0_i32 = arith.constant 0 : i32
    %c0_i32_0 = arith.constant 0 : i32
    %c0_i32_1 = arith.constant 0 : i32
    return %c0_i32, %c0_i32_0 : i32, i32
  }
  func.func @transform_21(%arg0: i32) -> (i32, i32, i32) {
    %c0_i32 = arith.constant 0 : i32
    %c0_i32_0 = arith.constant 0 : i32
    %c0_i32_1 = arith.constant 0 : i32
    return %arg0, %c0_i32, %c0_i32_0 : i32, i32, i32
  }
}

</mosaic_0001>

<llo_original>
// kernel: forward.1
$region0: #{forward.1}
  #allocation0 [shape = 'u32[]', space=smem, size = 0x4, offset = 0x4, fixed_abs, tag = 'smem constant byte address 0x4 - core index']
  #allocation1 [shape = 'u32[144,128]{1,0:T(1,128)}', space=vmem, size = 0x12000, scoped, tag = 'internal scratch']
  #allocation2 [shape = 'f32[64,64]{1,0:T(8,128)}', space=vmem, size = 0x8000, scoped, tag = 'scratch operand']
  %s0 = inlined_call_operand.vmem [shape: bf16[128,192], index: 0, kind: input, shape index: {}]
  %s1 = inlined_call_operand.vmem [shape: bf16[192,64], index: 1, kind: input, shape index: {}]
  %s2 = inlined_call_operand.vmem [shape: f32[64,64], index: 2, kind: input, shape index: {}]
  %s3 = inlined_call_operand.vmem [shape: f32[1,64], index: 3, kind: input, shape index: {}]
  %s4 = inlined_call_operand.vmem [shape: f32[1,64], index: 4, kind: input, shape index: {}]
  %s5 = inlined_call_operand.vmem [shape: f32[2,1,64], index: 5, kind: input, shape index: {}]
  %s6 = inlined_call_operand.vmem [shape: f32[2,1,64], index: 6, kind: input, shape index: {}]
  %s7 = inlined_call_operand.vmem [shape: bf16[2,64,192], index: 7, kind: input, shape index: {}]
  %s8 = inlined_call_operand.vmem [shape: f32[2,1,192], index: 8, kind: input, shape index: {}]
  %s9 = inlined_call_operand.vmem [shape: bf16[2,64,64], index: 9, kind: input, shape index: {}]
  %s10 = inlined_call_operand.vmem [shape: f32[2,1,64], index: 10, kind: input, shape index: {}]
  %s11 = inlined_call_operand.vmem [shape: f32[2,1,64], index: 11, kind: input, shape index: {}]
  %s12 = inlined_call_operand.vmem [shape: f32[2,1,64], index: 12, kind: input, shape index: {}]
  %s13 = inlined_call_operand.vmem [shape: bf16[2,64,256], index: 13, kind: input, shape index: {}]
  %s14 = inlined_call_operand.vmem [shape: f32[2,1,256], index: 14, kind: input, shape index: {}]
  %s15 = inlined_call_operand.vmem [shape: bf16[2,256,64], index: 15, kind: input, shape index: {}]
  %s16 = inlined_call_operand.vmem [shape: f32[2,1,64], index: 16, kind: input, shape index: {}]
  %s17 = inlined_call_operand.vmem [shape: f32[1,64], index: 17, kind: input, shape index: {}]
  %s18 = inlined_call_operand.vmem [shape: f32[1,64], index: 18, kind: input, shape index: {}]
  %s19 = inlined_call_operand.vmem [shape: bf16[64,128], index: 19, kind: input, shape index: {}]
  %s20 = inlined_call_operand.vmem [shape: f32[1,128], index: 20, kind: input, shape index: {}]
  %s21 = inlined_call_operand.vmem [shape: f32[4,1,128], index: 21, kind: output, shape index: {}]
  %s22 = sld [smem:[#allocation0]]
  $region117: #{forward.1} parent=0
    _
  %s24 = ssub.s32 1, %s22
  %s25 = scalar_select 0, %s24, %s22
  loop: start=0, step=1, limit=4
  $region2: #{forward.1} parent=0 // loop_pre_header
    _
  $region3: #{forward.1} parent=0 // loop_header
    %s27 = sphi 0, %s31
    %p28 = scmp.ge.s32.totalorder %s27, 4
    %s37 = sphi 0, %s39
    %s40 = sphi 0, %s37
    %s41 = sphi 0, %s40
    %s57 = sphi 0, %s41
    %s61 = sphi 0, %s61
    %s63 = sphi 0, %s61
    %s64 = sphi 0, %s63
    %s78 = sphi 0, %s64
    %s82 = sphi 0, %s82
    %s84 = sphi 0, %s82
    %s85 = sphi 0, %s84
    %s99 = sphi 0, %s85
    %s103 = sphi 0, %s103
    %s105 = sphi 0, %s103
    %s106 = sphi 0, %s105
    %s120 = sphi 0, %s106
    %s124 = sphi 0, %s124
    %s126 = sphi 0, %s124
    %s127 = sphi 0, %s126
    %s141 = sphi 0, %s127
    %s145 = sphi 0, %s145
    %s147 = sphi 0, %s145
    %s148 = sphi 0, %s147
    %s162 = sphi 0, %s148
    %s166 = sphi 0, %s166
    %s168 = sphi 0, %s166
    %s169 = sphi 0, %s168
    %s183 = sphi 0, %s169
    %s187 = sphi 0, %s187
    %s189 = sphi 0, %s187
    %s190 = sphi 0, %s189
    %s204 = sphi 0, %s190
    %s208 = sphi 0, %s208
    %s210 = sphi 0, %s208
    %s211 = sphi 0, %s210
    %s225 = sphi 0, %s211
    %s229 = sphi 0, %s229
    %s231 = sphi 0, %s229
    %s232 = sphi 0, %s231
    %s246 = sphi 0, %s232
    %s250 = sphi 0, %s250
    %s252 = sphi 0, %s250
    %s253 = sphi 0, %s252
    %s267 = sphi 0, %s253
    %s271 = sphi 0, %s271
    %s273 = sphi 0, %s271
    %s274 = sphi 0, %s273
    %s288 = sphi 0, %s274
    %s292 = sphi 0, %s292
    %s294 = sphi 0, %s292
    %s295 = sphi 0, %s294
    %s309 = sphi 0, %s295
    %s313 = sphi 0, %s313
    %s315 = sphi 0, %s313
    %s316 = sphi 0, %s315
    %s330 = sphi 0, %s316
    %s334 = sphi 0, %s334
    %s336 = sphi 0, %s334
    %s337 = sphi 0, %s336
    %s351 = sphi 0, %s337
    %s355 = sphi 0, %s355
    %s357 = sphi 0, %s355
    %s358 = sphi 0, %s357
    %s372 = sphi 0, %s358
    %s376 = sphi 0, %s376
    %s378 = sphi 0, %s376
    %s379 = sphi 0, %s378
    %s393 = sphi 0, %s379
    %s397 = sphi 0, %s397
    %s399 = sphi 0, %s397
    %s400 = sphi 0, %s399
    %s414 = sphi 0, %s400
    %s418 = sphi 0, %s418
    %s420 = sphi 0, %s418
    %s421 = sphi 0, %s420
    %s435 = sphi 0, %s421
    %s439 = sphi 0, %s439
    %s441 = sphi 0, %s439
    %s442 = sphi 0, %s441
    %s456 = sphi 0, %s442
    %s460 = sphi 0, %s460
    %s462 = sphi 0, %s460
    %s463 = sphi 0, %s462
    %s477 = sphi 0, %s463
    %s483 = sphi 0, %s485
    %s486 = sphi 0, %s483
    %s487 = sphi 0, %s486
    %s503 = sphi 0, %s487
  $region4: #{forward.1} parent=0 // loop_header_branch
    %30 = sbr.rel (%p28) target = $region8
  $region5: #{forward.1} parent=0 // loop_body
    %s32 = ssub.s32 %s27, 1
    %s33 = ssub.s32 %s27, 2
    %s34 = sadd.s32 %s27, 1
    %s35 = ssub.s32 %s27, %s34
    %p36 = scmp.eq.s32.totalorder %s35, 0
    %s38 = sadd.s32 %s37, 1
    %s39 = scalar_select %p36, %s37, %s38
    %p42 = pneg %p36
    %p43 = scmp.eq.s32.totalorder %s27, 1
    %p44 = por %p42, %p43
    %p45 = scmp.ne.s32.totalorder %s37, %s40
    %p46 = scmp.eq.s32.totalorder %s27, 0
    %p47 = por %p45, %p46
    %p48 = scmp.ne.s32.totalorder %s37, %s40
    %p49 = scmp.eq.s32.totalorder %s32, 1
    %p50 = por %p48, %p49
    %p51 = scmp.ne.s32.totalorder %s40, %s41
    %p52 = scmp.eq.s32.totalorder %s32, 0
    %p53 = por %p51, %p52
    %p54 = scmp.ne.s32.totalorder %s40, %s41
    %p55 = scmp.eq.s32.totalorder %s33, 1
    %p56 = por %p54, %p55
    %p58 = scmp.ne.s32.totalorder %s41, %s57
    %p59 = scmp.eq.s32.totalorder %s33, 0
    %p60 = por %p58, %p59
    %s62 = sadd.s32 %s61, 1
    %p65 = scmp.eq.s32.totalorder %s27, 1
    %p66 = scmp.ne.s32.totalorder %s61, %s63
    %p67 = scmp.eq.s32.totalorder %s27, 0
    %p68 = por %p66, %p67
    %p69 = scmp.ne.s32.totalorder %s61, %s63
    %p70 = scmp.eq.s32.totalorder %s32, 1
    %p71 = por %p69, %p70
    %p72 = scmp.ne.s32.totalorder %s63, %s64
    %p73 = scmp.eq.s32.totalorder %s32, 0
    %p74 = por %p72, %p73
    %p75 = scmp.ne.s32.totalorder %s63, %s64
    %p76 = scmp.eq.s32.totalorder %s33, 1
    %p77 = por %p75, %p76
    %p79 = scmp.ne.s32.totalorder %s64, %s78
    %p80 = scmp.eq.s32.totalorder %s33, 0
    %p81 = por %p79, %p80
    %s83 = sadd.s32 %s82, 1
    %p86 = scmp.eq.s32.totalorder %s27, 1
    %p87 = scmp.ne.s32.totalorder %s82, %s84
    %p88 = scmp.eq.s32.totalorder %s27, 0
    %p89 = por %p87, %p88
    %p90 = scmp.ne.s32.totalorder %s82, %s84
    %p91 = scmp.eq.s32.totalorder %s32, 1
    %p92 = por %p90, %p91
    %p93 = scmp.ne.s32.totalorder %s84, %s85
    %p94 = scmp.eq.s32.totalorder %s32, 0
    %p95 = por %p93, %p94
    %p96 = scmp.ne.s32.totalorder %s84, %s85
    %p97 = scmp.eq.s32.totalorder %s33, 1
    %p98 = por %p96, %p97
    %p100 = scmp.ne.s32.totalorder %s85, %s99
    %p101 = scmp.eq.s32.totalorder %s33, 0
    %p102 = por %p100, %p101
    %s104 = sadd.s32 %s103, 1
    %p107 = scmp.eq.s32.totalorder %s27, 1
    %p108 = scmp.ne.s32.totalorder %s103, %s105
    %p109 = scmp.eq.s32.totalorder %s27, 0
    %p110 = por %p108, %p109
    %p111 = scmp.ne.s32.totalorder %s103, %s105
    %p112 = scmp.eq.s32.totalorder %s32, 1
    %p113 = por %p111, %p112
    %p114 = scmp.ne.s32.totalorder %s105, %s106
    %p115 = scmp.eq.s32.totalorder %s32, 0
    %p116 = por %p114, %p115
    %p117 = scmp.ne.s32.totalorder %s105, %s106
    %p118 = scmp.eq.s32.totalorder %s33, 1
    %p119 = por %p117, %p118
    %p121 = scmp.ne.s32.totalorder %s106, %s120
    %p122 = scmp.eq.s32.totalorder %s33, 0
    %p123 = por %p121, %p122
    %s125 = sadd.s32 %s124, 1
    %p128 = scmp.eq.s32.totalorder %s27, 1
    %p129 = scmp.ne.s32.totalorder %s124, %s126
    %p130 = scmp.eq.s32.totalorder %s27, 0
    %p131 = por %p129, %p130
    %p132 = scmp.ne.s32.totalorder %s124, %s126
    %p133 = scmp.eq.s32.totalorder %s32, 1
    %p134 = por %p132, %p133
    %p135 = scmp.ne.s32.totalorder %s126, %s127
    %p136 = scmp.eq.s32.totalorder %s32, 0
    %p137 = por %p135, %p136
    %p138 = scmp.ne.s32.totalorder %s126, %s127
    %p139 = scmp.eq.s32.totalorder %s33, 1
    %p140 = por %p138, %p139
    %p142 = scmp.ne.s32.totalorder %s127, %s141
    %p143 = scmp.eq.s32.totalorder %s33, 0
    %p144 = por %p142, %p143
    %s146 = sadd.s32 %s145, 1
    %p149 = scmp.eq.s32.totalorder %s27, 1
    %p150 = scmp.ne.s32.totalorder %s145, %s147
    %p151 = scmp.eq.s32.totalorder %s27, 0
    %p152 = por %p150, %p151
    %p153 = scmp.ne.s32.totalorder %s145, %s147
    %p154 = scmp.eq.s32.totalorder %s32, 1
    %p155 = por %p153, %p154
    %p156 = scmp.ne.s32.totalorder %s147, %s148
    %p157 = scmp.eq.s32.totalorder %s32, 0
    %p158 = por %p156, %p157
    %p159 = scmp.ne.s32.totalorder %s147, %s148
    %p160 = scmp.eq.s32.totalorder %s33, 1
    %p161 = por %p159, %p160
    %p163 = scmp.ne.s32.totalorder %s148, %s162
    %p164 = scmp.eq.s32.totalorder %s33, 0
    %p165 = por %p163, %p164
    %s167 = sadd.s32 %s166, 1
    %p170 = scmp.eq.s32.totalorder %s27, 1
    %p171 = scmp.ne.s32.totalorder %s166, %s168
    %p172 = scmp.eq.s32.totalorder %s27, 0
    %p173 = por %p171, %p172
    %p174 = scmp.ne.s32.totalorder %s166, %s168
    %p175 = scmp.eq.s32.totalorder %s32, 1
    %p176 = por %p174, %p175
    %p177 = scmp.ne.s32.totalorder %s168, %s169
    %p178 = scmp.eq.s32.totalorder %s32, 0
    %p179 = por %p177, %p178
    %p180 = scmp.ne.s32.totalorder %s168, %s169
    %p181 = scmp.eq.s32.totalorder %s33, 1
    %p182 = por %p180, %p181
    %p184 = scmp.ne.s32.totalorder %s169, %s183
    %p185 = scmp.eq.s32.totalorder %s33, 0
    %p186 = por %p184, %p185
    %s188 = sadd.s32 %s187, 1
    %p191 = scmp.eq.s32.totalorder %s27, 1
    %p192 = scmp.ne.s32.totalorder %s187, %s189
    %p193 = scmp.eq.s32.totalorder %s27, 0
    %p194 = por %p192, %p193
    %p195 = scmp.ne.s32.totalorder %s187, %s189
    %p196 = scmp.eq.s32.totalorder %s32, 1
    %p197 = por %p195, %p196
    %p198 = scmp.ne.s32.totalorder %s189, %s190
    %p199 = scmp.eq.s32.totalorder %s32, 0
    %p200 = por %p198, %p199
    %p201 = scmp.ne.s32.totalorder %s189, %s190
    %p202 = scmp.eq.s32.totalorder %s33, 1
    %p203 = por %p201, %p202
    %p205 = scmp.ne.s32.totalorder %s190, %s204
    %p206 = scmp.eq.s32.totalorder %s33, 0
    %p207 = por %p205, %p206
    %s209 = sadd.s32 %s208, 1
    %p212 = scmp.eq.s32.totalorder %s27, 1
    %p213 = scmp.ne.s32.totalorder %s208, %s210
    %p214 = scmp.eq.s32.totalorder %s27, 0
    %p215 = por %p213, %p214
    %p216 = scmp.ne.s32.totalorder %s208, %s210
    %p217 = scmp.eq.s32.totalorder %s32, 1
    %p218 = por %p216, %p217
    %p219 = scmp.ne.s32.totalorder %s210, %s211
    %p220 = scmp.eq.s32.totalorder %s32, 0
    %p221 = por %p219, %p220
    %p222 = scmp.ne.s32.totalorder %s210, %s211
    %p223 = scmp.eq.s32.totalorder %s33, 1
    %p224 = por %p222, %p223
    %p226 = scmp.ne.s32.totalorder %s211, %s225
    %p227 = scmp.eq.s32.totalorder %s33, 0
    %p228 = por %p226, %p227
    %s230 = sadd.s32 %s229, 1
    %p233 = scmp.eq.s32.totalorder %s27, 1
    %p234 = scmp.ne.s32.totalorder %s229, %s231
    %p235 = scmp.eq.s32.totalorder %s27, 0
    %p236 = por %p234, %p235
    %p237 = scmp.ne.s32.totalorder %s229, %s231
    %p238 = scmp.eq.s32.totalorder %s32, 1
    %p239 = por %p237, %p238
    %p240 = scmp.ne.s32.totalorder %s231, %s232
    %p241 = scmp.eq.s32.totalorder %s32, 0
    %p242 = por %p240, %p241
    %p243 = scmp.ne.s32.totalorder %s231, %s232
    %p244 = scmp.eq.s32.totalorder %s33, 1
    %p245 = por %p243, %p244
    %p247 = scmp.ne.s32.totalorder %s232, %s246
    %p248 = scmp.eq.s32.totalorder %s33, 0
    %p249 = por %p247, %p248
    %s251 = sadd.s32 %s250, 1
    %p254 = scmp.eq.s32.totalorder %s27, 1
    %p255 = scmp.ne.s32.totalorder %s250, %s252
    %p256 = scmp.eq.s32.totalorder %s27, 0
    %p257 = por %p255, %p256
    %p258 = scmp.ne.s32.totalorder %s250, %s252
    %p259 = scmp.eq.s32.totalorder %s32, 1
    %p260 = por %p258, %p259
    %p261 = scmp.ne.s32.totalorder %s252, %s253
    %p262 = scmp.eq.s32.totalorder %s32, 0
    %p263 = por %p261, %p262
    %p264 = scmp.ne.s32.totalorder %s252, %s253
    %p265 = scmp.eq.s32.totalorder %s33, 1
    %p266 = por %p264, %p265
    %p268 = scmp.ne.s32.totalorder %s253, %s267
    %p269 = scmp.eq.s32.totalorder %s33, 0
    %p270 = por %p268, %p269
    %s272 = sadd.s32 %s271, 1
    %p275 = scmp.eq.s32.totalorder %s27, 1
    %p276 = scmp.ne.s32.totalorder %s271, %s273
    %p277 = scmp.eq.s32.totalorder %s27, 0
    %p278 = por %p276, %p277
    %p279 = scmp.ne.s32.totalorder %s271, %s273
    %p280 = scmp.eq.s32.totalorder %s32, 1
    %p281 = por %p279, %p280
    %p282 = scmp.ne.s32.totalorder %s273, %s274
    %p283 = scmp.eq.s32.totalorder %s32, 0
    %p284 = por %p282, %p283
    %p285 = scmp.ne.s32.totalorder %s273, %s274
    %p286 = scmp.eq.s32.totalorder %s33, 1
    %p287 = por %p285, %p286
    %p289 = scmp.ne.s32.totalorder %s274, %s288
    %p290 = scmp.eq.s32.totalorder %s33, 0
    %p291 = por %p289, %p290
    %s293 = sadd.s32 %s292, 1
    %p296 = scmp.eq.s32.totalorder %s27, 1
    %p297 = scmp.ne.s32.totalorder %s292, %s294
    %p298 = scmp.eq.s32.totalorder %s27, 0
    %p299 = por %p297, %p298
    %p300 = scmp.ne.s32.totalorder %s292, %s294
    %p301 = scmp.eq.s32.totalorder %s32, 1
    %p302 = por %p300, %p301
    %p303 = scmp.ne.s32.totalorder %s294, %s295
    %p304 = scmp.eq.s32.totalorder %s32, 0
    %p305 = por %p303, %p304
    %p306 = scmp.ne.s32.totalorder %s294, %s295
    %p307 = scmp.eq.s32.totalorder %s33, 1
    %p308 = por %p306, %p307
    %p310 = scmp.ne.s32.totalorder %s295, %s309
    %p311 = scmp.eq.s32.totalorder %s33, 0
    %p312 = por %p310, %p311
    %s314 = sadd.s32 %s313, 1
    %p317 = scmp.eq.s32.totalorder %s27, 1
    %p318 = scmp.ne.s32.totalorder %s313, %s315
    %p319 = scmp.eq.s32.totalorder %s27, 0
    %p320 = por %p318, %p319
    %p321 = scmp.ne.s32.totalorder %s313, %s315
    %p322 = scmp.eq.s32.totalorder %s32, 1
    %p323 = por %p321, %p322
    %p324 = scmp.ne.s32.totalorder %s315, %s316
    %p325 = scmp.eq.s32.totalorder %s32, 0
    %p326 = por %p324, %p325
    %p327 = scmp.ne.s32.totalorder %s315, %s316
    %p328 = scmp.eq.s32.totalorder %s33, 1
    %p329 = por %p327, %p328
    %p331 = scmp.ne.s32.totalorder %s316, %s330
    %p332 = scmp.eq.s32.totalorder %s33, 0
    %p333 = por %p331, %p332
    %s335 = sadd.s32 %s334, 1
    %p338 = scmp.eq.s32.totalorder %s27, 1
    %p339 = scmp.ne.s32.totalorder %s334, %s336
    %p340 = scmp.eq.s32.totalorder %s27, 0
    %p341 = por %p339, %p340
    %p342 = scmp.ne.s32.totalorder %s334, %s336
    %p343 = scmp.eq.s32.totalorder %s32, 1
    %p344 = por %p342, %p343
    %p345 = scmp.ne.s32.totalorder %s336, %s337
    %p346 = scmp.eq.s32.totalorder %s32, 0
    %p347 = por %p345, %p346
    %p348 = scmp.ne.s32.totalorder %s336, %s337
    %p349 = scmp.eq.s32.totalorder %s33, 1
    %p350 = por %p348, %p349
    %p352 = scmp.ne.s32.totalorder %s337, %s351
    %p353 = scmp.eq.s32.totalorder %s33, 0
    %p354 = por %p352, %p353
    %s356 = sadd.s32 %s355, 1
    %p359 = scmp.eq.s32.totalorder %s27, 1
    %p360 = scmp.ne.s32.totalorder %s355, %s357
    %p361 = scmp.eq.s32.totalorder %s27, 0
    %p362 = por %p360, %p361
    %p363 = scmp.ne.s32.totalorder %s355, %s357
    %p364 = scmp.eq.s32.totalorder %s32, 1
    %p365 = por %p363, %p364
    %p366 = scmp.ne.s32.totalorder %s357, %s358
    %p367 = scmp.eq.s32.totalorder %s32, 0
    %p368 = por %p366, %p367
    %p369 = scmp.ne.s32.totalorder %s357, %s358
    %p370 = scmp.eq.s32.totalorder %s33, 1
    %p371 = por %p369, %p370
    %p373 = scmp.ne.s32.totalorder %s358, %s372
    %p374 = scmp.eq.s32.totalorder %s33, 0
    %p375 = por %p373, %p374
    %s377 = sadd.s32 %s376, 1
    %p380 = scmp.eq.s32.totalorder %s27, 1
    %p381 = scmp.ne.s32.totalorder %s376, %s378
    %p382 = scmp.eq.s32.totalorder %s27, 0
    %p383 = por %p381, %p382
    %p384 = scmp.ne.s32.totalorder %s376, %s378
    %p385 = scmp.eq.s32.totalorder %s32, 1
    %p386 = por %p384, %p385
    %p387 = scmp.ne.s32.totalorder %s378, %s379
    %p388 = scmp.eq.s32.totalorder %s32, 0
    %p389 = por %p387, %p388
    %p390 = scmp.ne.s32.totalorder %s378, %s379
    %p391 = scmp.eq.s32.totalorder %s33, 1
    %p392 = por %p390, %p391
    %p394 = scmp.ne.s32.totalorder %s379, %s393
    %p395 = scmp.eq.s32.totalorder %s33, 0
    %p396 = por %p394, %p395
    %s398 = sadd.s32 %s397, 1
    %p401 = scmp.eq.s32.totalorder %s27, 1
    %p402 = scmp.ne.s32.totalorder %s397, %s399
    %p403 = scmp.eq.s32.totalorder %s27, 0
    %p404 = por %p402, %p403
    %p405 = scmp.ne.s32.totalorder %s397, %s399
    %p406 = scmp.eq.s32.totalorder %s32, 1
    %p407 = por %p405, %p406
    %p408 = scmp.ne.s32.totalorder %s399, %s400
    %p409 = scmp.eq.s32.totalorder %s32, 0
    %p410 = por %p408, %p409
    %p411 = scmp.ne.s32.totalorder %s399, %s400
    %p412 = scmp.eq.s32.totalorder %s33, 1
    %p413 = por %p411, %p412
    %p415 = scmp.ne.s32.totalorder %s400, %s414
    %p416 = scmp.eq.s32.totalorder %s33, 0
    %p417 = por %p415, %p416
    %s419 = sadd.s32 %s418, 1
    %p422 = scmp.eq.s32.totalorder %s27, 1
    %p423 = scmp.ne.s32.totalorder %s418, %s420
    %p424 = scmp.eq.s32.totalorder %s27, 0
    %p425 = por %p423, %p424
    %p426 = scmp.ne.s32.totalorder %s418, %s420
    %p427 = scmp.eq.s32.totalorder %s32, 1
    %p428 = por %p426, %p427
    %p429 = scmp.ne.s32.totalorder %s420, %s421
    %p430 = scmp.eq.s32.totalorder %s32, 0
    %p431 = por %p429, %p430
    %p432 = scmp.ne.s32.totalorder %s420, %s421
    %p433 = scmp.eq.s32.totalorder %s33, 1
    %p434 = por %p432, %p433
    %p436 = scmp.ne.s32.totalorder %s421, %s435
    %p437 = scmp.eq.s32.totalorder %s33, 0
    %p438 = por %p436, %p437
    %s440 = sadd.s32 %s439, 1
    %p443 = scmp.eq.s32.totalorder %s27, 1
    %p444 = scmp.ne.s32.totalorder %s439, %s441
    %p445 = scmp.eq.s32.totalorder %s27, 0
    %p446 = por %p444, %p445
    %p447 = scmp.ne.s32.totalorder %s439, %s441
    %p448 = scmp.eq.s32.totalorder %s32, 1
    %p449 = por %p447, %p448
    %p450 = scmp.ne.s32.totalorder %s441, %s442
    %p451 = scmp.eq.s32.totalorder %s32, 0
    %p452 = por %p450, %p451
    %p453 = scmp.ne.s32.totalorder %s441, %s442
    %p454 = scmp.eq.s32.totalorder %s33, 1
    %p455 = por %p453, %p454
    %p457 = scmp.ne.s32.totalorder %s442, %s456
    %p458 = scmp.eq.s32.totalorder %s33, 0
    %p459 = por %p457, %p458
    %s461 = sadd.s32 %s460, 1
    %p464 = scmp.eq.s32.totalorder %s27, 1
    %p465 = scmp.ne.s32.totalorder %s460, %s462
    %p466 = scmp.eq.s32.totalorder %s27, 0
    %p467 = por %p465, %p466
    %p468 = scmp.ne.s32.totalorder %s460, %s462
    %p469 = scmp.eq.s32.totalorder %s32, 1
    %p470 = por %p468, %p469
    %p471 = scmp.ne.s32.totalorder %s462, %s463
    %p472 = scmp.eq.s32.totalorder %s32, 0
    %p473 = por %p471, %p472
    %p474 = scmp.ne.s32.totalorder %s462, %s463
    %p475 = scmp.eq.s32.totalorder %s33, 1
    %p476 = por %p474, %p475
    %p478 = scmp.ne.s32.totalorder %s463, %s477
    %p479 = scmp.eq.s32.totalorder %s33, 0
    %p480 = por %p478, %p479
    %s481 = ssub.s32 %s27, %s34
    %p482 = scmp.eq.s32.totalorder %s481, 0
    %s484 = sadd.s32 %s483, 1
    %s485 = scalar_select %p482, %s483, %s484
    %p488 = pneg %p482
    %p489 = scmp.eq.s32.totalorder %s27, 1
    %p490 = por %p488, %p489
    %p491 = scmp.ne.s32.totalorder %s483, %s486
    %p492 = scmp.eq.s32.totalorder %s27, 0
    %p493 = por %p491, %p492
    %p494 = scmp.ne.s32.totalorder %s483, %s486
    %p495 = scmp.eq.s32.totalorder %s32, 1
    %p496 = por %p494, %p495
    %p497 = scmp.ne.s32.totalorder %s486, %s487
    %p498 = scmp.eq.s32.totalorder %s32, 0
    %p499 = por %p497, %p498
    %p500 = scmp.ne.s32.totalorder %s486, %s487
    %p501 = scmp.eq.s32.totalorder %s33, 1
    %p502 = por %p500, %p501
    %p504 = scmp.ne.s32.totalorder %s487, %s503
    %p505 = scmp.eq.s32.totalorder %s33, 0
    %p506 = por %p504, %p505
    %p507 = scmp.le.s32.totalorder 1, %s27
    %p508 = scmp.lt.s32.totalorder %s27, 3
    %p509 = pnand %p507, %p508
    %p510 = pneg %p509
    // Predicated region
    $region9: #{forward.1} parent=5 // pred_check
      _
    $region10: #{forward.1} parent=5 // pred_check_branch
      %512 = sbr.rel (%p509) target = $region12
    $region11: #{forward.1} parent=5 // pred_region
      %s513 = ssub.s32 %s27, 1
      // Predicated region
      $region13: #{forward.1} parent=11 // pred_check
        %p514 = pneg %p74
      $region14: #{forward.1} parent=11 // pred_check_branch
        %516 = sbr.rel (%p514) target = $region16
      $region15: #{forward.1} parent=11 // pred_region
        _
      $region16: #{forward.1} parent=11 // pred_fallthru
        _
      // Predicated region
      $region17: #{forward.1} parent=11 // pred_check
        %p517 = pneg %p95
      $region18: #{forward.1} parent=11 // pred_check_branch
        %519 = sbr.rel (%p517) target = $region20
      $region19: #{forward.1} parent=11 // pred_region
        _
      $region20: #{forward.1} parent=11 // pred_fallthru
        _
      // Predicated region
      $region21: #{forward.1} parent=11 // pred_check
        %p520 = pneg %p116
      $region22: #{forward.1} parent=11 // pred_check_branch
        %522 = sbr.rel (%p520) target = $region24
      $region23: #{forward.1} parent=11 // pred_region
        _
      $region24: #{forward.1} parent=11 // pred_fallthru
        _
      // Predicated region
      $region25: #{forward.1} parent=11 // pred_check
        %p523 = pneg %p137
      $region26: #{forward.1} parent=11 // pred_check_branch
        %525 = sbr.rel (%p523) target = $region28
      $region27: #{forward.1} parent=11 // pred_region
        _
      $region28: #{forward.1} parent=11 // pred_fallthru
        _
      // Predicated region
      $region29: #{forward.1} parent=11 // pred_check
        %p526 = pneg %p158
      $region30: #{forward.1} parent=11 // pred_check_branch
        %528 = sbr.rel (%p526) target = $region32
      $region31: #{forward.1} parent=11 // pred_region
        _
      $region32: #{forward.1} parent=11 // pred_fallthru
        _
      // Predicated region
      $region33: #{forward.1} parent=11 // pred_check
        %p529 = pneg %p179
      $region34: #{forward.1} parent=11 // pred_check_branch
        %531 = sbr.rel (%p529) target = $region36
      $region35: #{forward.1} parent=11 // pred_region
        _
      $region36: #{forward.1} parent=11 // pred_fallthru
        _
      // Predicated region
      $region37: #{forward.1} parent=11 // pred_check
        %p532 = pneg %p200
      $region38: #{forward.1} parent=11 // pred_check_branch
        %534 = sbr.rel (%p532) target = $region40
      $region39: #{forward.1} parent=11 // pred_region
        _
      $region40: #{forward.1} parent=11 // pred_fallthru
        _
      // Predicated region
      $region41: #{forward.1} parent=11 // pred_check
        %p535 = pneg %p221
      $region42: #{forward.1} parent=11 // pred_check_branch
        %537 = sbr.rel (%p535) target = $region44
      $region43: #{forward.1} parent=11 // pred_region
        _
      $region44: #{forward.1} parent=11 // pred_fallthru
        _
      // Predicated region
      $region45: #{forward.1} parent=11 // pred_check
        %p538 = pneg %p242
      $region46: #{forward.1} parent=11 // pred_check_branch
        %540 = sbr.rel (%p538) target = $region48
      $region47: #{forward.1} parent=11 // pred_region
        _
      $region48: #{forward.1} parent=11 // pred_fallthru
        _
      // Predicated region
      $region49: #{forward.1} parent=11 // pred_check
        %p541 = pneg %p263
      $region50: #{forward.1} parent=11 // pred_check_branch
        %543 = sbr.rel (%p541) target = $region52
      $region51: #{forward.1} parent=11 // pred_region
        _
      $region52: #{forward.1} parent=11 // pred_fallthru
        _
      // Predicated region
      $region53: #{forward.1} parent=11 // pred_check
        %p544 = pneg %p284
      $region54: #{forward.1} parent=11 // pred_check_branch
        %546 = sbr.rel (%p544) target = $region56
      $region55: #{forward.1} parent=11 // pred_region
        _
      $region56: #{forward.1} parent=11 // pred_fallthru
        _
      // Predicated region
      $region57: #{forward.1} parent=11 // pred_check
        %p547 = pneg %p305
      $region58: #{forward.1} parent=11 // pred_check_branch
        %549 = sbr.rel (%p547) target = $region60
      $region59: #{forward.1} parent=11 // pred_region
        _
      $region60: #{forward.1} parent=11 // pred_fallthru
        _
      // Predicated region
      $region61: #{forward.1} parent=11 // pred_check
        %p550 = pneg %p326
      $region62: #{forward.1} parent=11 // pred_check_branch
        %552 = sbr.rel (%p550) target = $region64
      $region63: #{forward.1} parent=11 // pred_region
        _
      $region64: #{forward.1} parent=11 // pred_fallthru
        _
      // Predicated region
      $region65: #{forward.1} parent=11 // pred_check
        %p553 = pneg %p347
      $region66: #{forward.1} parent=11 // pred_check_branch
        %555 = sbr.rel (%p553) target = $region68
      $region67: #{forward.1} parent=11 // pred_region
        _
      $region68: #{forward.1} parent=11 // pred_fallthru
        _
      // Predicated region
      $region69: #{forward.1} parent=11 // pred_check
        %p556 = pneg %p368
      $region70: #{forward.1} parent=11 // pred_check_branch
        %558 = sbr.rel (%p556) target = $region72
      $region71: #{forward.1} parent=11 // pred_region
        _
      $region72: #{forward.1} parent=11 // pred_fallthru
        _
      // Predicated region
      $region73: #{forward.1} parent=11 // pred_check
        %p559 = pneg %p389
      $region74: #{forward.1} parent=11 // pred_check_branch
        %561 = sbr.rel (%p559) target = $region76
      $region75: #{forward.1} parent=11 // pred_region
        _
      $region76: #{forward.1} parent=11 // pred_fallthru
        _
      // Predicated region
      $region77: #{forward.1} parent=11 // pred_check
        %p562 = pneg %p410
      $region78: #{forward.1} parent=11 // pred_check_branch
        %564 = sbr.rel (%p562) target = $region80
      $region79: #{forward.1} parent=11 // pred_region
        _
      $region80: #{forward.1} parent=11 // pred_fallthru
        _
      // Predicated region
      $region81: #{forward.1} parent=11 // pred_check
        %p565 = pneg %p431
      $region82: #{forward.1} parent=11 // pred_check_branch
        %567 = sbr.rel (%p565) target = $region84
      $region83: #{forward.1} parent=11 // pred_region
        _
      $region84: #{forward.1} parent=11 // pred_fallthru
        _
      // Predicated region
      $region85: #{forward.1} parent=11 // pred_check
        %p568 = pneg %p452
      $region86: #{forward.1} parent=11 // pred_check_branch
        %570 = sbr.rel (%p568) target = $region88
      $region87: #{forward.1} parent=11 // pred_region
        _
      $region88: #{forward.1} parent=11 // pred_fallthru
        _
      // Predicated region
      $region89: #{forward.1} parent=11 // pred_check
        %p571 = pneg %p473
      $region90: #{forward.1} parent=11 // pred_check_branch
        %573 = sbr.rel (%p571) target = $region92
      $region91: #{forward.1} parent=11 // pred_region
        _
      $region92: #{forward.1} parent=11 // pred_fallthru
        _
    $region12: #{forward.1} parent=5 // pred_fallthru
      _
    %p574 = scmp.lt.s32.totalorder %s27, 2
    // Predicated region
    $region93: #{forward.1} parent=5 // pred_check
      %p575 = pneg %p574
    $region94: #{forward.1} parent=5 // pred_check_branch
      %577 = sbr.rel (%p575) target = $region96
    $region95: #{forward.1} parent=5 // pred_region
      // Predicated region
      $region97: #{forward.1} parent=95 // pred_check
        %p578 = pneg %p47
      $region98: #{forward.1} parent=95 // pred_check_branch
        %580 = sbr.rel (%p578) target = $region100
      $region99: #{forward.1} parent=95 // pred_region
        %s581 = smul.u32 8, %s27
        %p582 = scmp.lt.s32.totalorder %s581, 15
        %s583 = scalar_select %p582, %s581, 15
        %s584 = smul.addr %s583, 2
        %s585 = smul.addr %s584, 4
        %s586 = scalar_lea.vmem %s0, %s585
        %s587 = smul.u32 8, %s27
      $region100: #{forward.1} parent=95 // pred_fallthru
        _
    $region96: #{forward.1} parent=5 // pred_fallthru
      _
    %p588 = scmp.le.s32.totalorder 1, %s27
    %p589 = scmp.lt.s32.totalorder %s27, 3
    %p590 = pnand %p588, %p589
    %p591 = pneg %p590
    // Predicated region
    $region101: #{forward.1} parent=5 // pred_check
      _
    $region102: #{forward.1} parent=5 // pred_check_branch
      %593 = sbr.rel (%p590) target = $region104
    $region103: #{forward.1} parent=5 // pred_region
      %s594 = ssub.s32 %s27, 1
      %s595 = smul.u32 8, %s32
      %p596 = scmp.lt.s32.totalorder %s595, 15
      %s597 = scalar_select %p596, %s595, 15
      %s598 = smul.addr %s597, 2
      %s599 = smul.addr %s598, 4
      %s600 = scalar_lea.vmem %s0, %s599
      %p601 = pneg %p53
      %p602 = pneg %p50
      %p603 = pneg %p74
      %p604 = pneg %p71
      %p605 = pneg %p95
      %p606 = pneg %p92
      %p607 = pneg %p116
      %p608 = pneg %p113
      %p609 = pneg %p137
      %p610 = pneg %p134
      %p611 = pneg %p158
      %p612 = pneg %p155
      %p613 = pneg %p179
      %p614 = pneg %p176
      %p615 = pneg %p200
      %p616 = pneg %p197
      %p617 = pneg %p221
      %p618 = pneg %p218
      %p619 = pneg %p242
      %p620 = pneg %p239
      %p621 = pneg %p263
      %p622 = pneg %p260
      %p623 = pneg %p284
      %p624 = pneg %p281
      %p625 = pneg %p305
      %p626 = pneg %p302
      %p627 = pneg %p326
      %p628 = pneg %p323
      %p629 = pneg %p347
      %p630 = pneg %p344
      %p631 = pneg %p368
      %p632 = pneg %p365
      %p633 = pneg %p389
      %p634 = pneg %p386
      %p635 = pneg %p410
      %p636 = pneg %p407
      %p637 = pneg %p431
      %p638 = pneg %p428
      %p639 = pneg %p452
      %p640 = pneg %p449
      %p641 = pneg %p473
      %p642 = pneg %p470
      %p643 = pneg %p499
      %p644 = pneg %p496
      %s645 = smul.u32 2, %s32
      %p646 = scmp.lt.s32.totalorder %s645, 3
      %s647 = scalar_select %p646, %s645, 3
      %s648 = scalar_lea.vmem %s21, %s647
      %s649 = smul.u32 8, %s32
      %p650 = scmp.lt.s32.totalorder %s649, 15
      %s651 = scalar_select %p650, %s649, 15
      %s652 = smul.addr %s651, 2
      %s653 = smul.addr %s652, 4
      %s654 = scalar_lea.vmem %s0, %s653
      %s655 = smul.u32 8, %s32
      %s656 = smul.u32 2, %s32
      %p657 = scmp.lt.s32.totalorder %s656, 3
      %s658 = scalar_select %p657, %s656, 3
      %s659 = scalar_lea.vmem %s21, %s658
      %s660 = smul.u32 2, %s32
      %v662 = vld [vmem:[%s654] sm:$0xff]
      %v663 = vld [vmem:[%s654 + $0x8] sm:$0xff]
      %v664 = vld [vmem:[%s654 + $0x10] sm:$0xff]
      %v665 = vld [vmem:[%s654 + $0x18] sm:$0xff]
      %v666 = vld [vmem:[%s654 + $0x20] sm:$0xff]
      %v667 = vld [vmem:[%s654 + $0x28] sm:$0xff]
      %v668 = vld [vmem:[%s654 + $0x30] sm:$0xff]
      %v669 = vld [vmem:[%s654 + $0x38] sm:$0xff]
      %v670 = vld [vmem:[%s1] sm:$0xf]
      %v671 = vld [vmem:[%s1 + $0x4] sm:$0xf]
      %v672 = vld [vmem:[%s1 + $0x8] sm:$0xf]
      %v673 = vld [vmem:[%s1 + $0xc] sm:$0xf]
      %v674 = vld [vmem:[%s1 + $0x10] sm:$0xf]
      %v675 = vld [vmem:[%s1 + $0x14] sm:$0xf]
      %v676 = vld [vmem:[%s1 + $0x18] sm:$0xf]
      %v677 = vld [vmem:[%s1 + $0x1c] sm:$0xf]
      %v678 = vld [vmem:[%s1 + $0x20] sm:$0xf]
      %v679 = vld [vmem:[%s1 + $0x24] sm:$0xf]
      %v680 = vld [vmem:[%s1 + $0x28] sm:$0xf]
      %v681 = vld [vmem:[%s1 + $0x2c] sm:$0xf]
      %v682 = vld [vmem:[%s1 + $0x30] sm:$0xf]
      %v683 = vld [vmem:[%s1 + $0x34] sm:$0xf]
      %v684 = vld [vmem:[%s1 + $0x38] sm:$0xf]
      %v685 = vld [vmem:[%s1 + $0x3c] sm:$0xf]
      %v686 = vld [vmem:[%s1 + $0x40] sm:$0xf]
      %v687 = vld [vmem:[%s1 + $0x44] sm:$0xf]
      %v688 = vld [vmem:[%s1 + $0x48] sm:$0xf]
      %v689 = vld [vmem:[%s1 + $0x4c] sm:$0xf]
      %v690 = vld [vmem:[%s1 + $0x50] sm:$0xf]
      %v691 = vld [vmem:[%s1 + $0x54] sm:$0xf]
      %v692 = vld [vmem:[%s1 + $0x58] sm:$0xf]
      %v693 = vld [vmem:[%s1 + $0x5c] sm:$0xf]
      %v694 = vld [vmem:[%s2] sm:$0xff]
      %v695 = vld [vmem:[%s2 + $0x8] sm:$0xff]
      %v696 = vld [vmem:[%s2 + $0x10] sm:$0xff]
      %v697 = vld [vmem:[%s2 + $0x18] sm:$0xff]
      %v698 = vld [vmem:[%s2 + $0x20] sm:$0xff]
      %v699 = vld [vmem:[%s2 + $0x28] sm:$0xff]
      %v700 = vld [vmem:[%s2 + $0x30] sm:$0xff]
      %v701 = vld [vmem:[%s2 + $0x38] sm:$0xff]
      %v710 = vunpack.c.l.b16 %v662
      %v711 = vunpack.c.h.b16 %v662
      %v712 = vunpack.c.l.b16 %v663
      %v713 = vunpack.c.h.b16 %v663
      %v714 = vunpack.c.l.b16 %v664
      %v715 = vunpack.c.h.b16 %v664
      %v716 = vunpack.c.l.b16 %v665
      %v717 = vunpack.c.h.b16 %v665
      %v718 = vunpack.c.l.b16 %v666
      %v719 = vunpack.c.h.b16 %v666
      %v720 = vunpack.c.l.b16 %v667
      %v721 = vunpack.c.h.b16 %v667
      %v722 = vunpack.c.l.b16 %v668
      %v723 = vunpack.c.h.b16 %v668
      %v724 = vunpack.c.l.b16 %v669
      %v725 = vunpack.c.h.b16 %v669
      %v726 = vpack.c.b16 %v712, %v710
      %v727 = vpack.c.b16 %v713, %v711
      %v728 = vpack.c.b16 %v716, %v714
      %v729 = vpack.c.b16 %v717, %v715
      %v730 = vpack.c.b16 %v720, %v718
      %v731 = vpack.c.b16 %v721, %v719
      %v732 = vpack.c.b16 %v724, %v722
      %v733 = vpack.c.b16 %v725, %v723
      %v762 = vunpack.c.l.b16 %v670
      %v763 = vunpack.c.l.b16 %v671
      %v764 = vunpack.c.l.b16 %v672
      %v765 = vunpack.c.l.b16 %v673
      %v766 = vunpack.c.l.b16 %v674
      %v767 = vunpack.c.l.b16 %v675
      %v768 = vunpack.c.l.b16 %v676
      %v769 = vunpack.c.l.b16 %v677
      %v770 = vunpack.c.l.b16 %v678
      %v771 = vunpack.c.l.b16 %v679
      %v772 = vunpack.c.l.b16 %v680
      %v773 = vunpack.c.l.b16 %v681
      %v774 = vunpack.c.l.b16 %v682
      %v775 = vunpack.c.l.b16 %v683
      %v776 = vunpack.c.l.b16 %v684
      %v777 = vunpack.c.l.b16 %v685
      %v778 = vunpack.c.l.b16 %v686
      %v779 = vunpack.c.l.b16 %v687
      %v780 = vunpack.c.l.b16 %v688
      %v781 = vunpack.c.l.b16 %v689
      %v782 = vunpack.c.l.b16 %v690
      %v783 = vunpack.c.l.b16 %v691
      %v784 = vunpack.c.l.b16 %v692
      %v785 = vunpack.c.l.b16 %v693
      %v786 = vpack.c.b16 %v763, %v762
      %v787 = vpack.c.b16 %v765, %v764
      %v788 = vpack.c.b16 %v767, %v766
      %v789 = vpack.c.b16 %v769, %v768
      %v790 = vpack.c.b16 %v771, %v770
      %v791 = vpack.c.b16 %v773, %v772
      %v792 = vpack.c.b16 %v775, %v774
      %v793 = vpack.c.b16 %v777, %v776
      %v794 = vpack.c.b16 %v779, %v778
      %v795 = vpack.c.b16 %v781, %v780
      %v796 = vpack.c.b16 %v783, %v782
      %v797 = vpack.c.b16 %v785, %v784
      %vm810 = vcmask 523264
      %v812 = vsel %vm810, %v727, 0
      %v815 = vsel %vm810, %v729, 0
      %v818 = vsel %vm810, %v731, 0
      %v821 = vsel %vm810, %v733, 0
      %823 = vmatprep.subr.bf16.mxu0 0
      %824 = vmatpush1.bf16.msra.mxu0 %v786
      %825 = vmatprep.subr.bf16.mxu0 0
      %826 = vmatpush1.bf16.msra.mxu0 %v787
      %827 = vmatprep.subr.bf16.mxu0 0
      %828 = vmatpush1.bf16.msra.mxu0 %v788
      %829 = vmatprep.subr.bf16.mxu0 0
      %830 = vmatpush1.bf16.msra.mxu0 %v789
      %831 = vmatprep.subr.bf16.mxu0 0
      %832 = vmatpush1.bf16.msra.mxu0 %v790
      %833 = vmatprep.subr.bf16.mxu0 0
      %834 = vmatpush1.bf16.msra.mxu0 %v791
      %835 = vmatprep.subr.bf16.mxu0 0
      %836 = vmatpush1.bf16.msra.mxu0 %v792
      %837 = vmatprep.subr.bf16.mxu0 0
      %838 = vmatpush1.bf16.msra.mxu0 %v793
      %839 = vmatprep.subr.bf16.mxu0 0
      %840 = vmatpush1.bf16.msra.mxu0 %v794
      %841 = vmatprep.subr.bf16.mxu0 0
      %842 = vmatpush1.bf16.msra.mxu0 %v795
      %843 = vmatprep.subr.bf16.mxu0 0
      %844 = vmatpush1.bf16.msra.mxu0 %v796
      %845 = vmatprep.subr.bf16.mxu0 0
      %846 = vmatpush1.bf16.msra.mxu0 %v797
      %847 = vmatprep.subr.bf16.mxu0 0
      %848 = vmatpush1.bf16.msra.mxu0 0
      %849 = vmatprep.subr.bf16.mxu0 0
      %850 = vmatpush1.bf16.msra.mxu0 0
      %851 = vmatprep.subr.bf16.mxu0 0
      %852 = vmatpush1.bf16.msra.mxu0 0
      %853 = vmatprep.subr.bf16.mxu0 0
      %854 = vmatpush1.bf16.msra.mxu0 0
      %855 = vmatprep.mubr.bf16.mxu0 %v812
      %856 = vmatmul.mubr.bf16.gmra.mrb[0].mxu0 %v726
      %v857 = vpop.f32.mrb[0].mxu0
      %v858 = vadd.f32 %v694, %v857
      %v859 = vpop.f32.mrb[0].mxu0
      %v860 = vpop.f32.mrb[0].mxu0
      %v861 = vadd.f32 %v695, %v860
      %v862 = vpop.f32.mrb[0].mxu0
      %863 = vmatprep.mubr.bf16.mxu0 %v815
      %864 = vmatmul.mubr.bf16.gmra.mrb[0].mxu0 %v728
      %v865 = vpop.f32.mrb[0].mxu0
      %v866 = vadd.f32 %v696, %v865
      %v867 = vpop.f32.mrb[0].mxu0
      %v868 = vpop.f32.mrb[0].mxu0
      %v869 = vadd.f32 %v697, %v868
      %v870 = vpop.f32.mrb[0].mxu0
      %871 = vmatprep.mubr.bf16.mxu0 %v818
      %872 = vmatmul.mubr.bf16.gmra.mrb[0].mxu0 %v730
      %v873 = vpop.f32.mrb[0].mxu0
      %v874 = vadd.f32 %v698, %v873
      %v875 = vpop.f32.mrb[0].mxu0
      %v876 = vpop.f32.mrb[0].mxu0
      %v877 = vadd.f32 %v699, %v876
      %v878 = vpop.f32.mrb[0].mxu0
      %879 = vmatprep.mubr.bf16.mxu0 %v821
      %880 = vmatmul.mubr.bf16.gmra.mrb[0].mxu0 %v732
      %v881 = vpop.f32.mrb[0].mxu0
      %v882 = vadd.f32 %v700, %v881
      %v883 = vpop.f32.mrb[0].mxu0
      %v884 = vpop.f32.mrb[0].mxu0
      %v885 = vadd.f32 %v701, %v884
      %v886 = vpop.f32.mrb[0].mxu0
      %887 = vdwg.mxu0
      %v888 = vld [vmem:[%s3] sm:$0x1]
      %v889 = vld [vmem:[%s4] sm:$0x1]
      %v890 = vsel %vm810, %v858, 0.0
      %891 = vadd.xlane.f32.xlu0 %v890
      %v892 = vpop.xlane.xlu0 %891
      %v893 = vsel %vm810, %v861, 0.0
      %894 = vadd.xlane.f32.xlu0 %v893
      %v895 = vpop.xlane.xlu0 %894
      %v896 = vsel %vm810, %v866, 0.0
      %897 = vadd.xlane.f32.xlu0 %v896
      %v898 = vpop.xlane.xlu0 %897
      %v899 = vsel %vm810, %v869, 0.0
      %900 = vadd.xlane.f32.xlu0 %v899
      %v901 = vpop.xlane.xlu0 %900
      %v902 = vsel %vm810, %v874, 0.0
      %903 = vadd.xlane.f32.xlu0 %v902
      %v904 = vpop.xlane.xlu0 %903
      %v905 = vsel %vm810, %v877, 0.0
      %906 = vadd.xlane.f32.xlu0 %v905
      %v907 = vpop.xlane.xlu0 %906
      %v908 = vsel %vm810, %v882, 0.0
      %909 = vadd.xlane.f32.xlu0 %v908
      %v910 = vpop.xlane.xlu0 %909
      %v911 = vsel %vm810, %v885, 0.0
      %912 = vadd.xlane.f32.xlu0 %v911
      %v913 = vpop.xlane.xlu0 %912
      %v914 = vrcp.pop 64.0
      %v915 = vmul.f32 %v892, %v914
      %v916 = vmul.f32 %v895, %v914
      %v917 = vmul.f32 %v898, %v914
      %v918 = vmul.f32 %v901, %v914
      %v919 = vmul.f32 %v904, %v914
      %v920 = vmul.f32 %v907, %v914
      %v921 = vmul.f32 %v910, %v914
      %v922 = vmul.f32 %v913, %v914
      %v923 = vmul.f32 %v858, %v858
      %v924 = vmul.f32 %v861, %v861
      %v925 = vmul.f32 %v866, %v866
      %v926 = vmul.f32 %v869, %v869
      %v927 = vmul.f32 %v874, %v874
      %v928 = vmul.f32 %v877, %v877
      %v929 = vmul.f32 %v882, %v882
      %v930 = vmul.f32 %v885, %v885
      %v931 = vsel %vm810, %v923, 0.0
      %932 = vadd.xlane.f32.xlu0 %v931
      %v933 = vpop.xlane.xlu0 %932
      %v934 = vsel %vm810, %v924, 0.0
      %935 = vadd.xlane.f32.xlu0 %v934
      %v936 = vpop.xlane.xlu0 %935
      %v937 = vsel %vm810, %v925, 0.0
      %938 = vadd.xlane.f32.xlu0 %v937
      %v939 = vpop.xlane.xlu0 %938
      %v940 = vsel %vm810, %v926, 0.0
      %941 = vadd.xlane.f32.xlu0 %v940
      %v942 = vpop.xlane.xlu0 %941
      %v943 = vsel %vm810, %v927, 0.0
      %944 = vadd.xlane.f32.xlu0 %v943
      %v945 = vpop.xlane.xlu0 %944
      %v946 = vsel %vm810, %v928, 0.0
      %947 = vadd.xlane.f32.xlu0 %v946
      %v948 = vpop.xlane.xlu0 %947
      %v949 = vsel %vm810, %v929, 0.0
      %950 = vadd.xlane.f32.xlu0 %v949
      %v951 = vpop.xlane.xlu0 %950
      %v952 = vsel %vm810, %v930, 0.0
      %953 = vadd.xlane.f32.xlu0 %v952
      %v954 = vpop.xlane.xlu0 %953
      %v955 = vmul.f32 %v933, %v914
      %v956 = vmul.f32 %v936, %v914
      %v957 = vmul.f32 %v939, %v914
      %v958 = vmul.f32 %v942, %v914
      %v959 = vmul.f32 %v945, %v914
      %v960 = vmul.f32 %v948, %v914
      %v961 = vmul.f32 %v951, %v914
      %v962 = vmul.f32 %v954, %v914
      %v963 = vmul.f32 %v915, %v915
      %v964 = vmul.f32 %v916, %v916
      %v965 = vmul.f32 %v917, %v917
      %v966 = vmul.f32 %v918, %v918
      %v967 = vmul.f32 %v919, %v919
      %v968 = vmul.f32 %v920, %v920
      %v969 = vmul.f32 %v921, %v921
      %v970 = vmul.f32 %v922, %v922
      %v971 = vsub.f32 %v955, %v963
      %v972 = vsub.f32 %v956, %v964
      %v973 = vsub.f32 %v957, %v965
      %v974 = vsub.f32 %v958, %v966
      %v975 = vsub.f32 %v959, %v967
      %v976 = vsub.f32 %v960, %v968
      %v977 = vsub.f32 %v961, %v969
      %v978 = vsub.f32 %v962, %v970
      %v979 = vsub.f32 %v858, %v915
      %v980 = vsub.f32 %v861, %v916
      %v981 = vsub.f32 %v866, %v917
      %v982 = vsub.f32 %v869, %v918
      %v983 = vsub.f32 %v874, %v919
      %v984 = vsub.f32 %v877, %v920
      %v985 = vsub.f32 %v882, %v921
      %v986 = vsub.f32 %v885, %v922
      %v987 = vadd.f32 %v971, 1e-05
      %v988 = vadd.f32 %v972, 1e-05
      %v989 = vadd.f32 %v973, 1e-05
      %v990 = vadd.f32 %v974, 1e-05
      %v991 = vadd.f32 %v975, 1e-05
      %v992 = vadd.f32 %v976, 1e-05
      %v993 = vadd.f32 %v977, 1e-05
      %v994 = vadd.f32 %v978, 1e-05
      %v995 = vrsqrt.pop %v987
      %v996 = vrsqrt.pop %v988
      %v997 = vrsqrt.pop %v989
      %v998 = vrsqrt.pop %v990
      %v999 = vrsqrt.pop %v991
      %v1000 = vrsqrt.pop %v992
      %v1001 = vrsqrt.pop %v993
      %v1002 = vrsqrt.pop %v994
      %v1003 = vmul.f32 %v979, %v995
      %v1004 = vmul.f32 %v980, %v996
      %v1005 = vmul.f32 %v981, %v997
      %v1006 = vmul.f32 %v982, %v998
      %v1007 = vmul.f32 %v983, %v999
      %v1008 = vmul.f32 %v984, %v1000
      %v1009 = vmul.f32 %v985, %v1001
      %v1010 = vmul.f32 %v986, %v1002
      %v1012 = vlaneseq
      %v1013 = vshrl.u32 %v1012, 7
      %v1014 = vsub.s32 0, %v1013
      %v1015 = vrot.slane %v888, %v1014
      %v1017 = vmul.f32 %v1003, %v1015
      %v1018 = vmul.f32 %v1004, %v1015
      %v1019 = vmul.f32 %v1005, %v1015
      %v1020 = vmul.f32 %v1006, %v1015
      %v1021 = vmul.f32 %v1007, %v1015
      %v1022 = vmul.f32 %v1008, %v1015
      %v1023 = vmul.f32 %v1009, %v1015
      %v1024 = vmul.f32 %v1010, %v1015
      %v1026 = vlaneseq
      %v1027 = vshrl.u32 %v1026, 7
      %v1028 = vsub.s32 0, %v1027
      %v1029 = vrot.slane %v889, %v1028
      %v1031 = vadd.f32 %v1017, %v1029
      %v1032 = vadd.f32 %v1018, %v1029
      %v1033 = vadd.f32 %v1019, %v1029
      %v1034 = vadd.f32 %v1020, %v1029
      %v1035 = vadd.f32 %v1021, %v1029
      %v1036 = vadd.f32 %v1022, %v1029
      %v1037 = vadd.f32 %v1023, %v1029
      %v1038 = vadd.f32 %v1024, %v1029
      %v1039 = vlaneseq
      %v1040 = vand.u32 %v1039, 127
      %vm1041 = vcmp.lt.s32.totalorder %v1040, 17
      %v1042 = vsel %vm1041, 0.0, -1e+30
      %v1043 = vld [vmem:[%s5] sm:$0x1]
      %v1044 = vld [vmem:[%s6] sm:$0x1]
      %v1045 = vsel %vm810, %v1031, 0.0
      %1046 = vadd.xlane.f32.xlu0 %v1045
      %v1047 = vpop.xlane.xlu0 %1046
      %v1048 = vsel %vm810, %v1032, 0.0
      %1049 = vadd.xlane.f32.xlu0 %v1048
      %v1050 = vpop.xlane.xlu0 %1049
      %v1051 = vsel %vm810, %v1033, 0.0
      %1052 = vadd.xlane.f32.xlu0 %v1051
      %v1053 = vpop.xlane.xlu0 %1052
      %v1054 = vsel %vm810, %v1034, 0.0
      %1055 = vadd.xlane.f32.xlu0 %v1054
      %v1056 = vpop.xlane.xlu0 %1055
      %v1057 = vsel %vm810, %v1035, 0.0
      %1058 = vadd.xlane.f32.xlu0 %v1057
      %v1059 = vpop.xlane.xlu0 %1058
      %v1060 = vsel %vm810, %v1036, 0.0
      %1061 = vadd.xlane.f32.xlu0 %v1060
      %v1062 = vpop.xlane.xlu0 %1061
      %v1063 = vsel %vm810, %v1037, 0.0
      %1064 = vadd.xlane.f32.xlu0 %v1063
      %v1065 = vpop.xlane.xlu0 %1064
      %v1066 = vsel %vm810, %v1038, 0.0
      %1067 = vadd.xlane.f32.xlu0 %v1066
      %v1068 = vpop.xlane.xlu0 %1067
      %v1069 = vmul.f32 %v1047, %v914
      %v1070 = vmul.f32 %v1050, %v914
      %v1071 = vmul.f32 %v1053, %v914
      %v1072 = vmul.f32 %v1056, %v914
      %v1073 = vmul.f32 %v1059, %v914
      %v1074 = vmul.f32 %v1062, %v914
      %v1075 = vmul.f32 %v1065, %v914
      %v1076 = vmul.f32 %v1068, %v914
      %v1077 = vmul.f32 %v1031, %v1031
      %v1078 = vmul.f32 %v1032, %v1032
      %v1079 = vmul.f32 %v1033, %v1033
      %v1080 = vmul.f32 %v1034, %v1034
      %v1081 = vmul.f32 %v1035, %v1035
      %v1082 = vmul.f32 %v1036, %v1036
      %v1083 = vmul.f32 %v1037, %v1037
      %v1084 = vmul.f32 %v1038, %v1038
      %v1085 = vsel %vm810, %v1077, 0.0
      %1086 = vadd.xlane.f32.xlu0 %v1085
      %v1087 = vpop.xlane.xlu0 %1086
      %v1088 = vsel %vm810, %v1078, 0.0
      %1089 = vadd.xlane.f32.xlu0 %v1088
      %v1090 = vpop.xlane.xlu0 %1089
      %v1091 = vsel %vm810, %v1079, 0.0
      %1092 = vadd.xlane.f32.xlu0 %v1091
      %v1093 = vpop.xlane.xlu0 %1092
      %v1094 = vsel %vm810, %v1080, 0.0
      %1095 = vadd.xlane.f32.xlu0 %v1094
      %v1096 = vpop.xlane.xlu0 %1095
      %v1097 = vsel %vm810, %v1081, 0.0
      %1098 = vadd.xlane.f32.xlu0 %v1097
      %v1099 = vpop.xlane.xlu0 %1098
      %v1100 = vsel %vm810, %v1082, 0.0
      %1101 = vadd.xlane.f32.xlu0 %v1100
      %v1102 = vpop.xlane.xlu0 %1101
      %v1103 = vsel %vm810, %v1083, 0.0
      %1104 = vadd.xlane.f32.xlu0 %v1103
      %v1105 = vpop.xlane.xlu0 %1104
      %v1106 = vsel %vm810, %v1084, 0.0
      %1107 = vadd.xlane.f32.xlu0 %v1106
      %v1108 = vpop.xlane.xlu0 %1107
      %v1109 = vmul.f32 %v1087, %v914
      %v1110 = vmul.f32 %v1090, %v914
      %v1111 = vmul.f32 %v1093, %v914
      %v1112 = vmul.f32 %v1096, %v914
      %v1113 = vmul.f32 %v1099, %v914
      %v1114 = vmul.f32 %v1102, %v914
      %v1115 = vmul.f32 %v1105, %v914
      %v1116 = vmul.f32 %v1108, %v914
      %v1117 = vmul.f32 %v1069, %v1069
      %v1118 = vmul.f32 %v1070, %v1070
      %v1119 = vmul.f32 %v1071, %v1071
      %v1120 = vmul.f32 %v1072, %v1072
      %v1121 = vmul.f32 %v1073, %v1073
      %v1122 = vmul.f32 %v1074, %v1074
      %v1123 = vmul.f32 %v1075, %v1075
      %v1124 = vmul.f32 %v1076, %v1076
      %v1125 = vsub.f32 %v1109, %v1117
      %v1126 = vsub.f32 %v1110, %v1118
      %v1127 = vsub.f32 %v1111, %v1119
      %v1128 = vsub.f32 %v1112, %v1120
      %v1129 = vsub.f32 %v1113, %v1121
      %v1130 = vsub.f32 %v1114, %v1122
      %v1131 = vsub.f32 %v1115, %v1123
      %v1132 = vsub.f32 %v1116, %v1124
      %v1133 = vsub.f32 %v1031, %v1069
      %v1134 = vsub.f32 %v1032, %v1070
      %v1135 = vsub.f32 %v1033, %v1071
      %v1136 = vsub.f32 %v1034, %v1072
      %v1137 = vsub.f32 %v1035, %v1073
      %v1138 = vsub.f32 %v1036, %v1074
      %v1139 = vsub.f32 %v1037, %v1075
      %v1140 = vsub.f32 %v1038, %v1076
      %v1141 = vadd.f32 %v1125, 1e-05
      %v1142 = vadd.f32 %v1126, 1e-05
      %v1143 = vadd.f32 %v1127, 1e-05
      %v1144 = vadd.f32 %v1128, 1e-05
      %v1145 = vadd.f32 %v1129, 1e-05
      %v1146 = vadd.f32 %v1130, 1e-05
      %v1147 = vadd.f32 %v1131, 1e-05
      %v1148 = vadd.f32 %v1132, 1e-05
      %v1149 = vrsqrt.pop %v1141
      %v1150 = vrsqrt.pop %v1142
      %v1151 = vrsqrt.pop %v1143
      %v1152 = vrsqrt.pop %v1144
      %v1153 = vrsqrt.pop %v1145
      %v1154 = vrsqrt.pop %v1146
      %v1155 = vrsqrt.pop %v1147
      %v1156 = vrsqrt.pop %v1148
      %v1157 = vmul.f32 %v1133, %v1149
      %v1158 = vmul.f32 %v1134, %v1150
      %v1159 = vmul.f32 %v1135, %v1151
      %v1160 = vmul.f32 %v1136, %v1152
      %v1161 = vmul.f32 %v1137, %v1153
      %v1162 = vmul.f32 %v1138, %v1154
      %v1163 = vmul.f32 %v1139, %v1155
      %v1164 = vmul.f32 %v1140, %v1156
      %v1166 = vlaneseq
      %v1167 = vshrl.u32 %v1166, 7
      %v1168 = vsub.s32 0, %v1167
      %v1169 = vrot.slane %v1043, %v1168
      %v1171 = vmul.f32 %v1157, %v1169
      %v1172 = vmul.f32 %v1158, %v1169
      %v1173 = vmul.f32 %v1159, %v1169
      %v1174 = vmul.f32 %v1160, %v1169
      %v1175 = vmul.f32 %v1161, %v1169
      %v1176 = vmul.f32 %v1162, %v1169
      %v1177 = vmul.f32 %v1163, %v1169
      %v1178 = vmul.f32 %v1164, %v1169
      %v1180 = vlaneseq
      %v1181 = vshrl.u32 %v1180, 7
      %v1182 = vsub.s32 0, %v1181
      %v1183 = vrot.slane %v1044, %v1182
      %v1185 = vadd.f32 %v1171, %v1183
      %v1186 = vadd.f32 %v1172, %v1183
      %v1187 = vadd.f32 %v1173, %v1183
      %v1188 = vadd.f32 %v1174, %v1183
      %v1189 = vadd.f32 %v1175, %v1183
      %v1190 = vadd.f32 %v1176, %v1183
      %v1191 = vadd.f32 %v1177, %v1183
      %v1192 = vadd.f32 %v1178, %v1183
      %v1193 = vpack.c.bf16 %v1186, %v1185
      %v1194 = vpack.c.bf16 %v1188, %v1187
      %v1195 = vpack.c.bf16 %v1190, %v1189
      %v1196 = vpack.c.bf16 %v1192, %v1191
      %v1197 = vld [vmem:[%s7] sm:$0xff]
      %v1198 = vld [vmem:[%s7 + $0x8] sm:$0xff]
      %v1199 = vld [vmem:[%s7 + $0x10] sm:$0xff]
      %v1200 = vld [vmem:[%s7 + $0x18] sm:$0xff]
      %v1201 = vld [vmem:[%s7 + $0x20] sm:$0xff]
      %v1202 = vld [vmem:[%s7 + $0x28] sm:$0xff]
      %v1203 = vld [vmem:[%s7 + $0x30] sm:$0xff]
      %v1204 = vld [vmem:[%s7 + $0x38] sm:$0xff]
      %v1205 = vld [vmem:[%s8] sm:$0x3]
      %v1207 = vlaneseq
      %v1208 = vshrl.u32 %v1207, 7
      %v1209 = vsub.s32 0, %v1208
      %v1210 = vrot.slane %v1205, %v1209
      %v1211 = vlaneseq
      %v1212 = vshrl.u32 %v1211, 7
      %v1213 = vsub.s32 1, %v1212
      %v1214 = vrot.slane %v1205, %v1213
      %v1225 = vunpack.c.l.b16 %v1197
      %v1226 = vunpack.c.h.b16 %v1197
      %v1227 = vunpack.c.l.b16 %v1198
      %v1228 = vunpack.c.h.b16 %v1198
      %v1229 = vunpack.c.l.b16 %v1199
      %v1230 = vunpack.c.h.b16 %v1199
      %v1231 = vunpack.c.l.b16 %v1200
      %v1232 = vunpack.c.h.b16 %v1200
      %v1233 = vunpack.c.l.b16 %v1201
      %v1234 = vunpack.c.h.b16 %v1201
      %v1235 = vunpack.c.l.b16 %v1202
      %v1236 = vunpack.c.h.b16 %v1202
      %v1237 = vunpack.c.l.b16 %v1203
      %v1238 = vunpack.c.h.b16 %v1203
      %v1239 = vunpack.c.l.b16 %v1204
      %v1240 = vunpack.c.h.b16 %v1204
      %v1241 = vpack.c.b16 %v1227, %v1225
      %v1242 = vpack.c.b16 %v1228, %v1226
      %v1243 = vpack.c.b16 %v1231, %v1229
      %v1244 = vpack.c.b16 %v1232, %v1230
      %v1245 = vpack.c.b16 %v1235, %v1233
      %v1246 = vpack.c.b16 %v1236, %v1234
      %v1247 = vpack.c.b16 %v1239, %v1237
      %v1248 = vpack.c.b16 %v1240, %v1238
      %v1258 = vsel %vm810, %v1193, 0
      %v1261 = vsel %vm810, %v1194, 0
      %v1264 = vsel %vm810, %v1195, 0
      %v1267 = vsel %vm810, %v1196, 0
      %1269 = vmatprep.subr.bf16.mxu0 %v1242
      %1270 = vmatpush1.bf16.msra.mxu0 %v1241
      %1271 = vmatprep.subr.bf16.mxu0 %v1244
      %1272 = vmatpush1.bf16.msra.mxu0 %v1243
      %1273 = vmatprep.subr.bf16.mxu0 %v1246
      %1274 = vmatpush1.bf16.msra.mxu0 %v1245
      %1275 = vmatprep.subr.bf16.mxu0 %v1248
      %1276 = vmatpush1.bf16.msra.mxu0 %v1247
      %1277 = vmatprep.subr.bf16.mxu0 0
      %1278 = vmatpush1.bf16.msra.mxu0 0
      %1279 = vmatprep.subr.bf16.mxu0 0
      %1280 = vmatpush1.bf16.msra.mxu0 0
      %1281 = vmatprep.subr.bf16.mxu0 0
      %1282 = vmatpush1.bf16.msra.mxu0 0
      %1283 = vmatprep.subr.bf16.mxu0 0
      %1284 = vmatpush1.bf16.msra.mxu0 0
      %1285 = vmatprep.subr.bf16.mxu0 0
      %1286 = vmatpush1.bf16.msra.mxu0 0
      %1287 = vmatprep.subr.bf16.mxu0 0
      %1288 = vmatpush1.bf16.msra.mxu0 0
      %1289 = vmatprep.subr.bf16.mxu0 0
      %1290 = vmatpush1.bf16.msra.mxu0 0
      %1291 = vmatprep.subr.bf16.mxu0 0
      %1292 = vmatpush1.bf16.msra.mxu0 0
      %1293 = vmatprep.subr.bf16.mxu0 0
      %1294 = vmatpush1.bf16.msra.mxu0 0
      %1295 = vmatprep.subr.bf16.mxu0 0
      %1296 = vmatpush1.bf16.msra.mxu0 0
      %1297 = vmatprep.subr.bf16.mxu0 0
      %1298 = vmatpush1.bf16.msra.mxu0 0
      %1299 = vmatprep.subr.bf16.mxu0 0
      %1300 = vmatpush1.bf16.msra.mxu0 0
      %1301 = vmatprep.mubr.bf16.mxu0 0
      %1302 = vmatmul.mubr.bf16.gmra.mrb[0].mxu0 %v1258
      %v1303 = vpop.f32.mrb[0].mxu0
      %v1304 = vadd.f32 %v1210, %v1303
      %v1305 = vpop.f32.mrb[0].mxu0
      %v1306 = vadd.f32 %v1214, %v1305
      %v1307 = vpop.f32.mrb[0].mxu0
      %v1308 = vadd.f32 %v1210, %v1307
      %v1309 = vpop.f32.mrb[0].mxu0
      %v1310 = vadd.f32 %v1214, %v1309
      %1311 = vmatprep.mubr.bf16.mxu0 0
      %1312 = vmatmul.mubr.bf16.gmra.mrb[0].mxu0 %v1261
      %v1313 = vpop.f32.mrb[0].mxu0
      %v1314 = vadd.f32 %v1210, %v1313
      %v1315 = vpop.f32.mrb[0].mxu0
      %v1316 = vadd.f32 %v1214, %v1315
      %v1317 = vpop.f32.mrb[0].mxu0
      %v1318 = vadd.f32 %v1210, %v1317
      %v1319 = vpop.f32.mrb[0].mxu0
      %v1320 = vadd.f32 %v1214, %v1319
      %1321 = vmatprep.mubr.bf16.mxu0 0
      %1322 = vmatmul.mubr.bf16.gmra.mrb[0].mxu0 %v1264
      %v1323 = vpop.f32.mrb[0].mxu0
      %v1324 = vadd.f32 %v1210, %v1323
      %v1325 = vpop.f32.mrb[0].mxu0
      %v1326 = vadd.f32 %v1214, %v1325
      %v1327 = vpop.f32.mrb[0].mxu0
      %v1328 = vadd.f32 %v1210, %v1327
      %v1329 = vpop.f32.mrb[0].mxu0
      %v1330 = vadd.f32 %v1214, %v1329
      %1331 = vmatprep.mubr.bf16.mxu0 0
      %1332 = vmatmul.mubr.bf16.gmra.mrb[0].mxu0 %v1267
      %v1333 = vpop.f32.mrb[0].mxu0
      %v1334 = vadd.f32 %v1210, %v1333
      %v1335 = vpop.f32.mrb[0].mxu0
      %v1336 = vadd.f32 %v1214, %v1335
      %v1337 = vpop.f32.mrb[0].mxu0
      %v1338 = vadd.f32 %v1210, %v1337
      %v1339 = vpop.f32.mrb[0].mxu0
      %v1340 = vadd.f32 %v1214, %v1339
      %1341 = vdwg.mxu0
      %v1342 = vpack.c.bf16 %v1308, %v1304
      %v1343 = vpack.c.bf16 %v1318, %v1314
      %v1344 = vpack.c.bf16 %v1328, %v1324
      %v1345 = vpack.c.bf16 %v1338, %v1334
      %v1346 = vpack.c.bf16 %v1310, %v1306
      %v1347 = vpack.c.bf16 %v1320, %v1316
      %v1348 = vpack.c.bf16 %v1330, %v1326
      %v1349 = vpack.c.bf16 %v1340, %v1336
      %1352 = vrot.lane.b32.xlu0 %v1342, 64
      %v1353 = vpop.permute.xlu0 %1352
      %1354 = vrot.lane.b32.xlu0 %v1343, 64
      %v1355 = vpop.permute.xlu0 %1354
      %vm1356 = vcmask 130048
      %v1358 = vsel %vm1356, %v1342, 0
      %v1361 = vsel %vm1356, %v1343, 0
      %v1364 = vsel %vm1356, %v1353, 0
      %v1367 = vsel %vm1356, %v1355, 0
      %1369 = vmatprep.subr.bf16.mxu0 0
      %1370 = vmatpush1.bf16.xpose.msra.mxu0 %v1364
      %1371 = vmatprep.subr.bf16.mxu0 0
      %1372 = vmatpush1.bf16.xpose.msra.mxu0 %v1367
      %1373 = vmatprep.subr.bf16.mxu0 0
      %1374 = vmatpush1.bf16.xpose.msra.mxu0 0
      %1375 = vmatprep.subr.bf16.mxu0 0
      %1376 = vmatpush1.bf16.xpose.msra.mxu0 0
      %1377 = vmatprep.subr.bf16.mxu0 0
      %1378 = vmatpush1.bf16.xpose.msra.mxu0 0
      %1379 = vmatprep.subr.bf16.mxu0 0
      %1380 = vmatpush1.bf16.xpose.msra.mxu0 0
      %1381 = vmatprep.subr.bf16.mxu0 0
      %1382 = vmatpush1.bf16.xpose.msra.mxu0 0
      %1383 = vmatprep.subr.bf16.mxu0 0
      %1384 = vmatpush1.bf16.xpose.msra.mxu0 0
      %1385 = vmatprep.subr.bf16.mxu0 0
      %1386 = vmatpush1.bf16.xpose.msra.mxu0 0
      %1387 = vmatprep.subr.bf16.mxu0 0
      %1388 = vmatpush1.bf16.xpose.msra.mxu0 0
      %1389 = vmatprep.subr.bf16.mxu0 0
      %1390 = vmatpush1.bf16.xpose.msra.mxu0 0
      %1391 = vmatprep.subr.bf16.mxu0 0
      %1392 = vmatpush1.bf16.xpose.msra.mxu0 0
      %1393 = vmatprep.subr.bf16.mxu0 0
      %1394 = vmatpush1.bf16.xpose.msra.mxu0 0
      %1395 = vmatprep.subr.bf16.mxu0 0
      %1396 = vmatpush1.bf16.xpose.msra.mxu0 0
      %1397 = vmatprep.subr.bf16.mxu0 0
      %1398 = vmatpush1.bf16.xpose.msra.mxu0 0
      %1399 = vmatprep.subr.bf16.mxu0 0
      %1400 = vmatpush1.bf16.xpose.msra.mxu0 0
      %1401 = vmatprep.mubr.bf16.mxu0 0
      %1402 = vmatmul.mubr.bf16.gmra.mrb[0].mxu0 %v1358
      %v1403 = vpop.f32.mrb[0].mxu0
      %v1404 = vadd.f32 %v1042, %v1403
      %v1405 = vpop.f32.mrb[0].mxu0
      %v1406 = vpop.f32.mrb[0].mxu0
      %v1407 = vadd.f32 %v1042, %v1406
      %v1408 = vpop.f32.mrb[0].mxu0
      %1409 = vmatprep.mubr.bf16.mxu0 0
      %1410 = vmatmul.mubr.bf16.gmra.mrb[0].mxu0 %v1361
      %v1411 = vpop.f32.mrb[0].mxu0
      %v1412 = vadd.f32 %v1042, %v1411
      %v1413 = vpop.f32.mrb[0].mxu0
      %v1414 = vpop.f32.mrb[0].mxu0
      %v1415 = vadd.f32 %v1042, %v1414
      %v1416 = vpop.f32.mrb[0].mxu0
      %1417 = vdwg.mxu0
      %vm1418 = vcmask 261120
      %v1419 = vsel %vm1418, %v1404, -inf
      %1420 = vmax.xlane.f32.xlu0 %v1419
      %v1421 = vpop.xlane.xlu0 %1420
      %v1422 = vsel %vm1418, %v1407, -inf
      %1423 = vmax.xlane.f32.xlu0 %v1422
      %v1424 = vpop.xlane.xlu0 %1423
      %v1425 = vsel %vm1418, %v1412, -inf
      %1426 = vmax.xlane.f32.xlu0 %v1425
      %v1427 = vpop.xlane.xlu0 %1426
      %v1428 = vsel %vm1418, %v1415, -inf
      %1429 = vmax.xlane.f32.xlu0 %v1428
      %v1430 = vpop.xlane.xlu0 %1429
      %v1431 = vsub.f32 %v1404, %v1421
      %v1432 = vsub.f32 %v1407, %v1424
      %v1433 = vsub.f32 %v1412, %v1427
      %v1434 = vsub.f32 %v1415, %v1430
      %v1435 = vmul.f32 %v1431, 1.442695
      %v1436 = vpow.pop %v1435
      %v1437 = vmul.f32 %v1432, 1.442695
      %v1438 = vpow.pop %v1437
      %v1439 = vmul.f32 %v1433, 1.442695
      %v1440 = vpow.pop %v1439
      %v1441 = vmul.f32 %v1434, 1.442695
      %v1442 = vpow.pop %v1441
      %v1443 = vsel %vm1418, %v1436, 0.0
      %1444 = vadd.xlane.f32.xlu0 %v1443
      %v1445 = vpop.xlane.xlu0 %1444
      %v1446 = vsel %vm1418, %v1438, 0.0
      %1447 = vadd.xlane.f32.xlu0 %v1446
      %v1448 = vpop.xlane.xlu0 %1447
      %v1449 = vsel %vm1418, %v1440, 0.0
      %1450 = vadd.xlane.f32.xlu0 %v1449
      %v1451 = vpop.xlane.xlu0 %1450
      %v1452 = vsel %vm1418, %v1442, 0.0
      %1453 = vadd.xlane.f32.xlu0 %v1452
      %v1454 = vpop.xlane.xlu0 %1453
      %v1455 = vrcp.pop %v1445
      %v1456 = vrcp.pop %v1448
      %v1457 = vrcp.pop %v1451
      %v1458 = vrcp.pop %v1454
      %v1459 = vmul.f32 %v1436, %v1455
      %v1460 = vmul.f32 %v1438, %v1456
      %v1461 = vmul.f32 %v1440, %v1457
      %v1462 = vmul.f32 %v1442, %v1458
      %v1463 = vpack.c.bf16 %v1460, %v1459
      %v1464 = vpack.c.bf16 %v1462, %v1461
      %v1466 = vsel %vm1418, %v1463, 0
      %v1469 = vsel %vm1418, %v1464, 0
      %1471 = vmatprep.subr.bf16.mxu0 0
      %1472 = vmatpush1.bf16.msra.mxu0 %v1346
      %1473 = vmatprep.subr.bf16.mxu0 0
      %1474 = vmatpush1.bf16.msra.mxu0 %v1347
      %1475 = vmatprep.subr.bf16.mxu0 0
      %1476 = vmatpush1.bf16.msra.mxu0 0
      %1477 = vmatprep.subr.bf16.mxu0 0
      %1478 = vmatpush1.bf16.msra.mxu0 0
      %1479 = vmatprep.subr.bf16.mxu0 0
      %1480 = vmatpush1.bf16.msra.mxu0 0
      %1481 = vmatprep.subr.bf16.mxu0 0
      %1482 = vmatpush1.bf16.msra.mxu0 0
      %1483 = vmatprep.subr.bf16.mxu0 0
      %1484 = vmatpush1.bf16.msra.mxu0 0
      %1485 = vmatprep.subr.bf16.mxu0 0
      %1486 = vmatpush1.bf16.msra.mxu0 0
      %1487 = vmatprep.subr.bf16.mxu0 0
      %1488 = vmatpush1.bf16.msra.mxu0 0
      %1489 = vmatprep.subr.bf16.mxu0 0
      %1490 = vmatpush1.bf16.msra.mxu0 0
      %1491 = vmatprep.subr.bf16.mxu0 0
      %1492 = vmatpush1.bf16.msra.mxu0 0
      %1493 = vmatprep.subr.bf16.mxu0 0
      %1494 = vmatpush1.bf16.msra.mxu0 0
      %1495 = vmatprep.subr.bf16.mxu0 0
      %1496 = vmatpush1.bf16.msra.mxu0 0
      %1497 = vmatprep.subr.bf16.mxu0 0
      %1498 = vmatpush1.bf16.msra.mxu0 0
      %1499 = vmatprep.subr.bf16.mxu0 0
      %1500 = vmatpush1.bf16.msra.mxu0 0
      %1501 = vmatprep.subr.bf16.mxu0 0
      %1502 = vmatpush1.bf16.msra.mxu0 0
      %1503 = vmatprep.mubr.bf16.mxu0 0
      %1504 = vmatmul.mubr.bf16.gmra.mrb[0].mxu0 %v1466
      %v1505 = vpop.f32.mrb[0].mxu0
      %v1506 = vadd.f32 0.0, %v1505
      %v1507 = vpop.f32.mrb[0].mxu0
      %v1508 = vpop.f32.mrb[0].mxu0
      %v1509 = vadd.f32 0.0, %v1508
      %v1510 = vpop.f32.mrb[0].mxu0
      %1511 = vmatprep.mubr.bf16.mxu0 0
      %1512 = vmatmul.mubr.bf16.gmra.mrb[0].mxu0 %v1469
      %v1513 = vpop.f32.mrb[0].mxu0
      %v1514 = vadd.f32 0.0, %v1513
      %v1515 = vpop.f32.mrb[0].mxu0
      %v1516 = vpop.f32.mrb[0].mxu0
      %v1517 = vadd.f32 0.0, %v1516
      %v1518 = vpop.f32.mrb[0].mxu0
      %1519 = vdwg.mxu0
      %1520 = vst.msk [vmem:[#allocation2] sm:$0xff] %vm1356, %v1506
      %1521 = vst.msk [vmem:[#allocation2 + $0x8] sm:$0xff] %vm1356, %v1509
      %1522 = vst.msk [vmem:[#allocation2 + $0x10] sm:$0xff] %vm1356, %v1514
      %1523 = vst.msk [vmem:[#allocation2 + $0x18] sm:$0xff] %vm1356, %v1517
      %1524 = vrot.lane.b32.xlu0 %v1342, 112
      %v1525 = vpop.permute.xlu0 %1524
      %1526 = vrot.lane.b32.xlu0 %v1343, 112
      %v1527 = vpop.permute.xlu0 %1526
      %1528 = vrot.lane.b32.xlu0 %v1342, 48
      %v1529 = vpop.permute.xlu0 %1528
      %1530 = vrot.lane.b32.xlu0 %v1343, 48
      %v1531 = vpop.permute.xlu0 %1530
      %v1533 = vsel %vm1356, %v1525, 0
      %v1536 = vsel %vm1356, %v1527, 0
      %v1539 = vsel %vm1356, %v1529, 0
      %v1542 = vsel %vm1356, %v1531, 0
      %1544 = vmatprep.subr.bf16.mxu0 0
      %1545 = vmatpush1.bf16.xpose.msra.mxu0 %v1539
      %1546 = vmatprep.subr.bf16.mxu0 0
      %1547 = vmatpush1.bf16.xpose.msra.mxu0 %v1542
      %1548 = vmatprep.subr.bf16.mxu0 0
      %1549 = vmatpush1.bf16.xpose.msra.mxu0 0
      %1550 = vmatprep.subr.bf16.mxu0 0
      %1551 = vmatpush1.bf16.xpose.msra.mxu0 0
      %1552 = vmatprep.subr.bf16.mxu0 0
      %1553 = vmatpush1.bf16.xpose.msra.mxu0 0
      %1554 = vmatprep.subr.bf16.mxu0 0
      %1555 = vmatpush1.bf16.xpose.msra.mxu0 0
      %1556 = vmatprep.subr.bf16.mxu0 0
      %1557 = vmatpush1.bf16.xpose.msra.mxu0 0
      %1558 = vmatprep.subr.bf16.mxu0 0
      %1559 = vmatpush1.bf16.xpose.msra.mxu0 0
      %1560 = vmatprep.subr.bf16.mxu0 0
      %1561 = vmatpush1.bf16.xpose.msra.mxu0 0
      %1562 = vmatprep.subr.bf16.mxu0 0
      %1563 = vmatpush1.bf16.xpose.msra.mxu0 0
      %1564 = vmatprep.subr.bf16.mxu0 0
      %1565 = vmatpush1.bf16.xpose.msra.mxu0 0
      %1566 = vmatprep.subr.bf16.mxu0 0
      %1567 = vmatpush1.bf16.xpose.msra.mxu0 0
      %1568 = vmatprep.subr.bf16.mxu0 0
      %1569 = vmatpush1.bf16.xpose.msra.mxu0 0
      %1570 = vmatprep.subr.bf16.mxu0 0
      %1571 = vmatpush1.bf16.xpose.msra.mxu0 0
      %1572 = vmatprep.subr.bf16.mxu0 0
      %1573 = vmatpush1.bf16.xpose.msra.mxu0 0
      %1574 = vmatprep.subr.bf16.mxu0 0
      %1575 = vmatpush1.bf16.xpose.msra.mxu0 0
      %1576 = vmatprep.mubr.bf16.mxu0 0
      %1577 = vmatmul.mubr.bf16.gmra.mrb[0].mxu0 %v1533
      %v1578 = vpop.f32.mrb[0].mxu0
      %v1579 = vadd.f32 %v1042, %v1578
      %v1580 = vpop.f32.mrb[0].mxu0
      %v1581 = vpop.f32.mrb[0].mxu0
      %v1582 = vadd.f32 %v1042, %v1581
      %v1583 = vpop.f32.mrb[0].mxu0
      %1584 = vmatprep.mubr.bf16.mxu0 0
      %1585 = vmatmul.mubr.bf16.gmra.mrb[0].mxu0 %v1536
      %v1586 = vpop.f32.mrb[0].mxu0
      %v1587 = vadd.f32 %v1042, %v1586
      %v1588 = vpop.f32.mrb[0].mxu0
      %v1589 = vpop.f32.mrb[0].mxu0
      %v1590 = vadd.f32 %v1042, %v1589
      %v1591 = vpop.f32.mrb[0].mxu0
      %1592 = vdwg.mxu0
      %v1593 = vsel %vm1418, %v1579, -inf
      %1594 = vmax.xlane.f32.xlu0 %v1593
      %v1595 = vpop.xlane.xlu0 %1594
      %v1596 = vsel %vm1418, %v1582, -inf
      %1597 = vmax.xlane.f32.xlu0 %v1596
      %v1598 = vpop.xlane.xlu0 %1597
      %v1599 = vsel %vm1418, %v1587, -inf
      %1600 = vmax.xlane.f32.xlu0 %v1599
      %v1601 = vpop.xlane.xlu0 %1600
      %v1602 = vsel %vm1418, %v1590, -inf
      %1603 = vmax.xlane.f32.xlu0 %v1602
      %v1604 = vpop.xlane.xlu0 %1603
      %v1605 = vsub.f32 %v1579, %v1595
      %v1606 = vsub.f32 %v1582, %v1598
      %v1607 = vsub.f32 %v1587, %v1601
      %v1608 = vsub.f32 %v1590, %v1604
      %v1609 = vmul.f32 %v1605, 1.442695
      %v1610 = vpow.pop %v1609
      %v1611 = vmul.f32 %v1606, 1.442695
      %v1612 = vpow.pop %v1611
      %v1613 = vmul.f32 %v1607, 1.442695
      %v1614 = vpow.pop %v1613
      %v1615 = vmul.f32 %v1608, 1.442695
      %v1616 = vpow.pop %v1615
      %v1617 = vsel %vm1418, %v1610, 0.0
      %1618 = vadd.xlane.f32.xlu0 %v1617
      %v1619 = vpop.xlane.xlu0 %1618
      %v1620 = vsel %vm1418, %v1612, 0.0
      %1621 = vadd.xlane.f32.xlu0 %v1620
      %v1622 = vpop.xlane.xlu0 %1621
      %v1623 = vsel %vm1418, %v1614, 0.0
      %1624 = vadd.xlane.f32.xlu0 %v1623
      %v1625 = vpop.xlane.xlu0 %1624
      %v1626 = vsel %vm1418, %v1616, 0.0
      %1627 = vadd.xlane.f32.xlu0 %v1626
      %v1628 = vpop.xlane.xlu0 %1627
      %v1629 = vrcp.pop %v1619
      %v1630 = vrcp.pop %v1622
      %v1631 = vrcp.pop %v1625
      %v1632 = vrcp.pop %v1628
      %v1633 = vmul.f32 %v1610, %v1629
      %v1634 = vmul.f32 %v1612, %v1630
      %v1635 = vmul.f32 %v1614, %v1631
      %v1636 = vmul.f32 %v1616, %v1632
      %v1637 = vpack.c.bf16 %v1634, %v1633
      %v1638 = vpack.c.bf16 %v1636, %v1635
      %1641 = vrot.lane.b32.xlu0 %v1346, 112
      %v1642 = vpop.permute.xlu0 %1641
      %1643 = vrot.lane.b32.xlu0 %v1347, 112
      %v1644 = vpop.permute.xlu0 %1643
      %v1648 = vsel %vm1418, %v1637, 0
      %v1651 = vsel %vm1418, %v1638, 0
      %1653 = vmatprep.subr.bf16.mxu0 0
      %1654 = vmatpush1.bf16.msra.mxu0 %v1642
      %1655 = vmatprep.subr.bf16.mxu0 0
      %1656 = vmatpush1.bf16.msra.mxu0 %v1644
      %1657 = vmatprep.subr.bf16.mxu0 0
      %1658 = vmatpush1.bf16.msra.mxu0 0
      %1659 = vmatprep.subr.bf16.mxu0 0
      %1660 = vmatpush1.bf16.msra.mxu0 0
      %1661 = vmatprep.subr.bf16.mxu0 0
      %1662 = vmatpush1.bf16.msra.mxu0 0
      %1663 = vmatprep.subr.bf16.mxu0 0
      %1664 = vmatpush1.bf16.msra.mxu0 0
      %1665 = vmatprep.subr.bf16.mxu0 0
      %1666 = vmatpush1.bf16.msra.mxu0 0
      %1667 = vmatprep.subr.bf16.mxu0 0
      %1668 = vmatpush1.bf16.msra.mxu0 0
      %1669 = vmatprep.subr.bf16.mxu0 0
      %1670 = vmatpush1.bf16.msra.mxu0 0
      %1671 = vmatprep.subr.bf16.mxu0 0
      %1672 = vmatpush1.bf16.msra.mxu0 0
      %1673 = vmatprep.subr.bf16.mxu0 0
      %1674 = vmatpush1.bf16.msra.mxu0 0
      %1675 = vmatprep.subr.bf16.mxu0 0
      %1676 = vmatpush1.bf16.msra.mxu0 0
      %1677 = vmatprep.subr.bf16.mxu0 0
      %1678 = vmatpush1.bf16.msra.mxu0 0
      %1679 = vmatprep.subr.bf16.mxu0 0
      %1680 = vmatpush1.bf16.msra.mxu0 0
      %1681 = vmatprep.subr.bf16.mxu0 0
      %1682 = vmatpush1.bf16.msra.mxu0 0
      %1683 = vmatprep.subr.bf16.mxu0 0
      %1684 = vmatpush1.bf16.msra.mxu0 0
      %1685 = vmatprep.mubr.bf16.mxu0 0
      %1686 = vmatmul.mubr.bf16.gmra.mrb[0].mxu0 %v1648
      %v1687 = vpop.f32.mrb[0].mxu0
      %v1688 = vadd.f32 0.0, %v1687
      %v1689 = vpop.f32.mrb[0].mxu0
      %v1690 = vpop.f32.mrb[0].mxu0
      %v1691 = vadd.f32 0.0, %v1690
      %v1692 = vpop.f32.mrb[0].mxu0
      %1693 = vmatprep.mubr.bf16.mxu0 0
      %1694 = vmatmul.mubr.bf16.gmra.mrb[0].mxu0 %v1651
      %v1695 = vpop.f32.mrb[0].mxu0
      %v1696 = vadd.f32 0.0, %v1695
      %v1697 = vpop.f32.mrb[0].mxu0
      %v1698 = vpop.f32.mrb[0].mxu0
      %v1699 = vadd.f32 0.0, %v1698
      %v1700 = vpop.f32.mrb[0].mxu0
      %1701 = vdwg.mxu0
      %1706 = vrot.lane.b32.xlu0 %v1688, 16
      %v1707 = vpop.permute.xlu0 %1706
      %1708 = vrot.lane.b32.xlu0 %v1691, 16
      %v1709 = vpop.permute.xlu0 %1708
      %1710 = vrot.lane.b32.xlu0 %v1696, 16
      %v1711 = vpop.permute.xlu0 %1710
      %1712 = vrot.lane.b32.xlu0 %v1699, 16
      %v1713 = vpop.permute.xlu0 %1712
      %vm1718 = vcmask 261248
      %1719 = vst.msk [vmem:[#allocation2] sm:$0xff] %vm1718, %v1707
      %1720 = vst.msk [vmem:[#allocation2 + $0x8] sm:$0xff] %vm1718, %v1709
      %1721 = vst.msk [vmem:[#allocation2 + $0x10] sm:$0xff] %vm1718, %v1711
      %1722 = vst.msk [vmem:[#allocation2 + $0x18] sm:$0xff] %vm1718, %v1713
      %1723 = vrot.lane.b32.xlu0 %v1342, 96
      %v1724 = vpop.permute.xlu0 %1723
      %1725 = vrot.lane.b32.xlu0 %v1343, 96
      %v1726 = vpop.permute.xlu0 %1725
      %1727 = vrot.lane.b32.xlu0 %v1342, 32
      %v1728 = vpop.permute.xlu0 %1727
      %1729 = vrot.lane.b32.xlu0 %v1343, 32
      %v1730 = vpop.permute.xlu0 %1729
      %v1732 = vsel %vm1356, %v1724, 0
      %v1735 = vsel %vm1356, %v1726, 0
      %v1738 = vsel %vm1356, %v1728, 0
      %v1741 = vsel %vm1356, %v1730, 0
      %1743 = vmatprep.subr.bf16.mxu0 0
      %1744 = vmatpush1.bf16.xpose.msra.mxu0 %v1738
      %1745 = vmatprep.subr.bf16.mxu0 0
      %1746 = vmatpush1.bf16.xpose.msra.mxu0 %v1741
      %1747 = vmatprep.subr.bf16.mxu0 0
      %1748 = vmatpush1.bf16.xpose.msra.mxu0 0
      %1749 = vmatprep.subr.bf16.mxu0 0
      %1750 = vmatpush1.bf16.xpose.msra.mxu0 0
      %1751 = vmatprep.subr.bf16.mxu0 0
      %1752 = vmatpush1.bf16.xpose.msra.mxu0 0
      %1753 = vmatprep.subr.bf16.mxu0 0
      %1754 = vmatpush1.bf16.xpose.msra.mxu0 0
      %1755 = vmatprep.subr.bf16.mxu0 0
      %1756 = vmatpush1.bf16.xpose.msra.mxu0 0
      %1757 = vmatprep.subr.bf16.mxu0 0
      %1758 = vmatpush1.bf16.xpose.msra.mxu0 0
      %1759 = vmatprep.subr.bf16.mxu0 0
      %1760 = vmatpush1.bf16.xpose.msra.mxu0 0
      %1761 = vmatprep.subr.bf16.mxu0 0
      %1762 = vmatpush1.bf16.xpose.msra.mxu0 0
      %1763 = vmatprep.subr.bf16.mxu0 0
      %1764 = vmatpush1.bf16.xpose.msra.mxu0 0
      %1765 = vmatprep.subr.bf16.mxu0 0
      %1766 = vmatpush1.bf16.xpose.msra.mxu0 0
      %1767 = vmatprep.subr.bf16.mxu0 0
      %1768 = vmatpush1.bf16.xpose.msra.mxu0 0
      %1769 = vmatprep.subr.bf16.mxu0 0
      %1770 = vmatpush1.bf16.xpose.msra.mxu0 0
      %1771 = vmatprep.subr.bf16.mxu0 0
      %1772 = vmatpush1.bf16.xpose.msra.mxu0 0
      %1773 = vmatprep.subr.bf16.mxu0 0
      %1774 = vmatpush1.bf16.xpose.msra.mxu0 0
      %1775 = vmatprep.mubr.bf16.mxu0 0
      %1776 = vmatmul.mubr.bf16.gmra.mrb[0].mxu0 %v1732
      %v1777 = vpop.f32.mrb[0].mxu0
      %v1778 = vadd.f32 %v1042, %v1777
      %v1779 = vpop.f32.mrb[0].mxu0
      %v1780 = vpop.f32.mrb[0].mxu0
      %v1781 = vadd.f32 %v1042, %v1780
      %v1782 = vpop.f32.mrb[0].mxu0
      %1783 = vmatprep.mubr.bf16.mxu0 0
      %1784 = vmatmul.mubr.bf16.gmra.mrb[0].mxu0 %v1735
      %v1785 = vpop.f32.mrb[0].mxu0
      %v1786 = vadd.f32 %v1042, %v1785
      %v1787 = vpop.f32.mrb[0].mxu0
      %v1788 = vpop.f32.mrb[0].mxu0
      %v1789 = vadd.f32 %v1042, %v1788
      %v1790 = vpop.f32.mrb[0].mxu0
      %1791 = vdwg.mxu0
      %v1792 = vsel %vm1418, %v1778, -inf
      %1793 = vmax.xlane.f32.xlu0 %v1792
      %v1794 = vpop.xlane.xlu0 %1793
      %v1795 = vsel %vm1418, %v1781, -inf
      %1796 = vmax.xlane.f32.xlu0 %v1795
      %v1797 = vpop.xlane.xlu0 %1796
      %v1798 = vsel %vm1418, %v1786, -inf
      %1799 = vmax.xlane.f32.xlu0 %v1798
      %v1800 = vpop.xlane.xlu0 %1799
      %v1801 = vsel %vm1418, %v1789, -inf
      %1802 = vmax.xlane.f32.xlu0 %v1801
      %v1803 = vpop.xlane.xlu0 %1802
      %v1804 = vsub.f32 %v1778, %v1794
      %v1805 = vsub.f32 %v1781, %v1797
      %v1806 = vsub.f32 %v1786, %v1800
      %v1807 = vsub.f32 %v1789, %v1803
      %v1808 = vmul.f32 %v1804, 1.442695
      %v1809 = vpow.pop %v1808
      %v1810 = vmul.f32 %v1805, 1.442695
      %v1811 = vpow.pop %v1810
      %v1812 = vmul.f32 %v1806, 1.442695
      %v1813 = vpow.pop %v1812
      %v1814 = vmul.f32 %v1807, 1.442695
      %v1815 = vpow.pop %v1814
      %v1816 = vsel %vm1418, %v1809, 0.0
      %1817 = vadd.xlane.f32.xlu0 %v1816
      %v1818 = vpop.xlane.xlu0 %1817
      %v1819 = vsel %vm1418, %v1811, 0.0
      %1820 = vadd.xlane.f32.xlu0 %v1819
      %v1821 = vpop.xlane.xlu0 %1820
      %v1822 = vsel %vm1418, %v1813, 0.0
      %1823 = vadd.xlane.f32.xlu0 %v1822
      %v1824 = vpop.xlane.xlu0 %1823
      %v1825 = vsel %vm1418, %v1815, 0.0
      %1826 = vadd.xlane.f32.xlu0 %v1825
      %v1827 = vpop.xlane.xlu0 %1826
      %v1828 = vrcp.pop %v1818
      %v1829 = vrcp.pop %v1821
      %v1830 = vrcp.pop %v1824
      %v1831 = vrcp.pop %v1827
      %v1832 = vmul.f32 %v1809, %v1828
      %v1833 = vmul.f32 %v1811, %v1829
      %v1834 = vmul.f32 %v1813, %v1830
      %v1835 = vmul.f32 %v1815, %v1831
      %v1836 = vpack.c.bf16 %v1833, %v1832
      %v1837 = vpack.c.bf16 %v1835, %v1834
      %1838 = vrot.lane.b32.xlu0 %v1346, 96
      %v1839 = vpop.permute.xlu0 %1838
      %1840 = vrot.lane.b32.xlu0 %v1347, 96
      %v1841 = vpop.permute.xlu0 %1840
      %v1845 = vsel %vm1418, %v1836, 0
      %v1848 = vsel %vm1418, %v1837, 0
      %1850 = vmatprep.subr.bf16.mxu0 0
      %1851 = vmatpush1.bf16.msra.mxu0 %v1839
      %1852 = vmatprep.subr.bf16.mxu0 0
      %1853 = vmatpush1.bf16.msra.mxu0 %v1841
      %1854 = vmatprep.subr.bf16.mxu0 0
      %1855 = vmatpush1.bf16.msra.mxu0 0
      %1856 = vmatprep.subr.bf16.mxu0 0
      %1857 = vmatpush1.bf16.msra.mxu0 0
      %1858 = vmatprep.subr.bf16.mxu0 0
      %1859 = vmatpush1.bf16.msra.mxu0 0
      %1860 = vmatprep.subr.bf16.mxu0 0
      %1861 = vmatpush1.bf16.msra.mxu0 0
      %1862 = vmatprep.subr.bf16.mxu0 0
      %1863 = vmatpush1.bf16.msra.mxu0 0
      %1864 = vmatprep.subr.bf16.mxu0 0
      %1865 = vmatpush1.bf16.msra.mxu0 0
      %1866 = vmatprep.subr.bf16.mxu0 0
      %1867 = vmatpush1.bf16.msra.mxu0 0
      %1868 = vmatprep.subr.bf16.mxu0 0
      %1869 = vmatpush1.bf16.msra.mxu0 0
      %1870 = vmatprep.subr.bf16.mxu0 0
      %1871 = vmatpush1.bf16.msra.mxu0 0
      %1872 = vmatprep.subr.bf16.mxu0 0
      %1873 = vmatpush1.bf16.msra.mxu0 0
      %1874 = vmatprep.subr.bf16.mxu0 0
      %1875 = vmatpush1.bf16.msra.mxu0 0
      %1876 = vmatprep.subr.bf16.mxu0 0
      %1877 = vmatpush1.bf16.msra.mxu0 0
      %1878 = vmatprep.subr.bf16.mxu0 0
      %1879 = vmatpush1.bf16.msra.mxu0 0
      %1880 = vmatprep.subr.bf16.mxu0 0
      %1881 = vmatpush1.bf16.msra.mxu0 0
      %1882 = vmatprep.mubr.bf16.mxu0 0
      %1883 = vmatmul.mubr.bf16.gmra.mrb[0].mxu0 %v1845
      %v1884 = vpop.f32.mrb[0].mxu0
      %v1885 = vadd.f32 0.0, %v1884
      %v1886 = vpop.f32.mrb[0].mxu0
      %v1887 = vpop.f32.mrb[0].mxu0
      %v1888 = vadd.f32 0.0, %v1887
      %v1889 = vpop.f32.mrb[0].mxu0
      %1890 = vmatprep.mubr.bf16.mxu0 0
      %1891 = vmatmul.mubr.bf16.gmra.mrb[0].mxu0 %v1848
      %v1892 = vpop.f32.mrb[0].mxu0
      %v1893 = vadd.f32 0.0, %v1892
      %v1894 = vpop.f32.mrb[0].mxu0
      %v1895 = vpop.f32.mrb[0].mxu0
      %v1896 = vadd.f32 0.0, %v1895
      %v1897 = vpop.f32.mrb[0].mxu0
      %1898 = vdwg.mxu0
      %1903 = vrot.lane.b32.xlu0 %v1885, 32
      %v1904 = vpop.permute.xlu0 %1903
      %1905 = vrot.lane.b32.xlu0 %v1888, 32
      %v1906 = vpop.permute.xlu0 %1905
      %1907 = vrot.lane.b32.xlu0 %v1893, 32
      %v1908 = vpop.permute.xlu0 %1907
      %1909 = vrot.lane.b32.xlu0 %v1896, 32
      %v1910 = vpop.permute.xlu0 %1909
      %vm1915 = vcmask 392448
      %1916 = vst.msk [vmem:[#allocation2] sm:$0xff] %vm1915, %v1904
      %1917 = vst.msk [vmem:[#allocation2 + $0x8] sm:$0xff] %vm1915, %v1906
      %1918 = vst.msk [vmem:[#allocation2 + $0x10] sm:$0xff] %vm1915, %v1908
      %1919 = vst.msk [vmem:[#allocation2 + $0x18] sm:$0xff] %vm1915, %v1910
      %1920 = vrot.lane.b32.xlu0 %v1342, 80
      %v1921 = vpop.permute.xlu0 %1920
      %1922 = vrot.lane.b32.xlu0 %v1343, 80
      %v1923 = vpop.permute.xlu0 %1922
      %1924 = vrot.lane.b32.xlu0 %v1342, 16
      %v1925 = vpop.permute.xlu0 %1924
      %1926 = vrot.lane.b32.xlu0 %v1343, 16
      %v1927 = vpop.permute.xlu0 %1926
      %v1929 = vsel %vm1356, %v1921, 0
      %v1932 = vsel %vm1356, %v1923, 0
      %v1935 = vsel %vm1356, %v1925, 0
      %v1938 = vsel %vm1356, %v1927, 0
      %1940 = vmatprep.subr.bf16.mxu0 0
      %1941 = vmatpush1.bf16.xpose.msra.mxu0 %v1935
      %1942 = vmatprep.subr.bf16.mxu0 0
      %1943 = vmatpush1.bf16.xpose.msra.mxu0 %v1938
      %1944 = vmatprep.subr.bf16.mxu0 0
      %1945 = vmatpush1.bf16.xpose.msra.mxu0 0
      %1946 = vmatprep.subr.bf16.mxu0 0
      %1947 = vmatpush1.bf16.xpose.msra.mxu0 0
      %1948 = vmatprep.subr.bf16.mxu0 0
      %1949 = vmatpush1.bf16.xpose.msra.mxu0 0
      %1950 = vmatprep.subr.bf16.mxu0 0
      %1951 = vmatpush1.bf16.xpose.msra.mxu0 0
      %1952 = vmatprep.subr.bf16.mxu0 0
      %1953 = vmatpush1.bf16.xpose.msra.mxu0 0
      %1954 = vmatprep.subr.bf16.mxu0 0
      %1955 = vmatpush1.bf16.xpose.msra.mxu0 0
      %1956 = vmatprep.subr.bf16.mxu0 0
      %1957 = vmatpush1.bf16.xpose.msra.mxu0 0
      %1958 = vmatprep.subr.bf16.mxu0 0
      %1959 = vmatpush1.bf16.xpose.msra.mxu0 0
      %1960 = vmatprep.subr.bf16.mxu0 0
      %1961 = vmatpush1.bf16.xpose.msra.mxu0 0
      %1962 = vmatprep.subr.bf16.mxu0 0
      %1963 = vmatpush1.bf16.xpose.msra.mxu0 0
      %1964 = vmatprep.subr.bf16.mxu0 0
      %1965 = vmatpush1.bf16.xpose.msra.mxu0 0
      %1966 = vmatprep.subr.bf16.mxu0 0
      %1967 = vmatpush1.bf16.xpose.msra.mxu0 0
      %1968 = vmatprep.subr.bf16.mxu0 0
      %1969 = vmatpush1.bf16.xpose.msra.mxu0 0
      %1970 = vmatprep.subr.bf16.mxu0 0
      %1971 = vmatpush1.bf16.xpose.msra.mxu0 0
      %1972 = vmatprep.mubr.bf16.mxu0 0
      %1973 = vmatmul.mubr.bf16.gmra.mrb[0].mxu0 %v1929
      %v1974 = vpop.f32.mrb[0].mxu0
      %v1975 = vadd.f32 %v1042, %v1974
      %v1976 = vpop.f32.mrb[0].mxu0
      %v1977 = vpop.f32.mrb[0].mxu0
      %v1978 = vadd.f32 %v1042, %v1977
      %v1979 = vpop.f32.mrb[0].mxu0
      %1980 = vmatprep.mubr.bf16.mxu0 0
      %1981 = vmatmul.mubr.bf16.gmra.mrb[0].mxu0 %v1932
      %v1982 = vpop.f32.mrb[0].mxu0
      %v1983 = vadd.f32 %v1042, %v1982
      %v1984 = vpop.f32.mrb[0].mxu0
      %v1985 = vpop.f32.mrb[0].mxu0
      %v1986 = vadd.f32 %v1042, %v1985
      %v1987 = vpop.f32.mrb[0].mxu0
      %1988 = vdwg.mxu0
      %v1989 = vsel %vm1418, %v1975, -inf
      %1990 = vmax.xlane.f32.xlu0 %v1989
      %v1991 = vpop.xlane.xlu0 %1990
      %v1992 = vsel %vm1418, %v1978, -inf
      %1993 = vmax.xlane.f32.xlu0 %v1992
      %v1994 = vpop.xlane.xlu0 %1993
      %v1995 = vsel %vm1418, %v1983, -inf
      %1996 = vmax.xlane.f32.xlu0 %v1995
      %v1997 = vpop.xlane.xlu0 %1996
      %v1998 = vsel %vm1418, %v1986, -inf
      %1999 = vmax.xlane.f32.xlu0 %v1998
      %v2000 = vpop.xlane.xlu0 %1999
      %v2001 = vsub.f32 %v1975, %v1991
      %v2002 = vsub.f32 %v1978, %v1994
      %v2003 = vsub.f32 %v1983, %v1997
      %v2004 = vsub.f32 %v1986, %v2000
      %v2005 = vmul.f32 %v2001, 1.442695
      %v2006 = vpow.pop %v2005
      %v2007 = vmul.f32 %v2002, 1.442695
      %v2008 = vpow.pop %v2007
      %v2009 = vmul.f32 %v2003, 1.442695
      %v2010 = vpow.pop %v2009
      %v2011 = vmul.f32 %v2004, 1.442695
      %v2012 = vpow.pop %v2011
      %v2013 = vsel %vm1418, %v2006, 0.0
      %2014 = vadd.xlane.f32.xlu0 %v2013
      %v2015 = vpop.xlane.xlu0 %2014
      %v2016 = vsel %vm1418, %v2008, 0.0
      %2017 = vadd.xlane.f32.xlu0 %v2016
      %v2018 = vpop.xlane.xlu0 %2017
      %v2019 = vsel %vm1418, %v2010, 0.0
      %2020 = vadd.xlane.f32.xlu0 %v2019
      %v2021 = vpop.xlane.xlu0 %2020
      %v2022 = vsel %vm1418, %v2012, 0.0
      %2023 = vadd.xlane.f32.xlu0 %v2022
      %v2024 = vpop.xlane.xlu0 %2023
      %v2025 = vrcp.pop %v2015
      %v2026 = vrcp.pop %v2018
      %v2027 = vrcp.pop %v2021
      %v2028 = vrcp.pop %v2024
      %v2029 = vmul.f32 %v2006, %v2025
      %v2030 = vmul.f32 %v2008, %v2026
      %v2031 = vmul.f32 %v2010, %v2027
      %v2032 = vmul.f32 %v2012, %v2028
      %v2033 = vpack.c.bf16 %v2030, %v2029
      %v2034 = vpack.c.bf16 %v2032, %v2031
      %2035 = vrot.lane.b32.xlu0 %v1346, 80
      %v2036 = vpop.permute.xlu0 %2035
      %2037 = vrot.lane.b32.xlu0 %v1347, 80
      %v2038 = vpop.permute.xlu0 %2037
      %v2042 = vsel %vm1418, %v2033, 0
      %v2045 = vsel %vm1418, %v2034, 0
      %2047 = vmatprep.subr.bf16.mxu0 0
      %2048 = vmatpush1.bf16.msra.mxu0 %v2036
      %2049 = vmatprep.subr.bf16.mxu0 0
      %2050 = vmatpush1.bf16.msra.mxu0 %v2038
      %2051 = vmatprep.subr.bf16.mxu0 0
      %2052 = vmatpush1.bf16.msra.mxu0 0
      %2053 = vmatprep.subr.bf16.mxu0 0
      %2054 = vmatpush1.bf16.msra.mxu0 0
      %2055 = vmatprep.subr.bf16.mxu0 0
      %2056 = vmatpush1.bf16.msra.mxu0 0
      %2057 = vmatprep.subr.bf16.mxu0 0
      %2058 = vmatpush1.bf16.msra.mxu0 0
      %2059 = vmatprep.subr.bf16.mxu0 0
      %2060 = vmatpush1.bf16.msra.mxu0 0
      %2061 = vmatprep.subr.bf16.mxu0 0
      %2062 = vmatpush1.bf16.msra.mxu0 0
      %2063 = vmatprep.subr.bf16.mxu0 0
      %2064 = vmatpush1.bf16.msra.mxu0 0
      %2065 = vmatprep.subr.bf16.mxu0 0
      %2066 = vmatpush1.bf16.msra.mxu0 0
      %2067 = vmatprep.subr.bf16.mxu0 0
      %2068 = vmatpush1.bf16.msra.mxu0 0
      %2069 = vmatprep.subr.bf16.mxu0 0
      %2070 = vmatpush1.bf16.msra.mxu0 0
      %2071 = vmatprep.subr.bf16.mxu0 0
      %2072 = vmatpush1.bf16.msra.mxu0 0
      %2073 = vmatprep.subr.bf16.mxu0 0
      %2074 = vmatpush1.bf16.msra.mxu0 0
      %2075 = vmatprep.subr.bf16.mxu0 0
      %2076 = vmatpush1.bf16.msra.mxu0 0
      %2077 = vmatprep.subr.bf16.mxu0 0
      %2078 = vmatpush1.bf16.msra.mxu0 0
      %2079 = vmatprep.mubr.bf16.mxu0 0
      %2080 = vmatmul.mubr.bf16.gmra.mrb[0].mxu0 %v2042
      %v2081 = vpop.f32.mrb[0].mxu0
      %v2082 = vadd.f32 0.0, %v2081
      %v2083 = vpop.f32.mrb[0].mxu0
      %v2084 = vpop.f32.mrb[0].mxu0
      %v2085 = vadd.f32 0.0, %v2084
      %v2086 = vpop.f32.mrb[0].mxu0
      %2087 = vmatprep.mubr.bf16.mxu0 0
      %2088 = vmatmul.mubr.bf16.gmra.mrb[0].mxu0 %v2045
      %v2089 = vpop.f32.mrb[0].mxu0
      %v2090 = vadd.f32 0.0, %v2089
      %v2091 = vpop.f32.mrb[0].mxu0
      %v2092 = vpop.f32.mrb[0].mxu0
      %v2093 = vadd.f32 0.0, %v2092
      %v2094 = vpop.f32.mrb[0].mxu0
      %2095 = vdwg.mxu0
      %2100 = vrot.lane.b32.xlu0 %v2082, 48
      %v2101 = vpop.permute.xlu0 %2100
      %2102 = vrot.lane.b32.xlu0 %v2085, 48
      %v2103 = vpop.permute.xlu0 %2102
      %2104 = vrot.lane.b32.xlu0 %v2090, 48
      %v2105 = vpop.permute.xlu0 %2104
      %2106 = vrot.lane.b32.xlu0 %v2093, 48
      %v2107 = vpop.permute.xlu0 %2106
      %vm2112 = vcmask 523648
      %2113 = vst.msk [vmem:[#allocation2] sm:$0xff] %vm2112, %v2101
      %2114 = vst.msk [vmem:[#allocation2 + $0x8] sm:$0xff] %vm2112, %v2103
      %2115 = vst.msk [vmem:[#allocation2 + $0x10] sm:$0xff] %vm2112, %v2105
      %2116 = vst.msk [vmem:[#allocation2 + $0x18] sm:$0xff] %vm2112, %v2107
      %2119 = vrot.lane.b32.xlu0 %v1344, 64
      %v2120 = vpop.permute.xlu0 %2119
      %2121 = vrot.lane.b32.xlu0 %v1345, 64
      %v2122 = vpop.permute.xlu0 %2121
      %v2124 = vsel %vm1356, %v1344, 0
      %v2127 = vsel %vm1356, %v1345, 0
      %v2130 = vsel %vm1356, %v2120, 0
      %v2133 = vsel %vm1356, %v2122, 0
      %2135 = vmatprep.subr.bf16.mxu0 0
      %2136 = vmatpush1.bf16.xpose.msra.mxu0 %v2130
      %2137 = vmatprep.subr.bf16.mxu0 0
      %2138 = vmatpush1.bf16.xpose.msra.mxu0 %v2133
      %2139 = vmatprep.subr.bf16.mxu0 0
      %2140 = vmatpush1.bf16.xpose.msra.mxu0 0
      %2141 = vmatprep.subr.bf16.mxu0 0
      %2142 = vmatpush1.bf16.xpose.msra.mxu0 0
      %2143 = vmatprep.subr.bf16.mxu0 0
      %2144 = vmatpush1.bf16.xpose.msra.mxu0 0
      %2145 = vmatprep.subr.bf16.mxu0 0
      %2146 = vmatpush1.bf16.xpose.msra.mxu0 0
      %2147 = vmatprep.subr.bf16.mxu0 0
      %2148 = vmatpush1.bf16.xpose.msra.mxu0 0
      %2149 = vmatprep.subr.bf16.mxu0 0
      %2150 = vmatpush1.bf16.xpose.msra.mxu0 0
      %2151 = vmatprep.subr.bf16.mxu0 0
      %2152 = vmatpush1.bf16.xpose.msra.mxu0 0
      %2153 = vmatprep.subr.bf16.mxu0 0
      %2154 = vmatpush1.bf16.xpose.msra.mxu0 0
      %2155 = vmatprep.subr.bf16.mxu0 0
      %2156 = vmatpush1.bf16.xpose.msra.mxu0 0
      %2157 = vmatprep.subr.bf16.mxu0 0
      %2158 = vmatpush1.bf16.xpose.msra.mxu0 0
      %2159 = vmatprep.subr.bf16.mxu0 0
      %2160 = vmatpush1.bf16.xpose.msra.mxu0 0
      %2161 = vmatprep.subr.bf16.mxu0 0
      %2162 = vmatpush1.bf16.xpose.msra.mxu0 0
      %2163 = vmatprep.subr.bf16.mxu0 0
      %2164 = vmatpush1.bf16.xpose.msra.mxu0 0
      %2165 = vmatprep.subr.bf16.mxu0 0
      %2166 = vmatpush1.bf16.xpose.msra.mxu0 0
      %2167 = vmatprep.mubr.bf16.mxu0 0
      %2168 = vmatmul.mubr.bf16.gmra.mrb[0].mxu0 %v2124
      %v2169 = vpop.f32.mrb[0].mxu0
      %v2170 = vadd.f32 %v1042, %v2169
      %v2171 = vpop.f32.mrb[0].mxu0
      %v2172 = vpop.f32.mrb[0].mxu0
      %v2173 = vadd.f32 %v1042, %v2172
      %v2174 = vpop.f32.mrb[0].mxu0
      %2175 = vmatprep.mubr.bf16.mxu0 0
      %2176 = vmatmul.mubr.bf16.gmra.mrb[0].mxu0 %v2127
      %v2177 = vpop.f32.mrb[0].mxu0
      %v2178 = vadd.f32 %v1042, %v2177
      %v2179 = vpop.f32.mrb[0].mxu0
      %v2180 = vpop.f32.mrb[0].mxu0
      %v2181 = vadd.f32 %v1042, %v2180
      %v2182 = vpop.f32.mrb[0].mxu0
      %2183 = vdwg.mxu0
      %v2184 = vsel %vm1418, %v2170, -inf
      %2185 = vmax.xlane.f32.xlu0 %v2184
      %v2186 = vpop.xlane.xlu0 %2185
      %v2187 = vsel %vm1418, %v2173, -inf
      %2188 = vmax.xlane.f32.xlu0 %v2187
      %v2189 = vpop.xlane.xlu0 %2188
      %v2190 = vsel %vm1418, %v2178, -inf
      %2191 = vmax.xlane.f32.xlu0 %v2190
      %v2192 = vpop.xlane.xlu0 %2191
      %v2193 = vsel %vm1418, %v2181, -inf
      %2194 = vmax.xlane.f32.xlu0 %v2193
      %v2195 = vpop.xlane.xlu0 %2194
      %v2196 = vsub.f32 %v2170, %v2186
      %v2197 = vsub.f32 %v2173, %v2189
      %v2198 = vsub.f32 %v2178, %v2192
      %v2199 = vsub.f32 %v2181, %v2195
      %v2200 = vmul.f32 %v2196, 1.442695
      %v2201 = vpow.pop %v2200
      %v2202 = vmul.f32 %v2197, 1.442695
      %v2203 = vpow.pop %v2202
      %v2204 = vmul.f32 %v2198, 1.442695
      %v2205 = vpow.pop %v2204
      %v2206 = vmul.f32 %v2199, 1.442695
      %v2207 = vpow.pop %v2206
      %v2208 = vsel %vm1418, %v2201, 0.0
      %2209 = vadd.xlane.f32.xlu0 %v2208
      %v2210 = vpop.xlane.xlu0 %2209
      %v2211 = vsel %vm1418, %v2203, 0.0
      %2212 = vadd.xlane.f32.xlu0 %v2211
      %v2213 = vpop.xlane.xlu0 %2212
      %v2214 = vsel %vm1418, %v2205, 0.0
      %2215 = vadd.xlane.f32.xlu0 %v2214
      %v2216 = vpop.xlane.xlu0 %2215
      %v2217 = vsel %vm1418, %v2207, 0.0
      %2218 = vadd.xlane.f32.xlu0 %v2217
      %v2219 = vpop.xlane.xlu0 %2218
      %v2220 = vrcp.pop %v2210
      %v2221 = vrcp.pop %v2213
      %v2222 = vrcp.pop %v2216
      %v2223 = vrcp.pop %v2219
      %v2224 = vmul.f32 %v2201, %v2220
      %v2225 = vmul.f32 %v2203, %v2221
      %v2226 = vmul.f32 %v2205, %v2222
      %v2227 = vmul.f32 %v2207, %v2223
      %v2228 = vpack.c.bf16 %v2225, %v2224
      %v2229 = vpack.c.bf16 %v2227, %v2226
      %v2231 = vsel %vm1418, %v2228, 0
      %v2234 = vsel %vm1418, %v2229, 0
      %2236 = vmatprep.subr.bf16.mxu0 0
      %2237 = vmatpush1.bf16.msra.mxu0 %v1348
      %2238 = vmatprep.subr.bf16.mxu0 0
      %2239 = vmatpush1.bf16.msra.mxu0 %v1349
      %2240 = vmatprep.subr.bf16.mxu0 0
      %2241 = vmatpush1.bf16.msra.mxu0 0
      %2242 = vmatprep.subr.bf16.mxu0 0
      %2243 = vmatpush1.bf16.msra.mxu0 0
      %2244 = vmatprep.subr.bf16.mxu0 0
      %2245 = vmatpush1.bf16.msra.mxu0 0
      %2246 = vmatprep.subr.bf16.mxu0 0
      %2247 = vmatpush1.bf16.msra.mxu0 0
      %2248 = vmatprep.subr.bf16.mxu0 0
      %2249 = vmatpush1.bf16.msra.mxu0 0
      %2250 = vmatprep.subr.bf16.mxu0 0
      %2251 = vmatpush1.bf16.msra.mxu0 0
      %2252 = vmatprep.subr.bf16.mxu0 0
      %2253 = vmatpush1.bf16.msra.mxu0 0
      %2254 = vmatprep.subr.bf16.mxu0 0
      %2255 = vmatpush1.bf16.msra.mxu0 0
      %2256 = vmatprep.subr.bf16.mxu0 0
      %2257 = vmatpush1.bf16.msra.mxu0 0
      %2258 = vmatprep.subr.bf16.mxu0 0
      %2259 = vmatpush1.bf16.msra.mxu0 0
      %2260 = vmatprep.subr.bf16.mxu0 0
      %2261 = vmatpush1.bf16.msra.mxu0 0
      %2262 = vmatprep.subr.bf16.mxu0 0
      %2263 = vmatpush1.bf16.msra.mxu0 0
      %2264 = vmatprep.subr.bf16.mxu0 0
      %2265 = vmatpush1.bf16.msra.mxu0 0
      %2266 = vmatprep.subr.bf16.mxu0 0
      %2267 = vmatpush1.bf16.msra.mxu0 0
      %2268 = vmatprep.mubr.bf16.mxu0 0
      %2269 = vmatmul.mubr.bf16.gmra.mrb[0].mxu0 %v2231
      %v2270 = vpop.f32.mrb[0].mxu0
      %v2271 = vadd.f32 0.0, %v2270
      %v2272 = vpop.f32.mrb[0].mxu0
      %v2273 = vpop.f32.mrb[0].mxu0
      %v2274 = vadd.f32 0.0, %v2273
      %v2275 = vpop.f32.mrb[0].mxu0
      %2276 = vmatprep.mubr.bf16.mxu0 0
      %2277 = vmatmul.mubr.bf16.gmra.mrb[0].mxu0 %v2234
      %v2278 = vpop.f32.mrb[0].mxu0
      %v2279 = vadd.f32 0.0, %v2278
      %v2280 = vpop.f32.mrb[0].mxu0
      %v2281 = vpop.f32.mrb[0].mxu0
      %v2282 = vadd.f32 0.0, %v2281
      %v2283 = vpop.f32.mrb[0].mxu0
      %2284 = vdwg.mxu0
      %2285 = vst.msk [vmem:[#allocation2 + $0x20] sm:$0xff] %vm1356, %v2271
      %2286 = vst.msk [vmem:[#allocation2 + $0x28] sm:$0xff] %vm1356, %v2274
      %2287 = vst.msk [vmem:[#allocation2 + $0x30] sm:$0xff] %vm1356, %v2279
      %2288 = vst.msk [vmem:[#allocation2 + $0x38] sm:$0xff] %vm1356, %v2282
      %2289 = vrot.lane.b32.xlu0 %v1344, 112
      %v2290 = vpop.permute.xlu0 %2289
      %2291 = vrot.lane.b32.xlu0 %v1345, 112
      %v2292 = vpop.permute.xlu0 %2291
      %2293 = vrot.lane.b32.xlu0 %v1344, 48
      %v2294 = vpop.permute.xlu0 %2293
      %2295 = vrot.lane.b32.xlu0 %v1345, 48
      %v2296 = vpop.permute.xlu0 %2295
      %v2298 = vsel %vm1356, %v2290, 0
      %v2301 = vsel %vm1356, %v2292, 0
      %v2304 = vsel %vm1356, %v2294, 0
      %v2307 = vsel %vm1356, %v2296, 0
      %2309 = vmatprep.subr.bf16.mxu0 0
      %2310 = vmatpush1.bf16.xpose.msra.mxu0 %v2304
      %2311 = vmatprep.subr.bf16.mxu0 0
      %2312 = vmatpush1.bf16.xpose.msra.mxu0 %v2307
      %2313 = vmatprep.subr.bf16.mxu0 0
      %2314 = vmatpush1.bf16.xpose.msra.mxu0 0
      %2315 = vmatprep.subr.bf16.mxu0 0
      %2316 = vmatpush1.bf16.xpose.msra.mxu0 0
      %2317 = vmatprep.subr.bf16.mxu0 0
      %2318 = vmatpush1.bf16.xpose.msra.mxu0 0
      %2319 = vmatprep.subr.bf16.mxu0 0
      %2320 = vmatpush1.bf16.xpose.msra.mxu0 0
      %2321 = vmatprep.subr.bf16.mxu0 0
      %2322 = vmatpush1.bf16.xpose.msra.mxu0 0
      %2323 = vmatprep.subr.bf16.mxu0 0
      %2324 = vmatpush1.bf16.xpose.msra.mxu0 0
      %2325 = vmatprep.subr.bf16.mxu0 0
      %2326 = vmatpush1.bf16.xpose.msra.mxu0 0
      %2327 = vmatprep.subr.bf16.mxu0 0
      %2328 = vmatpush1.bf16.xpose.msra.mxu0 0
      %2329 = vmatprep.subr.bf16.mxu0 0
      %2330 = vmatpush1.bf16.xpose.msra.mxu0 0
      %2331 = vmatprep.subr.bf16.mxu0 0
      %2332 = vmatpush1.bf16.xpose.msra.mxu0 0
      %2333 = vmatprep.subr.bf16.mxu0 0
      %2334 = vmatpush1.bf16.xpose.msra.mxu0 0
      %2335 = vmatprep.subr.bf16.mxu0 0
      %2336 = vmatpush1.bf16.xpose.msra.mxu0 0
      %2337 = vmatprep.subr.bf16.mxu0 0
      %2338 = vmatpush1.bf16.xpose.msra.mxu0 0
      %2339 = vmatprep.subr.bf16.mxu0 0
      %2340 = vmatpush1.bf16.xpose.msra.mxu0 0
      %2341 = vmatprep.mubr.bf16.mxu0 0
      %2342 = vmatmul.mubr.bf16.gmra.mrb[0].mxu0 %v2298
      %v2343 = vpop.f32.mrb[0].mxu0
      %v2344 = vadd.f32 %v1042, %v2343
      %v2345 = vpop.f32.mrb[0].mxu0
      %v2346 = vpop.f32.mrb[0].mxu0
      %v2347 = vadd.f32 %v1042, %v2346
      %v2348 = vpop.f32.mrb[0].mxu0
      %2349 = vmatprep.mubr.bf16.mxu0 0
      %2350 = vmatmul.mubr.bf16.gmra.mrb[0].mxu0 %v2301
      %v2351 = vpop.f32.mrb[0].mxu0
      %v2352 = vadd.f32 %v1042, %v2351
      %v2353 = vpop.f32.mrb[0].mxu0
      %v2354 = vpop.f32.mrb[0].mxu0
      %v2355 = vadd.f32 %v1042, %v2354
      %v2356 = vpop.f32.mrb[0].mxu0
      %2357 = vdwg.mxu0
      %v2358 = vsel %vm1418, %v2344, -inf
      %2359 = vmax.xlane.f32.xlu0 %v2358
      %v2360 = vpop.xlane.xlu0 %2359
      %v2361 = vsel %vm1418, %v2347, -inf
      %2362 = vmax.xlane.f32.xlu0 %v2361
      %v2363 = vpop.xlane.xlu0 %2362
      %v2364 = vsel %vm1418, %v2352, -inf
      %2365 = vmax.xlane.f32.xlu0 %v2364
      %v2366 = vpop.xlane.xlu0 %2365
      %v2367 = vsel %vm1418, %v2355, -inf
      %2368 = vmax.xlane.f32.xlu0 %v2367
      %v2369 = vpop.xlane.xlu0 %2368
      %v2370 = vsub.f32 %v2344, %v2360
      %v2371 = vsub.f32 %v2347, %v2363
      %v2372 = vsub.f32 %v2352, %v2366
      %v2373 = vsub.f32 %v2355, %v2369
      %v2374 = vmul.f32 %v2370, 1.442695
      %v2375 = vpow.pop %v2374
      %v2376 = vmul.f32 %v2371, 1.442695
      %v2377 = vpow.pop %v2376
      %v2378 = vmul.f32 %v2372, 1.442695
      %v2379 = vpow.pop %v2378
      %v2380 = vmul.f32 %v2373, 1.442695
      %v2381 = vpow.pop %v2380
      %v2382 = vsel %vm1418, %v2375, 0.0
      %2383 = vadd.xlane.f32.xlu0 %v2382
      %v2384 = vpop.xlane.xlu0 %2383
      %v2385 = vsel %vm1418, %v2377, 0.0
      %2386 = vadd.xlane.f32.xlu0 %v2385
      %v2387 = vpop.xlane.xlu0 %2386
      %v2388 = vsel %vm1418, %v2379, 0.0
      %2389 = vadd.xlane.f32.xlu0 %v2388
      %v2390 = vpop.xlane.xlu0 %2389
      %v2391 = vsel %vm1418, %v2381, 0.0
      %2392 = vadd.xlane.f32.xlu0 %v2391
      %v2393 = vpop.xlane.xlu0 %2392
      %v2394 = vrcp.pop %v2384
      %v2395 = vrcp.pop %v2387
      %v2396 = vrcp.pop %v2390
      %v2397 = vrcp.pop %v2393
      %v2398 = vmul.f32 %v2375, %v2394
      %v2399 = vmul.f32 %v2377, %v2395
      %v2400 = vmul.f32 %v2379, %v2396
      %v2401 = vmul.f32 %v2381, %v2397
      %v2402 = vpack.c.bf16 %v2399, %v2398
      %v2403 = vpack.c.bf16 %v2401, %v2400
      %2406 = vrot.lane.b32.xlu0 %v1348, 112
      %v2407 = vpop.permute.xlu0 %2406
      %2408 = vrot.lane.b32.xlu0 %v1349, 112
      %v2409 = vpop.permute.xlu0 %2408
      %v2413 = vsel %vm1418, %v2402, 0
      %v2416 = vsel %vm1418, %v2403, 0
      %2418 = vmatprep.subr.bf16.mxu0 0
      %2419 = vmatpush1.bf16.msra.mxu0 %v2407
      %2420 = vmatprep.subr.bf16.mxu0 0
      %2421 = vmatpush1.bf16.msra.mxu0 %v2409
      %2422 = vmatprep.subr.bf16.mxu0 0
      %2423 = vmatpush1.bf16.msra.mxu0 0
      %2424 = vmatprep.subr.bf16.mxu0 0
      %2425 = vmatpush1.bf16.msra.mxu0 0
      %2426 = vmatprep.subr.bf16.mxu0 0
      %2427 = vmatpush1.bf16.msra.mxu0 0
      %2428 = vmatprep.subr.bf16.mxu0 0
      %2429 = vmatpush1.bf16.msra.mxu0 0
      %2430 = vmatprep.subr.bf16.mxu0 0
      %2431 = vmatpush1.bf16.msra.mxu0 0
      %2432 = vmatprep.subr.bf16.mxu0 0
      %2433 = vmatpush1.bf16.msra.mxu0 0
      %2434 = vmatprep.subr.bf16.mxu0 0
      %2435 = vmatpush1.bf16.msra.mxu0 0
      %2436 = vmatprep.subr.bf16.mxu0 0
      %2437 = vmatpush1.bf16.msra.mxu0 0
      %2438 = vmatprep.subr.bf16.mxu0 0
      %2439 = vmatpush1.bf16.msra.mxu0 0
      %2440 = vmatprep.subr.bf16.mxu0 0
      %2441 = vmatpush1.bf16.msra.mxu0 0
      %2442 = vmatprep.subr.bf16.mxu0 0
      %2443 = vmatpush1.bf16.msra.mxu0 0
      %2444 = vmatprep.subr.bf16.mxu0 0
      %2445 = vmatpush1.bf16.msra.mxu0 0
      %2446 = vmatprep.subr.bf16.mxu0 0
      %2447 = vmatpush1.bf16.msra.mxu0 0
      %2448 = vmatprep.subr.bf16.mxu0 0
      %2449 = vmatpush1.bf16.msra.mxu0 0
      %2450 = vmatprep.mubr.bf16.mxu0 0
      %2451 = vmatmul.mubr.bf16.gmra.mrb[0].mxu0 %v2413
      %v2452 = vpop.f32.mrb[0].mxu0
      %v2453 = vadd.f32 0.0, %v2452
      %v2454 = vpop.f32.mrb[0].mxu0
      %v2455 = vpop.f32.mrb[0].mxu0
      %v2456 = vadd.f32 0.0, %v2455
      %v2457 = vpop.f32.mrb[0].mxu0
      %2458 = vmatprep.mubr.bf16.mxu0 0
      %2459 = vmatmul.mubr.bf16.gmra.mrb[0].mxu0 %v2416
      %v2460 = vpop.f32.mrb[0].mxu0
      %v2461 = vadd.f32 0.0, %v2460
      %v2462 = vpop.f32.mrb[0].mxu0
      %v2463 = vpop.f32.mrb[0].mxu0
      %v2464 = vadd.f32 0.0, %v2463
      %v2465 = vpop.f32.mrb[0].mxu0
      %2466 = vdwg.mxu0
      %2471 = vrot.lane.b32.xlu0 %v2453, 16
      %v2472 = vpop.permute.xlu0 %2471
      %2473 = vrot.lane.b32.xlu0 %v2456, 16
      %v2474 = vpop.permute.xlu0 %2473
      %2475 = vrot.lane.b32.xlu0 %v2461, 16
      %v2476 = vpop.permute.xlu0 %2475
      %2477 = vrot.lane.b32.xlu0 %v2464, 16
      %v2478 = vpop.permute.xlu0 %2477
      %2483 = vst.msk [vmem:[#allocation2 + $0x20] sm:$0xff] %vm1718, %v2472
      %2484 = vst.msk [vmem:[#allocation2 + $0x28] sm:$0xff] %vm1718, %v2474
      %2485 = vst.msk [vmem:[#allocation2 + $0x30] sm:$0xff] %vm1718, %v2476
      %2486 = vst.msk [vmem:[#allocation2 + $0x38] sm:$0xff] %vm1718, %v2478
      %2487 = vrot.lane.b32.xlu0 %v1344, 96
      %v2488 = vpop.permute.xlu0 %2487
      %2489 = vrot.lane.b32.xlu0 %v1345, 96
      %v2490 = vpop.permute.xlu0 %2489
      %2491 = vrot.lane.b32.xlu0 %v1344, 32
      %v2492 = vpop.permute.xlu0 %2491
      %2493 = vrot.lane.b32.xlu0 %v1345, 32
      %v2494 = vpop.permute.xlu0 %2493
      %v2496 = vsel %vm1356, %v2488, 0
      %v2499 = vsel %vm1356, %v2490, 0
      %v2502 = vsel %vm1356, %v2492, 0
      %v2505 = vsel %vm1356, %v2494, 0
      %2507 = vmatprep.subr.bf16.mxu0 0
      %2508 = vmatpush1.bf16.xpose.msra.mxu0 %v2502
      %2509 = vmatprep.subr.bf16.mxu0 0
      %2510 = vmatpush1.bf16.xpose.msra.mxu0 %v2505
      %2511 = vmatprep.subr.bf16.mxu0 0
      %2512 = vmatpush1.bf16.xpose.msra.mxu0 0
      %2513 = vmatprep.subr.bf16.mxu0 0
      %2514 = vmatpush1.bf16.xpose.msra.mxu0 0
      %2515 = vmatprep.subr.bf16.mxu0 0
      %2516 = vmatpush1.bf16.xpose.msra.mxu0 0
      %2517 = vmatprep.subr.bf16.mxu0 0
      %2518 = vmatpush1.bf16.xpose.msra.mxu0 0
      %2519 = vmatprep.subr.bf16.mxu0 0
      %2520 = vmatpush1.bf16.xpose.msra.mxu0 0
      %2521 = vmatprep.subr.bf16.mxu0 0
      %2522 = vmatpush1.bf16.xpose.msra.mxu0 0
      %2523 = vmatprep.subr.bf16.mxu0 0
      %2524 = vmatpush1.bf16.xpose.msra.mxu0 0
      %2525 = vmatprep.subr.bf16.mxu0 0
      %2526 = vmatpush1.bf16.xpose.msra.mxu0 0
      %2527 = vmatprep.subr.bf16.mxu0 0
      %2528 = vmatpush1.bf16.xpose.msra.mxu0 0
      %2529 = vmatprep.subr.bf16.mxu0 0
      %2530 = vmatpush1.bf16.xpose.msra.mxu0 0
      %2531 = vmatprep.subr.bf16.mxu0 0
      %2532 = vmatpush1.bf16.xpose.msra.mxu0 0
      %2533 = vmatprep.subr.bf16.mxu0 0
      %2534 = vmatpush1.bf16.xpose.msra.mxu0 0
      %2535 = vmatprep.subr.bf16.mxu0 0
      %2536 = vmatpush1.bf16.xpose.msra.mxu0 0
      %2537 = vmatprep.subr.bf16.mxu0 0
      %2538 = vmatpush1.bf16.xpose.msra.mxu0 0
      %2539 = vmatprep.mubr.bf16.mxu0 0
      %2540 = vmatmul.mubr.bf16.gmra.mrb[0].mxu0 %v2496
      %v2541 = vpop.f32.mrb[0].mxu0
      %v2542 = vadd.f32 %v1042, %v2541
      %v2543 = vpop.f32.mrb[0].mxu0
      %v2544 = vpop.f32.mrb[0].mxu0
      %v2545 = vadd.f32 %v1042, %v2544
      %v2546 = vpop.f32.mrb[0].mxu0
      %2547 = vmatprep.mubr.bf16.mxu0 0
      %2548 = vmatmul.mubr.bf16.gmra.mrb[0].mxu0 %v2499
      %v2549 = vpop.f32.mrb[0].mxu0
      %v2550 = vadd.f32 %v1042, %v2549
      %v2551 = vpop.f32.mrb[0].mxu0
      %v2552 = vpop.f32.mrb[0].mxu0
      %v2553 = vadd.f32 %v1042, %v2552
      %v2554 = vpop.f32.mrb[0].mxu0
      %2555 = vdwg.mxu0
      %v2556 = vsel %vm1418, %v2542, -inf
      %2557 = vmax.xlane.f32.xlu0 %v2556
      %v2558 = vpop.xlane.xlu0 %2557
      %v2559 = vsel %vm1418, %v2545, -inf
      %2560 = vmax.xlane.f32.xlu0 %v2559
      %v2561 = vpop.xlane.xlu0 %2560
      %v2562 = vsel %vm1418, %v2550, -inf
      %2563 = vmax.xlane.f32.xlu0 %v2562
      %v2564 = vpop.xlane.xlu0 %2563
      %v2565 = vsel %vm1418, %v2553, -inf
      %2566 = vmax.xlane.f32.xlu0 %v2565
      %v2567 = vpop.xlane.xlu0 %2566
      %v2568 = vsub.f32 %v2542, %v2558
      %v2569 = vsub.f32 %v2545, %v2561
      %v2570 = vsub.f32 %v2550, %v2564
      %v2571 = vsub.f32 %v2553, %v2567
      %v2572 = vmul.f32 %v2568, 1.442695
      %v2573 = vpow.pop %v2572
      %v2574 = vmul.f32 %v2569, 1.442695
      %v2575 = vpow.pop %v2574
      %v2576 = vmul.f32 %v2570, 1.442695
      %v2577 = vpow.pop %v2576
      %v2578 = vmul.f32 %v2571, 1.442695
      %v2579 = vpow.pop %v2578
      %v2580 = vsel %vm1418, %v2573, 0.0
      %2581 = vadd.xlane.f32.xlu0 %v2580
      %v2582 = vpop.xlane.xlu0 %2581
      %v2583 = vsel %vm1418, %v2575, 0.0
      %2584 = vadd.xlane.f32.xlu0 %v2583
      %v2585 = vpop.xlane.xlu0 %2584
      %v2586 = vsel %vm1418, %v2577, 0.0
      %2587 = vadd.xlane.f32.xlu0 %v2586
      %v2588 = vpop.xlane.xlu0 %2587
      %v2589 = vsel %vm1418, %v2579, 0.0
      %2590 = vadd.xlane.f32.xlu0 %v2589
      %v2591 = vpop.xlane.xlu0 %2590
      %v2592 = vrcp.pop %v2582
      %v2593 = vrcp.pop %v2585
      %v2594 = vrcp.pop %v2588
      %v2595 = vrcp.pop %v2591
      %v2596 = vmul.f32 %v2573, %v2592
      %v2597 = vmul.f32 %v2575, %v2593
      %v2598 = vmul.f32 %v2577, %v2594
      %v2599 = vmul.f32 %v2579, %v2595
      %v2600 = vpack.c.bf16 %v2597, %v2596
      %v2601 = vpack.c.bf16 %v2599, %v2598
      %2602 = vrot.lane.b32.xlu0 %v1348, 96
      %v2603 = vpop.permute.xlu0 %2602
      %2604 = vrot.lane.b32.xlu0 %v1349, 96
      %v2605 = vpop.permute.xlu0 %2604
      %v2609 = vsel %vm1418, %v2600, 0
      %v2612 = vsel %vm1418, %v2601, 0
      %2614 = vmatprep.subr.bf16.mxu0 0
      %2615 = vmatpush1.bf16.msra.mxu0 %v2603
      %2616 = vmatprep.subr.bf16.mxu0 0
      %2617 = vmatpush1.bf16.msra.mxu0 %v2605
      %2618 = vmatprep.subr.bf16.mxu0 0
      %2619 = vmatpush1.bf16.msra.mxu0 0
      %2620 = vmatprep.subr.bf16.mxu0 0
      %2621 = vmatpush1.bf16.msra.mxu0 0
      %2622 = vmatprep.subr.bf16.mxu0 0
      %2623 = vmatpush1.bf16.msra.mxu0 0
      %2624 = vmatprep.subr.bf16.mxu0 0
      %2625 = vmatpush1.bf16.msra.mxu0 0
      %2626 = vmatprep.subr.bf16.mxu0 0
      %2627 = vmatpush1.bf16.msra.mxu0 0
      %2628 = vmatprep.subr.bf16.mxu0 0
      %2629 = vmatpush1.bf16.msra.mxu0 0
      %2630 = vmatprep.subr.bf16.mxu0 0
      %2631 = vmatpush1.bf16.msra.mxu0 0
      %2632 = vmatprep.subr.bf16.mxu0 0
      %2633 = vmatpush1.bf16.msra.mxu0 0
      %2634 = vmatprep.subr.bf16.mxu0 0
      %2635 = vmatpush1.bf16.msra.mxu0 0
      %2636 = vmatprep.subr.bf16.mxu0 0
      %2637 = vmatpush1.bf16.msra.mxu0 0
      %2638 = vmatprep.subr.bf16.mxu0 0
      %2639 = vmatpush1.bf16.msra.mxu0 0
      %2640 = vmatprep.subr.bf16.mxu0 0
      %2641 = vmatpush1.bf16.msra.mxu0 0
      %2642 = vmatprep.subr.bf16.mxu0 0
      %2643 = vmatpush1.bf16.msra.mxu0 0
      %2644 = vmatprep.subr.bf16.mxu0 0
      %2645 = vmatpush1.bf16.msra.mxu0 0
      %2646 = vmatprep.mubr.bf16.mxu0 0
      %2647 = vmatmul.mubr.bf16.gmra.mrb[0].mxu0 %v2609
      %v2648 = vpop.f32.mrb[0].mxu0
      %v2649 = vadd.f32 0.0, %v2648
      %v2650 = vpop.f32.mrb[0].mxu0
      %v2651 = vpop.f32.mrb[0].mxu0
      %v2652 = vadd.f32 0.0, %v2651
      %v2653 = vpop.f32.mrb[0].mxu0
      %2654 = vmatprep.mubr.bf16.mxu0 0
      %2655 = vmatmul.mubr.bf16.gmra.mrb[0].mxu0 %v2612
      %v2656 = vpop.f32.mrb[0].mxu0
      %v2657 = vadd.f32 0.0, %v2656
      %v2658 = vpop.f32.mrb[0].mxu0
      %v2659 = vpop.f32.mrb[0].mxu0
      %v2660 = vadd.f32 0.0, %v2659
      %v2661 = vpop.f32.mrb[0].mxu0
      %2662 = vdwg.mxu0
      %2667 = vrot.lane.b32.xlu0 %v2649, 32
      %v2668 = vpop.permute.xlu0 %2667
      %2669 = vrot.lane.b32.xlu0 %v2652, 32
      %v2670 = vpop.permute.xlu0 %2669
      %2671 = vrot.lane.b32.xlu0 %v2657, 32
      %v2672 = vpop.permute.xlu0 %2671
      %2673 = vrot.lane.b32.xlu0 %v2660, 32
      %v2674 = vpop.permute.xlu0 %2673
      %2679 = vst.msk [vmem:[#allocation2 + $0x20] sm:$0xff] %vm1915, %v2668
      %2680 = vst.msk [vmem:[#allocation2 + $0x28] sm:$0xff] %vm1915, %v2670
      %2681 = vst.msk [vmem:[#allocation2 + $0x30] sm:$0xff] %vm1915, %v2672
      %2682 = vst.msk [vmem:[#allocation2 + $0x38] sm:$0xff] %vm1915, %v2674
      %2683 = vrot.lane.b32.xlu0 %v1344, 80
      %v2684 = vpop.permute.xlu0 %2683
      %2685 = vrot.lane.b32.xlu0 %v1345, 80
      %v2686 = vpop.permute.xlu0 %2685
      %2687 = vrot.lane.b32.xlu0 %v1344, 16
      %v2688 = vpop.permute.xlu0 %2687
      %2689 = vrot.lane.b32.xlu0 %v1345, 16
      %v2690 = vpop.permute.xlu0 %2689
      %v2692 = vsel %vm1356, %v2684, 0
      %v2695 = vsel %vm1356, %v2686, 0
      %v2698 = vsel %vm1356, %v2688, 0
      %v2701 = vsel %vm1356, %v2690, 0
      %2703 = vmatprep.subr.bf16.mxu0 0
      %2704 = vmatpush1.bf16.xpose.msra.mxu0 %v2698
      %2705 = vmatprep.subr.bf16.mxu0 0
      %2706 = vmatpush1.bf16.xpose.msra.mxu0 %v2701
      %2707 = vmatprep.subr.bf16.mxu0 0
      %2708 = vmatpush1.bf16.xpose.msra.mxu0 0
      %2709 = vmatprep.subr.bf16.mxu0 0
      %2710 = vmatpush1.bf16.xpose.msra.mxu0 0
      %2711 = vmatprep.subr.bf16.mxu0 0
      %2712 = vmatpush1.bf16.xpose.msra.mxu0 0
      %2713 = vmatprep.subr.bf16.mxu0 0
      %2714 = vmatpush1.bf16.xpose.msra.mxu0 0
      %2715 = vmatprep.subr.bf16.mxu0 0
      %2716 = vmatpush1.bf16.xpose.msra.mxu0 0
      %2717 = vmatprep.subr.bf16.mxu0 0
      %2718 = vmatpush1.bf16.xpose.msra.mxu0 0
      %2719 = vmatprep.subr.bf16.mxu0 0
      %2720 = vmatpush1.bf16.xpose.msra.mxu0 0
      %2721 = vmatprep.subr.bf16.mxu0 0
      %2722 = vmatpush1.bf16.xpose.msra.mxu0 0
      %2723 = vmatprep.subr.bf16.mxu0 0
      %2724 = vmatpush1.bf16.xpose.msra.mxu0 0
      %2725 = vmatprep.subr.bf16.mxu0 0
      %2726 = vmatpush1.bf16.xpose.msra.mxu0 0
      %2727 = vmatprep.subr.bf16.mxu0 0
      %2728 = vmatpush1.bf16.xpose.msra.mxu0 0
      %2729 = vmatprep.subr.bf16.mxu0 0
      %2730 = vmatpush1.bf16.xpose.msra.mxu0 0
      %2731 = vmatprep.subr.bf16.mxu0 0
      %2732 = vmatpush1.bf16.xpose.msra.mxu0 0
      %2733 = vmatprep.subr.bf16.mxu0 0
      %2734 = vmatpush1.bf16.xpose.msra.mxu0 0
      %2735 = vmatprep.mubr.bf16.mxu0 0
      %2736 = vmatmul.mubr.bf16.gmra.mrb[0].mxu0 %v2692
      %v2737 = vpop.f32.mrb[0].mxu0
      %v2738 = vadd.f32 %v1042, %v2737
      %v2739 = vpop.f32.mrb[0].mxu0
      %v2740 = vpop.f32.mrb[0].mxu0
      %v2741 = vadd.f32 %v1042, %v2740
      %v2742 = vpop.f32.mrb[0].mxu0
      %2743 = vmatprep.mubr.bf16.mxu0 0
      %2744 = vmatmul.mubr.bf16.gmra.mrb[0].mxu0 %v2695
      %v2745 = vpop.f32.mrb[0].mxu0
      %v2746 = vadd.f32 %v1042, %v2745
      %v2747 = vpop.f32.mrb[0].mxu0
      %v2748 = vpop.f32.mrb[0].mxu0
      %v2749 = vadd.f32 %v1042, %v2748
      %v2750 = vpop.f32.mrb[0].mxu0
      %2751 = vdwg.mxu0
      %v2752 = vsel %vm1418, %v2738, -inf
      %2753 = vmax.xlane.f32.xlu0 %v2752
      %v2754 = vpop.xlane.xlu0 %2753
      %v2755 = vsel %vm1418, %v2741, -inf
      %2756 = vmax.xlane.f32.xlu0 %v2755
      %v2757 = vpop.xlane.xlu0 %2756
      %v2758 = vsel %vm1418, %v2746, -inf
      %2759 = vmax.xlane.f32.xlu0 %v2758
      %v2760 = vpop.xlane.xlu0 %2759
      %v2761 = vsel %vm1418, %v2749, -inf
      %2762 = vmax.xlane.f32.xlu0 %v2761
      %v2763 = vpop.xlane.xlu0 %2762
      %v2764 = vsub.f32 %v2738, %v2754
      %v2765 = vsub.f32 %v2741, %v2757
      %v2766 = vsub.f32 %v2746, %v2760
      %v2767 = vsub.f32 %v2749, %v2763
      %v2768 = vmul.f32 %v2764, 1.442695
      %v2769 = vpow.pop %v2768
      %v2770 = vmul.f32 %v2765, 1.442695
      %v2771 = vpow.pop %v2770
      %v2772 = vmul.f32 %v2766, 1.442695
      %v2773 = vpow.pop %v2772
      %v2774 = vmul.f32 %v2767, 1.442695
      %v2775 = vpow.pop %v2774
      %v2776 = vsel %vm1418, %v2769, 0.0
      %2777 = vadd.xlane.f32.xlu0 %v2776
      %v2778 = vpop.xlane.xlu0 %2777
      %v2779 = vsel %vm1418, %v2771, 0.0
      %2780 = vadd.xlane.f32.xlu0 %v2779
      %v2781 = vpop.xlane.xlu0 %2780
      %v2782 = vsel %vm1418, %v2773, 0.0
      %2783 = vadd.xlane.f32.xlu0 %v2782
      %v2784 = vpop.xlane.xlu0 %2783
      %v2785 = vsel %vm1418, %v2775, 0.0
      %2786 = vadd.xlane.f32.xlu0 %v2785
      %v2787 = vpop.xlane.xlu0 %2786
      %v2788 = vrcp.pop %v2778
      %v2789 = vrcp.pop %v2781
      %v2790 = vrcp.pop %v2784
      %v2791 = vrcp.pop %v2787
      %v2792 = vmul.f32 %v2769, %v2788
      %v2793 = vmul.f32 %v2771, %v2789
      %v2794 = vmul.f32 %v2773, %v2790
      %v2795 = vmul.f32 %v2775, %v2791
      %v2796 = vpack.c.bf16 %v2793, %v2792
      %v2797 = vpack.c.bf16 %v2795, %v2794
      %2798 = vrot.lane.b32.xlu0 %v1348, 80
      %v2799 = vpop.permute.xlu0 %2798
      %2800 = vrot.lane.b32.xlu0 %v1349, 80
      %v2801 = vpop.permute.xlu0 %2800
      %v2805 = vsel %vm1418, %v2796, 0
      %v2808 = vsel %vm1418, %v2797, 0
      %2810 = vmatprep.subr.bf16.mxu0 0
      %2811 = vmatpush1.bf16.msra.mxu0 %v2799
      %2812 = vmatprep.subr.bf16.mxu0 0
      %2813 = vmatpush1.bf16.msra.mxu0 %v2801
      %2814 = vmatprep.subr.bf16.mxu0 0
      %2815 = vmatpush1.bf16.msra.mxu0 0
      %2816 = vmatprep.subr.bf16.mxu0 0
      %2817 = vmatpush1.bf16.msra.mxu0 0
      %2818 = vmatprep.subr.bf16.mxu0 0
      %2819 = vmatpush1.bf16.msra.mxu0 0
      %2820 = vmatprep.subr.bf16.mxu0 0
      %2821 = vmatpush1.bf16.msra.mxu0 0
      %2822 = vmatprep.subr.bf16.mxu0 0
      %2823 = vmatpush1.bf16.msra.mxu0 0
      %2824 = vmatprep.subr.bf16.mxu0 0
      %2825 = vmatpush1.bf16.msra.mxu0 0
      %2826 = vmatprep.subr.bf16.mxu0 0
      %2827 = vmatpush1.bf16.msra.mxu0 0
      %2828 = vmatprep.subr.bf16.mxu0 0
      %2829 = vmatpush1.bf16.msra.mxu0 0
      %2830 = vmatprep.subr.bf16.mxu0 0
      %2831 = vmatpush1.bf16.msra.mxu0 0
      %2832 = vmatprep.subr.bf16.mxu0 0
      %2833 = vmatpush1.bf16.msra.mxu0 0
      %2834 = vmatprep.subr.bf16.mxu0 0
      %2835 = vmatpush1.bf16.msra.mxu0 0
      %2836 = vmatprep.subr.bf16.mxu0 0
      %2837 = vmatpush1.bf16.msra.mxu0 0
      %2838 = vmatprep.subr.bf16.mxu0 0
      %2839 = vmatpush1.bf16.msra.mxu0 0
      %2840 = vmatprep.subr.bf16.mxu0 0
      %2841 = vmatpush1.bf16.msra.mxu0 0
      %2842 = vmatprep.mubr.bf16.mxu0 0
      %2843 = vmatmul.mubr.bf16.gmra.mrb[0].mxu0 %v2805
      %v2844 = vpop.f32.mrb[0].mxu0
      %v2845 = vadd.f32 0.0, %v2844
      %v2846 = vpop.f32.mrb[0].mxu0
      %v2847 = vpop.f32.mrb[0].mxu0
      %v2848 = vadd.f32 0.0, %v2847
      %v2849 = vpop.f32.mrb[0].mxu0
      %2850 = vmatprep.mubr.bf16.mxu0 0
      %2851 = vmatmul.mubr.bf16.gmra.mrb[0].mxu0 %v2808
      %v2852 = vpop.f32.mrb[0].mxu0
      %v2853 = vadd.f32 0.0, %v2852
      %v2854 = vpop.f32.mrb[0].mxu0
      %v2855 = vpop.f32.mrb[0].mxu0
      %v2856 = vadd.f32 0.0, %v2855
      %v2857 = vpop.f32.mrb[0].mxu0
      %2858 = vdwg.mxu0
      %2863 = vrot.lane.b32.xlu0 %v2845, 48
      %v2864 = vpop.permute.xlu0 %2863
      %2865 = vrot.lane.b32.xlu0 %v2848, 48
      %v2866 = vpop.permute.xlu0 %2865
      %2867 = vrot.lane.b32.xlu0 %v2853, 48
      %v2868 = vpop.permute.xlu0 %2867
      %2869 = vrot.lane.b32.xlu0 %v2856, 48
      %v2870 = vpop.permute.xlu0 %2869
      %2875 = vst.msk [vmem:[#allocation2 + $0x20] sm:$0xff] %vm2112, %v2864
      %2876 = vst.msk [vmem:[#allocation2 + $0x28] sm:$0xff] %vm2112, %v2866
      %2877 = vst.msk [vmem:[#allocation2 + $0x30] sm:$0xff] %vm2112, %v2868
      %2878 = vst.msk [vmem:[#allocation2 + $0x38] sm:$0xff] %vm2112, %v2870
      %v2879 = vld [vmem:[#allocation2] sm:$0xff]
      %v2880 = vld [vmem:[#allocation2 + $0x8] sm:$0xff]
      %v2881 = vld [vmem:[#allocation2 + $0x10] sm:$0xff]
      %v2882 = vld [vmem:[#allocation2 + $0x18] sm:$0xff]
      %v2883 = vld [vmem:[#allocation2 + $0x20] sm:$0xff]
      %v2884 = vld [vmem:[#allocation2 + $0x28] sm:$0xff]
      %v2885 = vld [vmem:[#allocation2 + $0x30] sm:$0xff]
      %v2886 = vld [vmem:[#allocation2 + $0x38] sm:$0xff]
      %v2887 = vpack.c.bf16 %v2880, %v2879
      %v2888 = vpack.c.bf16 %v2882, %v2881
      %v2889 = vpack.c.bf16 %v2884, %v2883
      %v2890 = vpack.c.bf16 %v2886, %v2885
      %v2891 = vld [vmem:[%s9] sm:$0xf]
      %v2892 = vld [vmem:[%s9 + $0x4] sm:$0xf]
      %v2893 = vld [vmem:[%s9 + $0x8] sm:$0xf]
      %v2894 = vld [vmem:[%s9 + $0xc] sm:$0xf]
      %v2895 = vld [vmem:[%s9 + $0x10] sm:$0xf]
      %v2896 = vld [vmem:[%s9 + $0x14] sm:$0xf]
      %v2897 = vld [vmem:[%s9 + $0x18] sm:$0xf]
      %v2898 = vld [vmem:[%s9 + $0x1c] sm:$0xf]
      %v2907 = vunpack.c.l.b16 %v2891
      %v2908 = vunpack.c.l.b16 %v2892
      %v2909 = vunpack.c.l.b16 %v2893
      %v2910 = vunpack.c.l.b16 %v2894
      %v2911 = vunpack.c.l.b16 %v2895
      %v2912 = vunpack.c.l.b16 %v2896
      %v2913 = vunpack.c.l.b16 %v2897
      %v2914 = vunpack.c.l.b16 %v2898
      %v2915 = vpack.c.b16 %v2908, %v2907
      %v2916 = vpack.c.b16 %v2910, %v2909
      %v2917 = vpack.c.b16 %v2912, %v2911
      %v2918 = vpack.c.b16 %v2914, %v2913
      %v2924 = vsel %vm810, %v2887, 0
      %v2927 = vsel %vm810, %v2888, 0
      %v2930 = vsel %vm810, %v2889, 0
      %v2933 = vsel %vm810, %v2890, 0
      %2935 = vmatprep.subr.bf16.mxu0 0
      %2936 = vmatpush1.bf16.msra.mxu0 %v2915
      %2937 = vmatprep.subr.bf16.mxu0 0
      %2938 = vmatpush1.bf16.msra.mxu0 %v2916
      %2939 = vmatprep.subr.bf16.mxu0 0
      %2940 = vmatpush1.bf16.msra.mxu0 %v2917
      %2941 = vmatprep.subr.bf16.mxu0 0
      %2942 = vmatpush1.bf16.msra.mxu0 %v2918
      %2943 = vmatprep.subr.bf16.mxu0 0
      %2944 = vmatpush1.bf16.msra.mxu0 0
      %2945 = vmatprep.subr.bf16.mxu0 0
      %2946 = vmatpush1.bf16.msra.mxu0 0
      %2947 = vmatprep.subr.bf16.mxu0 0
      %2948 = vmatpush1.bf16.msra.mxu0 0
      %2949 = vmatprep.subr.bf16.mxu0 0
      %2950 = vmatpush1.bf16.msra.mxu0 0
      %2951 = vmatprep.subr.bf16.mxu0 0
      %2952 = vmatpush1.bf16.msra.mxu0 0
      %2953 = vmatprep.subr.bf16.mxu0 0
      %2954 = vmatpush1.bf16.msra.mxu0 0
      %2955 = vmatprep.subr.bf16.mxu0 0
      %2956 = vmatpush1.bf16.msra.mxu0 0
      %2957 = vmatprep.subr.bf16.mxu0 0
      %2958 = vmatpush1.bf16.msra.mxu0 0
      %2959 = vmatprep.subr.bf16.mxu0 0
      %2960 = vmatpush1.bf16.msra.mxu0 0
      %2961 = vmatprep.subr.bf16.mxu0 0
      %2962 = vmatpush1.bf16.msra.mxu0 0
      %2963 = vmatprep.subr.bf16.mxu0 0
      %2964 = vmatpush1.bf16.msra.mxu0 0
      %2965 = vmatprep.subr.bf16.mxu0 0
      %2966 = vmatpush1.bf16.msra.mxu0 0
      %2967 = vmatprep.mubr.bf16.mxu0 0
      %2968 = vmatmul.mubr.bf16.gmra.mrb[0].mxu0 %v2924
      %v2969 = vpop.f32.mrb[0].mxu0
      %v2970 = vadd.f32 0.0, %v2969
      %v2971 = vpop.f32.mrb[0].mxu0
      %v2972 = vpop.f32.mrb[0].mxu0
      %v2973 = vadd.f32 0.0, %v2972
      %v2974 = vpop.f32.mrb[0].mxu0
      %2975 = vmatprep.mubr.bf16.mxu0 0
      %2976 = vmatmul.mubr.bf16.gmra.mrb[0].mxu0 %v2927
      %v2977 = vpop.f32.mrb[0].mxu0
      %v2978 = vadd.f32 0.0, %v2977
      %v2979 = vpop.f32.mrb[0].mxu0
      %v2980 = vpop.f32.mrb[0].mxu0
      %v2981 = vadd.f32 0.0, %v2980
      %v2982 = vpop.f32.mrb[0].mxu0
      %2983 = vmatprep.mubr.bf16.mxu0 0
      %2984 = vmatmul.mubr.bf16.gmra.mrb[0].mxu0 %v2930
      %v2985 = vpop.f32.mrb[0].mxu0
      %v2986 = vadd.f32 0.0, %v2985
      %v2987 = vpop.f32.mrb[0].mxu0
      %v2988 = vpop.f32.mrb[0].mxu0
      %v2989 = vadd.f32 0.0, %v2988
      %v2990 = vpop.f32.mrb[0].mxu0
      %2991 = vmatprep.mubr.bf16.mxu0 0
      %2992 = vmatmul.mubr.bf16.gmra.mrb[0].mxu0 %v2933
      %v2993 = vpop.f32.mrb[0].mxu0
      %v2994 = vadd.f32 0.0, %v2993
      %v2995 = vpop.f32.mrb[0].mxu0
      %v2996 = vpop.f32.mrb[0].mxu0
      %v2997 = vadd.f32 0.0, %v2996
      %v2998 = vpop.f32.mrb[0].mxu0
      %2999 = vdwg.mxu0
      %v3000 = vadd.f32 %v1031, %v2970
      %v3001 = vadd.f32 %v1032, %v2973
      %v3002 = vadd.f32 %v1033, %v2978
      %v3003 = vadd.f32 %v1034, %v2981
      %v3004 = vadd.f32 %v1035, %v2986
      %v3005 = vadd.f32 %v1036, %v2989
      %v3006 = vadd.f32 %v1037, %v2994
      %v3007 = vadd.f32 %v1038, %v2997
      %v3008 = vld [vmem:[%s10] sm:$0x1]
      %v3010 = vlaneseq
      %v3011 = vshrl.u32 %v3010, 7
      %v3012 = vsub.s32 0, %v3011
      %v3013 = vrot.slane %v3008, %v3012
      %v3015 = vadd.f32 %v3000, %v3013
      %v3016 = vadd.f32 %v3001, %v3013
      %v3017 = vadd.f32 %v3002, %v3013
      %v3018 = vadd.f32 %v3003, %v3013
      %v3019 = vadd.f32 %v3004, %v3013
      %v3020 = vadd.f32 %v3005, %v3013
      %v3021 = vadd.f32 %v3006, %v3013
      %v3022 = vadd.f32 %v3007, %v3013
      %v3023 = vld [vmem:[%s11] sm:$0x1]
      %v3024 = vld [vmem:[%s12] sm:$0x1]
      %v3025 = vsel %vm810, %v3015, 0.0
      %3026 = vadd.xlane.f32.xlu0 %v3025
      %v3027 = vpop.xlane.xlu0 %3026
      %v3028 = vsel %vm810, %v3016, 0.0
      %3029 = vadd.xlane.f32.xlu0 %v3028
      %v3030 = vpop.xlane.xlu0 %3029
      %v3031 = vsel %vm810, %v3017, 0.0
      %3032 = vadd.xlane.f32.xlu0 %v3031
      %v3033 = vpop.xlane.xlu0 %3032
      %v3034 = vsel %vm810, %v3018, 0.0
      %3035 = vadd.xlane.f32.xlu0 %v3034
      %v3036 = vpop.xlane.xlu0 %3035
      %v3037 = vsel %vm810, %v3019, 0.0
      %3038 = vadd.xlane.f32.xlu0 %v3037
      %v3039 = vpop.xlane.xlu0 %3038
      %v3040 = vsel %vm810, %v3020, 0.0
      %3041 = vadd.xlane.f32.xlu0 %v3040
      %v3042 = vpop.xlane.xlu0 %3041
      %v3043 = vsel %vm810, %v3021, 0.0
      %3044 = vadd.xlane.f32.xlu0 %v3043
      %v3045 = vpop.xlane.xlu0 %3044
      %v3046 = vsel %vm810, %v3022, 0.0
      %3047 = vadd.xlane.f32.xlu0 %v3046
      %v3048 = vpop.xlane.xlu0 %3047
      %v3049 = vmul.f32 %v3027, %v914
      %v3050 = vmul.f32 %v3030, %v914
      %v3051 = vmul.f32 %v3033, %v914
      %v3052 = vmul.f32 %v3036, %v914
      %v3053 = vmul.f32 %v3039, %v914
      %v3054 = vmul.f32 %v3042, %v914
      %v3055 = vmul.f32 %v3045, %v914
      %v3056 = vmul.f32 %v3048, %v914
      %v3057 = vmul.f32 %v3015, %v3015
      %v3058 = vmul.f32 %v3016, %v3016
      %v3059 = vmul.f32 %v3017, %v3017
      %v3060 = vmul.f32 %v3018, %v3018
      %v3061 = vmul.f32 %v3019, %v3019
      %v3062 = vmul.f32 %v3020, %v3020
      %v3063 = vmul.f32 %v3021, %v3021
      %v3064 = vmul.f32 %v3022, %v3022
      %v3065 = vsel %vm810, %v3057, 0.0
      %3066 = vadd.xlane.f32.xlu0 %v3065
      %v3067 = vpop.xlane.xlu0 %3066
      %v3068 = vsel %vm810, %v3058, 0.0
      %3069 = vadd.xlane.f32.xlu0 %v3068
      %v3070 = vpop.xlane.xlu0 %3069
      %v3071 = vsel %vm810, %v3059, 0.0
      %3072 = vadd.xlane.f32.xlu0 %v3071
      %v3073 = vpop.xlane.xlu0 %3072
      %v3074 = vsel %vm810, %v3060, 0.0
      %3075 = vadd.xlane.f32.xlu0 %v3074
      %v3076 = vpop.xlane.xlu0 %3075
      %v3077 = vsel %vm810, %v3061, 0.0
      %3078 = vadd.xlane.f32.xlu0 %v3077
      %v3079 = vpop.xlane.xlu0 %3078
      %v3080 = vsel %vm810, %v3062, 0.0
      %3081 = vadd.xlane.f32.xlu0 %v3080
      %v3082 = vpop.xlane.xlu0 %3081
      %v3083 = vsel %vm810, %v3063, 0.0
      %3084 = vadd.xlane.f32.xlu0 %v3083
      %v3085 = vpop.xlane.xlu0 %3084
      %v3086 = vsel %vm810, %v3064, 0.0
      %3087 = vadd.xlane.f32.xlu0 %v3086
      %v3088 = vpop.xlane.xlu0 %3087
      %v3089 = vmul.f32 %v3067, %v914
      %v3090 = vmul.f32 %v3070, %v914
      %v3091 = vmul.f32 %v3073, %v914
      %v3092 = vmul.f32 %v3076, %v914
      %v3093 = vmul.f32 %v3079, %v914
      %v3094 = vmul.f32 %v3082, %v914
      %v3095 = vmul.f32 %v3085, %v914
      %v3096 = vmul.f32 %v3088, %v914
      %v3097 = vmul.f32 %v3049, %v3049
      %v3098 = vmul.f32 %v3050, %v3050
      %v3099 = vmul.f32 %v3051, %v3051
      %v3100 = vmul.f32 %v3052, %v3052
      %v3101 = vmul.f32 %v3053, %v3053
      %v3102 = vmul.f32 %v3054, %v3054
      %v3103 = vmul.f32 %v3055, %v3055
      %v3104 = vmul.f32 %v3056, %v3056
      %v3105 = vsub.f32 %v3089, %v3097
      %v3106 = vsub.f32 %v3090, %v3098
      %v3107 = vsub.f32 %v3091, %v3099
      %v3108 = vsub.f32 %v3092, %v3100
      %v3109 = vsub.f32 %v3093, %v3101
      %v3110 = vsub.f32 %v3094, %v3102
      %v3111 = vsub.f32 %v3095, %v3103
      %v3112 = vsub.f32 %v3096, %v3104
      %v3113 = vsub.f32 %v3015, %v3049
      %v3114 = vsub.f32 %v3016, %v3050
      %v3115 = vsub.f32 %v3017, %v3051
      %v3116 = vsub.f32 %v3018, %v3052
      %v3117 = vsub.f32 %v3019, %v3053
      %v3118 = vsub.f32 %v3020, %v3054
      %v3119 = vsub.f32 %v3021, %v3055
      %v3120 = vsub.f32 %v3022, %v3056
      %v3121 = vadd.f32 %v3105, 1e-05
      %v3122 = vadd.f32 %v3106, 1e-05
      %v3123 = vadd.f32 %v3107, 1e-05
      %v3124 = vadd.f32 %v3108, 1e-05
      %v3125 = vadd.f32 %v3109, 1e-05
      %v3126 = vadd.f32 %v3110, 1e-05
      %v3127 = vadd.f32 %v3111, 1e-05
      %v3128 = vadd.f32 %v3112, 1e-05
      %v3129 = vrsqrt.pop %v3121
      %v3130 = vrsqrt.pop %v3122
      %v3131 = vrsqrt.pop %v3123
      %v3132 = vrsqrt.pop %v3124
      %v3133 = vrsqrt.pop %v3125
      %v3134 = vrsqrt.pop %v3126
      %v3135 = vrsqrt.pop %v3127
      %v3136 = vrsqrt.pop %v3128
      %v3137 = vmul.f32 %v3113, %v3129
      %v3138 = vmul.f32 %v3114, %v3130
      %v3139 = vmul.f32 %v3115, %v3131
      %v3140 = vmul.f32 %v3116, %v3132
      %v3141 = vmul.f32 %v3117, %v3133
      %v3142 = vmul.f32 %v3118, %v3134
      %v3143 = vmul.f32 %v3119, %v3135
      %v3144 = vmul.f32 %v3120, %v3136
      %v3146 = vlaneseq
      %v3147 = vshrl.u32 %v3146, 7
      %v3148 = vsub.s32 0, %v3147
      %v3149 = vrot.slane %v3023, %v3148
      %v3151 = vmul.f32 %v3137, %v3149
      %v3152 = vmul.f32 %v3138, %v3149
      %v3153 = vmul.f32 %v3139, %v3149
      %v3154 = vmul.f32 %v3140, %v3149
      %v3155 = vmul.f32 %v3141, %v3149
      %v3156 = vmul.f32 %v3142, %v3149
      %v3157 = vmul.f32 %v3143, %v3149
      %v3158 = vmul.f32 %v3144, %v3149
      %v3160 = vlaneseq
      %v3161 = vshrl.u32 %v3160, 7
      %v3162 = vsub.s32 0, %v3161
      %v3163 = vrot.slane %v3024, %v3162
      %v3165 = vadd.f32 %v3151, %v3163
      %v3166 = vadd.f32 %v3152, %v3163
      %v3167 = vadd.f32 %v3153, %v3163
      %v3168 = vadd.f32 %v3154, %v3163
      %v3169 = vadd.f32 %v3155, %v3163
      %v3170 = vadd.f32 %v3156, %v3163
      %v3171 = vadd.f32 %v3157, %v3163
      %v3172 = vadd.f32 %v3158, %v3163
      %v3173 = vpack.c.bf16 %v3166, %v3165
      %v3174 = vpack.c.bf16 %v3168, %v3167
      %v3175 = vpack.c.bf16 %v3170, %v3169
      %v3176 = vpack.c.bf16 %v3172, %v3171
      %v3177 = vld [vmem:[%s13] sm:$0xff]
      %v3178 = vld [vmem:[%s13 + $0x8] sm:$0xff]
      %v3179 = vld [vmem:[%s13 + $0x10] sm:$0xff]
      %v3180 = vld [vmem:[%s13 + $0x18] sm:$0xff]
      %v3181 = vld [vmem:[%s13 + $0x20] sm:$0xff]
      %v3182 = vld [vmem:[%s13 + $0x28] sm:$0xff]
      %v3183 = vld [vmem:[%s13 + $0x30] sm:$0xff]
      %v3184 = vld [vmem:[%s13 + $0x38] sm:$0xff]
      %v3185 = vld [vmem:[%s14] sm:$0x3]
      %v3187 = vlaneseq
      %v3188 = vshrl.u32 %v3187, 7
      %v3189 = vsub.s32 0, %v3188
      %v3190 = vrot.slane %v3185, %v3189
      %v3191 = vlaneseq
      %v3192 = vshrl.u32 %v3191, 7
      %v3193 = vsub.s32 1, %v3192
      %v3194 = vrot.slane %v3185, %v3193
      %v3205 = vunpack.c.l.b16 %v3177
      %v3206 = vunpack.c.h.b16 %v3177
      %v3207 = vunpack.c.l.b16 %v3178
      %v3208 = vunpack.c.h.b16 %v3178
      %v3209 = vunpack.c.l.b16 %v3179
      %v3210 = vunpack.c.h.b16 %v3179
      %v3211 = vunpack.c.l.b16 %v3180
      %v3212 = vunpack.c.h.b16 %v3180
      %v3213 = vunpack.c.l.b16 %v3181
      %v3214 = vunpack.c.h.b16 %v3181
      %v3215 = vunpack.c.l.b16 %v3182
      %v3216 = vunpack.c.h.b16 %v3182
      %v3217 = vunpack.c.l.b16 %v3183
      %v3218 = vunpack.c.h.b16 %v3183
      %v3219 = vunpack.c.l.b16 %v3184
      %v3220 = vunpack.c.h.b16 %v3184
      %v3221 = vpack.c.b16 %v3207, %v3205
      %v3222 = vpack.c.b16 %v3208, %v3206
      %v3223 = vpack.c.b16 %v3211, %v3209
      %v3224 = vpack.c.b16 %v3212, %v3210
      %v3225 = vpack.c.b16 %v3215, %v3213
      %v3226 = vpack.c.b16 %v3216, %v3214
      %v3227 = vpack.c.b16 %v3219, %v3217
      %v3228 = vpack.c.b16 %v3220, %v3218
      %v3238 = vsel %vm810, %v3173, 0
      %v3241 = vsel %vm810, %v3174, 0
      %v3244 = vsel %vm810, %v3175, 0
      %v3247 = vsel %vm810, %v3176, 0
      %3249 = vmatprep.subr.bf16.mxu0 %v3222
      %3250 = vmatpush1.bf16.msra.mxu0 %v3221
      %3251 = vmatprep.subr.bf16.mxu0 %v3224
      %3252 = vmatpush1.bf16.msra.mxu0 %v3223
      %3253 = vmatprep.subr.bf16.mxu0 %v3226
      %3254 = vmatpush1.bf16.msra.mxu0 %v3225
      %3255 = vmatprep.subr.bf16.mxu0 %v3228
      %3256 = vmatpush1.bf16.msra.mxu0 %v3227
      %3257 = vmatprep.subr.bf16.mxu0 0
      %3258 = vmatpush1.bf16.msra.mxu0 0
      %3259 = vmatprep.subr.bf16.mxu0 0
      %3260 = vmatpush1.bf16.msra.mxu0 0
      %3261 = vmatprep.subr.bf16.mxu0 0
      %3262 = vmatpush1.bf16.msra.mxu0 0
      %3263 = vmatprep.subr.bf16.mxu0 0
      %3264 = vmatpush1.bf16.msra.mxu0 0
      %3265 = vmatprep.subr.bf16.mxu0 0
      %3266 = vmatpush1.bf16.msra.mxu0 0
      %3267 = vmatprep.subr.bf16.mxu0 0
      %3268 = vmatpush1.bf16.msra.mxu0 0
      %3269 = vmatprep.subr.bf16.mxu0 0
      %3270 = vmatpush1.bf16.msra.mxu0 0
      %3271 = vmatprep.subr.bf16.mxu0 0
      %3272 = vmatpush1.bf16.msra.mxu0 0
      %3273 = vmatprep.subr.bf16.mxu0 0
      %3274 = vmatpush1.bf16.msra.mxu0 0
      %3275 = vmatprep.subr.bf16.mxu0 0
      %3276 = vmatpush1.bf16.msra.mxu0 0
      %3277 = vmatprep.subr.bf16.mxu0 0
      %3278 = vmatpush1.bf16.msra.mxu0 0
      %3279 = vmatprep.subr.bf16.mxu0 0
      %3280 = vmatpush1.bf16.msra.mxu0 0
      %3281 = vmatprep.mubr.bf16.mxu0 0
      %3282 = vmatmul.mubr.bf16.gmra.mrb[0].mxu0 %v3238
      %v3283 = vpop.f32.mrb[0].mxu0
      %v3284 = vadd.f32 %v3190, %v3283
      %v3285 = vpop.f32.mrb[0].mxu0
      %v3286 = vadd.f32 %v3194, %v3285
      %v3287 = vpop.f32.mrb[0].mxu0
      %v3288 = vadd.f32 %v3190, %v3287
      %v3289 = vpop.f32.mrb[0].mxu0
      %v3290 = vadd.f32 %v3194, %v3289
      %3291 = vmatprep.mubr.bf16.mxu0 0
      %3292 = vmatmul.mubr.bf16.gmra.mrb[0].mxu0 %v3241
      %v3293 = vpop.f32.mrb[0].mxu0
      %v3294 = vadd.f32 %v3190, %v3293
      %v3295 = vpop.f32.mrb[0].mxu0
      %v3296 = vadd.f32 %v3194, %v3295
      %v3297 = vpop.f32.mrb[0].mxu0
      %v3298 = vadd.f32 %v3190, %v3297
      %v3299 = vpop.f32.mrb[0].mxu0
      %v3300 = vadd.f32 %v3194, %v3299
      %3301 = vmatprep.mubr.bf16.mxu0 0
      %3302 = vmatmul.mubr.bf16.gmra.mrb[0].mxu0 %v3244
      %v3303 = vpop.f32.mrb[0].mxu0
      %v3304 = vadd.f32 %v3190, %v3303
      %v3305 = vpop.f32.mrb[0].mxu0
      %v3306 = vadd.f32 %v3194, %v3305
      %v3307 = vpop.f32.mrb[0].mxu0
      %v3308 = vadd.f32 %v3190, %v3307
      %v3309 = vpop.f32.mrb[0].mxu0
      %v3310 = vadd.f32 %v3194, %v3309
      %3311 = vmatprep.mubr.bf16.mxu0 0
      %3312 = vmatmul.mubr.bf16.gmra.mrb[0].mxu0 %v3247
      %v3313 = vpop.f32.mrb[0].mxu0
      %v3314 = vadd.f32 %v3190, %v3313
      %v3315 = vpop.f32.mrb[0].mxu0
      %v3316 = vadd.f32 %v3194, %v3315
      %v3317 = vpop.f32.mrb[0].mxu0
      %v3318 = vadd.f32 %v3190, %v3317
      %v3319 = vpop.f32.mrb[0].mxu0
      %v3320 = vadd.f32 %v3194, %v3319
      %3321 = vdwg.mxu0
      %v3322 = vmul.f32 %v3284, %v3284
      %v3323 = vmul.f32 %v3286, %v3286
      %v3324 = vmul.f32 %v3288, %v3288
      %v3325 = vmul.f32 %v3290, %v3290
      %v3326 = vmul.f32 %v3294, %v3294
      %v3327 = vmul.f32 %v3296, %v3296
      %v3328 = vmul.f32 %v3298, %v3298
      %v3329 = vmul.f32 %v3300, %v3300
      %v3330 = vmul.f32 %v3304, %v3304
      %v3331 = vmul.f32 %v3306, %v3306
      %v3332 = vmul.f32 %v3308, %v3308
      %v3333 = vmul.f32 %v3310, %v3310
      %v3334 = vmul.f32 %v3314, %v3314
      %v3335 = vmul.f32 %v3316, %v3316
      %v3336 = vmul.f32 %v3318, %v3318
      %v3337 = vmul.f32 %v3320, %v3320
      %v3338 = vmul.f32 %v3284, %v3322
      %v3339 = vmul.f32 %v3286, %v3323
      %v3340 = vmul.f32 %v3288, %v3324
      %v3341 = vmul.f32 %v3290, %v3325
      %v3342 = vmul.f32 %v3294, %v3326
      %v3343 = vmul.f32 %v3296, %v3327
      %v3344 = vmul.f32 %v3298, %v3328
      %v3345 = vmul.f32 %v3300, %v3329
      %v3346 = vmul.f32 %v3304, %v3330
      %v3347 = vmul.f32 %v3306, %v3331
      %v3348 = vmul.f32 %v3308, %v3332
      %v3349 = vmul.f32 %v3310, %v3333
      %v3350 = vmul.f32 %v3314, %v3334
      %v3351 = vmul.f32 %v3316, %v3335
      %v3352 = vmul.f32 %v3318, %v3336
      %v3353 = vmul.f32 %v3320, %v3337
      %v3354 = vmul.f32 %v3338, 0.044715
      %v3355 = vmul.f32 %v3339, 0.044715
      %v3356 = vmul.f32 %v3340, 0.044715
      %v3357 = vmul.f32 %v3341, 0.044715
      %v3358 = vmul.f32 %v3342, 0.044715
      %v3359 = vmul.f32 %v3343, 0.044715
      %v3360 = vmul.f32 %v3344, 0.044715
      %v3361 = vmul.f32 %v3345, 0.044715
      %v3362 = vmul.f32 %v3346, 0.044715
      %v3363 = vmul.f32 %v3347, 0.044715
      %v3364 = vmul.f32 %v3348, 0.044715
      %v3365 = vmul.f32 %v3349, 0.044715
      %v3366 = vmul.f32 %v3350, 0.044715
      %v3367 = vmul.f32 %v3351, 0.044715
      %v3368 = vmul.f32 %v3352, 0.044715
      %v3369 = vmul.f32 %v3353, 0.044715
      %v3370 = vadd.f32 %v3284, %v3354
      %v3371 = vadd.f32 %v3286, %v3355
      %v3372 = vadd.f32 %v3288, %v3356
      %v3373 = vadd.f32 %v3290, %v3357
      %v3374 = vadd.f32 %v3294, %v3358
      %v3375 = vadd.f32 %v3296, %v3359
      %v3376 = vadd.f32 %v3298, %v3360
      %v3377 = vadd.f32 %v3300, %v3361
      %v3378 = vadd.f32 %v3304, %v3362
      %v3379 = vadd.f32 %v3306, %v3363
      %v3380 = vadd.f32 %v3308, %v3364
      %v3381 = vadd.f32 %v3310, %v3365
      %v3382 = vadd.f32 %v3314, %v3366
      %v3383 = vadd.f32 %v3316, %v3367
      %v3384 = vadd.f32 %v3318, %v3368
      %v3385 = vadd.f32 %v3320, %v3369
      %v3386 = vmul.f32 %v3370, 0.7978846
      %v3387 = vmul.f32 %v3371, 0.7978846
      %v3388 = vmul.f32 %v3372, 0.7978846
      %v3389 = vmul.f32 %v3373, 0.7978846
      %v3390 = vmul.f32 %v3374, 0.7978846
      %v3391 = vmul.f32 %v3375, 0.7978846
      %v3392 = vmul.f32 %v3376, 0.7978846
      %v3393 = vmul.f32 %v3377, 0.7978846
      %v3394 = vmul.f32 %v3378, 0.7978846
      %v3395 = vmul.f32 %v3379, 0.7978846
      %v3396 = vmul.f32 %v3380, 0.7978846
      %v3397 = vmul.f32 %v3381, 0.7978846
      %v3398 = vmul.f32 %v3382, 0.7978846
      %v3399 = vmul.f32 %v3383, 0.7978846
      %v3400 = vmul.f32 %v3384, 0.7978846
      %v3401 = vmul.f32 %v3385, 0.7978846
      %v3402 = vtanh.pop %v3386
      %v3403 = vtanh.pop %v3387
      %v3404 = vtanh.pop %v3388
      %v3405 = vtanh.pop %v3389
      %v3406 = vtanh.pop %v3390
      %v3407 = vtanh.pop %v3391
      %v3408 = vtanh.pop %v3392
      %v3409 = vtanh.pop %v3393
      %v3410 = vtanh.pop %v3394
      %v3411 = vtanh.pop %v3395
      %v3412 = vtanh.pop %v3396
      %v3413 = vtanh.pop %v3397
      %v3414 = vtanh.pop %v3398
      %v3415 = vtanh.pop %v3399
      %v3416 = vtanh.pop %v3400
      %v3417 = vtanh.pop %v3401
      %v3418 = vadd.f32 %v3402, 1.0
      %v3419 = vadd.f32 %v3403, 1.0
      %v3420 = vadd.f32 %v3404, 1.0
      %v3421 = vadd.f32 %v3405, 1.0
      %v3422 = vadd.f32 %v3406, 1.0
      %v3423 = vadd.f32 %v3407, 1.0
      %v3424 = vadd.f32 %v3408, 1.0
      %v3425 = vadd.f32 %v3409, 1.0
      %v3426 = vadd.f32 %v3410, 1.0
      %v3427 = vadd.f32 %v3411, 1.0
      %v3428 = vadd.f32 %v3412, 1.0
      %v3429 = vadd.f32 %v3413, 1.0
      %v3430 = vadd.f32 %v3414, 1.0
      %v3431 = vadd.f32 %v3415, 1.0
      %v3432 = vadd.f32 %v3416, 1.0
      %v3433 = vadd.f32 %v3417, 1.0
      %v3434 = vmul.f32 %v3418, 0.5
      %v3435 = vmul.f32 %v3419, 0.5
      %v3436 = vmul.f32 %v3420, 0.5
      %v3437 = vmul.f32 %v3421, 0.5
      %v3438 = vmul.f32 %v3422, 0.5
      %v3439 = vmul.f32 %v3423, 0.5
      %v3440 = vmul.f32 %v3424, 0.5
      %v3441 = vmul.f32 %v3425, 0.5
      %v3442 = vmul.f32 %v3426, 0.5
      %v3443 = vmul.f32 %v3427, 0.5
      %v3444 = vmul.f32 %v3428, 0.5
      %v3445 = vmul.f32 %v3429, 0.5
      %v3446 = vmul.f32 %v3430, 0.5
      %v3447 = vmul.f32 %v3431, 0.5
      %v3448 = vmul.f32 %v3432, 0.5
      %v3449 = vmul.f32 %v3433, 0.5
      %v3450 = vmul.f32 %v3284, %v3434
      %v3451 = vmul.f32 %v3286, %v3435
      %v3452 = vmul.f32 %v3288, %v3436
      %v3453 = vmul.f32 %v3290, %v3437
      %v3454 = vmul.f32 %v3294, %v3438
      %v3455 = vmul.f32 %v3296, %v3439
      %v3456 = vmul.f32 %v3298, %v3440
      %v3457 = vmul.f32 %v3300, %v3441
      %v3458 = vmul.f32 %v3304, %v3442
      %v3459 = vmul.f32 %v3306, %v3443
      %v3460 = vmul.f32 %v3308, %v3444
      %v3461 = vmul.f32 %v3310, %v3445
      %v3462 = vmul.f32 %v3314, %v3446
      %v3463 = vmul.f32 %v3316, %v3447
      %v3464 = vmul.f32 %v3318, %v3448
      %v3465 = vmul.f32 %v3320, %v3449
      %v3466 = vpack.c.bf16 %v3452, %v3450
      %v3467 = vpack.c.bf16 %v3453, %v3451
      %v3468 = vpack.c.bf16 %v3456, %v3454
      %v3469 = vpack.c.bf16 %v3457, %v3455
      %v3470 = vpack.c.bf16 %v3460, %v3458
      %v3471 = vpack.c.bf16 %v3461, %v3459
      %v3472 = vpack.c.bf16 %v3464, %v3462
      %v3473 = vpack.c.bf16 %v3465, %v3463
      %v3474 = vld [vmem:[%s15] sm:$0xf]
      %v3475 = vld [vmem:[%s15 + $0x4] sm:$0xf]
      %v3476 = vld [vmem:[%s15 + $0x8] sm:$0xf]
      %v3477 = vld [vmem:[%s15 + $0xc] sm:$0xf]
      %v3478 = vld [vmem:[%s15 + $0x10] sm:$0xf]
      %v3479 = vld [vmem:[%s15 + $0x14] sm:$0xf]
      %v3480 = vld [vmem:[%s15 + $0x18] sm:$0xf]
      %v3481 = vld [vmem:[%s15 + $0x1c] sm:$0xf]
      %v3482 = vld [vmem:[%s15 + $0x20] sm:$0xf]
      %v3483 = vld [vmem:[%s15 + $0x24] sm:$0xf]
      %v3484 = vld [vmem:[%s15 + $0x28] sm:$0xf]
      %v3485 = vld [vmem:[%s15 + $0x2c] sm:$0xf]
      %v3486 = vld [vmem:[%s15 + $0x30] sm:$0xf]
      %v3487 = vld [vmem:[%s15 + $0x34] sm:$0xf]
      %v3488 = vld [vmem:[%s15 + $0x38] sm:$0xf]
      %v3489 = vld [vmem:[%s15 + $0x3c] sm:$0xf]
      %v3490 = vld [vmem:[%s15 + $0x40] sm:$0xf]
      %v3491 = vld [vmem:[%s15 + $0x44] sm:$0xf]
      %v3492 = vld [vmem:[%s15 + $0x48] sm:$0xf]
      %v3493 = vld [vmem:[%s15 + $0x4c] sm:$0xf]
      %v3494 = vld [vmem:[%s15 + $0x50] sm:$0xf]
      %v3495 = vld [vmem:[%s15 + $0x54] sm:$0xf]
      %v3496 = vld [vmem:[%s15 + $0x58] sm:$0xf]
      %v3497 = vld [vmem:[%s15 + $0x5c] sm:$0xf]
      %v3498 = vld [vmem:[%s15 + $0x60] sm:$0xf]
      %v3499 = vld [vmem:[%s15 + $0x64] sm:$0xf]
      %v3500 = vld [vmem:[%s15 + $0x68] sm:$0xf]
      %v3501 = vld [vmem:[%s15 + $0x6c] sm:$0xf]
      %v3502 = vld [vmem:[%s15 + $0x70] sm:$0xf]
      %v3503 = vld [vmem:[%s15 + $0x74] sm:$0xf]
      %v3504 = vld [vmem:[%s15 + $0x78] sm:$0xf]
      %v3505 = vld [vmem:[%s15 + $0x7c] sm:$0xf]
      %v3506 = vld [vmem:[%s16] sm:$0x1]
      %v3508 = vlaneseq
      %v3509 = vshrl.u32 %v3508, 7
      %v3510 = vsub.s32 0, %v3509
      %v3511 = vrot.slane %v3506, %v3510
      %v3545 = vunpack.c.l.b16 %v3474
      %v3546 = vunpack.c.l.b16 %v3475
      %v3547 = vunpack.c.l.b16 %v3476
      %v3548 = vunpack.c.l.b16 %v3477
      %v3549 = vunpack.c.l.b16 %v3478
      %v3550 = vunpack.c.l.b16 %v3479
      %v3551 = vunpack.c.l.b16 %v3480
      %v3552 = vunpack.c.l.b16 %v3481
      %v3553 = vunpack.c.l.b16 %v3482
      %v3554 = vunpack.c.l.b16 %v3483
      %v3555 = vunpack.c.l.b16 %v3484
      %v3556 = vunpack.c.l.b16 %v3485
      %v3557 = vunpack.c.l.b16 %v3486
      %v3558 = vunpack.c.l.b16 %v3487
      %v3559 = vunpack.c.l.b16 %v3488
      %v3560 = vunpack.c.l.b16 %v3489
      %v3561 = vunpack.c.l.b16 %v3490
      %v3562 = vunpack.c.l.b16 %v3491
      %v3563 = vunpack.c.l.b16 %v3492
      %v3564 = vunpack.c.l.b16 %v3493
      %v3565 = vunpack.c.l.b16 %v3494
      %v3566 = vunpack.c.l.b16 %v3495
      %v3567 = vunpack.c.l.b16 %v3496
      %v3568 = vunpack.c.l.b16 %v3497
      %v3569 = vunpack.c.l.b16 %v3498
      %v3570 = vunpack.c.l.b16 %v3499
      %v3571 = vunpack.c.l.b16 %v3500
      %v3572 = vunpack.c.l.b16 %v3501
      %v3573 = vunpack.c.l.b16 %v3502
      %v3574 = vunpack.c.l.b16 %v3503
      %v3575 = vunpack.c.l.b16 %v3504
      %v3576 = vunpack.c.l.b16 %v3505
      %v3577 = vpack.c.b16 %v3546, %v3545
      %v3578 = vpack.c.b16 %v3548, %v3547
      %v3579 = vpack.c.b16 %v3550, %v3549
      %v3580 = vpack.c.b16 %v3552, %v3551
      %v3581 = vpack.c.b16 %v3554, %v3553
      %v3582 = vpack.c.b16 %v3556, %v3555
      %v3583 = vpack.c.b16 %v3558, %v3557
      %v3584 = vpack.c.b16 %v3560, %v3559
      %v3585 = vpack.c.b16 %v3562, %v3561
      %v3586 = vpack.c.b16 %v3564, %v3563
      %v3587 = vpack.c.b16 %v3566, %v3565
      %v3588 = vpack.c.b16 %v3568, %v3567
      %v3589 = vpack.c.b16 %v3570, %v3569
      %v3590 = vpack.c.b16 %v3572, %v3571
      %v3591 = vpack.c.b16 %v3574, %v3573
      %v3592 = vpack.c.b16 %v3576, %v3575
      %3609 = vmatprep.subr.bf16.mxu0 0
      %3610 = vmatpush1.bf16.msra.mxu0 %v3577
      %3611 = vmatprep.subr.bf16.mxu0 0
      %3612 = vmatpush1.bf16.msra.mxu0 %v3578
      %3613 = vmatprep.subr.bf16.mxu0 0
      %3614 = vmatpush1.bf16.msra.mxu0 %v3579
      %3615 = vmatprep.subr.bf16.mxu0 0
      %3616 = vmatpush1.bf16.msra.mxu0 %v3580
      %3617 = vmatprep.subr.bf16.mxu0 0
      %3618 = vmatpush1.bf16.msra.mxu0 %v3581
      %3619 = vmatprep.subr.bf16.mxu0 0
      %3620 = vmatpush1.bf16.msra.mxu0 %v3582
      %3621 = vmatprep.subr.bf16.mxu0 0
      %3622 = vmatpush1.bf16.msra.mxu0 %v3583
      %3623 = vmatprep.subr.bf16.mxu0 0
      %3624 = vmatpush1.bf16.msra.mxu0 %v3584
      %3625 = vmatprep.subr.bf16.mxu0 0
      %3626 = vmatpush1.bf16.msra.mxu0 %v3585
      %3627 = vmatprep.subr.bf16.mxu0 0
      %3628 = vmatpush1.bf16.msra.mxu0 %v3586
      %3629 = vmatprep.subr.bf16.mxu0 0
      %3630 = vmatpush1.bf16.msra.mxu0 %v3587
      %3631 = vmatprep.subr.bf16.mxu0 0
      %3632 = vmatpush1.bf16.msra.mxu0 %v3588
      %3633 = vmatprep.subr.bf16.mxu0 0
      %3634 = vmatpush1.bf16.msra.mxu0 %v3589
      %3635 = vmatprep.subr.bf16.mxu0 0
      %3636 = vmatpush1.bf16.msra.mxu0 %v3590
      %3637 = vmatprep.subr.bf16.mxu0 0
      %3638 = vmatpush1.bf16.msra.mxu0 %v3591
      %3639 = vmatprep.subr.bf16.mxu0 0
      %3640 = vmatpush1.bf16.msra.mxu0 %v3592
      %3641 = vmatprep.mubr.bf16.mxu0 %v3467
      %3642 = vmatmul.mubr.bf16.gmra.mrb[0].mxu0 %v3466
      %v3643 = vpop.f32.mrb[0].mxu0
      %v3644 = vadd.f32 %v3511, %v3643
      %v3645 = vpop.f32.mrb[0].mxu0
      %v3646 = vpop.f32.mrb[0].mxu0
      %v3647 = vadd.f32 %v3511, %v3646
      %v3648 = vpop.f32.mrb[0].mxu0
      %3649 = vmatprep.mubr.bf16.mxu0 %v3469
      %3650 = vmatmul.mubr.bf16.gmra.mrb[0].mxu0 %v3468
      %v3651 = vpop.f32.mrb[0].mxu0
      %v3652 = vadd.f32 %v3511, %v3651
      %v3653 = vpop.f32.mrb[0].mxu0
      %v3654 = vpop.f32.mrb[0].mxu0
      %v3655 = vadd.f32 %v3511, %v3654
      %v3656 = vpop.f32.mrb[0].mxu0
      %3657 = vmatprep.mubr.bf16.mxu0 %v3471
      %3658 = vmatmul.mubr.bf16.gmra.mrb[0].mxu0 %v3470
      %v3659 = vpop.f32.mrb[0].mxu0
      %v3660 = vadd.f32 %v3511, %v3659
      %v3661 = vpop.f32.mrb[0].mxu0
      %v3662 = vpop.f32.mrb[0].mxu0
      %v3663 = vadd.f32 %v3511, %v3662
      %v3664 = vpop.f32.mrb[0].mxu0
      %3665 = vmatprep.mubr.bf16.mxu0 %v3473
      %3666 = vmatmul.mubr.bf16.gmra.mrb[0].mxu0 %v3472
      %v3667 = vpop.f32.mrb[0].mxu0
      %v3668 = vadd.f32 %v3511, %v3667
      %v3669 = vpop.f32.mrb[0].mxu0
      %v3670 = vpop.f32.mrb[0].mxu0
      %v3671 = vadd.f32 %v3511, %v3670
      %v3672 = vpop.f32.mrb[0].mxu0
      %3673 = vdwg.mxu0
      %v3674 = vadd.f32 %v3015, %v3644
      %v3675 = vadd.f32 %v3016, %v3647
      %v3676 = vadd.f32 %v3017, %v3652
      %v3677 = vadd.f32 %v3018, %v3655
      %v3678 = vadd.f32 %v3019, %v3660
      %v3679 = vadd.f32 %v3020, %v3663
      %v3680 = vadd.f32 %v3021, %v3668
      %v3681 = vadd.f32 %v3022, %v3671
      %s3682 = scalar_lea.vmem %s5, 1
      %v3683 = vld [vmem:[%s3682] sm:$0x1]
      %s3684 = scalar_lea.vmem %s6, 1
      %v3685 = vld [vmem:[%s3684] sm:$0x1]
      %v3686 = vsel %vm810, %v3674, 0.0
      %3687 = vadd.xlane.f32.xlu0 %v3686
      %v3688 = vpop.xlane.xlu0 %3687
      %v3689 = vsel %vm810, %v3675, 0.0
      %3690 = vadd.xlane.f32.xlu0 %v3689
      %v3691 = vpop.xlane.xlu0 %3690
      %v3692 = vsel %vm810, %v3676, 0.0
      %3693 = vadd.xlane.f32.xlu0 %v3692
      %v3694 = vpop.xlane.xlu0 %3693
      %v3695 = vsel %vm810, %v3677, 0.0
      %3696 = vadd.xlane.f32.xlu0 %v3695
      %v3697 = vpop.xlane.xlu0 %3696
      %v3698 = vsel %vm810, %v3678, 0.0
      %3699 = vadd.xlane.f32.xlu0 %v3698
      %v3700 = vpop.xlane.xlu0 %3699
      %v3701 = vsel %vm810, %v3679, 0.0
      %3702 = vadd.xlane.f32.xlu0 %v3701
      %v3703 = vpop.xlane.xlu0 %3702
      %v3704 = vsel %vm810, %v3680, 0.0
      %3705 = vadd.xlane.f32.xlu0 %v3704
      %v3706 = vpop.xlane.xlu0 %3705
      %v3707 = vsel %vm810, %v3681, 0.0
      %3708 = vadd.xlane.f32.xlu0 %v3707
      %v3709 = vpop.xlane.xlu0 %3708
      %v3710 = vmul.f32 %v3688, %v914
      %v3711 = vmul.f32 %v3691, %v914
      %v3712 = vmul.f32 %v3694, %v914
      %v3713 = vmul.f32 %v3697, %v914
      %v3714 = vmul.f32 %v3700, %v914
      %v3715 = vmul.f32 %v3703, %v914
      %v3716 = vmul.f32 %v3706, %v914
      %v3717 = vmul.f32 %v3709, %v914
      %v3718 = vmul.f32 %v3674, %v3674
      %v3719 = vmul.f32 %v3675, %v3675
      %v3720 = vmul.f32 %v3676, %v3676
      %v3721 = vmul.f32 %v3677, %v3677
      %v3722 = vmul.f32 %v3678, %v3678
      %v3723 = vmul.f32 %v3679, %v3679
      %v3724 = vmul.f32 %v3680, %v3680
      %v3725 = vmul.f32 %v3681, %v3681
      %v3726 = vsel %vm810, %v3718, 0.0
      %3727 = vadd.xlane.f32.xlu0 %v3726
      %v3728 = vpop.xlane.xlu0 %3727
      %v3729 = vsel %vm810, %v3719, 0.0
      %3730 = vadd.xlane.f32.xlu0 %v3729
      %v3731 = vpop.xlane.xlu0 %3730
      %v3732 = vsel %vm810, %v3720, 0.0
      %3733 = vadd.xlane.f32.xlu0 %v3732
      %v3734 = vpop.xlane.xlu0 %3733
      %v3735 = vsel %vm810, %v3721, 0.0
      %3736 = vadd.xlane.f32.xlu0 %v3735
      %v3737 = vpop.xlane.xlu0 %3736
      %v3738 = vsel %vm810, %v3722, 0.0
      %3739 = vadd.xlane.f32.xlu0 %v3738
      %v3740 = vpop.xlane.xlu0 %3739
      %v3741 = vsel %vm810, %v3723, 0.0
      %3742 = vadd.xlane.f32.xlu0 %v3741
      %v3743 = vpop.xlane.xlu0 %3742
      %v3744 = vsel %vm810, %v3724, 0.0
      %3745 = vadd.xlane.f32.xlu0 %v3744
      %v3746 = vpop.xlane.xlu0 %3745
      %v3747 = vsel %vm810, %v3725, 0.0
      %3748 = vadd.xlane.f32.xlu0 %v3747
      %v3749 = vpop.xlane.xlu0 %3748
      %v3750 = vmul.f32 %v3728, %v914
      %v3751 = vmul.f32 %v3731, %v914
      %v3752 = vmul.f32 %v3734, %v914
      %v3753 = vmul.f32 %v3737, %v914
      %v3754 = vmul.f32 %v3740, %v914
      %v3755 = vmul.f32 %v3743, %v914
      %v3756 = vmul.f32 %v3746, %v914
      %v3757 = vmul.f32 %v3749, %v914
      %v3758 = vmul.f32 %v3710, %v3710
      %v3759 = vmul.f32 %v3711, %v3711
      %v3760 = vmul.f32 %v3712, %v3712
      %v3761 = vmul.f32 %v3713, %v3713
      %v3762 = vmul.f32 %v3714, %v3714
      %v3763 = vmul.f32 %v3715, %v3715
      %v3764 = vmul.f32 %v3716, %v3716
      %v3765 = vmul.f32 %v3717, %v3717
      %v3766 = vsub.f32 %v3750, %v3758
      %v3767 = vsub.f32 %v3751, %v3759
      %v3768 = vsub.f32 %v3752, %v3760
      %v3769 = vsub.f32 %v3753, %v3761
      %v3770 = vsub.f32 %v3754, %v3762
      %v3771 = vsub.f32 %v3755, %v3763
      %v3772 = vsub.f32 %v3756, %v3764
      %v3773 = vsub.f32 %v3757, %v3765
      %v3774 = vsub.f32 %v3674, %v3710
      %v3775 = vsub.f32 %v3675, %v3711
      %v3776 = vsub.f32 %v3676, %v3712
      %v3777 = vsub.f32 %v3677, %v3713
      %v3778 = vsub.f32 %v3678, %v3714
      %v3779 = vsub.f32 %v3679, %v3715
      %v3780 = vsub.f32 %v3680, %v3716
      %v3781 = vsub.f32 %v3681, %v3717
      %v3782 = vadd.f32 %v3766, 1e-05
      %v3783 = vadd.f32 %v3767, 1e-05
      %v3784 = vadd.f32 %v3768, 1e-05
      %v3785 = vadd.f32 %v3769, 1e-05
      %v3786 = vadd.f32 %v3770, 1e-05
      %v3787 = vadd.f32 %v3771, 1e-05
      %v3788 = vadd.f32 %v3772, 1e-05
      %v3789 = vadd.f32 %v3773, 1e-05
      %v3790 = vrsqrt.pop %v3782
      %v3791 = vrsqrt.pop %v3783
      %v3792 = vrsqrt.pop %v3784
      %v3793 = vrsqrt.pop %v3785
      %v3794 = vrsqrt.pop %v3786
      %v3795 = vrsqrt.pop %v3787
      %v3796 = vrsqrt.pop %v3788
      %v3797 = vrsqrt.pop %v3789
      %v3798 = vmul.f32 %v3774, %v3790
      %v3799 = vmul.f32 %v3775, %v3791
      %v3800 = vmul.f32 %v3776, %v3792
      %v3801 = vmul.f32 %v3777, %v3793
      %v3802 = vmul.f32 %v3778, %v3794
      %v3803 = vmul.f32 %v3779, %v3795
      %v3804 = vmul.f32 %v3780, %v3796
      %v3805 = vmul.f32 %v3781, %v3797
      %v3807 = vlaneseq
      %v3808 = vshrl.u32 %v3807, 7
      %v3809 = vsub.s32 0, %v3808
      %v3810 = vrot.slane %v3683, %v3809
      %v3812 = vmul.f32 %v3798, %v3810
      %v3813 = vmul.f32 %v3799, %v3810
      %v3814 = vmul.f32 %v3800, %v3810
      %v3815 = vmul.f32 %v3801, %v3810
      %v3816 = vmul.f32 %v3802, %v3810
      %v3817 = vmul.f32 %v3803, %v3810
      %v3818 = vmul.f32 %v3804, %v3810
      %v3819 = vmul.f32 %v3805, %v3810
      %v3821 = vlaneseq
      %v3822 = vshrl.u32 %v3821, 7
      %v3823 = vsub.s32 0, %v3822
      %v3824 = vrot.slane %v3685, %v3823
      %v3826 = vadd.f32 %v3812, %v3824
      %v3827 = vadd.f32 %v3813, %v3824
      %v3828 = vadd.f32 %v3814, %v3824
      %v3829 = vadd.f32 %v3815, %v3824
      %v3830 = vadd.f32 %v3816, %v3824
      %v3831 = vadd.f32 %v3817, %v3824
      %v3832 = vadd.f32 %v3818, %v3824
      %v3833 = vadd.f32 %v3819, %v3824
      %v3834 = vpack.c.bf16 %v3827, %v3826
      %v3835 = vpack.c.bf16 %v3829, %v3828
      %v3836 = vpack.c.bf16 %v3831, %v3830
      %v3837 = vpack.c.bf16 %v3833, %v3832
      %s3838 = scalar_lea.vmem %s7, 64
      %v3839 = vld [vmem:[%s3838] sm:$0xff]
      %v3840 = vld [vmem:[%s3838 + $0x8] sm:$0xff]
      %v3841 = vld [vmem:[%s3838 + $0x10] sm:$0xff]
      %v3842 = vld [vmem:[%s3838 + $0x18] sm:$0xff]
      %v3843 = vld [vmem:[%s3838 + $0x20] sm:$0xff]
      %v3844 = vld [vmem:[%s3838 + $0x28] sm:$0xff]
      %v3845 = vld [vmem:[%s3838 + $0x30] sm:$0xff]
      %v3846 = vld [vmem:[%s3838 + $0x38] sm:$0xff]
      %s3847 = scalar_lea.vmem %s8, 2
      %v3848 = vld [vmem:[%s3847] sm:$0x3]
      %v3850 = vlaneseq
      %v3851 = vshrl.u32 %v3850, 7
      %v3852 = vsub.s32 0, %v3851
      %v3853 = vrot.slane %v3848, %v3852
      %v3854 = vlaneseq
      %v3855 = vshrl.u32 %v3854, 7
      %v3856 = vsub.s32 1, %v3855
      %v3857 = vrot.slane %v3848, %v3856
      %v3868 = vunpack.c.l.b16 %v3839
      %v3869 = vunpack.c.h.b16 %v3839
      %v3870 = vunpack.c.l.b16 %v3840
      %v3871 = vunpack.c.h.b16 %v3840
      %v3872 = vunpack.c.l.b16 %v3841
      %v3873 = vunpack.c.h.b16 %v3841
      %v3874 = vunpack.c.l.b16 %v3842
      %v3875 = vunpack.c.h.b16 %v3842
      %v3876 = vunpack.c.l.b16 %v3843
      %v3877 = vunpack.c.h.b16 %v3843
      %v3878 = vunpack.c.l.b16 %v3844
      %v3879 = vunpack.c.h.b16 %v3844
      %v3880 = vunpack.c.l.b16 %v3845
      %v3881 = vunpack.c.h.b16 %v3845
      %v3882 = vunpack.c.l.b16 %v3846
      %v3883 = vunpack.c.h.b16 %v3846
      %v3884 = vpack.c.b16 %v3870, %v3868
      %v3885 = vpack.c.b16 %v3871, %v3869
      %v3886 = vpack.c.b16 %v3874, %v3872
      %v3887 = vpack.c.b16 %v3875, %v3873
      %v3888 = vpack.c.b16 %v3878, %v3876
      %v3889 = vpack.c.b16 %v3879, %v3877
      %v3890 = vpack.c.b16 %v3882, %v3880
      %v3891 = vpack.c.b16 %v3883, %v3881
      %v3901 = vsel %vm810, %v3834, 0
      %v3904 = vsel %vm810, %v3835, 0
      %v3907 = vsel %vm810, %v3836, 0
      %v3910 = vsel %vm810, %v3837, 0
      %3912 = vmatprep.subr.bf16.mxu0 %v3885
      %3913 = vmatpush1.bf16.msra.mxu0 %v3884
      %3914 = vmatprep.subr.bf16.mxu0 %v3887
      %3915 = vmatpush1.bf16.msra.mxu0 %v3886
      %3916 = vmatprep.subr.bf16.mxu0 %v3889
      %3917 = vmatpush1.bf16.msra.mxu0 %v3888
      %3918 = vmatprep.subr.bf16.mxu0 %v3891
      %3919 = vmatpush1.bf16.msra.mxu0 %v3890
      %3920 = vmatprep.subr.bf16.mxu0 0
      %3921 = vmatpush1.bf16.msra.mxu0 0
      %3922 = vmatprep.subr.bf16.mxu0 0
      %3923 = vmatpush1.bf16.msra.mxu0 0
      %3924 = vmatprep.subr.bf16.mxu0 0
      %3925 = vmatpush1.bf16.msra.mxu0 0
      %3926 = vmatprep.subr.bf16.mxu0 0
      %3927 = vmatpush1.bf16.msra.mxu0 0
      %3928 = vmatprep.subr.bf16.mxu0 0
      %3929 = vmatpush1.bf16.msra.mxu0 0
      %3930 = vmatprep.subr.bf16.mxu0 0
      %3931 = vmatpush1.bf16.msra.mxu0 0
      %3932 = vmatprep.subr.bf16.mxu0 0
      %3933 = vmatpush1.bf16.msra.mxu0 0
      %3934 = vmatprep.subr.bf16.mxu0 0
      %3935 = vmatpush1.bf16.msra.mxu0 0
      %3936 = vmatprep.subr.bf16.mxu0 0
      %3937 = vmatpush1.bf16.msra.mxu0 0
      %3938 = vmatprep.subr.bf16.mxu0 0
      %3939 = vmatpush1.bf16.msra.mxu0 0
      %3940 = vmatprep.subr.bf16.mxu0 0
      %3941 = vmatpush1.bf16.msra.mxu0 0
      %3942 = vmatprep.subr.bf16.mxu0 0
      %3943 = vmatpush1.bf16.msra.mxu0 0
      %3944 = vmatprep.mubr.bf16.mxu0 0
      %3945 = vmatmul.mubr.bf16.gmra.mrb[0].mxu0 %v3901
      %v3946 = vpop.f32.mrb[0].mxu0
      %v3947 = vadd.f32 %v3853, %v3946
      %v3948 = vpop.f32.mrb[0].mxu0
      %v3949 = vadd.f32 %v3857, %v3948
      %v3950 = vpop.f32.mrb[0].mxu0
      %v3951 = vadd.f32 %v3853, %v3950
      %v3952 = vpop.f32.mrb[0].mxu0
      %v3953 = vadd.f32 %v3857, %v3952
      %3954 = vmatprep.mubr.bf16.mxu0 0
      %3955 = vmatmul.mubr.bf16.gmra.mrb[0].mxu0 %v3904
      %v3956 = vpop.f32.mrb[0].mxu0
      %v3957 = vadd.f32 %v3853, %v3956
      %v3958 = vpop.f32.mrb[0].mxu0
      %v3959 = vadd.f32 %v3857, %v3958
      %v3960 = vpop.f32.mrb[0].mxu0
      %v3961 = vadd.f32 %v3853, %v3960
      %v3962 = vpop.f32.mrb[0].mxu0
      %v3963 = vadd.f32 %v3857, %v3962
      %3964 = vmatprep.mubr.bf16.mxu0 0
      %3965 = vmatmul.mubr.bf16.gmra.mrb[0].mxu0 %v3907
      %v3966 = vpop.f32.mrb[0].mxu0
      %v3967 = vadd.f32 %v3853, %v3966
      %v3968 = vpop.f32.mrb[0].mxu0
      %v3969 = vadd.f32 %v3857, %v3968
      %v3970 = vpop.f32.mrb[0].mxu0
      %v3971 = vadd.f32 %v3853, %v3970
      %v3972 = vpop.f32.mrb[0].mxu0
      %v3973 = vadd.f32 %v3857, %v3972
      %3974 = vmatprep.mubr.bf16.mxu0 0
      %3975 = vmatmul.mubr.bf16.gmra.mrb[0].mxu0 %v3910
      %v3976 = vpop.f32.mrb[0].mxu0
      %v3977 = vadd.f32 %v3853, %v3976
      %v3978 = vpop.f32.mrb[0].mxu0
      %v3979 = vadd.f32 %v3857, %v3978
      %v3980 = vpop.f32.mrb[0].mxu0
      %v3981 = vadd.f32 %v3853, %v3980
      %v3982 = vpop.f32.mrb[0].mxu0
      %v3983 = vadd.f32 %v3857, %v3982
      %3984 = vdwg.mxu0
      %v3985 = vpack.c.bf16 %v3951, %v3947
      %v3986 = vpack.c.bf16 %v3961, %v3957
      %v3987 = vpack.c.bf16 %v3971, %v3967
      %v3988 = vpack.c.bf16 %v3981, %v3977
      %v3989 = vpack.c.bf16 %v3953, %v3949
      %v3990 = vpack.c.bf16 %v3963, %v3959
      %v3991 = vpack.c.bf16 %v3973, %v3969
      %v3992 = vpack.c.bf16 %v3983, %v3979
      %3995 = vrot.lane.b32.xlu0 %v3985, 64
      %v3996 = vpop.permute.xlu0 %3995
      %3997 = vrot.lane.b32.xlu0 %v3986, 64
      %v3998 = vpop.permute.xlu0 %3997
      %v4000 = vsel %vm1356, %v3985, 0
      %v4003 = vsel %vm1356, %v3986, 0
      %v4006 = vsel %vm1356, %v3996, 0
      %v4009 = vsel %vm1356, %v3998, 0
      %4011 = vmatprep.subr.bf16.mxu0 0
      %4012 = vmatpush1.bf16.xpose.msra.mxu0 %v4006
      %4013 = vmatprep.subr.bf16.mxu0 0
      %4014 = vmatpush1.bf16.xpose.msra.mxu0 %v4009
      %4015 = vmatprep.subr.bf16.mxu0 0
      %4016 = vmatpush1.bf16.xpose.msra.mxu0 0
      %4017 = vmatprep.subr.bf16.mxu0 0
      %4018 = vmatpush1.bf16.xpose.msra.mxu0 0
      %4019 = vmatprep.subr.bf16.mxu0 0
      %4020 = vmatpush1.bf16.xpose.msra.mxu0 0
      %4021 = vmatprep.subr.bf16.mxu0 0
      %4022 = vmatpush1.bf16.xpose.msra.mxu0 0
      %4023 = vmatprep.subr.bf16.mxu0 0
      %4024 = vmatpush1.bf16.xpose.msra.mxu0 0
      %4025 = vmatprep.subr.bf16.mxu0 0
      %4026 = vmatpush1.bf16.xpose.msra.mxu0 0
      %4027 = vmatprep.subr.bf16.mxu0 0
      %4028 = vmatpush1.bf16.xpose.msra.mxu0 0
      %4029 = vmatprep.subr.bf16.mxu0 0
      %4030 = vmatpush1.bf16.xpose.msra.mxu0 0
      %4031 = vmatprep.subr.bf16.mxu0 0
      %4032 = vmatpush1.bf16.xpose.msra.mxu0 0
      %4033 = vmatprep.subr.bf16.mxu0 0
      %4034 = vmatpush1.bf16.xpose.msra.mxu0 0
      %4035 = vmatprep.subr.bf16.mxu0 0
      %4036 = vmatpush1.bf16.xpose.msra.mxu0 0
      %4037 = vmatprep.subr.bf16.mxu0 0
      %4038 = vmatpush1.bf16.xpose.msra.mxu0 0
      %4039 = vmatprep.subr.bf16.mxu0 0
      %4040 = vmatpush1.bf16.xpose.msra.mxu0 0
      %4041 = vmatprep.subr.bf16.mxu0 0
      %4042 = vmatpush1.bf16.xpose.msra.mxu0 0
      %4043 = vmatprep.mubr.bf16.mxu0 0
      %4044 = vmatmul.mubr.bf16.gmra.mrb[0].mxu0 %v4000
      %v4045 = vpop.f32.mrb[0].mxu0
      %v4046 = vadd.f32 %v1042, %v4045
      %v4047 = vpop.f32.mrb[0].mxu0
      %v4048 = vpop.f32.mrb[0].mxu0
      %v4049 = vadd.f32 %v1042, %v4048
      %v4050 = vpop.f32.mrb[0].mxu0
      %4051 = vmatprep.mubr.bf16.mxu0 0
      %4052 = vmatmul.mubr.bf16.gmra.mrb[0].mxu0 %v4003
      %v4053 = vpop.f32.mrb[0].mxu0
      %v4054 = vadd.f32 %v1042, %v4053
      %v4055 = vpop.f32.mrb[0].mxu0
      %v4056 = vpop.f32.mrb[0].mxu0
      %v4057 = vadd.f32 %v1042, %v4056
      %v4058 = vpop.f32.mrb[0].mxu0
      %4059 = vdwg.mxu0
      %v4060 = vsel %vm1418, %v4046, -inf
      %4061 = vmax.xlane.f32.xlu0 %v4060
      %v4062 = vpop.xlane.xlu0 %4061
      %v4063 = vsel %vm1418, %v4049, -inf
      %4064 = vmax.xlane.f32.xlu0 %v4063
      %v4065 = vpop.xlane.xlu0 %4064
      %v4066 = vsel %vm1418, %v4054, -inf
      %4067 = vmax.xlane.f32.xlu0 %v4066
      %v4068 = vpop.xlane.xlu0 %4067
      %v4069 = vsel %vm1418, %v4057, -inf
      %4070 = vmax.xlane.f32.xlu0 %v4069
      %v4071 = vpop.xlane.xlu0 %4070
      %v4072 = vsub.f32 %v4046, %v4062
      %v4073 = vsub.f32 %v4049, %v4065
      %v4074 = vsub.f32 %v4054, %v4068
      %v4075 = vsub.f32 %v4057, %v4071
      %v4076 = vmul.f32 %v4072, 1.442695
      %v4077 = vpow.pop %v4076
      %v4078 = vmul.f32 %v4073, 1.442695
      %v4079 = vpow.pop %v4078
      %v4080 = vmul.f32 %v4074, 1.442695
      %v4081 = vpow.pop %v4080
      %v4082 = vmul.f32 %v4075, 1.442695
      %v4083 = vpow.pop %v4082
      %v4084 = vsel %vm1418, %v4077, 0.0
      %4085 = vadd.xlane.f32.xlu0 %v4084
      %v4086 = vpop.xlane.xlu0 %4085
      %v4087 = vsel %vm1418, %v4079, 0.0
      %4088 = vadd.xlane.f32.xlu0 %v4087
      %v4089 = vpop.xlane.xlu0 %4088
      %v4090 = vsel %vm1418, %v4081, 0.0
      %4091 = vadd.xlane.f32.xlu0 %v4090
      %v4092 = vpop.xlane.xlu0 %4091
      %v4093 = vsel %vm1418, %v4083, 0.0
      %4094 = vadd.xlane.f32.xlu0 %v4093
      %v4095 = vpop.xlane.xlu0 %4094
      %v4096 = vrcp.pop %v4086
      %v4097 = vrcp.pop %v4089
      %v4098 = vrcp.pop %v4092
      %v4099 = vrcp.pop %v4095
      %v4100 = vmul.f32 %v4077, %v4096
      %v4101 = vmul.f32 %v4079, %v4097
      %v4102 = vmul.f32 %v4081, %v4098
      %v4103 = vmul.f32 %v4083, %v4099
      %v4104 = vpack.c.bf16 %v4101, %v4100
      %v4105 = vpack.c.bf16 %v4103, %v4102
      %v4107 = vsel %vm1418, %v4104, 0
      %v4110 = vsel %vm1418, %v4105, 0
      %4112 = vmatprep.subr.bf16.mxu0 0
      %4113 = vmatpush1.bf16.msra.mxu0 %v3989
      %4114 = vmatprep.subr.bf16.mxu0 0
      %4115 = vmatpush1.bf16.msra.mxu0 %v3990
      %4116 = vmatprep.subr.bf16.mxu0 0
      %4117 = vmatpush1.bf16.msra.mxu0 0
      %4118 = vmatprep.subr.bf16.mxu0 0
      %4119 = vmatpush1.bf16.msra.mxu0 0
      %4120 = vmatprep.subr.bf16.mxu0 0
      %4121 = vmatpush1.bf16.msra.mxu0 0
      %4122 = vmatprep.subr.bf16.mxu0 0
      %4123 = vmatpush1.bf16.msra.mxu0 0
      %4124 = vmatprep.subr.bf16.mxu0 0
      %4125 = vmatpush1.bf16.msra.mxu0 0
      %4126 = vmatprep.subr.bf16.mxu0 0
      %4127 = vmatpush1.bf16.msra.mxu0 0
      %4128 = vmatprep.subr.bf16.mxu0 0
      %4129 = vmatpush1.bf16.msra.mxu0 0
      %4130 = vmatprep.subr.bf16.mxu0 0
      %4131 = vmatpush1.bf16.msra.mxu0 0
      %4132 = vmatprep.subr.bf16.mxu0 0
      %4133 = vmatpush1.bf16.msra.mxu0 0
      %4134 = vmatprep.subr.bf16.mxu0 0
      %4135 = vmatpush1.bf16.msra.mxu0 0
      %4136 = vmatprep.subr.bf16.mxu0 0
      %4137 = vmatpush1.bf16.msra.mxu0 0
      %4138 = vmatprep.subr.bf16.mxu0 0
      %4139 = vmatpush1.bf16.msra.mxu0 0
      %4140 = vmatprep.subr.bf16.mxu0 0
      %4141 = vmatpush1.bf16.msra.mxu0 0
      %4142 = vmatprep.subr.bf16.mxu0 0
      %4143 = vmatpush1.bf16.msra.mxu0 0
      %4144 = vmatprep.mubr.bf16.mxu0 0
      %4145 = vmatmul.mubr.bf16.gmra.mrb[0].mxu0 %v4107
      %v4146 = vpop.f32.mrb[0].mxu0
      %v4147 = vadd.f32 0.0, %v4146
      %v4148 = vpop.f32.mrb[0].mxu0
      %v4149 = vpop.f32.mrb[0].mxu0
      %v4150 = vadd.f32 0.0, %v4149
      %v4151 = vpop.f32.mrb[0].mxu0
      %4152 = vmatprep.mubr.bf16.mxu0 0
      %4153 = vmatmul.mubr.bf16.gmra.mrb[0].mxu0 %v4110
      %v4154 = vpop.f32.mrb[0].mxu0
      %v4155 = vadd.f32 0.0, %v4154
      %v4156 = vpop.f32.mrb[0].mxu0
      %v4157 = vpop.f32.mrb[0].mxu0
      %v4158 = vadd.f32 0.0, %v4157
      %v4159 = vpop.f32.mrb[0].mxu0
      %4160 = vdwg.mxu0
      %4161 = vst.msk [vmem:[#allocation2] sm:$0xff] %vm1356, %v4147
      %4162 = vst.msk [vmem:[#allocation2 + $0x8] sm:$0xff] %vm1356, %v4150
      %4163 = vst.msk [vmem:[#allocation2 + $0x10] sm:$0xff] %vm1356, %v4155
      %4164 = vst.msk [vmem:[#allocation2 + $0x18] sm:$0xff] %vm1356, %v4158
      %4165 = vrot.lane.b32.xlu0 %v3985, 112
      %v4166 = vpop.permute.xlu0 %4165
      %4167 = vrot.lane.b32.xlu0 %v3986, 112
      %v4168 = vpop.permute.xlu0 %4167
      %4169 = vrot.lane.b32.xlu0 %v3985, 48
      %v4170 = vpop.permute.xlu0 %4169
      %4171 = vrot.lane.b32.xlu0 %v3986, 48
      %v4172 = vpop.permute.xlu0 %4171
      %v4174 = vsel %vm1356, %v4166, 0
      %v4177 = vsel %vm1356, %v4168, 0
      %v4180 = vsel %vm1356, %v4170, 0
      %v4183 = vsel %vm1356, %v4172, 0
      %4185 = vmatprep.subr.bf16.mxu0 0
      %4186 = vmatpush1.bf16.xpose.msra.mxu0 %v4180
      %4187 = vmatprep.subr.bf16.mxu0 0
      %4188 = vmatpush1.bf16.xpose.msra.mxu0 %v4183
      %4189 = vmatprep.subr.bf16.mxu0 0
      %4190 = vmatpush1.bf16.xpose.msra.mxu0 0
      %4191 = vmatprep.subr.bf16.mxu0 0
      %4192 = vmatpush1.bf16.xpose.msra.mxu0 0
      %4193 = vmatprep.subr.bf16.mxu0 0
      %4194 = vmatpush1.bf16.xpose.msra.mxu0 0
      %4195 = vmatprep.subr.bf16.mxu0 0
      %4196 = vmatpush1.bf16.xpose.msra.mxu0 0
      %4197 = vmatprep.subr.bf16.mxu0 0
      %4198 = vmatpush1.bf16.xpose.msra.mxu0 0
      %4199 = vmatprep.subr.bf16.mxu0 0
      %4200 = vmatpush1.bf16.xpose.msra.mxu0 0
      %4201 = vmatprep.subr.bf16.mxu0 0
      %4202 = vmatpush1.bf16.xpose.msra.mxu0 0
      %4203 = vmatprep.subr.bf16.mxu0 0
      %4204 = vmatpush1.bf16.xpose.msra.mxu0 0
      %4205 = vmatprep.subr.bf16.mxu0 0
      %4206 = vmatpush1.bf16.xpose.msra.mxu0 0
      %4207 = vmatprep.subr.bf16.mxu0 0
      %4208 = vmatpush1.bf16.xpose.msra.mxu0 0
      %4209 = vmatprep.subr.bf16.mxu0 0
      %4210 = vmatpush1.bf16.xpose.msra.mxu0 0
      %4211 = vmatprep.subr.bf16.mxu0 0
      %4212 = vmatpush1.bf16.xpose.msra.mxu0 0
      %4213 = vmatprep.subr.bf16.mxu0 0
      %4214 = vmatpush1.bf16.xpose.msra.mxu0 0
      %4215 = vmatprep.subr.bf16.mxu0 0
      %4216 = vmatpush1.bf16.xpose.msra.mxu0 0
      %4217 = vmatprep.mubr.bf16.mxu0 0
      %4218 = vmatmul.mubr.bf16.gmra.mrb[0].mxu0 %v4174
      %v4219 = vpop.f32.mrb[0].mxu0
      %v4220 = vadd.f32 %v1042, %v4219
      %v4221 = vpop.f32.mrb[0].mxu0
      %v4222 = vpop.f32.mrb[0].mxu0
      %v4223 = vadd.f32 %v1042, %v4222
      %v4224 = vpop.f32.mrb[0].mxu0
      %4225 = vmatprep.mubr.bf16.mxu0 0
      %4226 = vmatmul.mubr.bf16.gmra.mrb[0].mxu0 %v4177
      %v4227 = vpop.f32.mrb[0].mxu0
      %v4228 = vadd.f32 %v1042, %v4227
      %v4229 = vpop.f32.mrb[0].mxu0
      %v4230 = vpop.f32.mrb[0].mxu0
      %v4231 = vadd.f32 %v1042, %v4230
      %v4232 = vpop.f32.mrb[0].mxu0
      %4233 = vdwg.mxu0
      %v4234 = vsel %vm1418, %v4220, -inf
      %4235 = vmax.xlane.f32.xlu0 %v4234
      %v4236 = vpop.xlane.xlu0 %4235
      %v4237 = vsel %vm1418, %v4223, -inf
      %4238 = vmax.xlane.f32.xlu0 %v4237
      %v4239 = vpop.xlane.xlu0 %4238
      %v4240 = vsel %vm1418, %v4228, -inf
      %4241 = vmax.xlane.f32.xlu0 %v4240
      %v4242 = vpop.xlane.xlu0 %4241
      %v4243 = vsel %vm1418, %v4231, -inf
      %4244 = vmax.xlane.f32.xlu0 %v4243
      %v4245 = vpop.xlane.xlu0 %4244
      %v4246 = vsub.f32 %v4220, %v4236
      %v4247 = vsub.f32 %v4223, %v4239
      %v4248 = vsub.f32 %v4228, %v4242
      %v4249 = vsub.f32 %v4231, %v4245
      %v4250 = vmul.f32 %v4246, 1.442695
      %v4251 = vpow.pop %v4250
      %v4252 = vmul.f32 %v4247, 1.442695
      %v4253 = vpow.pop %v4252
      %v4254 = vmul.f32 %v4248, 1.442695
      %v4255 = vpow.pop %v4254
      %v4256 = vmul.f32 %v4249, 1.442695
      %v4257 = vpow.pop %v4256
      %v4258 = vsel %vm1418, %v4251, 0.0
      %4259 = vadd.xlane.f32.xlu0 %v4258
      %v4260 = vpop.xlane.xlu0 %4259
      %v4261 = vsel %vm1418, %v4253, 0.0
      %4262 = vadd.xlane.f32.xlu0 %v4261
      %v4263 = vpop.xlane.xlu0 %4262
      %v4264 = vsel %vm1418, %v4255, 0.0
      %4265 = vadd.xlane.f32.xlu0 %v4264
      %v4266 = vpop.xlane.xlu0 %4265
      %v4267 = vsel %vm1418, %v4257, 0.0
      %4268 = vadd.xlane.f32.xlu0 %v4267
      %v4269 = vpop.xlane.xlu0 %4268
      %v4270 = vrcp.pop %v4260
      %v4271 = vrcp.pop %v4263
      %v4272 = vrcp.pop %v4266
      %v4273 = vrcp.pop %v4269
      %v4274 = vmul.f32 %v4251, %v4270
      %v4275 = vmul.f32 %v4253, %v4271
      %v4276 = vmul.f32 %v4255, %v4272
      %v4277 = vmul.f32 %v4257, %v4273
      %v4278 = vpack.c.bf16 %v4275, %v4274
      %v4279 = vpack.c.bf16 %v4277, %v4276
      %4282 = vrot.lane.b32.xlu0 %v3989, 112
      %v4283 = vpop.permute.xlu0 %4282
      %4284 = vrot.lane.b32.xlu0 %v3990, 112
      %v4285 = vpop.permute.xlu0 %4284
      %v4289 = vsel %vm1418, %v4278, 0
      %v4292 = vsel %vm1418, %v4279, 0
      %4294 = vmatprep.subr.bf16.mxu0 0
      %4295 = vmatpush1.bf16.msra.mxu0 %v4283
      %4296 = vmatprep.subr.bf16.mxu0 0
      %4297 = vmatpush1.bf16.msra.mxu0 %v4285
      %4298 = vmatprep.subr.bf16.mxu0 0
      %4299 = vmatpush1.bf16.msra.mxu0 0
      %4300 = vmatprep.subr.bf16.mxu0 0
      %4301 = vmatpush1.bf16.msra.mxu0 0
      %4302 = vmatprep.subr.bf16.mxu0 0
      %4303 = vmatpush1.bf16.msra.mxu0 0
      %4304 = vmatprep.subr.bf16.mxu0 0
      %4305 = vmatpush1.bf16.msra.mxu0 0
      %4306 = vmatprep.subr.bf16.mxu0 0
      %4307 = vmatpush1.bf16.msra.mxu0 0
      %4308 = vmatprep.subr.bf16.mxu0 0
      %4309 = vmatpush1.bf16.msra.mxu0 0
      %4310 = vmatprep.subr.bf16.mxu0 0
      %4311 = vmatpush1.bf16.msra.mxu0 0
      %4312 = vmatprep.subr.bf16.mxu0 0
      %4313 = vmatpush1.bf16.msra.mxu0 0
      %4314 = vmatprep.subr.bf16.mxu0 0
      %4315 = vmatpush1.bf16.msra.mxu0 0
      %4316 = vmatprep.subr.bf16.mxu0 0
      %4317 = vmatpush1.bf16.msra.mxu0 0
      %4318 = vmatprep.subr.bf16.mxu0 0
      %4319 = vmatpush1.bf16.msra.mxu0 0
      %4320 = vmatprep.subr.bf16.mxu0 0
      %4321 = vmatpush1.bf16.msra.mxu0 0
      %4322 = vmatprep.subr.bf16.mxu0 0
      %4323 = vmatpush1.bf16.msra.mxu0 0
      %4324 = vmatprep.subr.bf16.mxu0 0
      %4325 = vmatpush1.bf16.msra.mxu0 0
      %4326 = vmatprep.mubr.bf16.mxu0 0
      %4327 = vmatmul.mubr.bf16.gmra.mrb[0].mxu0 %v4289
      %v4328 = vpop.f32.mrb[0].mxu0
      %v4329 = vadd.f32 0.0, %v4328
      %v4330 = vpop.f32.mrb[0].mxu0
      %v4331 = vpop.f32.mrb[0].mxu0
      %v4332 = vadd.f32 0.0, %v4331
      %v4333 = vpop.f32.mrb[0].mxu0
      %4334 = vmatprep.mubr.bf16.mxu0 0
      %4335 = vmatmul.mubr.bf16.gmra.mrb[0].mxu0 %v4292
      %v4336 = vpop.f32.mrb[0].mxu0
      %v4337 = vadd.f32 0.0, %v4336
      %v4338 = vpop.f32.mrb[0].mxu0
      %v4339 = vpop.f32.mrb[0].mxu0
      %v4340 = vadd.f32 0.0, %v4339
      %v4341 = vpop.f32.mrb[0].mxu0
      %4342 = vdwg.mxu0
      %4347 = vrot.lane.b32.xlu0 %v4329, 16
      %v4348 = vpop.permute.xlu0 %4347
      %4349 = vrot.lane.b32.xlu0 %v4332, 16
      %v4350 = vpop.permute.xlu0 %4349
      %4351 = vrot.lane.b32.xlu0 %v4337, 16
      %v4352 = vpop.permute.xlu0 %4351
      %4353 = vrot.lane.b32.xlu0 %v4340, 16
      %v4354 = vpop.permute.xlu0 %4353
      %4359 = vst.msk [vmem:[#allocation2] sm:$0xff] %vm1718, %v4348
      %4360 = vst.msk [vmem:[#allocation2 + $0x8] sm:$0xff] %vm1718, %v4350
      %4361 = vst.msk [vmem:[#allocation2 + $0x10] sm:$0xff] %vm1718, %v4352
      %4362 = vst.msk [vmem:[#allocation2 + $0x18] sm:$0xff] %vm1718, %v4354
      %4363 = vrot.lane.b32.xlu0 %v3985, 96
      %v4364 = vpop.permute.xlu0 %4363
      %4365 = vrot.lane.b32.xlu0 %v3986, 96
      %v4366 = vpop.permute.xlu0 %4365
      %4367 = vrot.lane.b32.xlu0 %v3985, 32
      %v4368 = vpop.permute.xlu0 %4367
      %4369 = vrot.lane.b32.xlu0 %v3986, 32
      %v4370 = vpop.permute.xlu0 %4369
      %v4372 = vsel %vm1356, %v4364, 0
      %v4375 = vsel %vm1356, %v4366, 0
      %v4378 = vsel %vm1356, %v4368, 0
      %v4381 = vsel %vm1356, %v4370, 0
      %4383 = vmatprep.subr.bf16.mxu0 0
      %4384 = vmatpush1.bf16.xpose.msra.mxu0 %v4378
      %4385 = vmatprep.subr.bf16.mxu0 0
      %4386 = vmatpush1.bf16.xpose.msra.mxu0 %v4381
      %4387 = vmatprep.subr.bf16.mxu0 0
      %4388 = vmatpush1.bf16.xpose.msra.mxu0 0
      %4389 = vmatprep.subr.bf16.mxu0 0
      %4390 = vmatpush1.bf16.xpose.msra.mxu0 0
      %4391 = vmatprep.subr.bf16.mxu0 0
      %4392 = vmatpush1.bf16.xpose.msra.mxu0 0
      %4393 = vmatprep.subr.bf16.mxu0 0
      %4394 = vmatpush1.bf16.xpose.msra.mxu0 0
      %4395 = vmatprep.subr.bf16.mxu0 0
      %4396 = vmatpush1.bf16.xpose.msra.mxu0 0
      %4397 = vmatprep.subr.bf16.mxu0 0
      %4398 = vmatpush1.bf16.xpose.msra.mxu0 0
      %4399 = vmatprep.subr.bf16.mxu0 0
      %4400 = vmatpush1.bf16.xpose.msra.mxu0 0
      %4401 = vmatprep.subr.bf16.mxu0 0
      %4402 = vmatpush1.bf16.xpose.msra.mxu0 0
      %4403 = vmatprep.subr.bf16.mxu0 0
      %4404 = vmatpush1.bf16.xpose.msra.mxu0 0
      %4405 = vmatprep.subr.bf16.mxu0 0
      %4406 = vmatpush1.bf16.xpose.msra.mxu0 0
      %4407 = vmatprep.subr.bf16.mxu0 0
      %4408 = vmatpush1.bf16.xpose.msra.mxu0 0
      %4409 = vmatprep.subr.bf16.mxu0 0
      %4410 = vmatpush1.bf16.xpose.msra.mxu0 0
      %4411 = vmatprep.subr.bf16.mxu0 0
      %4412 = vmatpush1.bf16.xpose.msra.mxu0 0
      %4413 = vmatprep.subr.bf16.mxu0 0
      %4414 = vmatpush1.bf16.xpose.msra.mxu0 0
      %4415 = vmatprep.mubr.bf16.mxu0 0
      %4416 = vmatmul.mubr.bf16.gmra.mrb[0].mxu0 %v4372
      %v4417 = vpop.f32.mrb[0].mxu0
      %v4418 = vadd.f32 %v1042, %v4417
      %v4419 = vpop.f32.mrb[0].mxu0
      %v4420 = vpop.f32.mrb[0].mxu0
      %v4421 = vadd.f32 %v1042, %v4420
      %v4422 = vpop.f32.mrb[0].mxu0
      %4423 = vmatprep.mubr.bf16.mxu0 0
      %4424 = vmatmul.mubr.bf16.gmra.mrb[0].mxu0 %v4375
      %v4425 = vpop.f32.mrb[0].mxu0
      %v4426 = vadd.f32 %v1042, %v4425
      %v4427 = vpop.f32.mrb[0].mxu0
      %v4428 = vpop.f32.mrb[0].mxu0
      %v4429 = vadd.f32 %v1042, %v4428
      %v4430 = vpop.f32.mrb[0].mxu0
      %4431 = vdwg.mxu0
      %v4432 = vsel %vm1418, %v4418, -inf
      %4433 = vmax.xlane.f32.xlu0 %v4432
      %v4434 = vpop.xlane.xlu0 %4433
      %v4435 = vsel %vm1418, %v4421, -inf
      %4436 = vmax.xlane.f32.xlu0 %v4435
      %v4437 = vpop.xlane.xlu0 %4436
      %v4438 = vsel %vm1418, %v4426, -inf
      %4439 = vmax.xlane.f32.xlu0 %v4438
      %v4440 = vpop.xlane.xlu0 %4439
      %v4441 = vsel %vm1418, %v4429, -inf
      %4442 = vmax.xlane.f32.xlu0 %v4441
      %v4443 = vpop.xlane.xlu0 %4442
      %v4444 = vsub.f32 %v4418, %v4434
      %v4445 = vsub.f32 %v4421, %v4437
      %v4446 = vsub.f32 %v4426, %v4440
      %v4447 = vsub.f32 %v4429, %v4443
      %v4448 = vmul.f32 %v4444, 1.442695
      %v4449 = vpow.pop %v4448
      %v4450 = vmul.f32 %v4445, 1.442695
      %v4451 = vpow.pop %v4450
      %v4452 = vmul.f32 %v4446, 1.442695
      %v4453 = vpow.pop %v4452
      %v4454 = vmul.f32 %v4447, 1.442695
      %v4455 = vpow.pop %v4454
      %v4456 = vsel %vm1418, %v4449, 0.0
      %4457 = vadd.xlane.f32.xlu0 %v4456
      %v4458 = vpop.xlane.xlu0 %4457
      %v4459 = vsel %vm1418, %v4451, 0.0
      %4460 = vadd.xlane.f32.xlu0 %v4459
      %v4461 = vpop.xlane.xlu0 %4460
      %v4462 = vsel %vm1418, %v4453, 0.0
      %4463 = vadd.xlane.f32.xlu0 %v4462
      %v4464 = vpop.xlane.xlu0 %4463
      %v4465 = vsel %vm1418, %v4455, 0.0
      %4466 = vadd.xlane.f32.xlu0 %v4465
      %v4467 = vpop.xlane.xlu0 %4466
      %v4468 = vrcp.pop %v4458
      %v4469 = vrcp.pop %v4461
      %v4470 = vrcp.pop %v4464
      %v4471 = vrcp.pop %v4467
      %v4472 = vmul.f32 %v4449, %v4468
      %v4473 = vmul.f32 %v4451, %v4469
      %v4474 = vmul.f32 %v4453, %v4470
      %v4475 = vmul.f32 %v4455, %v4471
      %v4476 = vpack.c.bf16 %v4473, %v4472
      %v4477 = vpack.c.bf16 %v4475, %v4474
      %4478 = vrot.lane.b32.xlu0 %v3989, 96
      %v4479 = vpop.permute.xlu0 %4478
      %4480 = vrot.lane.b32.xlu0 %v3990, 96
      %v4481 = vpop.permute.xlu0 %4480
      %v4485 = vsel %vm1418, %v4476, 0
      %v4488 = vsel %vm1418, %v4477, 0
      %4490 = vmatprep.subr.bf16.mxu0 0
      %4491 = vmatpush1.bf16.msra.mxu0 %v4479
      %4492 = vmatprep.subr.bf16.mxu0 0
      %4493 = vmatpush1.bf16.msra.mxu0 %v4481
      %4494 = vmatprep.subr.bf16.mxu0 0
      %4495 = vmatpush1.bf16.msra.mxu0 0
      %4496 = vmatprep.subr.bf16.mxu0 0
      %4497 = vmatpush1.bf16.msra.mxu0 0
      %4498 = vmatprep.subr.bf16.mxu0 0
      %4499 = vmatpush1.bf16.msra.mxu0 0
      %4500 = vmatprep.subr.bf16.mxu0 0
      %4501 = vmatpush1.bf16.msra.mxu0 0
      %4502 = vmatprep.subr.bf16.mxu0 0
      %4503 = vmatpush1.bf16.msra.mxu0 0
      %4504 = vmatprep.subr.bf16.mxu0 0
      %4505 = vmatpush1.bf16.msra.mxu0 0
      %4506 = vmatprep.subr.bf16.mxu0 0
      %4507 = vmatpush1.bf16.msra.mxu0 0
      %4508 = vmatprep.subr.bf16.mxu0 0
      %4509 = vmatpush1.bf16.msra.mxu0 0
      %4510 = vmatprep.subr.bf16.mxu0 0
      %4511 = vmatpush1.bf16.msra.mxu0 0
      %4512 = vmatprep.subr.bf16.mxu0 0
      %4513 = vmatpush1.bf16.msra.mxu0 0
      %4514 = vmatprep.subr.bf16.mxu0 0
      %4515 = vmatpush1.bf16.msra.mxu0 0
      %4516 = vmatprep.subr.bf16.mxu0 0
      %4517 = vmatpush1.bf16.msra.mxu0 0
      %4518 = vmatprep.subr.bf16.mxu0 0
      %4519 = vmatpush1.bf16.msra.mxu0 0
      %4520 = vmatprep.subr.bf16.mxu0 0
      %4521 = vmatpush1.bf16.msra.mxu0 0
      %4522 = vmatprep.mubr.bf16.mxu0 0
      %4523 = vmatmul.mubr.bf16.gmra.mrb[0].mxu0 %v4485
      %v4524 = vpop.f32.mrb[0].mxu0
      %v4525 = vadd.f32 0.0, %v4524
      %v4526 = vpop.f32.mrb[0].mxu0
      %v4527 = vpop.f32.mrb[0].mxu0
      %v4528 = vadd.f32 0.0, %v4527
      %v4529 = vpop.f32.mrb[0].mxu0
      %4530 = vmatprep.mubr.bf16.mxu0 0
      %4531 = vmatmul.mubr.bf16.gmra.mrb[0].mxu0 %v4488
      %v4532 = vpop.f32.mrb[0].mxu0
      %v4533 = vadd.f32 0.0, %v4532
      %v4534 = vpop.f32.mrb[0].mxu0
      %v4535 = vpop.f32.mrb[0].mxu0
      %v4536 = vadd.f32 0.0, %v4535
      %v4537 = vpop.f32.mrb[0].mxu0
      %4538 = vdwg.mxu0
      %4543 = vrot.lane.b32.xlu0 %v4525, 32
      %v4544 = vpop.permute.xlu0 %4543
      %4545 = vrot.lane.b32.xlu0 %v4528, 32
      %v4546 = vpop.permute.xlu0 %4545
      %4547 = vrot.lane.b32.xlu0 %v4533, 32
      %v4548 = vpop.permute.xlu0 %4547
      %4549 = vrot.lane.b32.xlu0 %v4536, 32
      %v4550 = vpop.permute.xlu0 %4549
      %4555 = vst.msk [vmem:[#allocation2] sm:$0xff] %vm1915, %v4544
      %4556 = vst.msk [vmem:[#allocation2 + $0x8] sm:$0xff] %vm1915, %v4546
      %4557 = vst.msk [vmem:[#allocation2 + $0x10] sm:$0xff] %vm1915, %v4548
      %4558 = vst.msk [vmem:[#allocation2 + $0x18] sm:$0xff] %vm1915, %v4550
      %4559 = vrot.lane.b32.xlu0 %v3985, 80
      %v4560 = vpop.permute.xlu0 %4559
      %4561 = vrot.lane.b32.xlu0 %v3986, 80
      %v4562 = vpop.permute.xlu0 %4561
      %4563 = vrot.lane.b32.xlu0 %v3985, 16
      %v4564 = vpop.permute.xlu0 %4563
      %4565 = vrot.lane.b32.xlu0 %v3986, 16
      %v4566 = vpop.permute.xlu0 %4565
      %v4568 = vsel %vm1356, %v4560, 0
      %v4571 = vsel %vm1356, %v4562, 0
      %v4574 = vsel %vm1356, %v4564, 0
      %v4577 = vsel %vm1356, %v4566, 0
      %4579 = vmatprep.subr.bf16.mxu0 0
      %4580 = vmatpush1.bf16.xpose.msra.mxu0 %v4574
      %4581 = vmatprep.subr.bf16.mxu0 0
      %4582 = vmatpush1.bf16.xpose.msra.mxu0 %v4577
      %4583 = vmatprep.subr.bf16.mxu0 0
      %4584 = vmatpush1.bf16.xpose.msra.mxu0 0
      %4585 = vmatprep.subr.bf16.mxu0 0
      %4586 = vmatpush1.bf16.xpose.msra.mxu0 0
      %4587 = vmatprep.subr.bf16.mxu0 0
      %4588 = vmatpush1.bf16.xpose.msra.mxu0 0
      %4589 = vmatprep.subr.bf16.mxu0 0
      %4590 = vmatpush1.bf16.xpose.msra.mxu0 0
      %4591 = vmatprep.subr.bf16.mxu0 0
      %4592 = vmatpush1.bf16.xpose.msra.mxu0 0
      %4593 = vmatprep.subr.bf16.mxu0 0
      %4594 = vmatpush1.bf16.xpose.msra.mxu0 0
      %4595 = vmatprep.subr.bf16.mxu0 0
      %4596 = vmatpush1.bf16.xpose.msra.mxu0 0
      %4597 = vmatprep.subr.bf16.mxu0 0
      %4598 = vmatpush1.bf16.xpose.msra.mxu0 0
      %4599 = vmatprep.subr.bf16.mxu0 0
      %4600 = vmatpush1.bf16.xpose.msra.mxu0 0
      %4601 = vmatprep.subr.bf16.mxu0 0
      %4602 = vmatpush1.bf16.xpose.msra.mxu0 0
      %4603 = vmatprep.subr.bf16.mxu0 0
      %4604 = vmatpush1.bf16.xpose.msra.mxu0 0
      %4605 = vmatprep.subr.bf16.mxu0 0
      %4606 = vmatpush1.bf16.xpose.msra.mxu0 0
      %4607 = vmatprep.subr.bf16.mxu0 0
      %4608 = vmatpush1.bf16.xpose.msra.mxu0 0
      %4609 = vmatprep.subr.bf16.mxu0 0
      %4610 = vmatpush1.bf16.xpose.msra.mxu0 0
      %4611 = vmatprep.mubr.bf16.mxu0 0
      %4612 = vmatmul.mubr.bf16.gmra.mrb[0].mxu0 %v4568
      %v4613 = vpop.f32.mrb[0].mxu0
      %v4614 = vadd.f32 %v1042, %v4613
      %v4615 = vpop.f32.mrb[0].mxu0
      %v4616 = vpop.f32.mrb[0].mxu0
      %v4617 = vadd.f32 %v1042, %v4616
      %v4618 = vpop.f32.mrb[0].mxu0
      %4619 = vmatprep.mubr.bf16.mxu0 0
      %4620 = vmatmul.mubr.bf16.gmra.mrb[0].mxu0 %v4571
      %v4621 = vpop.f32.mrb[0].mxu0
      %v4622 = vadd.f32 %v1042, %v4621
      %v4623 = vpop.f32.mrb[0].mxu0
      %v4624 = vpop.f32.mrb[0].mxu0
      %v4625 = vadd.f32 %v1042, %v4624
      %v4626 = vpop.f32.mrb[0].mxu0
      %4627 = vdwg.mxu0
      %v4628 = vsel %vm1418, %v4614, -inf
      %4629 = vmax.xlane.f32.xlu0 %v4628
      %v4630 = vpop.xlane.xlu0 %4629
      %v4631 = vsel %vm1418, %v4617, -inf
      %4632 = vmax.xlane.f32.xlu0 %v4631
      %v4633 = vpop.xlane.xlu0 %4632
      %v4634 = vsel %vm1418, %v4622, -inf
      %4635 = vmax.xlane.f32.xlu0 %v4634
      %v4636 = vpop.xlane.xlu0 %4635
      %v4637 = vsel %vm1418, %v4625, -inf
      %4638 = vmax.xlane.f32.xlu0 %v4637
      %v4639 = vpop.xlane.xlu0 %4638
      %v4640 = vsub.f32 %v4614, %v4630
      %v4641 = vsub.f32 %v4617, %v4633
      %v4642 = vsub.f32 %v4622, %v4636
      %v4643 = vsub.f32 %v4625, %v4639
      %v4644 = vmul.f32 %v4640, 1.442695
      %v4645 = vpow.pop %v4644
      %v4646 = vmul.f32 %v4641, 1.442695
      %v4647 = vpow.pop %v4646
      %v4648 = vmul.f32 %v4642, 1.442695
      %v4649 = vpow.pop %v4648
      %v4650 = vmul.f32 %v4643, 1.442695
      %v4651 = vpow.pop %v4650
      %v4652 = vsel %vm1418, %v4645, 0.0
      %4653 = vadd.xlane.f32.xlu0 %v4652
      %v4654 = vpop.xlane.xlu0 %4653
      %v4655 = vsel %vm1418, %v4647, 0.0
      %4656 = vadd.xlane.f32.xlu0 %v4655
      %v4657 = vpop.xlane.xlu0 %4656
      %v4658 = vsel %vm1418, %v4649, 0.0
      %4659 = vadd.xlane.f32.xlu0 %v4658
      %v4660 = vpop.xlane.xlu0 %4659
      %v4661 = vsel %vm1418, %v4651, 0.0
      %4662 = vadd.xlane.f32.xlu0 %v4661
      %v4663 = vpop.xlane.xlu0 %4662
      %v4664 = vrcp.pop %v4654
      %v4665 = vrcp.pop %v4657
      %v4666 = vrcp.pop %v4660
      %v4667 = vrcp.pop %v4663
      %v4668 = vmul.f32 %v4645, %v4664
      %v4669 = vmul.f32 %v4647, %v4665
      %v4670 = vmul.f32 %v4649, %v4666
      %v4671 = vmul.f32 %v4651, %v4667
      %v4672 = vpack.c.bf16 %v4669, %v4668
      %v4673 = vpack.c.bf16 %v4671, %v4670
      %4674 = vrot.lane.b32.xlu0 %v3989, 80
      %v4675 = vpop.permute.xlu0 %4674
      %4676 = vrot.lane.b32.xlu0 %v3990, 80
      %v4677 = vpop.permute.xlu0 %4676
      %v4681 = vsel %vm1418, %v4672, 0
      %v4684 = vsel %vm1418, %v4673, 0
      %4686 = vmatprep.subr.bf16.mxu0 0
      %4687 = vmatpush1.bf16.msra.mxu0 %v4675
      %4688 = vmatprep.subr.bf16.mxu0 0
      %4689 = vmatpush1.bf16.msra.mxu0 %v4677
      %4690 = vmatprep.subr.bf16.mxu0 0
      %4691 = vmatpush1.bf16.msra.mxu0 0
      %4692 = vmatprep.subr.bf16.mxu0 0
      %4693 = vmatpush1.bf16.msra.mxu0 0
      %4694 = vmatprep.subr.bf16.mxu0 0
      %4695 = vmatpush1.bf16.msra.mxu0 0
      %4696 = vmatprep.subr.bf16.mxu0 0
      %4697 = vmatpush1.bf16.msra.mxu0 0
      %4698 = vmatprep.subr.bf16.mxu0 0
      %4699 = vmatpush1.bf16.msra.mxu0 0
      %4700 = vmatprep.subr.bf16.mxu0 0
      %4701 = vmatpush1.bf16.msra.mxu0 0
      %4702 = vmatprep.subr.bf16.mxu0 0
      %4703 = vmatpush1.bf16.msra.mxu0 0
      %4704 = vmatprep.subr.bf16.mxu0 0
      %4705 = vmatpush1.bf16.msra.mxu0 0
      %4706 = vmatprep.subr.bf16.mxu0 0
      %4707 = vmatpush1.bf16.msra.mxu0 0
      %4708 = vmatprep.subr.bf16.mxu0 0
      %4709 = vmatpush1.bf16.msra.mxu0 0
      %4710 = vmatprep.subr.bf16.mxu0 0
      %4711 = vmatpush1.bf16.msra.mxu0 0
      %4712 = vmatprep.subr.bf16.mxu0 0
      %4713 = vmatpush1.bf16.msra.mxu0 0
      %4714 = vmatprep.subr.bf16.mxu0 0
      %4715 = vmatpush1.bf16.msra.mxu0 0
      %4716 = vmatprep.subr.bf16.mxu0 0
      %4717 = vmatpush1.bf16.msra.mxu0 0
      %4718 = vmatprep.mubr.bf16.mxu0 0
      %4719 = vmatmul.mubr.bf16.gmra.mrb[0].mxu0 %v4681
      %v4720 = vpop.f32.mrb[0].mxu0
      %v4721 = vadd.f32 0.0, %v4720
      %v4722 = vpop.f32.mrb[0].mxu0
      %v4723 = vpop.f32.mrb[0].mxu0
      %v4724 = vadd.f32 0.0, %v4723
      %v4725 = vpop.f32.mrb[0].mxu0
      %4726 = vmatprep.mubr.bf16.mxu0 0
      %4727 = vmatmul.mubr.bf16.gmra.mrb[0].mxu0 %v4684
      %v4728 = vpop.f32.mrb[0].mxu0
      %v4729 = vadd.f32 0.0, %v4728
      %v4730 = vpop.f32.mrb[0].mxu0
      %v4731 = vpop.f32.mrb[0].mxu0
      %v4732 = vadd.f32 0.0, %v4731
      %v4733 = vpop.f32.mrb[0].mxu0
      %4734 = vdwg.mxu0
      %4739 = vrot.lane.b32.xlu0 %v4721, 48
      %v4740 = vpop.permute.xlu0 %4739
      %4741 = vrot.lane.b32.xlu0 %v4724, 48
      %v4742 = vpop.permute.xlu0 %4741
      %4743 = vrot.lane.b32.xlu0 %v4729, 48
      %v4744 = vpop.permute.xlu0 %4743
      %4745 = vrot.lane.b32.xlu0 %v4732, 48
      %v4746 = vpop.permute.xlu0 %4745
      %4751 = vst.msk [vmem:[#allocation2] sm:$0xff] %vm2112, %v4740
      %4752 = vst.msk [vmem:[#allocation2 + $0x8] sm:$0xff] %vm2112, %v4742
      %4753 = vst.msk [vmem:[#allocation2 + $0x10] sm:$0xff] %vm2112, %v4744
      %4754 = vst.msk [vmem:[#allocation2 + $0x18] sm:$0xff] %vm2112, %v4746
      %4757 = vrot.lane.b32.xlu0 %v3987, 64
      %v4758 = vpop.permute.xlu0 %4757
      %4759 = vrot.lane.b32.xlu0 %v3988, 64
      %v4760 = vpop.permute.xlu0 %4759
      %v4762 = vsel %vm1356, %v3987, 0
      %v4765 = vsel %vm1356, %v3988, 0
      %v4768 = vsel %vm1356, %v4758, 0
      %v4771 = vsel %vm1356, %v4760, 0
      %4773 = vmatprep.subr.bf16.mxu0 0
      %4774 = vmatpush1.bf16.xpose.msra.mxu0 %v4768
      %4775 = vmatprep.subr.bf16.mxu0 0
      %4776 = vmatpush1.bf16.xpose.msra.mxu0 %v4771
      %4777 = vmatprep.subr.bf16.mxu0 0
      %4778 = vmatpush1.bf16.xpose.msra.mxu0 0
      %4779 = vmatprep.subr.bf16.mxu0 0
      %4780 = vmatpush1.bf16.xpose.msra.mxu0 0
      %4781 = vmatprep.subr.bf16.mxu0 0
      %4782 = vmatpush1.bf16.xpose.msra.mxu0 0
      %4783 = vmatprep.subr.bf16.mxu0 0
      %4784 = vmatpush1.bf16.xpose.msra.mxu0 0
      %4785 = vmatprep.subr.bf16.mxu0 0
      %4786 = vmatpush1.bf16.xpose.msra.mxu0 0
      %4787 = vmatprep.subr.bf16.mxu0 0
      %4788 = vmatpush1.bf16.xpose.msra.mxu0 0
      %4789 = vmatprep.subr.bf16.mxu0 0
      %4790 = vmatpush1.bf16.xpose.msra.mxu0 0
      %4791 = vmatprep.subr.bf16.mxu0 0
      %4792 = vmatpush1.bf16.xpose.msra.mxu0 0
      %4793 = vmatprep.subr.bf16.mxu0 0
      %4794 = vmatpush1.bf16.xpose.msra.mxu0 0
      %4795 = vmatprep.subr.bf16.mxu0 0
      %4796 = vmatpush1.bf16.xpose.msra.mxu0 0
      %4797 = vmatprep.subr.bf16.mxu0 0
      %4798 = vmatpush1.bf16.xpose.msra.mxu0 0
      %4799 = vmatprep.subr.bf16.mxu0 0
      %4800 = vmatpush1.bf16.xpose.msra.mxu0 0
      %4801 = vmatprep.subr.bf16.mxu0 0
      %4802 = vmatpush1.bf16.xpose.msra.mxu0 0
      %4803 = vmatprep.subr.bf16.mxu0 0
      %4804 = vmatpush1.bf16.xpose.msra.mxu0 0
      %4805 = vmatprep.mubr.bf16.mxu0 0
      %4806 = vmatmul.mubr.bf16.gmra.mrb[0].mxu0 %v4762
      %v4807 = vpop.f32.mrb[0].mxu0
      %v4808 = vadd.f32 %v1042, %v4807
      %v4809 = vpop.f32.mrb[0].mxu0
      %v4810 = vpop.f32.mrb[0].mxu0
      %v4811 = vadd.f32 %v1042, %v4810
      %v4812 = vpop.f32.mrb[0].mxu0
      %4813 = vmatprep.mubr.bf16.mxu0 0
      %4814 = vmatmul.mubr.bf16.gmra.mrb[0].mxu0 %v4765
      %v4815 = vpop.f32.mrb[0].mxu0
      %v4816 = vadd.f32 %v1042, %v4815
      %v4817 = vpop.f32.mrb[0].mxu0
      %v4818 = vpop.f32.mrb[0].mxu0
      %v4819 = vadd.f32 %v1042, %v4818
      %v4820 = vpop.f32.mrb[0].mxu0
      %4821 = vdwg.mxu0
      %v4822 = vsel %vm1418, %v4808, -inf
      %4823 = vmax.xlane.f32.xlu0 %v4822
      %v4824 = vpop.xlane.xlu0 %4823
      %v4825 = vsel %vm1418, %v4811, -inf
      %4826 = vmax.xlane.f32.xlu0 %v4825
      %v4827 = vpop.xlane.xlu0 %4826
      %v4828 = vsel %vm1418, %v4816, -inf
      %4829 = vmax.xlane.f32.xlu0 %v4828
      %v4830 = vpop.xlane.xlu0 %4829
      %v4831 = vsel %vm1418, %v4819, -inf
      %4832 = vmax.xlane.f32.xlu0 %v4831
      %v4833 = vpop.xlane.xlu0 %4832
      %v4834 = vsub.f32 %v4808, %v4824
      %v4835 = vsub.f32 %v4811, %v4827
      %v4836 = vsub.f32 %v4816, %v4830
      %v4837 = vsub.f32 %v4819, %v4833
      %v4838 = vmul.f32 %v4834, 1.442695
      %v4839 = vpow.pop %v4838
      %v4840 = vmul.f32 %v4835, 1.442695
      %v4841 = vpow.pop %v4840
      %v4842 = vmul.f32 %v4836, 1.442695
      %v4843 = vpow.pop %v4842
      %v4844 = vmul.f32 %v4837, 1.442695
      %v4845 = vpow.pop %v4844
      %v4846 = vsel %vm1418, %v4839, 0.0
      %4847 = vadd.xlane.f32.xlu0 %v4846
      %v4848 = vpop.xlane.xlu0 %4847
      %v4849 = vsel %vm1418, %v4841, 0.0
      %4850 = vadd.xlane.f32.xlu0 %v4849
      %v4851 = vpop.xlane.xlu0 %4850
      %v4852 = vsel %vm1418, %v4843, 0.0
      %4853 = vadd.xlane.f32.xlu0 %v4852
      %v4854 = vpop.xlane.xlu0 %4853
      %v4855 = vsel %vm1418, %v4845, 0.0
      %4856 = vadd.xlane.f32.xlu0 %v4855
      %v4857 = vpop.xlane.xlu0 %4856
      %v4858 = vrcp.pop %v4848
      %v4859 = vrcp.pop %v4851
      %v4860 = vrcp.pop %v4854
      %v4861 = vrcp.pop %v4857
      %v4862 = vmul.f32 %v4839, %v4858
      %v4863 = vmul.f32 %v4841, %v4859
      %v4864 = vmul.f32 %v4843, %v4860
      %v4865 = vmul.f32 %v4845, %v4861
      %v4866 = vpack.c.bf16 %v4863, %v4862
      %v4867 = vpack.c.bf16 %v4865, %v4864
      %v4869 = vsel %vm1418, %v4866, 0
      %v4872 = vsel %vm1418, %v4867, 0
      %4874 = vmatprep.subr.bf16.mxu0 0
      %4875 = vmatpush1.bf16.msra.mxu0 %v3991
      %4876 = vmatprep.subr.bf16.mxu0 0
      %4877 = vmatpush1.bf16.msra.mxu0 %v3992
      %4878 = vmatprep.subr.bf16.mxu0 0
      %4879 = vmatpush1.bf16.msra.mxu0 0
      %4880 = vmatprep.subr.bf16.mxu0 0
      %4881 = vmatpush1.bf16.msra.mxu0 0
      %4882 = vmatprep.subr.bf16.mxu0 0
      %4883 = vmatpush1.bf16.msra.mxu0 0
      %4884 = vmatprep.subr.bf16.mxu0 0
      %4885 = vmatpush1.bf16.msra.mxu0 0
      %4886 = vmatprep.subr.bf16.mxu0 0
      %4887 = vmatpush1.bf16.msra.mxu0 0
      %4888 = vmatprep.subr.bf16.mxu0 0
      %4889 = vmatpush1.bf16.msra.mxu0 0
      %4890 = vmatprep.subr.bf16.mxu0 0
      %4891 = vmatpush1.bf16.msra.mxu0 0
      %4892 = vmatprep.subr.bf16.mxu0 0
      %4893 = vmatpush1.bf16.msra.mxu0 0
      %4894 = vmatprep.subr.bf16.mxu0 0
      %4895 = vmatpush1.bf16.msra.mxu0 0
      %4896 = vmatprep.subr.bf16.mxu0 0
      %4897 = vmatpush1.bf16.msra.mxu0 0
      %4898 = vmatprep.subr.bf16.mxu0 0
      %4899 = vmatpush1.bf16.msra.mxu0 0
      %4900 = vmatprep.subr.bf16.mxu0 0
      %4901 = vmatpush1.bf16.msra.mxu0 0
      %4902 = vmatprep.subr.bf16.mxu0 0
      %4903 = vmatpush1.bf16.msra.mxu0 0
      %4904 = vmatprep.subr.bf16.mxu0 0
      %4905 = vmatpush1.bf16.msra.mxu0 0
      %4906 = vmatprep.mubr.bf16.mxu0 0
      %4907 = vmatmul.mubr.bf16.gmra.mrb[0].mxu0 %v4869
      %v4908 = vpop.f32.mrb[0].mxu0
      %v4909 = vadd.f32 0.0, %v4908
      %v4910 = vpop.f32.mrb[0].mxu0
      %v4911 = vpop.f32.mrb[0].mxu0
      %v4912 = vadd.f32 0.0, %v4911
      %v4913 = vpop.f32.mrb[0].mxu0
      %4914 = vmatprep.mubr.bf16.mxu0 0
      %4915 = vmatmul.mubr.bf16.gmra.mrb[0].mxu0 %v4872
      %v4916 = vpop.f32.mrb[0].mxu0
      %v4917 = vadd.f32 0.0, %v4916
      %v4918 = vpop.f32.mrb[0].mxu0
      %v4919 = vpop.f32.mrb[0].mxu0
      %v4920 = vadd.f32 0.0, %v4919
      %v4921 = vpop.f32.mrb[0].mxu0
      %4922 = vdwg.mxu0
      %4923 = vst.msk [vmem:[#allocation2 + $0x20] sm:$0xff] %vm1356, %v4909
      %4924 = vst.msk [vmem:[#allocation2 + $0x28] sm:$0xff] %vm1356, %v4912
      %4925 = vst.msk [vmem:[#allocation2 + $0x30] sm:$0xff] %vm1356, %v4917
      %4926 = vst.msk [vmem:[#allocation2 + $0x38] sm:$0xff] %vm1356, %v4920
      %4927 = vrot.lane.b32.xlu0 %v3987, 112
      %v4928 = vpop.permute.xlu0 %4927
      %4929 = vrot.lane.b32.xlu0 %v3988, 112
      %v4930 = vpop.permute.xlu0 %4929
      %4931 = vrot.lane.b32.xlu0 %v3987, 48
      %v4932 = vpop.permute.xlu0 %4931
      %4933 = vrot.lane.b32.xlu0 %v3988, 48
      %v4934 = vpop.permute.xlu0 %4933
      %v4936 = vsel %vm1356, %v4928, 0
      %v4939 = vsel %vm1356, %v4930, 0
      %v4942 = vsel %vm1356, %v4932, 0
      %v4945 = vsel %vm1356, %v4934, 0
      %4947 = vmatprep.subr.bf16.mxu0 0
      %4948 = vmatpush1.bf16.xpose.msra.mxu0 %v4942
      %4949 = vmatprep.subr.bf16.mxu0 0
      %4950 = vmatpush1.bf16.xpose.msra.mxu0 %v4945
      %4951 = vmatprep.subr.bf16.mxu0 0
      %4952 = vmatpush1.bf16.xpose.msra.mxu0 0
      %4953 = vmatprep.subr.bf16.mxu0 0
      %4954 = vmatpush1.bf16.xpose.msra.mxu0 0
      %4955 = vmatprep.subr.bf16.mxu0 0
      %4956 = vmatpush1.bf16.xpose.msra.mxu0 0
      %4957 = vmatprep.subr.bf16.mxu0 0
      %4958 = vmatpush1.bf16.xpose.msra.mxu0 0
      %4959 = vmatprep.subr.bf16.mxu0 0
      %4960 = vmatpush1.bf16.xpose.msra.mxu0 0
      %4961 = vmatprep.subr.bf16.mxu0 0
      %4962 = vmatpush1.bf16.xpose.msra.mxu0 0
      %4963 = vmatprep.subr.bf16.mxu0 0
      %4964 = vmatpush1.bf16.xpose.msra.mxu0 0
      %4965 = vmatprep.subr.bf16.mxu0 0
      %4966 = vmatpush1.bf16.xpose.msra.mxu0 0
      %4967 = vmatprep.subr.bf16.mxu0 0
      %4968 = vmatpush1.bf16.xpose.msra.mxu0 0
      %4969 = vmatprep.subr.bf16.mxu0 0
      %4970 = vmatpush1.bf16.xpose.msra.mxu0 0
      %4971 = vmatprep.subr.bf16.mxu0 0
      %4972 = vmatpush1.bf16.xpose.msra.mxu0 0
      %4973 = vmatprep.subr.bf16.mxu0 0
      %4974 = vmatpush1.bf16.xpose.msra.mxu0 0
      %4975 = vmatprep.subr.bf16.mxu0 0
      %4976 = vmatpush1.bf16.xpose.msra.mxu0 0
      %4977 = vmatprep.subr.bf16.mxu0 0
      %4978 = vmatpush1.bf16.xpose.msra.mxu0 0
      %4979 = vmatprep.mubr.bf16.mxu0 0
      %4980 = vmatmul.mubr.bf16.gmra.mrb[0].mxu0 %v4936
      %v4981 = vpop.f32.mrb[0].mxu0
      %v4982 = vadd.f32 %v1042, %v4981
      %v4983 = vpop.f32.mrb[0].mxu0
      %v4984 = vpop.f32.mrb[0].mxu0
      %v4985 = vadd.f32 %v1042, %v4984
      %v4986 = vpop.f32.mrb[0].mxu0
      %4987 = vmatprep.mubr.bf16.mxu0 0
      %4988 = vmatmul.mubr.bf16.gmra.mrb[0].mxu0 %v4939
      %v4989 = vpop.f32.mrb[0].mxu0
      %v4990 = vadd.f32 %v1042, %v4989
      %v4991 = vpop.f32.mrb[0].mxu0
      %v4992 = vpop.f32.mrb[0].mxu0
      %v4993 = vadd.f32 %v1042, %v4992
      %v4994 = vpop.f32.mrb[0].mxu0
      %4995 = vdwg.mxu0
      %v4996 = vsel %vm1418, %v4982, -inf
      %4997 = vmax.xlane.f32.xlu0 %v4996
      %v4998 = vpop.xlane.xlu0 %4997
      %v4999 = vsel %vm1418, %v4985, -inf
      %5000 = vmax.xlane.f32.xlu0 %v4999
      %v5001 = vpop.xlane.xlu0 %5000
      %v5002 = vsel %vm1418, %v4990, -inf
      %5003 = vmax.xlane.f32.xlu0 %v5002
      %v5004 = vpop.xlane.xlu0 %5003
      %v5005 = vsel %vm1418, %v4993, -inf
      %5006 = vmax.xlane.f32.xlu0 %v5005
      %v5007 = vpop.xlane.xlu0 %5006
      %v5008 = vsub.f32 %v4982, %v4998
      %v5009 = vsub.f32 %v4985, %v5001
      %v5010 = vsub.f32 %v4990, %v5004
      %v5011 = vsub.f32 %v4993, %v5007
      %v5012 = vmul.f32 %v5008, 1.442695
      %v5013 = vpow.pop %v5012
      %v5014 = vmul.f32 %v5009, 1.442695
      %v5015 = vpow.pop %v5014
      %v5016 = vmul.f32 %v5010, 1.442695
      %v5017 = vpow.pop %v5016
      %v5018 = vmul.f32 %v5011, 1.442695
      %v5019 = vpow.pop %v5018
      %v5020 = vsel %vm1418, %v5013, 0.0
      %5021 = vadd.xlane.f32.xlu0 %v5020
      %v5022 = vpop.xlane.xlu0 %5021
      %v5023 = vsel %vm1418, %v5015, 0.0
      %5024 = vadd.xlane.f32.xlu0 %v5023
      %v5025 = vpop.xlane.xlu0 %5024
      %v5026 = vsel %vm1418, %v5017, 0.0
      %5027 = vadd.xlane.f32.xlu0 %v5026
      %v5028 = vpop.xlane.xlu0 %5027
      %v5029 = vsel %vm1418, %v5019, 0.0
      %5030 = vadd.xlane.f32.xlu0 %v5029
      %v5031 = vpop.xlane.xlu0 %5030
      %v5032 = vrcp.pop %v5022
      %v5033 = vrcp.pop %v5025
      %v5034 = vrcp.pop %v5028
      %v5035 = vrcp.pop %v5031
      %v5036 = vmul.f32 %v5013, %v5032
      %v5037 = vmul.f32 %v5015, %v5033
      %v5038 = vmul.f32 %v5017, %v5034
      %v5039 = vmul.f32 %v5019, %v5035
      %v5040 = vpack.c.bf16 %v5037, %v5036
      %v5041 = vpack.c.bf16 %v5039, %v5038
      %5044 = vrot.lane.b32.xlu0 %v3991, 112
      %v5045 = vpop.permute.xlu0 %5044
      %5046 = vrot.lane.b32.xlu0 %v3992, 112
      %v5047 = vpop.permute.xlu0 %5046
      %v5051 = vsel %vm1418, %v5040, 0
      %v5054 = vsel %vm1418, %v5041, 0
      %5056 = vmatprep.subr.bf16.mxu0 0
      %5057 = vmatpush1.bf16.msra.mxu0 %v5045
      %5058 = vmatprep.subr.bf16.mxu0 0
      %5059 = vmatpush1.bf16.msra.mxu0 %v5047
      %5060 = vmatprep.subr.bf16.mxu0 0
      %5061 = vmatpush1.bf16.msra.mxu0 0
      %5062 = vmatprep.subr.bf16.mxu0 0
      %5063 = vmatpush1.bf16.msra.mxu0 0
      %5064 = vmatprep.subr.bf16.mxu0 0
      %5065 = vmatpush1.bf16.msra.mxu0 0
      %5066 = vmatprep.subr.bf16.mxu0 0
      %5067 = vmatpush1.bf16.msra.mxu0 0
      %5068 = vmatprep.subr.bf16.mxu0 0
      %5069 = vmatpush1.bf16.msra.mxu0 0
      %5070 = vmatprep.subr.bf16.mxu0 0
      %5071 = vmatpush1.bf16.msra.mxu0 0
      %5072 = vmatprep.subr.bf16.mxu0 0
      %5073 = vmatpush1.bf16.msra.mxu0 0
      %5074 = vmatprep.subr.bf16.mxu0 0
      %5075 = vmatpush1.bf16.msra.mxu0 0
      %5076 = vmatprep.subr.bf16.mxu0 0
      %5077 = vmatpush1.bf16.msra.mxu0 0
      %5078 = vmatprep.subr.bf16.mxu0 0
      %5079 = vmatpush1.bf16.msra.mxu0 0
      %5080 = vmatprep.subr.bf16.mxu0 0
      %5081 = vmatpush1.bf16.msra.mxu0 0
      %5082 = vmatprep.subr.bf16.mxu0 0
      %5083 = vmatpush1.bf16.msra.mxu0 0
      %5084 = vmatprep.subr.bf16.mxu0 0
      %5085 = vmatpush1.bf16.msra.mxu0 0
      %5086 = vmatprep.subr.bf16.mxu0 0
      %5087 = vmatpush1.bf16.msra.mxu0 0
      %5088 = vmatprep.mubr.bf16.mxu0 0
      %5089 = vmatmul.mubr.bf16.gmra.mrb[0].mxu0 %v5051
      %v5090 = vpop.f32.mrb[0].mxu0
      %v5091 = vadd.f32 0.0, %v5090
      %v5092 = vpop.f32.mrb[0].mxu0
      %v5093 = vpop.f32.mrb[0].mxu0
      %v5094 = vadd.f32 0.0, %v5093
      %v5095 = vpop.f32.mrb[0].mxu0
      %5096 = vmatprep.mubr.bf16.mxu0 0
      %5097 = vmatmul.mubr.bf16.gmra.mrb[0].mxu0 %v5054
      %v5098 = vpop.f32.mrb[0].mxu0
      %v5099 = vadd.f32 0.0, %v5098
      %v5100 = vpop.f32.mrb[0].mxu0
      %v5101 = vpop.f32.mrb[0].mxu0
      %v5102 = vadd.f32 0.0, %v5101
      %v5103 = vpop.f32.mrb[0].mxu0
      %5104 = vdwg.mxu0
      %5109 = vrot.lane.b32.xlu0 %v5091, 16
      %v5110 = vpop.permute.xlu0 %5109
      %5111 = vrot.lane.b32.xlu0 %v5094, 16
      %v5112 = vpop.permute.xlu0 %5111
      %5113 = vrot.lane.b32.xlu0 %v5099, 16
      %v5114 = vpop.permute.xlu0 %5113
      %5115 = vrot.lane.b32.xlu0 %v5102, 16
      %v5116 = vpop.permute.xlu0 %5115
      %5121 = vst.msk [vmem:[#allocation2 + $0x20] sm:$0xff] %vm1718, %v5110
      %5122 = vst.msk [vmem:[#allocation2 + $0x28] sm:$0xff] %vm1718, %v5112
      %5123 = vst.msk [vmem:[#allocation2 + $0x30] sm:$0xff] %vm1718, %v5114
      %5124 = vst.msk [vmem:[#allocation2 + $0x38] sm:$0xff] %vm1718, %v5116
      %5125 = vrot.lane.b32.xlu0 %v3987, 96
      %v5126 = vpop.permute.xlu0 %5125
      %5127 = vrot.lane.b32.xlu0 %v3988, 96
      %v5128 = vpop.permute.xlu0 %5127
      %5129 = vrot.lane.b32.xlu0 %v3987, 32
      %v5130 = vpop.permute.xlu0 %5129
      %5131 = vrot.lane.b32.xlu0 %v3988, 32
      %v5132 = vpop.permute.xlu0 %5131
      %v5134 = vsel %vm1356, %v5126, 0
      %v5137 = vsel %vm1356, %v5128, 0
      %v5140 = vsel %vm1356, %v5130, 0
      %v5143 = vsel %vm1356, %v5132, 0
      %5145 = vmatprep.subr.bf16.mxu0 0
      %5146 = vmatpush1.bf16.xpose.msra.mxu0 %v5140
      %5147 = vmatprep.subr.bf16.mxu0 0
      %5148 = vmatpush1.bf16.xpose.msra.mxu0 %v5143
      %5149 = vmatprep.subr.bf16.mxu0 0
      %5150 = vmatpush1.bf16.xpose.msra.mxu0 0
      %5151 = vmatprep.subr.bf16.mxu0 0
      %5152 = vmatpush1.bf16.xpose.msra.mxu0 0
      %5153 = vmatprep.subr.bf16.mxu0 0
      %5154 = vmatpush1.bf16.xpose.msra.mxu0 0
      %5155 = vmatprep.subr.bf16.mxu0 0
      %5156 = vmatpush1.bf16.xpose.msra.mxu0 0
      %5157 = vmatprep.subr.bf16.mxu0 0
      %5158 = vmatpush1.bf16.xpose.msra.mxu0 0
      %5159 = vmatprep.subr.bf16.mxu0 0
      %5160 = vmatpush1.bf16.xpose.msra.mxu0 0
      %5161 = vmatprep.subr.bf16.mxu0 0
      %5162 = vmatpush1.bf16.xpose.msra.mxu0 0
      %5163 = vmatprep.subr.bf16.mxu0 0
      %5164 = vmatpush1.bf16.xpose.msra.mxu0 0
      %5165 = vmatprep.subr.bf16.mxu0 0
      %5166 = vmatpush1.bf16.xpose.msra.mxu0 0
      %5167 = vmatprep.subr.bf16.mxu0 0
      %5168 = vmatpush1.bf16.xpose.msra.mxu0 0
      %5169 = vmatprep.subr.bf16.mxu0 0
      %5170 = vmatpush1.bf16.xpose.msra.mxu0 0
      %5171 = vmatprep.subr.bf16.mxu0 0
      %5172 = vmatpush1.bf16.xpose.msra.mxu0 0
      %5173 = vmatprep.subr.bf16.mxu0 0
      %5174 = vmatpush1.bf16.xpose.msra.mxu0 0
      %5175 = vmatprep.subr.bf16.mxu0 0
      %5176 = vmatpush1.bf16.xpose.msra.mxu0 0
      %5177 = vmatprep.mubr.bf16.mxu0 0
      %5178 = vmatmul.mubr.bf16.gmra.mrb[0].mxu0 %v5134
      %v5179 = vpop.f32.mrb[0].mxu0
      %v5180 = vadd.f32 %v1042, %v5179
      %v5181 = vpop.f32.mrb[0].mxu0
      %v5182 = vpop.f32.mrb[0].mxu0
      %v5183 = vadd.f32 %v1042, %v5182
      %v5184 = vpop.f32.mrb[0].mxu0
      %5185 = vmatprep.mubr.bf16.mxu0 0
      %5186 = vmatmul.mubr.bf16.gmra.mrb[0].mxu0 %v5137
      %v5187 = vpop.f32.mrb[0].mxu0
      %v5188 = vadd.f32 %v1042, %v5187
      %v5189 = vpop.f32.mrb[0].mxu0
      %v5190 = vpop.f32.mrb[0].mxu0
      %v5191 = vadd.f32 %v1042, %v5190
      %v5192 = vpop.f32.mrb[0].mxu0
      %5193 = vdwg.mxu0
      %v5194 = vsel %vm1418, %v5180, -inf
      %5195 = vmax.xlane.f32.xlu0 %v5194
      %v5196 = vpop.xlane.xlu0 %5195
      %v5197 = vsel %vm1418, %v5183, -inf
      %5198 = vmax.xlane.f32.xlu0 %v5197
      %v5199 = vpop.xlane.xlu0 %5198
      %v5200 = vsel %vm1418, %v5188, -inf
      %5201 = vmax.xlane.f32.xlu0 %v5200
      %v5202 = vpop.xlane.xlu0 %5201
      %v5203 = vsel %vm1418, %v5191, -inf
      %5204 = vmax.xlane.f32.xlu0 %v5203
      %v5205 = vpop.xlane.xlu0 %5204
      %v5206 = vsub.f32 %v5180, %v5196
      %v5207 = vsub.f32 %v5183, %v5199
      %v5208 = vsub.f32 %v5188, %v5202
      %v5209 = vsub.f32 %v5191, %v5205
      %v5210 = vmul.f32 %v5206, 1.442695
      %v5211 = vpow.pop %v5210
      %v5212 = vmul.f32 %v5207, 1.442695
      %v5213 = vpow.pop %v5212
      %v5214 = vmul.f32 %v5208, 1.442695
      %v5215 = vpow.pop %v5214
      %v5216 = vmul.f32 %v5209, 1.442695
      %v5217 = vpow.pop %v5216
      %v5218 = vsel %vm1418, %v5211, 0.0
      %5219 = vadd.xlane.f32.xlu0 %v5218
      %v5220 = vpop.xlane.xlu0 %5219
      %v5221 = vsel %vm1418, %v5213, 0.0
      %5222 = vadd.xlane.f32.xlu0 %v5221
      %v5223 = vpop.xlane.xlu0 %5222
      %v5224 = vsel %vm1418, %v5215, 0.0
      %5225 = vadd.xlane.f32.xlu0 %v5224
      %v5226 = vpop.xlane.xlu0 %5225
      %v5227 = vsel %vm1418, %v5217, 0.0
      %5228 = vadd.xlane.f32.xlu0 %v5227
      %v5229 = vpop.xlane.xlu0 %5228
      %v5230 = vrcp.pop %v5220
      %v5231 = vrcp.pop %v5223
      %v5232 = vrcp.pop %v5226
      %v5233 = vrcp.pop %v5229
      %v5234 = vmul.f32 %v5211, %v5230
      %v5235 = vmul.f32 %v5213, %v5231
      %v5236 = vmul.f32 %v5215, %v5232
      %v5237 = vmul.f32 %v5217, %v5233
      %v5238 = vpack.c.bf16 %v5235, %v5234
      %v5239 = vpack.c.bf16 %v5237, %v5236
      %5240 = vrot.lane.b32.xlu0 %v3991, 96
      %v5241 = vpop.permute.xlu0 %5240
      %5242 = vrot.lane.b32.xlu0 %v3992, 96
      %v5243 = vpop.permute.xlu0 %5242
      %v5247 = vsel %vm1418, %v5238, 0
      %v5250 = vsel %vm1418, %v5239, 0
      %5252 = vmatprep.subr.bf16.mxu0 0
      %5253 = vmatpush1.bf16.msra.mxu0 %v5241
      %5254 = vmatprep.subr.bf16.mxu0 0
      %5255 = vmatpush1.bf16.msra.mxu0 %v5243
      %5256 = vmatprep.subr.bf16.mxu0 0
      %5257 = vmatpush1.bf16.msra.mxu0 0
      %5258 = vmatprep.subr.bf16.mxu0 0
      %5259 = vmatpush1.bf16.msra.mxu0 0
      %5260 = vmatprep.subr.bf16.mxu0 0
      %5261 = vmatpush1.bf16.msra.mxu0 0
      %5262 = vmatprep.subr.bf16.mxu0 0
      %5263 = vmatpush1.bf16.msra.mxu0 0
      %5264 = vmatprep.subr.bf16.mxu0 0
      %5265 = vmatpush1.bf16.msra.mxu0 0
      %5266 = vmatprep.subr.bf16.mxu0 0
      %5267 = vmatpush1.bf16.msra.mxu0 0
      %5268 = vmatprep.subr.bf16.mxu0 0
      %5269 = vmatpush1.bf16.msra.mxu0 0
      %5270 = vmatprep.subr.bf16.mxu0 0
      %5271 = vmatpush1.bf16.msra.mxu0 0
      %5272 = vmatprep.subr.bf16.mxu0 0
      %5273 = vmatpush1.bf16.msra.mxu0 0
      %5274 = vmatprep.subr.bf16.mxu0 0
      %5275 = vmatpush1.bf16.msra.mxu0 0
      %5276 = vmatprep.subr.bf16.mxu0 0
      %5277 = vmatpush1.bf16.msra.mxu0 0
      %5278 = vmatprep.subr.bf16.mxu0 0
      %5279 = vmatpush1.bf16.msra.mxu0 0
      %5280 = vmatprep.subr.bf16.mxu0 0
      %5281 = vmatpush1.bf16.msra.mxu0 0
      %5282 = vmatprep.subr.bf16.mxu0 0
      %5283 = vmatpush1.bf16.msra.mxu0 0
      %5284 = vmatprep.mubr.bf16.mxu0 0
      %5285 = vmatmul.mubr.bf16.gmra.mrb[0].mxu0 %v5247
      %v5286 = vpop.f32.mrb[0].mxu0
      %v5287 = vadd.f32 0.0, %v5286
      %v5288 = vpop.f32.mrb[0].mxu0
      %v5289 = vpop.f32.mrb[0].mxu0
      %v5290 = vadd.f32 0.0, %v5289
      %v5291 = vpop.f32.mrb[0].mxu0
      %5292 = vmatprep.mubr.bf16.mxu0 0
      %5293 = vmatmul.mubr.bf16.gmra.mrb[0].mxu0 %v5250
      %v5294 = vpop.f32.mrb[0].mxu0
      %v5295 = vadd.f32 0.0, %v5294
      %v5296 = vpop.f32.mrb[0].mxu0
      %v5297 = vpop.f32.mrb[0].mxu0
      %v5298 = vadd.f32 0.0, %v5297
      %v5299 = vpop.f32.mrb[0].mxu0
      %5300 = vdwg.mxu0
      %5305 = vrot.lane.b32.xlu0 %v5287, 32
      %v5306 = vpop.permute.xlu0 %5305
      %5307 = vrot.lane.b32.xlu0 %v5290, 32
      %v5308 = vpop.permute.xlu0 %5307
      %5309 = vrot.lane.b32.xlu0 %v5295, 32
      %v5310 = vpop.permute.xlu0 %5309
      %5311 = vrot.lane.b32.xlu0 %v5298, 32
      %v5312 = vpop.permute.xlu0 %5311
      %5317 = vst.msk [vmem:[#allocation2 + $0x20] sm:$0xff] %vm1915, %v5306
      %5318 = vst.msk [vmem:[#allocation2 + $0x28] sm:$0xff] %vm1915, %v5308
      %5319 = vst.msk [vmem:[#allocation2 + $0x30] sm:$0xff] %vm1915, %v5310
      %5320 = vst.msk [vmem:[#allocation2 + $0x38] sm:$0xff] %vm1915, %v5312
      %5321 = vrot.lane.b32.xlu0 %v3987, 80
      %v5322 = vpop.permute.xlu0 %5321
      %5323 = vrot.lane.b32.xlu0 %v3988, 80
      %v5324 = vpop.permute.xlu0 %5323
      %5325 = vrot.lane.b32.xlu0 %v3987, 16
      %v5326 = vpop.permute.xlu0 %5325
      %5327 = vrot.lane.b32.xlu0 %v3988, 16
      %v5328 = vpop.permute.xlu0 %5327
      %v5330 = vsel %vm1356, %v5322, 0
      %v5333 = vsel %vm1356, %v5324, 0
      %v5336 = vsel %vm1356, %v5326, 0
      %v5339 = vsel %vm1356, %v5328, 0
      %5341 = vmatprep.subr.bf16.mxu0 0
      %5342 = vmatpush1.bf16.xpose.msra.mxu0 %v5336
      %5343 = vmatprep.subr.bf16.mxu0 0
      %5344 = vmatpush1.bf16.xpose.msra.mxu0 %v5339
      %5345 = vmatprep.subr.bf16.mxu0 0
      %5346 = vmatpush1.bf16.xpose.msra.mxu0 0
      %5347 = vmatprep.subr.bf16.mxu0 0
      %5348 = vmatpush1.bf16.xpose.msra.mxu0 0
      %5349 = vmatprep.subr.bf16.mxu0 0
      %5350 = vmatpush1.bf16.xpose.msra.mxu0 0
      %5351 = vmatprep.subr.bf16.mxu0 0
      %5352 = vmatpush1.bf16.xpose.msra.mxu0 0
      %5353 = vmatprep.subr.bf16.mxu0 0
      %5354 = vmatpush1.bf16.xpose.msra.mxu0 0
      %5355 = vmatprep.subr.bf16.mxu0 0
      %5356 = vmatpush1.bf16.xpose.msra.mxu0 0
      %5357 = vmatprep.subr.bf16.mxu0 0
      %5358 = vmatpush1.bf16.xpose.msra.mxu0 0
      %5359 = vmatprep.subr.bf16.mxu0 0
      %5360 = vmatpush1.bf16.xpose.msra.mxu0 0
      %5361 = vmatprep.subr.bf16.mxu0 0
      %5362 = vmatpush1.bf16.xpose.msra.mxu0 0
      %5363 = vmatprep.subr.bf16.mxu0 0
      %5364 = vmatpush1.bf16.xpose.msra.mxu0 0
      %5365 = vmatprep.subr.bf16.mxu0 0
      %5366 = vmatpush1.bf16.xpose.msra.mxu0 0
      %5367 = vmatprep.subr.bf16.mxu0 0
      %5368 = vmatpush1.bf16.xpose.msra.mxu0 0
      %5369 = vmatprep.subr.bf16.mxu0 0
      %5370 = vmatpush1.bf16.xpose.msra.mxu0 0
      %5371 = vmatprep.subr.bf16.mxu0 0
      %5372 = vmatpush1.bf16.xpose.msra.mxu0 0
      %5373 = vmatprep.mubr.bf16.mxu0 0
      %5374 = vmatmul.mubr.bf16.gmra.mrb[0].mxu0 %v5330
      %v5375 = vpop.f32.mrb[0].mxu0
      %v5376 = vadd.f32 %v1042, %v5375
      %v5377 = vpop.f32.mrb[0].mxu0
      %v5378 = vpop.f32.mrb[0].mxu0
      %v5379 = vadd.f32 %v1042, %v5378
      %v5380 = vpop.f32.mrb[0].mxu0
      %5381 = vmatprep.mubr.bf16.mxu0 0
      %5382 = vmatmul.mubr.bf16.gmra.mrb[0].mxu0 %v5333
      %v5383 = vpop.f32.mrb[0].mxu0
      %v5384 = vadd.f32 %v1042, %v5383
      %v5385 = vpop.f32.mrb[0].mxu0
      %v5386 = vpop.f32.mrb[0].mxu0
      %v5387 = vadd.f32 %v1042, %v5386
      %v5388 = vpop.f32.mrb[0].mxu0
      %5389 = vdwg.mxu0
      %v5390 = vsel %vm1418, %v5376, -inf
      %5391 = vmax.xlane.f32.xlu0 %v5390
      %v5392 = vpop.xlane.xlu0 %5391
      %v5393 = vsel %vm1418, %v5379, -inf
      %5394 = vmax.xlane.f32.xlu0 %v5393
      %v5395 = vpop.xlane.xlu0 %5394
      %v5396 = vsel %vm1418, %v5384, -inf
      %5397 = vmax.xlane.f32.xlu0 %v5396
      %v5398 = vpop.xlane.xlu0 %5397
      %v5399 = vsel %vm1418, %v5387, -inf
      %5400 = vmax.xlane.f32.xlu0 %v5399
      %v5401 = vpop.xlane.xlu0 %5400
      %v5402 = vsub.f32 %v5376, %v5392
      %v5403 = vsub.f32 %v5379, %v5395
      %v5404 = vsub.f32 %v5384, %v5398
      %v5405 = vsub.f32 %v5387, %v5401
      %v5406 = vmul.f32 %v5402, 1.442695
      %v5407 = vpow.pop %v5406
      %v5408 = vmul.f32 %v5403, 1.442695
      %v5409 = vpow.pop %v5408
      %v5410 = vmul.f32 %v5404, 1.442695
      %v5411 = vpow.pop %v5410
      %v5412 = vmul.f32 %v5405, 1.442695
      %v5413 = vpow.pop %v5412
      %v5414 = vsel %vm1418, %v5407, 0.0
      %5415 = vadd.xlane.f32.xlu0 %v5414
      %v5416 = vpop.xlane.xlu0 %5415
      %v5417 = vsel %vm1418, %v5409, 0.0
      %5418 = vadd.xlane.f32.xlu0 %v5417
      %v5419 = vpop.xlane.xlu0 %5418
      %v5420 = vsel %vm1418, %v5411, 0.0
      %5421 = vadd.xlane.f32.xlu0 %v5420
      %v5422 = vpop.xlane.xlu0 %5421
      %v5423 = vsel %vm1418, %v5413, 0.0
      %5424 = vadd.xlane.f32.xlu0 %v5423
      %v5425 = vpop.xlane.xlu0 %5424
      %v5426 = vrcp.pop %v5416
      %v5427 = vrcp.pop %v5419
      %v5428 = vrcp.pop %v5422
      %v5429 = vrcp.pop %v5425
      %v5430 = vmul.f32 %v5407, %v5426
      %v5431 = vmul.f32 %v5409, %v5427
      %v5432 = vmul.f32 %v5411, %v5428
      %v5433 = vmul.f32 %v5413, %v5429
      %v5434 = vpack.c.bf16 %v5431, %v5430
      %v5435 = vpack.c.bf16 %v5433, %v5432
      %5436 = vrot.lane.b32.xlu0 %v3991, 80
      %v5437 = vpop.permute.xlu0 %5436
      %5438 = vrot.lane.b32.xlu0 %v3992, 80
      %v5439 = vpop.permute.xlu0 %5438
      %v5443 = vsel %vm1418, %v5434, 0
      %v5446 = vsel %vm1418, %v5435, 0
      %5448 = vmatprep.subr.bf16.mxu0 0
      %5449 = vmatpush1.bf16.msra.mxu0 %v5437
      %5450 = vmatprep.subr.bf16.mxu0 0
      %5451 = vmatpush1.bf16.msra.mxu0 %v5439
      %5452 = vmatprep.subr.bf16.mxu0 0
      %5453 = vmatpush1.bf16.msra.mxu0 0
      %5454 = vmatprep.subr.bf16.mxu0 0
      %5455 = vmatpush1.bf16.msra.mxu0 0
      %5456 = vmatprep.subr.bf16.mxu0 0
      %5457 = vmatpush1.bf16.msra.mxu0 0
      %5458 = vmatprep.subr.bf16.mxu0 0
      %5459 = vmatpush1.bf16.msra.mxu0 0
      %5460 = vmatprep.subr.bf16.mxu0 0
      %5461 = vmatpush1.bf16.msra.mxu0 0
      %5462 = vmatprep.subr.bf16.mxu0 0
      %5463 = vmatpush1.bf16.msra.mxu0 0
      %5464 = vmatprep.subr.bf16.mxu0 0
      %5465 = vmatpush1.bf16.msra.mxu0 0
      %5466 = vmatprep.subr.bf16.mxu0 0
      %5467 = vmatpush1.bf16.msra.mxu0 0
      %5468 = vmatprep.subr.bf16.mxu0 0
      %5469 = vmatpush1.bf16.msra.mxu0 0
      %5470 = vmatprep.subr.bf16.mxu0 0
      %5471 = vmatpush1.bf16.msra.mxu0 0
      %5472 = vmatprep.subr.bf16.mxu0 0
      %5473 = vmatpush1.bf16.msra.mxu0 0
      %5474 = vmatprep.subr.bf16.mxu0 0
      %5475 = vmatpush1.bf16.msra.mxu0 0
      %5476 = vmatprep.subr.bf16.mxu0 0
      %5477 = vmatpush1.bf16.msra.mxu0 0
      %5478 = vmatprep.subr.bf16.mxu0 0
      %5479 = vmatpush1.bf16.msra.mxu0 0
      %5480 = vmatprep.mubr.bf16.mxu0 0
      %5481 = vmatmul.mubr.bf16.gmra.mrb[0].mxu0 %v5443
      %v5482 = vpop.f32.mrb[0].mxu0
      %v5483 = vadd.f32 0.0, %v5482
      %v5484 = vpop.f32.mrb[0].mxu0
      %v5485 = vpop.f32.mrb[0].mxu0
      %v5486 = vadd.f32 0.0, %v5485
      %v5487 = vpop.f32.mrb[0].mxu0
      %5488 = vmatprep.mubr.bf16.mxu0 0
      %5489 = vmatmul.mubr.bf16.gmra.mrb[0].mxu0 %v5446
      %v5490 = vpop.f32.mrb[0].mxu0
      %v5491 = vadd.f32 0.0, %v5490
      %v5492 = vpop.f32.mrb[0].mxu0
      %v5493 = vpop.f32.mrb[0].mxu0
      %v5494 = vadd.f32 0.0, %v5493
      %v5495 = vpop.f32.mrb[0].mxu0
      %5496 = vdwg.mxu0
      %5501 = vrot.lane.b32.xlu0 %v5483, 48
      %v5502 = vpop.permute.xlu0 %5501
      %5503 = vrot.lane.b32.xlu0 %v5486, 48
      %v5504 = vpop.permute.xlu0 %5503
      %5505 = vrot.lane.b32.xlu0 %v5491, 48
      %v5506 = vpop.permute.xlu0 %5505
      %5507 = vrot.lane.b32.xlu0 %v5494, 48
      %v5508 = vpop.permute.xlu0 %5507
      %5513 = vst.msk [vmem:[#allocation2 + $0x20] sm:$0xff] %vm2112, %v5502
      %5514 = vst.msk [vmem:[#allocation2 + $0x28] sm:$0xff] %vm2112, %v5504
      %5515 = vst.msk [vmem:[#allocation2 + $0x30] sm:$0xff] %vm2112, %v5506
      %5516 = vst.msk [vmem:[#allocation2 + $0x38] sm:$0xff] %vm2112, %v5508
      %v5517 = vld [vmem:[#allocation2] sm:$0xff]
      %v5518 = vld [vmem:[#allocation2 + $0x8] sm:$0xff]
      %v5519 = vld [vmem:[#allocation2 + $0x10] sm:$0xff]
      %v5520 = vld [vmem:[#allocation2 + $0x18] sm:$0xff]
      %v5521 = vld [vmem:[#allocation2 + $0x20] sm:$0xff]
      %v5522 = vld [vmem:[#allocation2 + $0x28] sm:$0xff]
      %v5523 = vld [vmem:[#allocation2 + $0x30] sm:$0xff]
      %v5524 = vld [vmem:[#allocation2 + $0x38] sm:$0xff]
      %v5525 = vpack.c.bf16 %v5518, %v5517
      %v5526 = vpack.c.bf16 %v5520, %v5519
      %v5527 = vpack.c.bf16 %v5522, %v5521
      %v5528 = vpack.c.bf16 %v5524, %v5523
      %s5529 = scalar_lea.vmem %s9, 32
      %v5530 = vld [vmem:[%s5529] sm:$0xf]
      %v5531 = vld [vmem:[%s5529 + $0x4] sm:$0xf]
      %v5532 = vld [vmem:[%s5529 + $0x8] sm:$0xf]
      %v5533 = vld [vmem:[%s5529 + $0xc] sm:$0xf]
      %v5534 = vld [vmem:[%s5529 + $0x10] sm:$0xf]
      %v5535 = vld [vmem:[%s5529 + $0x14] sm:$0xf]
      %v5536 = vld [vmem:[%s5529 + $0x18] sm:$0xf]
      %v5537 = vld [vmem:[%s5529 + $0x1c] sm:$0xf]
      %v5546 = vunpack.c.l.b16 %v5530
      %v5547 = vunpack.c.l.b16 %v5531
      %v5548 = vunpack.c.l.b16 %v5532
      %v5549 = vunpack.c.l.b16 %v5533
      %v5550 = vunpack.c.l.b16 %v5534
      %v5551 = vunpack.c.l.b16 %v5535
      %v5552 = vunpack.c.l.b16 %v5536
      %v5553 = vunpack.c.l.b16 %v5537
      %v5554 = vpack.c.b16 %v5547, %v5546
      %v5555 = vpack.c.b16 %v5549, %v5548
      %v5556 = vpack.c.b16 %v5551, %v5550
      %v5557 = vpack.c.b16 %v5553, %v5552
      %v5563 = vsel %vm810, %v5525, 0
      %v5566 = vsel %vm810, %v5526, 0
      %v5569 = vsel %vm810, %v5527, 0
      %v5572 = vsel %vm810, %v5528, 0
      %5574 = vmatprep.subr.bf16.mxu0 0
      %5575 = vmatpush1.bf16.msra.mxu0 %v5554
      %5576 = vmatprep.subr.bf16.mxu0 0
      %5577 = vmatpush1.bf16.msra.mxu0 %v5555
      %5578 = vmatprep.subr.bf16.mxu0 0
      %5579 = vmatpush1.bf16.msra.mxu0 %v5556
      %5580 = vmatprep.subr.bf16.mxu0 0
      %5581 = vmatpush1.bf16.msra.mxu0 %v5557
      %5582 = vmatprep.subr.bf16.mxu0 0
      %5583 = vmatpush1.bf16.msra.mxu0 0
      %5584 = vmatprep.subr.bf16.mxu0 0
      %5585 = vmatpush1.bf16.msra.mxu0 0
      %5586 = vmatprep.subr.bf16.mxu0 0
      %5587 = vmatpush1.bf16.msra.mxu0 0
      %5588 = vmatprep.subr.bf16.mxu0 0
      %5589 = vmatpush1.bf16.msra.mxu0 0
      %5590 = vmatprep.subr.bf16.mxu0 0
      %5591 = vmatpush1.bf16.msra.mxu0 0
      %5592 = vmatprep.subr.bf16.mxu0 0
      %5593 = vmatpush1.bf16.msra.mxu0 0
      %5594 = vmatprep.subr.bf16.mxu0 0
      %5595 = vmatpush1.bf16.msra.mxu0 0
      %5596 = vmatprep.subr.bf16.mxu0 0
      %5597 = vmatpush1.bf16.msra.mxu0 0
      %5598 = vmatprep.subr.bf16.mxu0 0
      %5599 = vmatpush1.bf16.msra.mxu0 0
      %5600 = vmatprep.subr.bf16.mxu0 0
      %5601 = vmatpush1.bf16.msra.mxu0 0
      %5602 = vmatprep.subr.bf16.mxu0 0
      %5603 = vmatpush1.bf16.msra.mxu0 0
      %5604 = vmatprep.subr.bf16.mxu0 0
      %5605 = vmatpush1.bf16.msra.mxu0 0
      %5606 = vmatprep.mubr.bf16.mxu0 0
      %5607 = vmatmul.mubr.bf16.gmra.mrb[0].mxu0 %v5563
      %v5608 = vpop.f32.mrb[0].mxu0
      %v5609 = vadd.f32 0.0, %v5608
      %v5610 = vpop.f32.mrb[0].mxu0
      %v5611 = vpop.f32.mrb[0].mxu0
      %v5612 = vadd.f32 0.0, %v5611
      %v5613 = vpop.f32.mrb[0].mxu0
      %5614 = vmatprep.mubr.bf16.mxu0 0
      %5615 = vmatmul.mubr.bf16.gmra.mrb[0].mxu0 %v5566
      %v5616 = vpop.f32.mrb[0].mxu0
      %v5617 = vadd.f32 0.0, %v5616
      %v5618 = vpop.f32.mrb[0].mxu0
      %v5619 = vpop.f32.mrb[0].mxu0
      %v5620 = vadd.f32 0.0, %v5619
      %v5621 = vpop.f32.mrb[0].mxu0
      %5622 = vmatprep.mubr.bf16.mxu0 0
      %5623 = vmatmul.mubr.bf16.gmra.mrb[0].mxu0 %v5569
      %v5624 = vpop.f32.mrb[0].mxu0
      %v5625 = vadd.f32 0.0, %v5624
      %v5626 = vpop.f32.mrb[0].mxu0
      %v5627 = vpop.f32.mrb[0].mxu0
      %v5628 = vadd.f32 0.0, %v5627
      %v5629 = vpop.f32.mrb[0].mxu0
      %5630 = vmatprep.mubr.bf16.mxu0 0
      %5631 = vmatmul.mubr.bf16.gmra.mrb[0].mxu0 %v5572
      %v5632 = vpop.f32.mrb[0].mxu0
      %v5633 = vadd.f32 0.0, %v5632
      %v5634 = vpop.f32.mrb[0].mxu0
      %v5635 = vpop.f32.mrb[0].mxu0
      %v5636 = vadd.f32 0.0, %v5635
      %v5637 = vpop.f32.mrb[0].mxu0
      %5638 = vdwg.mxu0
      %v5639 = vadd.f32 %v3674, %v5609
      %v5640 = vadd.f32 %v3675, %v5612
      %v5641 = vadd.f32 %v3676, %v5617
      %v5642 = vadd.f32 %v3677, %v5620
      %v5643 = vadd.f32 %v3678, %v5625
      %v5644 = vadd.f32 %v3679, %v5628
      %v5645 = vadd.f32 %v3680, %v5633
      %v5646 = vadd.f32 %v3681, %v5636
      %s5647 = scalar_lea.vmem %s10, 1
      %v5648 = vld [vmem:[%s5647] sm:$0x1]
      %v5650 = vlaneseq
      %v5651 = vshrl.u32 %v5650, 7
      %v5652 = vsub.s32 0, %v5651
      %v5653 = vrot.slane %v5648, %v5652
      %v5655 = vadd.f32 %v5639, %v5653
      %v5656 = vadd.f32 %v5640, %v5653
      %v5657 = vadd.f32 %v5641, %v5653
      %v5658 = vadd.f32 %v5642, %v5653
      %v5659 = vadd.f32 %v5643, %v5653
      %v5660 = vadd.f32 %v5644, %v5653
      %v5661 = vadd.f32 %v5645, %v5653
      %v5662 = vadd.f32 %v5646, %v5653
      %s5663 = scalar_lea.vmem %s11, 1
      %v5664 = vld [vmem:[%s5663] sm:$0x1]
      %s5665 = scalar_lea.vmem %s12, 1
      %v5666 = vld [vmem:[%s5665] sm:$0x1]
      %v5667 = vsel %vm810, %v5655, 0.0
      %5668 = vadd.xlane.f32.xlu0 %v5667
      %v5669 = vpop.xlane.xlu0 %5668
      %v5670 = vsel %vm810, %v5656, 0.0
      %5671 = vadd.xlane.f32.xlu0 %v5670
      %v5672 = vpop.xlane.xlu0 %5671
      %v5673 = vsel %vm810, %v5657, 0.0
      %5674 = vadd.xlane.f32.xlu0 %v5673
      %v5675 = vpop.xlane.xlu0 %5674
      %v5676 = vsel %vm810, %v5658, 0.0
      %5677 = vadd.xlane.f32.xlu0 %v5676
      %v5678 = vpop.xlane.xlu0 %5677
      %v5679 = vsel %vm810, %v5659, 0.0
      %5680 = vadd.xlane.f32.xlu0 %v5679
      %v5681 = vpop.xlane.xlu0 %5680
      %v5682 = vsel %vm810, %v5660, 0.0
      %5683 = vadd.xlane.f32.xlu0 %v5682
      %v5684 = vpop.xlane.xlu0 %5683
      %v5685 = vsel %vm810, %v5661, 0.0
      %5686 = vadd.xlane.f32.xlu0 %v5685
      %v5687 = vpop.xlane.xlu0 %5686
      %v5688 = vsel %vm810, %v5662, 0.0
      %5689 = vadd.xlane.f32.xlu0 %v5688
      %v5690 = vpop.xlane.xlu0 %5689
      %v5691 = vmul.f32 %v5669, %v914
      %v5692 = vmul.f32 %v5672, %v914
      %v5693 = vmul.f32 %v5675, %v914
      %v5694 = vmul.f32 %v5678, %v914
      %v5695 = vmul.f32 %v5681, %v914
      %v5696 = vmul.f32 %v5684, %v914
      %v5697 = vmul.f32 %v5687, %v914
      %v5698 = vmul.f32 %v5690, %v914
      %v5699 = vmul.f32 %v5655, %v5655
      %v5700 = vmul.f32 %v5656, %v5656
      %v5701 = vmul.f32 %v5657, %v5657
      %v5702 = vmul.f32 %v5658, %v5658
      %v5703 = vmul.f32 %v5659, %v5659
      %v5704 = vmul.f32 %v5660, %v5660
      %v5705 = vmul.f32 %v5661, %v5661
      %v5706 = vmul.f32 %v5662, %v5662
      %v5707 = vsel %vm810, %v5699, 0.0
      %5708 = vadd.xlane.f32.xlu0 %v5707
      %v5709 = vpop.xlane.xlu0 %5708
      %v5710 = vsel %vm810, %v5700, 0.0
      %5711 = vadd.xlane.f32.xlu0 %v5710
      %v5712 = vpop.xlane.xlu0 %5711
      %v5713 = vsel %vm810, %v5701, 0.0
      %5714 = vadd.xlane.f32.xlu0 %v5713
      %v5715 = vpop.xlane.xlu0 %5714
      %v5716 = vsel %vm810, %v5702, 0.0
      %5717 = vadd.xlane.f32.xlu0 %v5716
      %v5718 = vpop.xlane.xlu0 %5717
      %v5719 = vsel %vm810, %v5703, 0.0
      %5720 = vadd.xlane.f32.xlu0 %v5719
      %v5721 = vpop.xlane.xlu0 %5720
      %v5722 = vsel %vm810, %v5704, 0.0
      %5723 = vadd.xlane.f32.xlu0 %v5722
      %v5724 = vpop.xlane.xlu0 %5723
      %v5725 = vsel %vm810, %v5705, 0.0
      %5726 = vadd.xlane.f32.xlu0 %v5725
      %v5727 = vpop.xlane.xlu0 %5726
      %v5728 = vsel %vm810, %v5706, 0.0
      %5729 = vadd.xlane.f32.xlu0 %v5728
      %v5730 = vpop.xlane.xlu0 %5729
      %v5731 = vmul.f32 %v5709, %v914
      %v5732 = vmul.f32 %v5712, %v914
      %v5733 = vmul.f32 %v5715, %v914
      %v5734 = vmul.f32 %v5718, %v914
      %v5735 = vmul.f32 %v5721, %v914
      %v5736 = vmul.f32 %v5724, %v914
      %v5737 = vmul.f32 %v5727, %v914
      %v5738 = vmul.f32 %v5730, %v914
      %v5739 = vmul.f32 %v5691, %v5691
      %v5740 = vmul.f32 %v5692, %v5692
      %v5741 = vmul.f32 %v5693, %v5693
      %v5742 = vmul.f32 %v5694, %v5694
      %v5743 = vmul.f32 %v5695, %v5695
      %v5744 = vmul.f32 %v5696, %v5696
      %v5745 = vmul.f32 %v5697, %v5697
      %v5746 = vmul.f32 %v5698, %v5698
      %v5747 = vsub.f32 %v5731, %v5739
      %v5748 = vsub.f32 %v5732, %v5740
      %v5749 = vsub.f32 %v5733, %v5741
      %v5750 = vsub.f32 %v5734, %v5742
      %v5751 = vsub.f32 %v5735, %v5743
      %v5752 = vsub.f32 %v5736, %v5744
      %v5753 = vsub.f32 %v5737, %v5745
      %v5754 = vsub.f32 %v5738, %v5746
      %v5755 = vsub.f32 %v5655, %v5691
      %v5756 = vsub.f32 %v5656, %v5692
      %v5757 = vsub.f32 %v5657, %v5693
      %v5758 = vsub.f32 %v5658, %v5694
      %v5759 = vsub.f32 %v5659, %v5695
      %v5760 = vsub.f32 %v5660, %v5696
      %v5761 = vsub.f32 %v5661, %v5697
      %v5762 = vsub.f32 %v5662, %v5698
      %v5763 = vadd.f32 %v5747, 1e-05
      %v5764 = vadd.f32 %v5748, 1e-05
      %v5765 = vadd.f32 %v5749, 1e-05
      %v5766 = vadd.f32 %v5750, 1e-05
      %v5767 = vadd.f32 %v5751, 1e-05
      %v5768 = vadd.f32 %v5752, 1e-05
      %v5769 = vadd.f32 %v5753, 1e-05
      %v5770 = vadd.f32 %v5754, 1e-05
      %v5771 = vrsqrt.pop %v5763
      %v5772 = vrsqrt.pop %v5764
      %v5773 = vrsqrt.pop %v5765
      %v5774 = vrsqrt.pop %v5766
      %v5775 = vrsqrt.pop %v5767
      %v5776 = vrsqrt.pop %v5768
      %v5777 = vrsqrt.pop %v5769
      %v5778 = vrsqrt.pop %v5770
      %v5779 = vmul.f32 %v5755, %v5771
      %v5780 = vmul.f32 %v5756, %v5772
      %v5781 = vmul.f32 %v5757, %v5773
      %v5782 = vmul.f32 %v5758, %v5774
      %v5783 = vmul.f32 %v5759, %v5775
      %v5784 = vmul.f32 %v5760, %v5776
      %v5785 = vmul.f32 %v5761, %v5777
      %v5786 = vmul.f32 %v5762, %v5778
      %v5788 = vlaneseq
      %v5789 = vshrl.u32 %v5788, 7
      %v5790 = vsub.s32 0, %v5789
      %v5791 = vrot.slane %v5664, %v5790
      %v5793 = vmul.f32 %v5779, %v5791
      %v5794 = vmul.f32 %v5780, %v5791
      %v5795 = vmul.f32 %v5781, %v5791
      %v5796 = vmul.f32 %v5782, %v5791
      %v5797 = vmul.f32 %v5783, %v5791
      %v5798 = vmul.f32 %v5784, %v5791
      %v5799 = vmul.f32 %v5785, %v5791
      %v5800 = vmul.f32 %v5786, %v5791
      %v5802 = vlaneseq
      %v5803 = vshrl.u32 %v5802, 7
      %v5804 = vsub.s32 0, %v5803
      %v5805 = vrot.slane %v5666, %v5804
      %v5807 = vadd.f32 %v5793, %v5805
      %v5808 = vadd.f32 %v5794, %v5805
      %v5809 = vadd.f32 %v5795, %v5805
      %v5810 = vadd.f32 %v5796, %v5805
      %v5811 = vadd.f32 %v5797, %v5805
      %v5812 = vadd.f32 %v5798, %v5805
      %v5813 = vadd.f32 %v5799, %v5805
      %v5814 = vadd.f32 %v5800, %v5805
      %v5815 = vpack.c.bf16 %v5808, %v5807
      %v5816 = vpack.c.bf16 %v5810, %v5809
      %v5817 = vpack.c.bf16 %v5812, %v5811
      %v5818 = vpack.c.bf16 %v5814, %v5813
      %s5819 = scalar_lea.vmem %s13, 64
      %v5820 = vld [vmem:[%s5819] sm:$0xff]
      %v5821 = vld [vmem:[%s5819 + $0x8] sm:$0xff]
      %v5822 = vld [vmem:[%s5819 + $0x10] sm:$0xff]
      %v5823 = vld [vmem:[%s5819 + $0x18] sm:$0xff]
      %v5824 = vld [vmem:[%s5819 + $0x20] sm:$0xff]
      %v5825 = vld [vmem:[%s5819 + $0x28] sm:$0xff]
      %v5826 = vld [vmem:[%s5819 + $0x30] sm:$0xff]
      %v5827 = vld [vmem:[%s5819 + $0x38] sm:$0xff]
      %s5828 = scalar_lea.vmem %s14, 2
      %v5829 = vld [vmem:[%s5828] sm:$0x3]
      %v5831 = vlaneseq
      %v5832 = vshrl.u32 %v5831, 7
      %v5833 = vsub.s32 0, %v5832
      %v5834 = vrot.slane %v5829, %v5833
      %v5835 = vlaneseq
      %v5836 = vshrl.u32 %v5835, 7
      %v5837 = vsub.s32 1, %v5836
      %v5838 = vrot.slane %v5829, %v5837
      %v5849 = vunpack.c.l.b16 %v5820
      %v5850 = vunpack.c.h.b16 %v5820
      %v5851 = vunpack.c.l.b16 %v5821
      %v5852 = vunpack.c.h.b16 %v5821
      %v5853 = vunpack.c.l.b16 %v5822
      %v5854 = vunpack.c.h.b16 %v5822
      %v5855 = vunpack.c.l.b16 %v5823
      %v5856 = vunpack.c.h.b16 %v5823
      %v5857 = vunpack.c.l.b16 %v5824
      %v5858 = vunpack.c.h.b16 %v5824
      %v5859 = vunpack.c.l.b16 %v5825
      %v5860 = vunpack.c.h.b16 %v5825
      %v5861 = vunpack.c.l.b16 %v5826
      %v5862 = vunpack.c.h.b16 %v5826
      %v5863 = vunpack.c.l.b16 %v5827
      %v5864 = vunpack.c.h.b16 %v5827
      %v5865 = vpack.c.b16 %v5851, %v5849
      %v5866 = vpack.c.b16 %v5852, %v5850
      %v5867 = vpack.c.b16 %v5855, %v5853
      %v5868 = vpack.c.b16 %v5856, %v5854
      %v5869 = vpack.c.b16 %v5859, %v5857
      %v5870 = vpack.c.b16 %v5860, %v5858
      %v5871 = vpack.c.b16 %v5863, %v5861
      %v5872 = vpack.c.b16 %v5864, %v5862
      %v5882 = vsel %vm810, %v5815, 0
      %v5885 = vsel %vm810, %v5816, 0
      %v5888 = vsel %vm810, %v5817, 0
      %v5891 = vsel %vm810, %v5818, 0
      %5893 = vmatprep.subr.bf16.mxu0 %v5866
      %5894 = vmatpush1.bf16.msra.mxu0 %v5865
      %5895 = vmatprep.subr.bf16.mxu0 %v5868
      %5896 = vmatpush1.bf16.msra.mxu0 %v5867
      %5897 = vmatprep.subr.bf16.mxu0 %v5870
      %5898 = vmatpush1.bf16.msra.mxu0 %v5869
      %5899 = vmatprep.subr.bf16.mxu0 %v5872
      %5900 = vmatpush1.bf16.msra.mxu0 %v5871
      %5901 = vmatprep.subr.bf16.mxu0 0
      %5902 = vmatpush1.bf16.msra.mxu0 0
      %5903 = vmatprep.subr.bf16.mxu0 0
      %5904 = vmatpush1.bf16.msra.mxu0 0
      %5905 = vmatprep.subr.bf16.mxu0 0
      %5906 = vmatpush1.bf16.msra.mxu0 0
      %5907 = vmatprep.subr.bf16.mxu0 0
      %5908 = vmatpush1.bf16.msra.mxu0 0
      %5909 = vmatprep.subr.bf16.mxu0 0
      %5910 = vmatpush1.bf16.msra.mxu0 0
      %5911 = vmatprep.subr.bf16.mxu0 0
      %5912 = vmatpush1.bf16.msra.mxu0 0
      %5913 = vmatprep.subr.bf16.mxu0 0
      %5914 = vmatpush1.bf16.msra.mxu0 0
      %5915 = vmatprep.subr.bf16.mxu0 0
      %5916 = vmatpush1.bf16.msra.mxu0 0
      %5917 = vmatprep.subr.bf16.mxu0 0
      %5918 = vmatpush1.bf16.msra.mxu0 0
      %5919 = vmatprep.subr.bf16.mxu0 0
      %5920 = vmatpush1.bf16.msra.mxu0 0
      %5921 = vmatprep.subr.bf16.mxu0 0
      %5922 = vmatpush1.bf16.msra.mxu0 0
      %5923 = vmatprep.subr.bf16.mxu0 0
      %5924 = vmatpush1.bf16.msra.mxu0 0
      %5925 = vmatprep.mubr.bf16.mxu0 0
      %5926 = vmatmul.mubr.bf16.gmra.mrb[0].mxu0 %v5882
      %v5927 = vpop.f32.mrb[0].mxu0
      %v5928 = vadd.f32 %v5834, %v5927
      %v5929 = vpop.f32.mrb[0].mxu0
      %v5930 = vadd.f32 %v5838, %v5929
      %v5931 = vpop.f32.mrb[0].mxu0
      %v5932 = vadd.f32 %v5834, %v5931
      %v5933 = vpop.f32.mrb[0].mxu0
      %v5934 = vadd.f32 %v5838, %v5933
      %5935 = vmatprep.mubr.bf16.mxu0 0
      %5936 = vmatmul.mubr.bf16.gmra.mrb[0].mxu0 %v5885
      %v5937 = vpop.f32.mrb[0].mxu0
      %v5938 = vadd.f32 %v5834, %v5937
      %v5939 = vpop.f32.mrb[0].mxu0
      %v5940 = vadd.f32 %v5838, %v5939
      %v5941 = vpop.f32.mrb[0].mxu0
      %v5942 = vadd.f32 %v5834, %v5941
      %v5943 = vpop.f32.mrb[0].mxu0
      %v5944 = vadd.f32 %v5838, %v5943
      %5945 = vmatprep.mubr.bf16.mxu0 0
      %5946 = vmatmul.mubr.bf16.gmra.mrb[0].mxu0 %v5888
      %v5947 = vpop.f32.mrb[0].mxu0
      %v5948 = vadd.f32 %v5834, %v5947
      %v5949 = vpop.f32.mrb[0].mxu0
      %v5950 = vadd.f32 %v5838, %v5949
      %v5951 = vpop.f32.mrb[0].mxu0
      %v5952 = vadd.f32 %v5834, %v5951
      %v5953 = vpop.f32.mrb[0].mxu0
      %v5954 = vadd.f32 %v5838, %v5953
      %5955 = vmatprep.mubr.bf16.mxu0 0
      %5956 = vmatmul.mubr.bf16.gmra.mrb[0].mxu0 %v5891
      %v5957 = vpop.f32.mrb[0].mxu0
      %v5958 = vadd.f32 %v5834, %v5957
      %v5959 = vpop.f32.mrb[0].mxu0
      %v5960 = vadd.f32 %v5838, %v5959
      %v5961 = vpop.f32.mrb[0].mxu0
      %v5962 = vadd.f32 %v5834, %v5961
      %v5963 = vpop.f32.mrb[0].mxu0
      %v5964 = vadd.f32 %v5838, %v5963
      %5965 = vdwg.mxu0
      %v5966 = vmul.f32 %v5928, %v5928
      %v5967 = vmul.f32 %v5930, %v5930
      %v5968 = vmul.f32 %v5932, %v5932
      %v5969 = vmul.f32 %v5934, %v5934
      %v5970 = vmul.f32 %v5938, %v5938
      %v5971 = vmul.f32 %v5940, %v5940
      %v5972 = vmul.f32 %v5942, %v5942
      %v5973 = vmul.f32 %v5944, %v5944
      %v5974 = vmul.f32 %v5948, %v5948
      %v5975 = vmul.f32 %v5950, %v5950
      %v5976 = vmul.f32 %v5952, %v5952
      %v5977 = vmul.f32 %v5954, %v5954
      %v5978 = vmul.f32 %v5958, %v5958
      %v5979 = vmul.f32 %v5960, %v5960
      %v5980 = vmul.f32 %v5962, %v5962
      %v5981 = vmul.f32 %v5964, %v5964
      %v5982 = vmul.f32 %v5928, %v5966
      %v5983 = vmul.f32 %v5930, %v5967
      %v5984 = vmul.f32 %v5932, %v5968
      %v5985 = vmul.f32 %v5934, %v5969
      %v5986 = vmul.f32 %v5938, %v5970
      %v5987 = vmul.f32 %v5940, %v5971
      %v5988 = vmul.f32 %v5942, %v5972
      %v5989 = vmul.f32 %v5944, %v5973
      %v5990 = vmul.f32 %v5948, %v5974
      %v5991 = vmul.f32 %v5950, %v5975
      %v5992 = vmul.f32 %v5952, %v5976
      %v5993 = vmul.f32 %v5954, %v5977
      %v5994 = vmul.f32 %v5958, %v5978
      %v5995 = vmul.f32 %v5960, %v5979
      %v5996 = vmul.f32 %v5962, %v5980
      %v5997 = vmul.f32 %v5964, %v5981
      %v5998 = vmul.f32 %v5982, 0.044715
      %v5999 = vmul.f32 %v5983, 0.044715
      %v6000 = vmul.f32 %v5984, 0.044715
      %v6001 = vmul.f32 %v5985, 0.044715
      %v6002 = vmul.f32 %v5986, 0.044715
      %v6003 = vmul.f32 %v5987, 0.044715
      %v6004 = vmul.f32 %v5988, 0.044715
      %v6005 = vmul.f32 %v5989, 0.044715
      %v6006 = vmul.f32 %v5990, 0.044715
      %v6007 = vmul.f32 %v5991, 0.044715
      %v6008 = vmul.f32 %v5992, 0.044715
      %v6009 = vmul.f32 %v5993, 0.044715
      %v6010 = vmul.f32 %v5994, 0.044715
      %v6011 = vmul.f32 %v5995, 0.044715
      %v6012 = vmul.f32 %v5996, 0.044715
      %v6013 = vmul.f32 %v5997, 0.044715
      %v6014 = vadd.f32 %v5928, %v5998
      %v6015 = vadd.f32 %v5930, %v5999
      %v6016 = vadd.f32 %v5932, %v6000
      %v6017 = vadd.f32 %v5934, %v6001
      %v6018 = vadd.f32 %v5938, %v6002
      %v6019 = vadd.f32 %v5940, %v6003
      %v6020 = vadd.f32 %v5942, %v6004
      %v6021 = vadd.f32 %v5944, %v6005
      %v6022 = vadd.f32 %v5948, %v6006
      %v6023 = vadd.f32 %v5950, %v6007
      %v6024 = vadd.f32 %v5952, %v6008
      %v6025 = vadd.f32 %v5954, %v6009
      %v6026 = vadd.f32 %v5958, %v6010
      %v6027 = vadd.f32 %v5960, %v6011
      %v6028 = vadd.f32 %v5962, %v6012
      %v6029 = vadd.f32 %v5964, %v6013
      %v6030 = vmul.f32 %v6014, 0.7978846
      %v6031 = vmul.f32 %v6015, 0.7978846
      %v6032 = vmul.f32 %v6016, 0.7978846
      %v6033 = vmul.f32 %v6017, 0.7978846
      %v6034 = vmul.f32 %v6018, 0.7978846
      %v6035 = vmul.f32 %v6019, 0.7978846
      %v6036 = vmul.f32 %v6020, 0.7978846
      %v6037 = vmul.f32 %v6021, 0.7978846
      %v6038 = vmul.f32 %v6022, 0.7978846
      %v6039 = vmul.f32 %v6023, 0.7978846
      %v6040 = vmul.f32 %v6024, 0.7978846
      %v6041 = vmul.f32 %v6025, 0.7978846
      %v6042 = vmul.f32 %v6026, 0.7978846
      %v6043 = vmul.f32 %v6027, 0.7978846
      %v6044 = vmul.f32 %v6028, 0.7978846
      %v6045 = vmul.f32 %v6029, 0.7978846
      %v6046 = vtanh.pop %v6030
      %v6047 = vtanh.pop %v6031
      %v6048 = vtanh.pop %v6032
      %v6049 = vtanh.pop %v6033
      %v6050 = vtanh.pop %v6034
      %v6051 = vtanh.pop %v6035
      %v6052 = vtanh.pop %v6036
      %v6053 = vtanh.pop %v6037
      %v6054 = vtanh.pop %v6038
      %v6055 = vtanh.pop %v6039
      %v6056 = vtanh.pop %v6040
      %v6057 = vtanh.pop %v6041
      %v6058 = vtanh.pop %v6042
      %v6059 = vtanh.pop %v6043
      %v6060 = vtanh.pop %v6044
      %v6061 = vtanh.pop %v6045
      %v6062 = vadd.f32 %v6046, 1.0
      %v6063 = vadd.f32 %v6047, 1.0
      %v6064 = vadd.f32 %v6048, 1.0
      %v6065 = vadd.f32 %v6049, 1.0
      %v6066 = vadd.f32 %v6050, 1.0
      %v6067 = vadd.f32 %v6051, 1.0
      %v6068 = vadd.f32 %v6052, 1.0
      %v6069 = vadd.f32 %v6053, 1.0
      %v6070 = vadd.f32 %v6054, 1.0
      %v6071 = vadd.f32 %v6055, 1.0
      %v6072 = vadd.f32 %v6056, 1.0
      %v6073 = vadd.f32 %v6057, 1.0
      %v6074 = vadd.f32 %v6058, 1.0
      %v6075 = vadd.f32 %v6059, 1.0
      %v6076 = vadd.f32 %v6060, 1.0
      %v6077 = vadd.f32 %v6061, 1.0
      %v6078 = vmul.f32 %v6062, 0.5
      %v6079 = vmul.f32 %v6063, 0.5
      %v6080 = vmul.f32 %v6064, 0.5
      %v6081 = vmul.f32 %v6065, 0.5
      %v6082 = vmul.f32 %v6066, 0.5
      %v6083 = vmul.f32 %v6067, 0.5
      %v6084 = vmul.f32 %v6068, 0.5
      %v6085 = vmul.f32 %v6069, 0.5
      %v6086 = vmul.f32 %v6070, 0.5
      %v6087 = vmul.f32 %v6071, 0.5
      %v6088 = vmul.f32 %v6072, 0.5
      %v6089 = vmul.f32 %v6073, 0.5
      %v6090 = vmul.f32 %v6074, 0.5
      %v6091 = vmul.f32 %v6075, 0.5
      %v6092 = vmul.f32 %v6076, 0.5
      %v6093 = vmul.f32 %v6077, 0.5
      %v6094 = vmul.f32 %v5928, %v6078
      %v6095 = vmul.f32 %v5930, %v6079
      %v6096 = vmul.f32 %v5932, %v6080
      %v6097 = vmul.f32 %v5934, %v6081
      %v6098 = vmul.f32 %v5938, %v6082
      %v6099 = vmul.f32 %v5940, %v6083
      %v6100 = vmul.f32 %v5942, %v6084
      %v6101 = vmul.f32 %v5944, %v6085
      %v6102 = vmul.f32 %v5948, %v6086
      %v6103 = vmul.f32 %v5950, %v6087
      %v6104 = vmul.f32 %v5952, %v6088
      %v6105 = vmul.f32 %v5954, %v6089
      %v6106 = vmul.f32 %v5958, %v6090
      %v6107 = vmul.f32 %v5960, %v6091
      %v6108 = vmul.f32 %v5962, %v6092
      %v6109 = vmul.f32 %v5964, %v6093
      %v6110 = vpack.c.bf16 %v6096, %v6094
      %v6111 = vpack.c.bf16 %v6097, %v6095
      %v6112 = vpack.c.bf16 %v6100, %v6098
      %v6113 = vpack.c.bf16 %v6101, %v6099
      %v6114 = vpack.c.bf16 %v6104, %v6102
      %v6115 = vpack.c.bf16 %v6105, %v6103
      %v6116 = vpack.c.bf16 %v6108, %v6106
      %v6117 = vpack.c.bf16 %v6109, %v6107
      %s6118 = scalar_lea.vmem %s15, 128
      %v6119 = vld [vmem:[%s6118] sm:$0xf]
      %v6120 = vld [vmem:[%s6118 + $0x4] sm:$0xf]
      %v6121 = vld [vmem:[%s6118 + $0x8] sm:$0xf]
      %v6122 = vld [vmem:[%s6118 + $0xc] sm:$0xf]
      %v6123 = vld [vmem:[%s6118 + $0x10] sm:$0xf]
      %v6124 = vld [vmem:[%s6118 + $0x14] sm:$0xf]
      %v6125 = vld [vmem:[%s6118 + $0x18] sm:$0xf]
      %v6126 = vld [vmem:[%s6118 + $0x1c] sm:$0xf]
      %v6127 = vld [vmem:[%s6118 + $0x20] sm:$0xf]
      %v6128 = vld [vmem:[%s6118 + $0x24] sm:$0xf]
      %v6129 = vld [vmem:[%s6118 + $0x28] sm:$0xf]
      %v6130 = vld [vmem:[%s6118 + $0x2c] sm:$0xf]
      %v6131 = vld [vmem:[%s6118 + $0x30] sm:$0xf]
      %v6132 = vld [vmem:[%s6118 + $0x34] sm:$0xf]
      %v6133 = vld [vmem:[%s6118 + $0x38] sm:$0xf]
      %v6134 = vld [vmem:[%s6118 + $0x3c] sm:$0xf]
      %v6135 = vld [vmem:[%s6118 + $0x40] sm:$0xf]
      %v6136 = vld [vmem:[%s6118 + $0x44] sm:$0xf]
      %v6137 = vld [vmem:[%s6118 + $0x48] sm:$0xf]
      %v6138 = vld [vmem:[%s6118 + $0x4c] sm:$0xf]
      %v6139 = vld [vmem:[%s6118 + $0x50] sm:$0xf]
      %v6140 = vld [vmem:[%s6118 + $0x54] sm:$0xf]
      %v6141 = vld [vmem:[%s6118 + $0x58] sm:$0xf]
      %v6142 = vld [vmem:[%s6118 + $0x5c] sm:$0xf]
      %v6143 = vld [vmem:[%s6118 + $0x60] sm:$0xf]
      %v6144 = vld [vmem:[%s6118 + $0x64] sm:$0xf]
      %v6145 = vld [vmem:[%s6118 + $0x68] sm:$0xf]
      %v6146 = vld [vmem:[%s6118 + $0x6c] sm:$0xf]
      %v6147 = vld [vmem:[%s6118 + $0x70] sm:$0xf]
      %v6148 = vld [vmem:[%s6118 + $0x74] sm:$0xf]
      %v6149 = vld [vmem:[%s6118 + $0x78] sm:$0xf]
      %v6150 = vld [vmem:[%s6118 + $0x7c] sm:$0xf]
      %s6151 = scalar_lea.vmem %s16, 1
      %v6152 = vld [vmem:[%s6151] sm:$0x1]
      %v6154 = vlaneseq
      %v6155 = vshrl.u32 %v6154, 7
      %v6156 = vsub.s32 0, %v6155
      %v6157 = vrot.slane %v6152, %v6156
      %v6191 = vunpack.c.l.b16 %v6119
      %v6192 = vunpack.c.l.b16 %v6120
      %v6193 = vunpack.c.l.b16 %v6121
      %v6194 = vunpack.c.l.b16 %v6122
      %v6195 = vunpack.c.l.b16 %v6123
      %v6196 = vunpack.c.l.b16 %v6124
      %v6197 = vunpack.c.l.b16 %v6125
      %v6198 = vunpack.c.l.b16 %v6126
      %v6199 = vunpack.c.l.b16 %v6127
      %v6200 = vunpack.c.l.b16 %v6128
      %v6201 = vunpack.c.l.b16 %v6129
      %v6202 = vunpack.c.l.b16 %v6130
      %v6203 = vunpack.c.l.b16 %v6131
      %v6204 = vunpack.c.l.b16 %v6132
      %v6205 = vunpack.c.l.b16 %v6133
      %v6206 = vunpack.c.l.b16 %v6134
      %v6207 = vunpack.c.l.b16 %v6135
      %v6208 = vunpack.c.l.b16 %v6136
      %v6209 = vunpack.c.l.b16 %v6137
      %v6210 = vunpack.c.l.b16 %v6138
      %v6211 = vunpack.c.l.b16 %v6139
      %v6212 = vunpack.c.l.b16 %v6140
      %v6213 = vunpack.c.l.b16 %v6141
      %v6214 = vunpack.c.l.b16 %v6142
      %v6215 = vunpack.c.l.b16 %v6143
      %v6216 = vunpack.c.l.b16 %v6144
      %v6217 = vunpack.c.l.b16 %v6145
      %v6218 = vunpack.c.l.b16 %v6146
      %v6219 = vunpack.c.l.b16 %v6147
      %v6220 = vunpack.c.l.b16 %v6148
      %v6221 = vunpack.c.l.b16 %v6149
      %v6222 = vunpack.c.l.b16 %v6150
      %v6223 = vpack.c.b16 %v6192, %v6191
      %v6224 = vpack.c.b16 %v6194, %v6193
      %v6225 = vpack.c.b16 %v6196, %v6195
      %v6226 = vpack.c.b16 %v6198, %v6197
      %v6227 = vpack.c.b16 %v6200, %v6199
      %v6228 = vpack.c.b16 %v6202, %v6201
      %v6229 = vpack.c.b16 %v6204, %v6203
      %v6230 = vpack.c.b16 %v6206, %v6205
      %v6231 = vpack.c.b16 %v6208, %v6207
      %v6232 = vpack.c.b16 %v6210, %v6209
      %v6233 = vpack.c.b16 %v6212, %v6211
      %v6234 = vpack.c.b16 %v6214, %v6213
      %v6235 = vpack.c.b16 %v6216, %v6215
      %v6236 = vpack.c.b16 %v6218, %v6217
      %v6237 = vpack.c.b16 %v6220, %v6219
      %v6238 = vpack.c.b16 %v6222, %v6221
      %6255 = vmatprep.subr.bf16.mxu0 0
      %6256 = vmatpush1.bf16.msra.mxu0 %v6223
      %6257 = vmatprep.subr.bf16.mxu0 0
      %6258 = vmatpush1.bf16.msra.mxu0 %v6224
      %6259 = vmatprep.subr.bf16.mxu0 0
      %6260 = vmatpush1.bf16.msra.mxu0 %v6225
      %6261 = vmatprep.subr.bf16.mxu0 0
      %6262 = vmatpush1.bf16.msra.mxu0 %v6226
      %6263 = vmatprep.subr.bf16.mxu0 0
      %6264 = vmatpush1.bf16.msra.mxu0 %v6227
      %6265 = vmatprep.subr.bf16.mxu0 0
      %6266 = vmatpush1.bf16.msra.mxu0 %v6228
      %6267 = vmatprep.subr.bf16.mxu0 0
      %6268 = vmatpush1.bf16.msra.mxu0 %v6229
      %6269 = vmatprep.subr.bf16.mxu0 0
      %6270 = vmatpush1.bf16.msra.mxu0 %v6230
      %6271 = vmatprep.subr.bf16.mxu0 0
      %6272 = vmatpush1.bf16.msra.mxu0 %v6231
      %6273 = vmatprep.subr.bf16.mxu0 0
      %6274 = vmatpush1.bf16.msra.mxu0 %v6232
      %6275 = vmatprep.subr.bf16.mxu0 0
      %6276 = vmatpush1.bf16.msra.mxu0 %v6233
      %6277 = vmatprep.subr.bf16.mxu0 0
      %6278 = vmatpush1.bf16.msra.mxu0 %v6234
      %6279 = vmatprep.subr.bf16.mxu0 0
      %6280 = vmatpush1.bf16.msra.mxu0 %v6235
      %6281 = vmatprep.subr.bf16.mxu0 0
      %6282 = vmatpush1.bf16.msra.mxu0 %v6236
      %6283 = vmatprep.subr.bf16.mxu0 0
      %6284 = vmatpush1.bf16.msra.mxu0 %v6237
      %6285 = vmatprep.subr.bf16.mxu0 0
      %6286 = vmatpush1.bf16.msra.mxu0 %v6238
      %6287 = vmatprep.mubr.bf16.mxu0 %v6111
      %6288 = vmatmul.mubr.bf16.gmra.mrb[0].mxu0 %v6110
      %v6289 = vpop.f32.mrb[0].mxu0
      %v6290 = vadd.f32 %v6157, %v6289
      %v6291 = vpop.f32.mrb[0].mxu0
      %v6292 = vpop.f32.mrb[0].mxu0
      %v6293 = vpop.f32.mrb[0].mxu0
      %6294 = vmatprep.mubr.bf16.mxu0 %v6113
      %6295 = vmatmul.mubr.bf16.gmra.mrb[0].mxu0 %v6112
      %v6296 = vpop.f32.mrb[0].mxu0
      %v6297 = vpop.f32.mrb[0].mxu0
      %v6298 = vpop.f32.mrb[0].mxu0
      %v6299 = vpop.f32.mrb[0].mxu0
      %6300 = vmatprep.mubr.bf16.mxu0 %v6115
      %6301 = vmatmul.mubr.bf16.gmra.mrb[0].mxu0 %v6114
      %v6302 = vpop.f32.mrb[0].mxu0
      %v6303 = vadd.f32 %v6157, %v6302
      %v6304 = vpop.f32.mrb[0].mxu0
      %v6305 = vpop.f32.mrb[0].mxu0
      %v6306 = vpop.f32.mrb[0].mxu0
      %6307 = vmatprep.mubr.bf16.mxu0 %v6117
      %6308 = vmatmul.mubr.bf16.gmra.mrb[0].mxu0 %v6116
      %v6309 = vpop.f32.mrb[0].mxu0
      %v6310 = vpop.f32.mrb[0].mxu0
      %v6311 = vpop.f32.mrb[0].mxu0
      %v6312 = vpop.f32.mrb[0].mxu0
      %6313 = vdwg.mxu0
      %v6314 = vadd.f32 %v5655, %v6290
      %v6315 = vadd.f32 %v5659, %v6303
      %v6317 = vrot.slane %v6315, 7
      %vm6319 = vcmask 1040384
      %v6320 = vsel %vm6319, %v6314, %v6317
      %v6321 = vld [vmem:[%s17] sm:$0x1]
      %v6322 = vld [vmem:[%s18] sm:$0x1]
      %vm6323 = vcmask 517120
      %v6324 = vsel %vm6323, %v6320, 0.0
      %6325 = vadd.xlane.f32.xlu0 %v6324
      %v6326 = vpop.xlane.xlu0 %6325
      %v6327 = vmul.f32 %v6326, %v914
      %v6328 = vmul.f32 %v6320, %v6320
      %v6329 = vsel %vm6323, %v6328, 0.0
      %6330 = vadd.xlane.f32.xlu0 %v6329
      %v6331 = vpop.xlane.xlu0 %6330
      %v6332 = vmul.f32 %v6331, %v914
      %v6333 = vmul.f32 %v6327, %v6327
      %v6334 = vsub.f32 %v6332, %v6333
      %v6335 = vsub.f32 %v6320, %v6327
      %v6336 = vadd.f32 %v6334, 1e-05
      %v6337 = vrsqrt.pop %v6336
      %v6338 = vmul.f32 %v6335, %v6337
      %v6340 = vlaneseq
      %v6341 = vshrl.u32 %v6340, 7
      %v6342 = vsub.s32 0, %v6341
      %v6343 = vrot.slane %v6321, %v6342
      %v6345 = vmul.f32 %v6338, %v6343
      %v6347 = vlaneseq
      %v6348 = vshrl.u32 %v6347, 7
      %v6349 = vsub.s32 0, %v6348
      %v6350 = vrot.slane %v6322, %v6349
      %v6352 = vadd.f32 %v6345, %v6350
      %v6353 = vpack.c.bf16 %v6352, %v6352
      %v6354 = vld [vmem:[%s19] sm:$0xf]
      %v6355 = vld [vmem:[%s19 + $0x4] sm:$0xf]
      %v6356 = vld [vmem:[%s19 + $0x8] sm:$0xf]
      %v6357 = vld [vmem:[%s19 + $0xc] sm:$0xf]
      %v6358 = vld [vmem:[%s19 + $0x10] sm:$0xf]
      %v6359 = vld [vmem:[%s19 + $0x14] sm:$0xf]
      %v6360 = vld [vmem:[%s19 + $0x18] sm:$0xf]
      %v6361 = vld [vmem:[%s19 + $0x1c] sm:$0xf]
      %v6362 = vld [vmem:[%s20] sm:$0x1]
      %v6364 = vlaneseq
      %v6365 = vshrl.u32 %v6364, 7
      %v6366 = vsub.s32 0, %v6365
      %v6367 = vrot.slane %v6362, %v6366
      %v6377 = vunpack.c.l.b16 %v6354
      %v6378 = vunpack.c.l.b16 %v6355
      %v6379 = vunpack.c.l.b16 %v6356
      %v6380 = vunpack.c.l.b16 %v6357
      %v6381 = vunpack.c.l.b16 %v6358
      %v6382 = vunpack.c.l.b16 %v6359
      %v6383 = vunpack.c.l.b16 %v6360
      %v6384 = vunpack.c.l.b16 %v6361
      %v6385 = vpack.c.b16 %v6378, %v6377
      %v6386 = vpack.c.b16 %v6380, %v6379
      %v6387 = vpack.c.b16 %v6382, %v6381
      %v6388 = vpack.c.b16 %v6384, %v6383
      %v6394 = vsel %vm810, %v6353, 0
      %6396 = vmatprep.subr.bf16.mxu0 0
      %6397 = vmatpush1.bf16.msra.mxu0 %v6385
      %6398 = vmatprep.subr.bf16.mxu0 0
      %6399 = vmatpush1.bf16.msra.mxu0 %v6386
      %6400 = vmatprep.subr.bf16.mxu0 0
      %6401 = vmatpush1.bf16.msra.mxu0 %v6387
      %6402 = vmatprep.subr.bf16.mxu0 0
      %6403 = vmatpush1.bf16.msra.mxu0 %v6388
      %6404 = vmatprep.subr.bf16.mxu0 0
      %6405 = vmatpush1.bf16.msra.mxu0 0
      %6406 = vmatprep.subr.bf16.mxu0 0
      %6407 = vmatpush1.bf16.msra.mxu0 0
      %6408 = vmatprep.subr.bf16.mxu0 0
      %6409 = vmatpush1.bf16.msra.mxu0 0
      %6410 = vmatprep.subr.bf16.mxu0 0
      %6411 = vmatpush1.bf16.msra.mxu0 0
      %6412 = vmatprep.subr.bf16.mxu0 0
      %6413 = vmatpush1.bf16.msra.mxu0 0
      %6414 = vmatprep.subr.bf16.mxu0 0
      %6415 = vmatpush1.bf16.msra.mxu0 0
      %6416 = vmatprep.subr.bf16.mxu0 0
      %6417 = vmatpush1.bf16.msra.mxu0 0
      %6418 = vmatprep.subr.bf16.mxu0 0
      %6419 = vmatpush1.bf16.msra.mxu0 0
      %6420 = vmatprep.subr.bf16.mxu0 0
      %6421 = vmatpush1.bf16.msra.mxu0 0
      %6422 = vmatprep.subr.bf16.mxu0 0
      %6423 = vmatpush1.bf16.msra.mxu0 0
      %6424 = vmatprep.subr.bf16.mxu0 0
      %6425 = vmatpush1.bf16.msra.mxu0 0
      %6426 = vmatprep.subr.bf16.mxu0 0
      %6427 = vmatpush1.bf16.msra.mxu0 0
      %6428 = vmatprep.mubr.bf16.mxu0 0
      %6429 = vmatmul.mubr.bf16.gmra.mrb[0].mxu0 %v6394
      %v6430 = vpop.f32.mrb[0].mxu0
      %v6431 = vadd.f32 %v6367, %v6430
      %v6432 = vpop.f32.mrb[0].mxu0
      %v6433 = vpop.f32.mrb[0].mxu0
      %v6434 = vpop.f32.mrb[0].mxu0
      %6435 = vdwg.mxu0
      %6436 = vst [vmem:[%s659] sm:$0x1] %v6431
      %s6437 = scalar_lea.vmem %s659, 1
      %6438 = vst [vmem:[%s6437 - $0x1] sm:$0x2] %v6431
      %s6439 = smul.u32 2, %s32
      %p6440 = scmp.lt.s32.totalorder %s6439, 3
      %s6441 = scalar_select %p6440, %s6439, 3
      %s6442 = scalar_lea.vmem %s21, %s6441
      // Predicated region
      $region105: #{forward.1} parent=103 // pred_check
        %p6443 = pneg %p496
      $region106: #{forward.1} parent=103 // pred_check_branch
        %6445 = sbr.rel (%p6443) target = $region108
      $region107: #{forward.1} parent=103 // pred_region
        %s6446 = smul.u32 2, %s32
      $region108: #{forward.1} parent=103 // pred_fallthru
        _
    $region104: #{forward.1} parent=5 // pred_fallthru
      _
    %p6447 = scmp.le.s32.totalorder 2, %s27
    // Predicated region
    $region109: #{forward.1} parent=5 // pred_check
      %p6448 = pneg %p6447
    $region110: #{forward.1} parent=5 // pred_check_branch
      %6450 = sbr.rel (%p6448) target = $region112
    $region111: #{forward.1} parent=5 // pred_region
      %s6451 = ssub.s32 %s27, 2
      // Predicated region
      $region113: #{forward.1} parent=111 // pred_check
        %p6452 = pneg %p502
      $region114: #{forward.1} parent=111 // pred_check_branch
        %6454 = sbr.rel (%p6452) target = $region116
      $region115: #{forward.1} parent=111 // pred_region
        %s6455 = smul.u32 2, %s33
        %p6456 = scmp.lt.s32.totalorder %s6455, 3
        %s6457 = scalar_select %p6456, %s6455, 3
        %s6458 = scalar_lea.vmem %s21, %s6457
      $region116: #{forward.1} parent=111 // pred_fallthru
        _
    $region112: #{forward.1} parent=5 // pred_fallthru
      _
  $region6: #{forward.1} parent=0 // loop_footer
    %s31 = sadd.s32 1, %s27
  $region7: #{forward.1} parent=0 // loop_footer_branch
    %26 = sbr.rel target = $region3
  $region8: #{forward.1} parent=0 // loop_exit
    _

</llo_original>
